<compile_context>
chip_gen: v7x
topology: tpu7x:2x2x1
jax: 0.10.0
libtpu: 0.0.40
codegen_flags: <defaults>
</compile_context>

<pallas_src>
import math

import numpy as np
import jax
import jax.numpy as jnp
from jax import lax
from jax.experimental import pallas as pl
from jax.experimental.pallas import tpu as pltpu

# ----------------------------- configuration -----------------------------
OBS_DIM = 16
HIDDEN = 32
NUM_HEADS = 4
HEAD_DIM = HIDDEN // NUM_HEADS
CONTEXT = 8                # per-modality context_size
SEQ = 3 * CONTEXT          # GPT2 context (rtg / state / action interleaved)
NUM_LAYERS = 2
ACTION_SIZE = 6
ACT_ROWS_PAD = 8           # action embedding table padded to 8 rows
OUT_PAD = 128              # lane-dense padded logits width
MAX_TIMESTEP = 32
LN_EPS = 0.003
BATCH = 2
BT = BATCH * CONTEXT       # flattened (batch, context) rows = 16
BSEQ = BATCH * SEQ         # flattened GPT2 tokens = 48
NEG_INF = -1e30
SCALE = 1.0 / math.sqrt(HEAD_DIM)


def _layer_norm(x, g, b):
    # torch.nn.LayerNorm semantics (biased variance), eps = 0.003
    mu = jnp.mean(x, axis=-1, keepdims=True)
    var = jnp.mean((x - mu) ** 2, axis=-1, keepdims=True)
    return (x - mu) * lax.rsqrt(var + LN_EPS) * g + b


# ------------------------------- fused kernel -----------------------------
def fused_forward_kernel(
    flat_x_ref, ts_ref, act_ref, rtg_ref,
    enc_w_ref, enc_b_ref, pos_tbl_ref, act_tbl_ref, rtg_w_ref, rtg_b_ref,
    p_rtg_ref, p_state_ref, p_act_ref, sel_state_ref, mask_ref,
    w_qkv_ref, b_qkv_ref, wp_ref, bp_ref,
    ln1g_ref, ln1b_ref, ln2g_ref, ln2b_ref,
    w1_ref, b1_ref, w2_ref, b2_ref,
    ln_f_g_ref, ln_f_b_ref, out_w_ref,
    probs_ref, logits_ref,
):
    f32 = jnp.float32

    # ---- embedding glue (all in VMEM) ------------------------------------
    # Encoder: VectorEncoder-style Linear + ReLU (d3rlpy Encoder is abstract).
    state_feat = jnp.maximum(
        jnp.dot(flat_x_ref[...], enc_w_ref[...], preferred_element_type=f32)
        + enc_b_ref[...], 0.0)                                       # (BT, H)

    # SimplePositionEncoding / action embedding as one-hot matmuls.
    t_oh = (ts_ref[...] ==
            lax.broadcasted_iota(jnp.int32, (BT, MAX_TIMESTEP), 1)).astype(f32)
    pos_emb = jnp.dot(t_oh, pos_tbl_ref[...], preferred_element_type=f32)

    a_oh = (act_ref[...] ==
            lax.broadcasted_iota(jnp.int32, (BT, ACT_ROWS_PAD), 1)).astype(f32)
    act_emb = jnp.dot(a_oh, act_tbl_ref[...], preferred_element_type=f32) + pos_emb

    rtg_emb = rtg_ref[...] * rtg_w_ref[...] + rtg_b_ref[...] + pos_emb
    state_emb = state_feat + pos_emb

    # Interleave (rtg_t, state_t, action_t) via constant scatter matrices.
    h = (jnp.dot(p_rtg_ref[...], rtg_emb, preferred_element_type=f32)
         + jnp.dot(p_state_ref[...], state_emb, preferred_element_type=f32)
         + jnp.dot(p_act_ref[...], act_emb, preferred_element_type=f32))  # (BSEQ, H)

    mask_add = mask_ref[...]                                         # (BSEQ, BSEQ)

    # ---- GPT2 blocks (static unroll; weights stay resident) --------------
    for l in range(NUM_LAYERS):
        nx = _layer_norm(h, ln1g_ref[l], ln1b_ref[l])
        qkv = jnp.dot(nx, w_qkv_ref[l], preferred_element_type=f32) + b_qkv_ref[l]
        wp_l = wp_ref[l]
        attn_out = jnp.zeros((BSEQ, HIDDEN), f32) + bp_ref[l]
        for hd in range(NUM_HEADS):
            lo = hd * HEAD_DIM
            qh = qkv[:, lo:lo + HEAD_DIM]
            kh = qkv[:, HIDDEN + lo:HIDDEN + lo + HEAD_DIM]
            vh = qkv[:, 2 * HIDDEN + lo:2 * HIDDEN + lo + HEAD_DIM]
            att = lax.dot_general(qh, kh, (((1,), (1,)), ((), ())),
                                  preferred_element_type=f32) * SCALE
            att = att + mask_add
            att = att - jnp.max(att, axis=-1, keepdims=True)
            e = jnp.exp(att)
            p = e * pl.reciprocal(jnp.sum(e, axis=-1, keepdims=True), approx=True)
            ho = jnp.dot(p, vh, preferred_element_type=f32)          # (BSEQ, HEAD_DIM)
            # fold head output straight into the projection (no concat)
            attn_out = attn_out + jnp.dot(ho, wp_l[lo:lo + HEAD_DIM, :],
                                          preferred_element_type=f32)
        h = h + attn_out

        nx = _layer_norm(h, ln2g_ref[l], ln2b_ref[l])
        mid = jax.nn.gelu(jnp.dot(nx, w1_ref[l], preferred_element_type=f32)
                          + b1_ref[l])
        h = h + jnp.dot(mid, w2_ref[l], preferred_element_type=f32) + b2_ref[l]

    h = _layer_norm(h, ln_f_g_ref[...], ln_f_b_ref[...])

    # ---- output head on state-position tokens ----------------------------
    state_h = jnp.dot(sel_state_ref[...], h, preferred_element_type=f32)   # (BT, H)
    logits = jnp.dot(state_h, out_w_ref[...], preferred_element_type=f32)  # (BT, OUT_PAD)

    valid = lax.broadcasted_iota(jnp.int32, (BT, OUT_PAD), 1) < ACTION_SIZE
    ml = jnp.where(valid, logits, NEG_INF)
    m = jnp.max(ml, axis=-1, keepdims=True)
    e = jnp.exp(ml - m)
    probs = e / jnp.sum(e, axis=-1, keepdims=True)

    probs_ref[...] = probs
    logits_ref[...] = logits


# ------------------------------ wrapper -----------------------------------
def _vmem_spec():
    return pl.BlockSpec(memory_space=pltpu.MemorySpace.VMEM)


def _scatter_matrices():
    # P_m[b*SEQ + 3*t + m, b*T + t] = 1 for modality m in {0: rtg, 1: state, 2: act}
    mats = np.zeros((3, BSEQ, BT), np.float32)
    for b in range(BATCH):
        for t in range(CONTEXT):
            src = b * CONTEXT + t
            for m in range(3):
                mats[m, b * SEQ + 3 * t + m, src] = 1.0
    return (jnp.asarray(mats[0]), jnp.asarray(mats[1]), jnp.asarray(mats[2]),
            jnp.asarray(mats[1].T))            # sel_state = P_state^T


def _attention_mask():
    # block-diagonal (per batch element) causal additive mask, hoisted to host
    idx = np.arange(BSEQ)
    same = (idx[:, None] // SEQ) == (idx[None, :] // SEQ)
    causal = idx[None, :] <= idx[:, None]
    return jnp.asarray(np.where(same & causal, 0.0, NEG_INF).astype(np.float32))


def forward(params, x, action, return_to_go, timesteps):
    batch, context = return_to_go.shape[:2]
    assert batch == BATCH and context == CONTEXT

    flat_x = x.reshape(BT, OBS_DIM).astype(jnp.float32)
    ts = timesteps.reshape(BT, 1).astype(jnp.int32)
    act = action.reshape(BT, 1).astype(jnp.int32)
    rtg = return_to_go.reshape(BT, 1).astype(jnp.float32)

    p_rtg, p_state, p_act, sel_state = _scatter_matrices()
    mask_add = _attention_mask()

    act_tbl = jnp.zeros((ACT_ROWS_PAD, HIDDEN), jnp.float32)
    act_tbl = act_tbl.at[:ACTION_SIZE].set(params["act_table"])
    out_w_pad = jnp.zeros((HIDDEN, OUT_PAD), jnp.float32)
    out_w_pad = out_w_pad.at[:, :ACTION_SIZE].set(params["out_w"])

    args = (flat_x, ts, act, rtg,
            params["enc_w"], params["enc_b"], params["pos_table"], act_tbl,
            params["rtg_w"], params["rtg_b"],
            p_rtg, p_state, p_act, sel_state, mask_add,
            params["w_qkv"], params["b_qkv"], params["wp"], params["bp"],
            params["ln1g"], params["ln1b"], params["ln2g"], params["ln2b"],
            params["w1"], params["b1"], params["w2"], params["b2"],
            params["ln_f_g"], params["ln_f_b"], out_w_pad)

    probs_pad, logits_pad = pl.pallas_call(
        fused_forward_kernel,
        out_shape=(jax.ShapeDtypeStruct((BT, OUT_PAD), jnp.float32),
                   jax.ShapeDtypeStruct((BT, OUT_PAD), jnp.float32)),
        in_specs=[_vmem_spec() for _ in args],
        out_specs=(_vmem_spec(), _vmem_spec()),
    )(*args)

    probs = probs_pad.reshape(batch, context, OUT_PAD)[..., :ACTION_SIZE]
    logits = logits_pad.reshape(batch, context, OUT_PAD)[..., :ACTION_SIZE]
    return probs, logits


# --------------------------- parameter init -------------------------------
def init_params(key):
    ks = jax.random.split(key, 9)

    def w(k, shape, scale=0.02):
        return (scale * jax.random.normal(k, shape)).astype(jnp.float32)

    return {
        "enc_w": w(ks[0], (OBS_DIM, HIDDEN)),
        "enc_b": jnp.zeros((1, HIDDEN), jnp.float32),
        "pos_table": w(ks[1], (MAX_TIMESTEP, HIDDEN)),
        "act_table": w(ks[2], (ACTION_SIZE, HIDDEN)),
        "rtg_w": w(ks[3], (1, HIDDEN)),
        "rtg_b": jnp.zeros((1, HIDDEN), jnp.float32),
        "ln_f_g": jnp.ones((1, HIDDEN), jnp.float32),
        "ln_f_b": jnp.zeros((1, HIDDEN), jnp.float32),
        "out_w": w(ks[4], (HIDDEN, ACTION_SIZE)),     # Linear(H, A, bias=False)
        # per-layer weights stacked along a leading layer axis, QKV fused
        "w_qkv": w(ks[5], (NUM_LAYERS, HIDDEN, 3 * HIDDEN)),
        "b_qkv": jnp.zeros((NUM_LAYERS, 1, 3 * HIDDEN), jnp.float32),
        "wp": w(ks[6], (NUM_LAYERS, HIDDEN, HIDDEN)),
        "bp": jnp.zeros((NUM_LAYERS, 1, HIDDEN), jnp.float32),
        "ln1g": jnp.ones((NUM_LAYERS, 1, HIDDEN), jnp.float32),
        "ln1b": jnp.zeros((NUM_LAYERS, 1, HIDDEN), jnp.float32),
        "ln2g": jnp.ones((NUM_LAYERS, 1, HIDDEN), jnp.float32),
        "ln2b": jnp.zeros((NUM_LAYERS, 1, HIDDEN), jnp.float32),
        "w1": w(ks[7], (NUM_LAYERS, HIDDEN, 4 * HIDDEN)),
        "b1": jnp.zeros((NUM_LAYERS, 1, 4 * HIDDEN), jnp.float32),
        "w2": w(ks[8], (NUM_LAYERS, 4 * HIDDEN, HIDDEN)),
        "b2": jnp.zeros((NUM_LAYERS, 1, HIDDEN), jnp.float32),
    }


# --------------------------------- main ------------------------------------
if __name__ == "__main__":
    key = jax.random.PRNGKey(0)
    kx, ka, kr, kt, kp = jax.random.split(key, 5)

    x = jax.random.normal(kx, (BATCH, CONTEXT, OBS_DIM), jnp.float32)
    action = jax.random.randint(ka, (BATCH, CONTEXT), 0, ACTION_SIZE)
    return_to_go = jax.random.normal(kr, (BATCH, CONTEXT, 1), jnp.float32)
    timesteps = jax.random.randint(kt, (BATCH, CONTEXT), 0, MAX_TIMESTEP)

    params = init_params(kp)

    probs, logits = forward(params, x, action, return_to_go, timesteps)
    jax.block_until_ready((probs, logits))

    assert probs.shape == (BATCH, CONTEXT, ACTION_SIZE)
    assert logits.shape == (BATCH, CONTEXT, ACTION_SIZE)
    assert bool(jnp.all(jnp.isfinite(probs))) and bool(jnp.all(jnp.isfinite(logits)))
    # softmax rows sum to 1
    assert bool(jnp.allclose(jnp.sum(probs, axis=-1), 1.0, atol=1e-5))
    print("KERNEL_OK")
</pallas_src>

<mosaic_0001>
module attributes {stable_mosaic.version = 11 : i64} {
  func.func @fused_forward_kernel(%arg0: memref<16x16xf32, #tpu.memory_space<vmem>>, %arg1: memref<16x1xi32, #tpu.memory_space<vmem>>, %arg2: memref<16x1xi32, #tpu.memory_space<vmem>>, %arg3: memref<16x1xf32, #tpu.memory_space<vmem>>, %arg4: memref<16x32xf32, #tpu.memory_space<vmem>>, %arg5: memref<1x32xf32, #tpu.memory_space<vmem>>, %arg6: memref<32x32xf32, #tpu.memory_space<vmem>>, %arg7: memref<8x32xf32, #tpu.memory_space<vmem>>, %arg8: memref<1x32xf32, #tpu.memory_space<vmem>>, %arg9: memref<1x32xf32, #tpu.memory_space<vmem>>, %arg10: memref<48x16xf32, #tpu.memory_space<vmem>>, %arg11: memref<48x16xf32, #tpu.memory_space<vmem>>, %arg12: memref<48x16xf32, #tpu.memory_space<vmem>>, %arg13: memref<16x48xf32, #tpu.memory_space<vmem>>, %arg14: memref<48x48xf32, #tpu.memory_space<vmem>>, %arg15: memref<2x32x96xf32, #tpu.memory_space<vmem>>, %arg16: memref<2x1x96xf32, #tpu.memory_space<vmem>>, %arg17: memref<2x32x32xf32, #tpu.memory_space<vmem>>, %arg18: memref<2x1x32xf32, #tpu.memory_space<vmem>>, %arg19: memref<2x1x32xf32, #tpu.memory_space<vmem>>, %arg20: memref<2x1x32xf32, #tpu.memory_space<vmem>>, %arg21: memref<2x1x32xf32, #tpu.memory_space<vmem>>, %arg22: memref<2x1x32xf32, #tpu.memory_space<vmem>>, %arg23: memref<2x32x128xf32, #tpu.memory_space<vmem>>, %arg24: memref<2x1x128xf32, #tpu.memory_space<vmem>>, %arg25: memref<2x128x32xf32, #tpu.memory_space<vmem>>, %arg26: memref<2x1x32xf32, #tpu.memory_space<vmem>>, %arg27: memref<1x32xf32, #tpu.memory_space<vmem>>, %arg28: memref<1x32xf32, #tpu.memory_space<vmem>>, %arg29: memref<32x128xf32, #tpu.memory_space<vmem>>, %arg30: memref<16x128xf32, #tpu.memory_space<vmem>>, %arg31: memref<16x128xf32, #tpu.memory_space<vmem>>) attributes {dimension_semantics = [], scalar_prefetch = 0 : i64, scratch_operands = 0 : i64, tpu.core_type = #tpu.core_type<tc>} {
    %c0 = arith.constant 0 : index
    %c0_0 = arith.constant 0 : index
    %0 = vector.load %arg0[%c0, %c0_0] : memref<16x16xf32, #tpu.memory_space<vmem>>, vector<16x16xf32>
    %c0_1 = arith.constant 0 : index
    %c0_2 = arith.constant 0 : index
    %1 = vector.load %arg4[%c0_1, %c0_2] : memref<16x32xf32, #tpu.memory_space<vmem>>, vector<16x32xf32>
    %cst = arith.constant dense<0.000000e+00> : vector<16x32xf32>
    %2 = tpu.matmul %0, %1, %cst {dimension_numbers = #tpu.dot_dimension_numbers<[1], [0], [0], [1], [0, 0, 1, 1], [], []>} : vector<16x16xf32>, vector<16x32xf32>, vector<16x32xf32> -> vector<16x32xf32>
    %c0_3 = arith.constant 0 : index
    %c0_4 = arith.constant 0 : index
    %3 = vector.load %arg5[%c0_3, %c0_4] : memref<1x32xf32, #tpu.memory_space<vmem>>, vector<1x32xf32>
    %4 = vector.broadcast %3 : vector<1x32xf32> to vector<16x32xf32>
    %5 = arith.addf %2, %4 : vector<16x32xf32>
    %cst_5 = arith.constant 0.000000e+00 : f32
    %6 = vector.broadcast %cst_5 : f32 to vector<16x32xf32>
    %7 = arith.maximumf %5, %6 : vector<16x32xf32>
    %c0_6 = arith.constant 0 : index
    %c0_7 = arith.constant 0 : index
    %8 = vector.load %arg1[%c0_6, %c0_7] : memref<16x1xi32, #tpu.memory_space<vmem>>, vector<16x1xi32>
    %9 = tpu.iota {dimensions = array<i32: 1>} : vector<16x32xi32>
    %10 = vector.broadcast %8 : vector<16x1xi32> to vector<16x32xi32>
    %11 = arith.cmpi eq, %10, %9 : vector<16x32xi32>
    %12 = arith.extui %11 : vector<16x32xi1> to vector<16x32xi32>
    %13 = arith.sitofp %12 : vector<16x32xi32> to vector<16x32xf32>
    %c0_8 = arith.constant 0 : index
    %c0_9 = arith.constant 0 : index
    %14 = vector.load %arg6[%c0_8, %c0_9] : memref<32x32xf32, #tpu.memory_space<vmem>>, vector<32x32xf32>
    %cst_10 = arith.constant dense<0.000000e+00> : vector<16x32xf32>
    %15 = tpu.matmul %13, %14, %cst_10 {dimension_numbers = #tpu.dot_dimension_numbers<[1], [0], [0], [1], [0, 0, 1, 1], [], []>} : vector<16x32xf32>, vector<32x32xf32>, vector<16x32xf32> -> vector<16x32xf32>
    %c0_11 = arith.constant 0 : index
    %c0_12 = arith.constant 0 : index
    %16 = vector.load %arg2[%c0_11, %c0_12] : memref<16x1xi32, #tpu.memory_space<vmem>>, vector<16x1xi32>
    %17 = tpu.iota {dimensions = array<i32: 1>} : vector<16x8xi32>
    %18 = vector.broadcast %16 : vector<16x1xi32> to vector<16x8xi32>
    %19 = arith.cmpi eq, %18, %17 : vector<16x8xi32>
    %20 = arith.extui %19 : vector<16x8xi1> to vector<16x8xi32>
    %21 = arith.sitofp %20 : vector<16x8xi32> to vector<16x8xf32>
    %c0_13 = arith.constant 0 : index
    %c0_14 = arith.constant 0 : index
    %22 = vector.load %arg7[%c0_13, %c0_14] : memref<8x32xf32, #tpu.memory_space<vmem>>, vector<8x32xf32>
    %cst_15 = arith.constant dense<0.000000e+00> : vector<16x32xf32>
    %23 = tpu.matmul %21, %22, %cst_15 {dimension_numbers = #tpu.dot_dimension_numbers<[1], [0], [0], [1], [0, 0, 1, 1], [], []>} : vector<16x8xf32>, vector<8x32xf32>, vector<16x32xf32> -> vector<16x32xf32>
    %24 = arith.addf %23, %15 : vector<16x32xf32>
    %c0_16 = arith.constant 0 : index
    %c0_17 = arith.constant 0 : index
    %25 = vector.load %arg3[%c0_16, %c0_17] : memref<16x1xf32, #tpu.memory_space<vmem>>, vector<16x1xf32>
    %c0_18 = arith.constant 0 : index
    %c0_19 = arith.constant 0 : index
    %26 = vector.load %arg8[%c0_18, %c0_19] : memref<1x32xf32, #tpu.memory_space<vmem>>, vector<1x32xf32>
    %27 = vector.broadcast %25 : vector<16x1xf32> to vector<16x32xf32>
    %28 = vector.broadcast %26 : vector<1x32xf32> to vector<16x32xf32>
    %29 = arith.mulf %27, %28 : vector<16x32xf32>
    %c0_20 = arith.constant 0 : index
    %c0_21 = arith.constant 0 : index
    %30 = vector.load %arg9[%c0_20, %c0_21] : memref<1x32xf32, #tpu.memory_space<vmem>>, vector<1x32xf32>
    %31 = vector.broadcast %30 : vector<1x32xf32> to vector<16x32xf32>
    %32 = arith.addf %29, %31 : vector<16x32xf32>
    %33 = arith.addf %32, %15 : vector<16x32xf32>
    %34 = arith.addf %7, %15 : vector<16x32xf32>
    %c0_22 = arith.constant 0 : index
    %c0_23 = arith.constant 0 : index
    %35 = vector.load %arg10[%c0_22, %c0_23] : memref<48x16xf32, #tpu.memory_space<vmem>>, vector<48x16xf32>
    %cst_24 = arith.constant dense<0.000000e+00> : vector<48x32xf32>
    %36 = tpu.matmul %35, %33, %cst_24 {dimension_numbers = #tpu.dot_dimension_numbers<[1], [0], [0], [1], [0, 0, 1, 1], [], []>} : vector<48x16xf32>, vector<16x32xf32>, vector<48x32xf32> -> vector<48x32xf32>
    %c0_25 = arith.constant 0 : index
    %c0_26 = arith.constant 0 : index
    %37 = vector.load %arg11[%c0_25, %c0_26] : memref<48x16xf32, #tpu.memory_space<vmem>>, vector<48x16xf32>
    %cst_27 = arith.constant dense<0.000000e+00> : vector<48x32xf32>
    %38 = tpu.matmul %37, %34, %cst_27 {dimension_numbers = #tpu.dot_dimension_numbers<[1], [0], [0], [1], [0, 0, 1, 1], [], []>} : vector<48x16xf32>, vector<16x32xf32>, vector<48x32xf32> -> vector<48x32xf32>
    %39 = arith.addf %36, %38 : vector<48x32xf32>
    %c0_28 = arith.constant 0 : index
    %c0_29 = arith.constant 0 : index
    %40 = vector.load %arg12[%c0_28, %c0_29] : memref<48x16xf32, #tpu.memory_space<vmem>>, vector<48x16xf32>
    %cst_30 = arith.constant dense<0.000000e+00> : vector<48x32xf32>
    %41 = tpu.matmul %40, %24, %cst_30 {dimension_numbers = #tpu.dot_dimension_numbers<[1], [0], [0], [1], [0, 0, 1, 1], [], []>} : vector<48x16xf32>, vector<16x32xf32>, vector<48x32xf32> -> vector<48x32xf32>
    %42 = arith.addf %39, %41 : vector<48x32xf32>
    %c0_31 = arith.constant 0 : index
    %c0_32 = arith.constant 0 : index
    %43 = vector.load %arg14[%c0_31, %c0_32] : memref<48x48xf32, #tpu.memory_space<vmem>>, vector<48x48xf32>
    %c0_33 = arith.constant 0 : index
    %c0_34 = arith.constant 0 : index
    %c0_35 = arith.constant 0 : index
    %44 = vector.load %arg19[%c0_33, %c0_34, %c0_35] : memref<2x1x32xf32, #tpu.memory_space<vmem>>, vector<1x1x32xf32>
    %45 = vector.shape_cast %44 : vector<1x1x32xf32> to vector<1x32xf32>
    %c0_36 = arith.constant 0 : index
    %c0_37 = arith.constant 0 : index
    %c0_38 = arith.constant 0 : index
    %46 = vector.load %arg20[%c0_36, %c0_37, %c0_38] : memref<2x1x32xf32, #tpu.memory_space<vmem>>, vector<1x1x32xf32>
    %47 = vector.shape_cast %46 : vector<1x1x32xf32> to vector<1x32xf32>
    %cst_39 = arith.constant dense<0.000000e+00> : vector<48xf32>
    %48 = vector.multi_reduction <add>, %42, %cst_39 [1] : vector<48x32xf32> to vector<48xf32>
    %49 = vector.shape_cast %48 : vector<48xf32> to vector<48x1xf32>
    %cst_40 = arith.constant 3.200000e+01 : f32
    %50 = vector.broadcast %cst_40 : f32 to vector<48x1xf32>
    %51 = arith.divf %49, %50 : vector<48x1xf32>
    %52 = vector.broadcast %51 : vector<48x1xf32> to vector<48x32xf32>
    %53 = arith.subf %42, %52 : vector<48x32xf32>
    %54 = arith.mulf %53, %53 : vector<48x32xf32>
    %cst_41 = arith.constant dense<0.000000e+00> : vector<48xf32>
    %55 = vector.multi_reduction <add>, %54, %cst_41 [1] : vector<48x32xf32> to vector<48xf32>
    %56 = vector.shape_cast %55 : vector<48xf32> to vector<48x1xf32>
    %cst_42 = arith.constant 3.200000e+01 : f32
    %57 = vector.broadcast %cst_42 : f32 to vector<48x1xf32>
    %58 = arith.divf %56, %57 : vector<48x1xf32>
    %59 = vector.broadcast %51 : vector<48x1xf32> to vector<48x32xf32>
    %60 = arith.subf %42, %59 : vector<48x32xf32>
    %cst_43 = arith.constant 3.000000e-03 : f32
    %61 = vector.broadcast %cst_43 : f32 to vector<48x1xf32>
    %62 = arith.addf %58, %61 : vector<48x1xf32>
    %63 = math.rsqrt %62 : vector<48x1xf32>
    %64 = vector.broadcast %63 : vector<48x1xf32> to vector<48x32xf32>
    %65 = arith.mulf %60, %64 : vector<48x32xf32>
    %66 = vector.broadcast %45 : vector<1x32xf32> to vector<48x32xf32>
    %67 = arith.mulf %65, %66 : vector<48x32xf32>
    %68 = vector.broadcast %47 : vector<1x32xf32> to vector<48x32xf32>
    %69 = arith.addf %67, %68 : vector<48x32xf32>
    %c0_44 = arith.constant 0 : index
    %c0_45 = arith.constant 0 : index
    %c0_46 = arith.constant 0 : index
    %70 = vector.load %arg15[%c0_44, %c0_45, %c0_46] : memref<2x32x96xf32, #tpu.memory_space<vmem>>, vector<1x32x96xf32>
    %71 = vector.shape_cast %70 : vector<1x32x96xf32> to vector<32x96xf32>
    %cst_47 = arith.constant dense<0.000000e+00> : vector<48x96xf32>
    %72 = tpu.matmul %69, %71, %cst_47 {dimension_numbers = #tpu.dot_dimension_numbers<[1], [0], [0], [1], [0, 0, 1, 1], [], []>} : vector<48x32xf32>, vector<32x96xf32>, vector<48x96xf32> -> vector<48x96xf32>
    %c0_48 = arith.constant 0 : index
    %c0_49 = arith.constant 0 : index
    %c0_50 = arith.constant 0 : index
    %73 = vector.load %arg16[%c0_48, %c0_49, %c0_50] : memref<2x1x96xf32, #tpu.memory_space<vmem>>, vector<1x1x96xf32>
    %74 = vector.shape_cast %73 : vector<1x1x96xf32> to vector<1x96xf32>
    %75 = vector.broadcast %74 : vector<1x96xf32> to vector<48x96xf32>
    %76 = arith.addf %72, %75 : vector<48x96xf32>
    %c0_51 = arith.constant 0 : index
    %c0_52 = arith.constant 0 : index
    %c0_53 = arith.constant 0 : index
    %77 = vector.load %arg17[%c0_51, %c0_52, %c0_53] : memref<2x32x32xf32, #tpu.memory_space<vmem>>, vector<1x32x32xf32>
    %78 = vector.shape_cast %77 : vector<1x32x32xf32> to vector<32x32xf32>
    %cst_54 = arith.constant 0.000000e+00 : f32
    %79 = vector.broadcast %cst_54 : f32 to vector<48x32xf32>
    %c0_55 = arith.constant 0 : index
    %c0_56 = arith.constant 0 : index
    %c0_57 = arith.constant 0 : index
    %80 = vector.load %arg18[%c0_55, %c0_56, %c0_57] : memref<2x1x32xf32, #tpu.memory_space<vmem>>, vector<1x1x32xf32>
    %81 = vector.shape_cast %80 : vector<1x1x32xf32> to vector<1x32xf32>
    %82 = vector.broadcast %81 : vector<1x32xf32> to vector<48x32xf32>
    %83 = arith.addf %79, %82 : vector<48x32xf32>
    %84 = vector.extract_strided_slice %76 {offsets = [0, 0], sizes = [48, 8], strides = [1, 1]} : vector<48x96xf32> to vector<48x8xf32>
    %85 = vector.extract_strided_slice %76 {offsets = [0, 32], sizes = [48, 8], strides = [1, 1]} : vector<48x96xf32> to vector<48x8xf32>
    %86 = vector.extract_strided_slice %76 {offsets = [0, 64], sizes = [48, 8], strides = [1, 1]} : vector<48x96xf32> to vector<48x8xf32>
    %cst_58 = arith.constant dense<0.000000e+00> : vector<48x48xf32>
    %87 = tpu.matmul %84, %85, %cst_58 {dimension_numbers = #tpu.dot_dimension_numbers<[1], [1], [0], [0], [0, 0, 1, 0], [], []>} : vector<48x8xf32>, vector<48x8xf32>, vector<48x48xf32> -> vector<48x48xf32>
    %cst_59 = arith.constant 0.353553385 : f32
    %88 = vector.broadcast %cst_59 : f32 to vector<48x48xf32>
    %89 = arith.mulf %87, %88 : vector<48x48xf32>
    %90 = arith.addf %89, %43 : vector<48x48xf32>
    %cst_60 = arith.constant dense<0xFF800000> : vector<48xf32>
    %91 = vector.multi_reduction <maximumf>, %90, %cst_60 [1] : vector<48x48xf32> to vector<48xf32>
    %92 = vector.shape_cast %91 : vector<48xf32> to vector<48x1xf32>
    %93 = vector.broadcast %92 : vector<48x1xf32> to vector<48x48xf32>
    %94 = arith.subf %90, %93 : vector<48x48xf32>
    %95 = math.exp %94 : vector<48x48xf32>
    %cst_61 = arith.constant dense<0.000000e+00> : vector<48xf32>
    %96 = vector.multi_reduction <add>, %95, %cst_61 [1] : vector<48x48xf32> to vector<48xf32>
    %97 = vector.shape_cast %96 : vector<48xf32> to vector<48x1xf32>
    %98 = tpu.reciprocal %97 {approx = true} : vector<48x1xf32> -> vector<48x1xf32>
    %99 = vector.broadcast %98 : vector<48x1xf32> to vector<48x48xf32>
    %100 = arith.mulf %95, %99 : vector<48x48xf32>
    %cst_62 = arith.constant dense<0.000000e+00> : vector<48x8xf32>
    %101 = tpu.matmul %100, %86, %cst_62 {dimension_numbers = #tpu.dot_dimension_numbers<[1], [0], [0], [1], [0, 0, 1, 1], [], []>} : vector<48x48xf32>, vector<48x8xf32>, vector<48x8xf32> -> vector<48x8xf32>
    %102 = vector.extract_strided_slice %78 {offsets = [0, 0], sizes = [8, 32], strides = [1, 1]} : vector<32x32xf32> to vector<8x32xf32>
    %cst_63 = arith.constant dense<0.000000e+00> : vector<48x32xf32>
    %103 = tpu.matmul %101, %102, %cst_63 {dimension_numbers = #tpu.dot_dimension_numbers<[1], [0], [0], [1], [0, 0, 1, 1], [], []>} : vector<48x8xf32>, vector<8x32xf32>, vector<48x32xf32> -> vector<48x32xf32>
    %104 = arith.addf %83, %103 : vector<48x32xf32>
    %105 = vector.extract_strided_slice %76 {offsets = [0, 8], sizes = [48, 8], strides = [1, 1]} : vector<48x96xf32> to vector<48x8xf32>
    %106 = vector.extract_strided_slice %76 {offsets = [0, 40], sizes = [48, 8], strides = [1, 1]} : vector<48x96xf32> to vector<48x8xf32>
    %107 = vector.extract_strided_slice %76 {offsets = [0, 72], sizes = [48, 8], strides = [1, 1]} : vector<48x96xf32> to vector<48x8xf32>
    %cst_64 = arith.constant dense<0.000000e+00> : vector<48x48xf32>
    %108 = tpu.matmul %105, %106, %cst_64 {dimension_numbers = #tpu.dot_dimension_numbers<[1], [1], [0], [0], [0, 0, 1, 0], [], []>} : vector<48x8xf32>, vector<48x8xf32>, vector<48x48xf32> -> vector<48x48xf32>
    %cst_65 = arith.constant 0.353553385 : f32
    %109 = vector.broadcast %cst_65 : f32 to vector<48x48xf32>
    %110 = arith.mulf %108, %109 : vector<48x48xf32>
    %111 = arith.addf %110, %43 : vector<48x48xf32>
    %cst_66 = arith.constant dense<0xFF800000> : vector<48xf32>
    %112 = vector.multi_reduction <maximumf>, %111, %cst_66 [1] : vector<48x48xf32> to vector<48xf32>
    %113 = vector.shape_cast %112 : vector<48xf32> to vector<48x1xf32>
    %114 = vector.broadcast %113 : vector<48x1xf32> to vector<48x48xf32>
    %115 = arith.subf %111, %114 : vector<48x48xf32>
    %116 = math.exp %115 : vector<48x48xf32>
    %cst_67 = arith.constant dense<0.000000e+00> : vector<48xf32>
    %117 = vector.multi_reduction <add>, %116, %cst_67 [1] : vector<48x48xf32> to vector<48xf32>
    %118 = vector.shape_cast %117 : vector<48xf32> to vector<48x1xf32>
    %119 = tpu.reciprocal %118 {approx = true} : vector<48x1xf32> -> vector<48x1xf32>
    %120 = vector.broadcast %119 : vector<48x1xf32> to vector<48x48xf32>
    %121 = arith.mulf %116, %120 : vector<48x48xf32>
    %cst_68 = arith.constant dense<0.000000e+00> : vector<48x8xf32>
    %122 = tpu.matmul %121, %107, %cst_68 {dimension_numbers = #tpu.dot_dimension_numbers<[1], [0], [0], [1], [0, 0, 1, 1], [], []>} : vector<48x48xf32>, vector<48x8xf32>, vector<48x8xf32> -> vector<48x8xf32>
    %123 = vector.extract_strided_slice %78 {offsets = [8, 0], sizes = [8, 32], strides = [1, 1]} : vector<32x32xf32> to vector<8x32xf32>
    %cst_69 = arith.constant dense<0.000000e+00> : vector<48x32xf32>
    %124 = tpu.matmul %122, %123, %cst_69 {dimension_numbers = #tpu.dot_dimension_numbers<[1], [0], [0], [1], [0, 0, 1, 1], [], []>} : vector<48x8xf32>, vector<8x32xf32>, vector<48x32xf32> -> vector<48x32xf32>
    %125 = arith.addf %104, %124 : vector<48x32xf32>
    %126 = vector.extract_strided_slice %76 {offsets = [0, 16], sizes = [48, 8], strides = [1, 1]} : vector<48x96xf32> to vector<48x8xf32>
    %127 = vector.extract_strided_slice %76 {offsets = [0, 48], sizes = [48, 8], strides = [1, 1]} : vector<48x96xf32> to vector<48x8xf32>
    %128 = vector.extract_strided_slice %76 {offsets = [0, 80], sizes = [48, 8], strides = [1, 1]} : vector<48x96xf32> to vector<48x8xf32>
    %cst_70 = arith.constant dense<0.000000e+00> : vector<48x48xf32>
    %129 = tpu.matmul %126, %127, %cst_70 {dimension_numbers = #tpu.dot_dimension_numbers<[1], [1], [0], [0], [0, 0, 1, 0], [], []>} : vector<48x8xf32>, vector<48x8xf32>, vector<48x48xf32> -> vector<48x48xf32>
    %cst_71 = arith.constant 0.353553385 : f32
    %130 = vector.broadcast %cst_71 : f32 to vector<48x48xf32>
    %131 = arith.mulf %129, %130 : vector<48x48xf32>
    %132 = arith.addf %131, %43 : vector<48x48xf32>
    %cst_72 = arith.constant dense<0xFF800000> : vector<48xf32>
    %133 = vector.multi_reduction <maximumf>, %132, %cst_72 [1] : vector<48x48xf32> to vector<48xf32>
    %134 = vector.shape_cast %133 : vector<48xf32> to vector<48x1xf32>
    %135 = vector.broadcast %134 : vector<48x1xf32> to vector<48x48xf32>
    %136 = arith.subf %132, %135 : vector<48x48xf32>
    %137 = math.exp %136 : vector<48x48xf32>
    %cst_73 = arith.constant dense<0.000000e+00> : vector<48xf32>
    %138 = vector.multi_reduction <add>, %137, %cst_73 [1] : vector<48x48xf32> to vector<48xf32>
    %139 = vector.shape_cast %138 : vector<48xf32> to vector<48x1xf32>
    %140 = tpu.reciprocal %139 {approx = true} : vector<48x1xf32> -> vector<48x1xf32>
    %141 = vector.broadcast %140 : vector<48x1xf32> to vector<48x48xf32>
    %142 = arith.mulf %137, %141 : vector<48x48xf32>
    %cst_74 = arith.constant dense<0.000000e+00> : vector<48x8xf32>
    %143 = tpu.matmul %142, %128, %cst_74 {dimension_numbers = #tpu.dot_dimension_numbers<[1], [0], [0], [1], [0, 0, 1, 1], [], []>} : vector<48x48xf32>, vector<48x8xf32>, vector<48x8xf32> -> vector<48x8xf32>
    %144 = vector.extract_strided_slice %78 {offsets = [16, 0], sizes = [8, 32], strides = [1, 1]} : vector<32x32xf32> to vector<8x32xf32>
    %cst_75 = arith.constant dense<0.000000e+00> : vector<48x32xf32>
    %145 = tpu.matmul %143, %144, %cst_75 {dimension_numbers = #tpu.dot_dimension_numbers<[1], [0], [0], [1], [0, 0, 1, 1], [], []>} : vector<48x8xf32>, vector<8x32xf32>, vector<48x32xf32> -> vector<48x32xf32>
    %146 = arith.addf %125, %145 : vector<48x32xf32>
    %147 = vector.extract_strided_slice %76 {offsets = [0, 24], sizes = [48, 8], strides = [1, 1]} : vector<48x96xf32> to vector<48x8xf32>
    %148 = vector.extract_strided_slice %76 {offsets = [0, 56], sizes = [48, 8], strides = [1, 1]} : vector<48x96xf32> to vector<48x8xf32>
    %149 = vector.extract_strided_slice %76 {offsets = [0, 88], sizes = [48, 8], strides = [1, 1]} : vector<48x96xf32> to vector<48x8xf32>
    %cst_76 = arith.constant dense<0.000000e+00> : vector<48x48xf32>
    %150 = tpu.matmul %147, %148, %cst_76 {dimension_numbers = #tpu.dot_dimension_numbers<[1], [1], [0], [0], [0, 0, 1, 0], [], []>} : vector<48x8xf32>, vector<48x8xf32>, vector<48x48xf32> -> vector<48x48xf32>
    %cst_77 = arith.constant 0.353553385 : f32
    %151 = vector.broadcast %cst_77 : f32 to vector<48x48xf32>
    %152 = arith.mulf %150, %151 : vector<48x48xf32>
    %153 = arith.addf %152, %43 : vector<48x48xf32>
    %cst_78 = arith.constant dense<0xFF800000> : vector<48xf32>
    %154 = vector.multi_reduction <maximumf>, %153, %cst_78 [1] : vector<48x48xf32> to vector<48xf32>
    %155 = vector.shape_cast %154 : vector<48xf32> to vector<48x1xf32>
    %156 = vector.broadcast %155 : vector<48x1xf32> to vector<48x48xf32>
    %157 = arith.subf %153, %156 : vector<48x48xf32>
    %158 = math.exp %157 : vector<48x48xf32>
    %cst_79 = arith.constant dense<0.000000e+00> : vector<48xf32>
    %159 = vector.multi_reduction <add>, %158, %cst_79 [1] : vector<48x48xf32> to vector<48xf32>
    %160 = vector.shape_cast %159 : vector<48xf32> to vector<48x1xf32>
    %161 = tpu.reciprocal %160 {approx = true} : vector<48x1xf32> -> vector<48x1xf32>
    %162 = vector.broadcast %161 : vector<48x1xf32> to vector<48x48xf32>
    %163 = arith.mulf %158, %162 : vector<48x48xf32>
    %cst_80 = arith.constant dense<0.000000e+00> : vector<48x8xf32>
    %164 = tpu.matmul %163, %149, %cst_80 {dimension_numbers = #tpu.dot_dimension_numbers<[1], [0], [0], [1], [0, 0, 1, 1], [], []>} : vector<48x48xf32>, vector<48x8xf32>, vector<48x8xf32> -> vector<48x8xf32>
    %165 = vector.extract_strided_slice %78 {offsets = [24, 0], sizes = [8, 32], strides = [1, 1]} : vector<32x32xf32> to vector<8x32xf32>
    %cst_81 = arith.constant dense<0.000000e+00> : vector<48x32xf32>
    %166 = tpu.matmul %164, %165, %cst_81 {dimension_numbers = #tpu.dot_dimension_numbers<[1], [0], [0], [1], [0, 0, 1, 1], [], []>} : vector<48x8xf32>, vector<8x32xf32>, vector<48x32xf32> -> vector<48x32xf32>
    %167 = arith.addf %146, %166 : vector<48x32xf32>
    %168 = arith.addf %42, %167 : vector<48x32xf32>
    %c0_82 = arith.constant 0 : index
    %c0_83 = arith.constant 0 : index
    %c0_84 = arith.constant 0 : index
    %169 = vector.load %arg21[%c0_82, %c0_83, %c0_84] : memref<2x1x32xf32, #tpu.memory_space<vmem>>, vector<1x1x32xf32>
    %170 = vector.shape_cast %169 : vector<1x1x32xf32> to vector<1x32xf32>
    %c0_85 = arith.constant 0 : index
    %c0_86 = arith.constant 0 : index
    %c0_87 = arith.constant 0 : index
    %171 = vector.load %arg22[%c0_85, %c0_86, %c0_87] : memref<2x1x32xf32, #tpu.memory_space<vmem>>, vector<1x1x32xf32>
    %172 = vector.shape_cast %171 : vector<1x1x32xf32> to vector<1x32xf32>
    %cst_88 = arith.constant dense<0.000000e+00> : vector<48xf32>
    %173 = vector.multi_reduction <add>, %168, %cst_88 [1] : vector<48x32xf32> to vector<48xf32>
    %174 = vector.shape_cast %173 : vector<48xf32> to vector<48x1xf32>
    %cst_89 = arith.constant 3.200000e+01 : f32
    %175 = vector.broadcast %cst_89 : f32 to vector<48x1xf32>
    %176 = arith.divf %174, %175 : vector<48x1xf32>
    %177 = vector.broadcast %176 : vector<48x1xf32> to vector<48x32xf32>
    %178 = arith.subf %168, %177 : vector<48x32xf32>
    %179 = arith.mulf %178, %178 : vector<48x32xf32>
    %cst_90 = arith.constant dense<0.000000e+00> : vector<48xf32>
    %180 = vector.multi_reduction <add>, %179, %cst_90 [1] : vector<48x32xf32> to vector<48xf32>
    %181 = vector.shape_cast %180 : vector<48xf32> to vector<48x1xf32>
    %cst_91 = arith.constant 3.200000e+01 : f32
    %182 = vector.broadcast %cst_91 : f32 to vector<48x1xf32>
    %183 = arith.divf %181, %182 : vector<48x1xf32>
    %184 = vector.broadcast %176 : vector<48x1xf32> to vector<48x32xf32>
    %185 = arith.subf %168, %184 : vector<48x32xf32>
    %cst_92 = arith.constant 3.000000e-03 : f32
    %186 = vector.broadcast %cst_92 : f32 to vector<48x1xf32>
    %187 = arith.addf %183, %186 : vector<48x1xf32>
    %188 = math.rsqrt %187 : vector<48x1xf32>
    %189 = vector.broadcast %188 : vector<48x1xf32> to vector<48x32xf32>
    %190 = arith.mulf %185, %189 : vector<48x32xf32>
    %191 = vector.broadcast %170 : vector<1x32xf32> to vector<48x32xf32>
    %192 = arith.mulf %190, %191 : vector<48x32xf32>
    %193 = vector.broadcast %172 : vector<1x32xf32> to vector<48x32xf32>
    %194 = arith.addf %192, %193 : vector<48x32xf32>
    %c0_93 = arith.constant 0 : index
    %c0_94 = arith.constant 0 : index
    %c0_95 = arith.constant 0 : index
    %195 = vector.load %arg23[%c0_93, %c0_94, %c0_95] : memref<2x32x128xf32, #tpu.memory_space<vmem>>, vector<1x32x128xf32>
    %196 = vector.shape_cast %195 : vector<1x32x128xf32> to vector<32x128xf32>
    %cst_96 = arith.constant dense<0.000000e+00> : vector<48x128xf32>
    %197 = tpu.matmul %194, %196, %cst_96 {dimension_numbers = #tpu.dot_dimension_numbers<[1], [0], [0], [1], [0, 0, 1, 1], [], []>} : vector<48x32xf32>, vector<32x128xf32>, vector<48x128xf32> -> vector<48x128xf32>
    %c0_97 = arith.constant 0 : index
    %c0_98 = arith.constant 0 : index
    %c0_99 = arith.constant 0 : index
    %198 = vector.load %arg24[%c0_97, %c0_98, %c0_99] : memref<2x1x128xf32, #tpu.memory_space<vmem>>, vector<1x1x128xf32>
    %199 = vector.shape_cast %198 : vector<1x1x128xf32> to vector<1x128xf32>
    %200 = vector.broadcast %199 : vector<1x128xf32> to vector<48x128xf32>
    %201 = arith.addf %197, %200 : vector<48x128xf32>
    %202 = arith.mulf %201, %201 : vector<48x128xf32>
    %203 = arith.mulf %201, %202 : vector<48x128xf32>
    %cst_100 = arith.constant 4.471500e-02 : f32
    %204 = vector.broadcast %cst_100 : f32 to vector<48x128xf32>
    %205 = arith.mulf %204, %203 : vector<48x128xf32>
    %206 = arith.addf %201, %205 : vector<48x128xf32>
    %cst_101 = arith.constant 0.797884583 : f32
    %207 = vector.broadcast %cst_101 : f32 to vector<48x128xf32>
    %208 = arith.mulf %207, %206 : vector<48x128xf32>
    %209 = math.tanh %208 : vector<48x128xf32>
    %cst_102 = arith.constant 1.000000e+00 : f32
    %210 = vector.broadcast %cst_102 : f32 to vector<48x128xf32>
    %211 = arith.addf %210, %209 : vector<48x128xf32>
    %cst_103 = arith.constant 5.000000e-01 : f32
    %212 = vector.broadcast %cst_103 : f32 to vector<48x128xf32>
    %213 = arith.mulf %212, %211 : vector<48x128xf32>
    %214 = arith.mulf %201, %213 : vector<48x128xf32>
    %c0_104 = arith.constant 0 : index
    %c0_105 = arith.constant 0 : index
    %c0_106 = arith.constant 0 : index
    %215 = vector.load %arg25[%c0_104, %c0_105, %c0_106] : memref<2x128x32xf32, #tpu.memory_space<vmem>>, vector<1x128x32xf32>
    %216 = vector.shape_cast %215 : vector<1x128x32xf32> to vector<128x32xf32>
    %cst_107 = arith.constant dense<0.000000e+00> : vector<48x32xf32>
    %217 = tpu.matmul %214, %216, %cst_107 {dimension_numbers = #tpu.dot_dimension_numbers<[1], [0], [0], [1], [0, 0, 1, 1], [], []>} : vector<48x128xf32>, vector<128x32xf32>, vector<48x32xf32> -> vector<48x32xf32>
    %218 = arith.addf %168, %217 : vector<48x32xf32>
    %c0_108 = arith.constant 0 : index
    %c0_109 = arith.constant 0 : index
    %c0_110 = arith.constant 0 : index
    %219 = vector.load %arg26[%c0_108, %c0_109, %c0_110] : memref<2x1x32xf32, #tpu.memory_space<vmem>>, vector<1x1x32xf32>
    %220 = vector.shape_cast %219 : vector<1x1x32xf32> to vector<1x32xf32>
    %221 = vector.broadcast %220 : vector<1x32xf32> to vector<48x32xf32>
    %222 = arith.addf %218, %221 : vector<48x32xf32>
    %c1 = arith.constant 1 : index
    %c0_111 = arith.constant 0 : index
    %c0_112 = arith.constant 0 : index
    %223 = vector.load %arg19[%c1, %c0_111, %c0_112] : memref<2x1x32xf32, #tpu.memory_space<vmem>>, vector<1x1x32xf32>
    %224 = vector.shape_cast %223 : vector<1x1x32xf32> to vector<1x32xf32>
    %c1_113 = arith.constant 1 : index
    %c0_114 = arith.constant 0 : index
    %c0_115 = arith.constant 0 : index
    %225 = vector.load %arg20[%c1_113, %c0_114, %c0_115] : memref<2x1x32xf32, #tpu.memory_space<vmem>>, vector<1x1x32xf32>
    %226 = vector.shape_cast %225 : vector<1x1x32xf32> to vector<1x32xf32>
    %cst_116 = arith.constant dense<0.000000e+00> : vector<48xf32>
    %227 = vector.multi_reduction <add>, %222, %cst_116 [1] : vector<48x32xf32> to vector<48xf32>
    %228 = vector.shape_cast %227 : vector<48xf32> to vector<48x1xf32>
    %cst_117 = arith.constant 3.200000e+01 : f32
    %229 = vector.broadcast %cst_117 : f32 to vector<48x1xf32>
    %230 = arith.divf %228, %229 : vector<48x1xf32>
    %231 = vector.broadcast %230 : vector<48x1xf32> to vector<48x32xf32>
    %232 = arith.subf %222, %231 : vector<48x32xf32>
    %233 = arith.mulf %232, %232 : vector<48x32xf32>
    %cst_118 = arith.constant dense<0.000000e+00> : vector<48xf32>
    %234 = vector.multi_reduction <add>, %233, %cst_118 [1] : vector<48x32xf32> to vector<48xf32>
    %235 = vector.shape_cast %234 : vector<48xf32> to vector<48x1xf32>
    %cst_119 = arith.constant 3.200000e+01 : f32
    %236 = vector.broadcast %cst_119 : f32 to vector<48x1xf32>
    %237 = arith.divf %235, %236 : vector<48x1xf32>
    %238 = vector.broadcast %230 : vector<48x1xf32> to vector<48x32xf32>
    %239 = arith.subf %222, %238 : vector<48x32xf32>
    %cst_120 = arith.constant 3.000000e-03 : f32
    %240 = vector.broadcast %cst_120 : f32 to vector<48x1xf32>
    %241 = arith.addf %237, %240 : vector<48x1xf32>
    %242 = math.rsqrt %241 : vector<48x1xf32>
    %243 = vector.broadcast %242 : vector<48x1xf32> to vector<48x32xf32>
    %244 = arith.mulf %239, %243 : vector<48x32xf32>
    %245 = vector.broadcast %224 : vector<1x32xf32> to vector<48x32xf32>
    %246 = arith.mulf %244, %245 : vector<48x32xf32>
    %247 = vector.broadcast %226 : vector<1x32xf32> to vector<48x32xf32>
    %248 = arith.addf %246, %247 : vector<48x32xf32>
    %c1_121 = arith.constant 1 : index
    %c0_122 = arith.constant 0 : index
    %c0_123 = arith.constant 0 : index
    %249 = vector.load %arg15[%c1_121, %c0_122, %c0_123] : memref<2x32x96xf32, #tpu.memory_space<vmem>>, vector<1x32x96xf32>
    %250 = vector.shape_cast %249 : vector<1x32x96xf32> to vector<32x96xf32>
    %cst_124 = arith.constant dense<0.000000e+00> : vector<48x96xf32>
    %251 = tpu.matmul %248, %250, %cst_124 {dimension_numbers = #tpu.dot_dimension_numbers<[1], [0], [0], [1], [0, 0, 1, 1], [], []>} : vector<48x32xf32>, vector<32x96xf32>, vector<48x96xf32> -> vector<48x96xf32>
    %c1_125 = arith.constant 1 : index
    %c0_126 = arith.constant 0 : index
    %c0_127 = arith.constant 0 : index
    %252 = vector.load %arg16[%c1_125, %c0_126, %c0_127] : memref<2x1x96xf32, #tpu.memory_space<vmem>>, vector<1x1x96xf32>
    %253 = vector.shape_cast %252 : vector<1x1x96xf32> to vector<1x96xf32>
    %254 = vector.broadcast %253 : vector<1x96xf32> to vector<48x96xf32>
    %255 = arith.addf %251, %254 : vector<48x96xf32>
    %c1_128 = arith.constant 1 : index
    %c0_129 = arith.constant 0 : index
    %c0_130 = arith.constant 0 : index
    %256 = vector.load %arg17[%c1_128, %c0_129, %c0_130] : memref<2x32x32xf32, #tpu.memory_space<vmem>>, vector<1x32x32xf32>
    %257 = vector.shape_cast %256 : vector<1x32x32xf32> to vector<32x32xf32>
    %cst_131 = arith.constant 0.000000e+00 : f32
    %258 = vector.broadcast %cst_131 : f32 to vector<48x32xf32>
    %c1_132 = arith.constant 1 : index
    %c0_133 = arith.constant 0 : index
    %c0_134 = arith.constant 0 : index
    %259 = vector.load %arg18[%c1_132, %c0_133, %c0_134] : memref<2x1x32xf32, #tpu.memory_space<vmem>>, vector<1x1x32xf32>
    %260 = vector.shape_cast %259 : vector<1x1x32xf32> to vector<1x32xf32>
    %261 = vector.broadcast %260 : vector<1x32xf32> to vector<48x32xf32>
    %262 = arith.addf %258, %261 : vector<48x32xf32>
    %263 = vector.extract_strided_slice %255 {offsets = [0, 0], sizes = [48, 8], strides = [1, 1]} : vector<48x96xf32> to vector<48x8xf32>
    %264 = vector.extract_strided_slice %255 {offsets = [0, 32], sizes = [48, 8], strides = [1, 1]} : vector<48x96xf32> to vector<48x8xf32>
    %265 = vector.extract_strided_slice %255 {offsets = [0, 64], sizes = [48, 8], strides = [1, 1]} : vector<48x96xf32> to vector<48x8xf32>
    %cst_135 = arith.constant dense<0.000000e+00> : vector<48x48xf32>
    %266 = tpu.matmul %263, %264, %cst_135 {dimension_numbers = #tpu.dot_dimension_numbers<[1], [1], [0], [0], [0, 0, 1, 0], [], []>} : vector<48x8xf32>, vector<48x8xf32>, vector<48x48xf32> -> vector<48x48xf32>
    %cst_136 = arith.constant 0.353553385 : f32
    %267 = vector.broadcast %cst_136 : f32 to vector<48x48xf32>
    %268 = arith.mulf %266, %267 : vector<48x48xf32>
    %269 = arith.addf %268, %43 : vector<48x48xf32>
    %cst_137 = arith.constant dense<0xFF800000> : vector<48xf32>
    %270 = vector.multi_reduction <maximumf>, %269, %cst_137 [1] : vector<48x48xf32> to vector<48xf32>
    %271 = vector.shape_cast %270 : vector<48xf32> to vector<48x1xf32>
    %272 = vector.broadcast %271 : vector<48x1xf32> to vector<48x48xf32>
    %273 = arith.subf %269, %272 : vector<48x48xf32>
    %274 = math.exp %273 : vector<48x48xf32>
    %cst_138 = arith.constant dense<0.000000e+00> : vector<48xf32>
    %275 = vector.multi_reduction <add>, %274, %cst_138 [1] : vector<48x48xf32> to vector<48xf32>
    %276 = vector.shape_cast %275 : vector<48xf32> to vector<48x1xf32>
    %277 = tpu.reciprocal %276 {approx = true} : vector<48x1xf32> -> vector<48x1xf32>
    %278 = vector.broadcast %277 : vector<48x1xf32> to vector<48x48xf32>
    %279 = arith.mulf %274, %278 : vector<48x48xf32>
    %cst_139 = arith.constant dense<0.000000e+00> : vector<48x8xf32>
    %280 = tpu.matmul %279, %265, %cst_139 {dimension_numbers = #tpu.dot_dimension_numbers<[1], [0], [0], [1], [0, 0, 1, 1], [], []>} : vector<48x48xf32>, vector<48x8xf32>, vector<48x8xf32> -> vector<48x8xf32>
    %281 = vector.extract_strided_slice %257 {offsets = [0, 0], sizes = [8, 32], strides = [1, 1]} : vector<32x32xf32> to vector<8x32xf32>
    %cst_140 = arith.constant dense<0.000000e+00> : vector<48x32xf32>
    %282 = tpu.matmul %280, %281, %cst_140 {dimension_numbers = #tpu.dot_dimension_numbers<[1], [0], [0], [1], [0, 0, 1, 1], [], []>} : vector<48x8xf32>, vector<8x32xf32>, vector<48x32xf32> -> vector<48x32xf32>
    %283 = arith.addf %262, %282 : vector<48x32xf32>
    %284 = vector.extract_strided_slice %255 {offsets = [0, 8], sizes = [48, 8], strides = [1, 1]} : vector<48x96xf32> to vector<48x8xf32>
    %285 = vector.extract_strided_slice %255 {offsets = [0, 40], sizes = [48, 8], strides = [1, 1]} : vector<48x96xf32> to vector<48x8xf32>
    %286 = vector.extract_strided_slice %255 {offsets = [0, 72], sizes = [48, 8], strides = [1, 1]} : vector<48x96xf32> to vector<48x8xf32>
    %cst_141 = arith.constant dense<0.000000e+00> : vector<48x48xf32>
    %287 = tpu.matmul %284, %285, %cst_141 {dimension_numbers = #tpu.dot_dimension_numbers<[1], [1], [0], [0], [0, 0, 1, 0], [], []>} : vector<48x8xf32>, vector<48x8xf32>, vector<48x48xf32> -> vector<48x48xf32>
    %cst_142 = arith.constant 0.353553385 : f32
    %288 = vector.broadcast %cst_142 : f32 to vector<48x48xf32>
    %289 = arith.mulf %287, %288 : vector<48x48xf32>
    %290 = arith.addf %289, %43 : vector<48x48xf32>
    %cst_143 = arith.constant dense<0xFF800000> : vector<48xf32>
    %291 = vector.multi_reduction <maximumf>, %290, %cst_143 [1] : vector<48x48xf32> to vector<48xf32>
    %292 = vector.shape_cast %291 : vector<48xf32> to vector<48x1xf32>
    %293 = vector.broadcast %292 : vector<48x1xf32> to vector<48x48xf32>
    %294 = arith.subf %290, %293 : vector<48x48xf32>
    %295 = math.exp %294 : vector<48x48xf32>
    %cst_144 = arith.constant dense<0.000000e+00> : vector<48xf32>
    %296 = vector.multi_reduction <add>, %295, %cst_144 [1] : vector<48x48xf32> to vector<48xf32>
    %297 = vector.shape_cast %296 : vector<48xf32> to vector<48x1xf32>
    %298 = tpu.reciprocal %297 {approx = true} : vector<48x1xf32> -> vector<48x1xf32>
    %299 = vector.broadcast %298 : vector<48x1xf32> to vector<48x48xf32>
    %300 = arith.mulf %295, %299 : vector<48x48xf32>
    %cst_145 = arith.constant dense<0.000000e+00> : vector<48x8xf32>
    %301 = tpu.matmul %300, %286, %cst_145 {dimension_numbers = #tpu.dot_dimension_numbers<[1], [0], [0], [1], [0, 0, 1, 1], [], []>} : vector<48x48xf32>, vector<48x8xf32>, vector<48x8xf32> -> vector<48x8xf32>
    %302 = vector.extract_strided_slice %257 {offsets = [8, 0], sizes = [8, 32], strides = [1, 1]} : vector<32x32xf32> to vector<8x32xf32>
    %cst_146 = arith.constant dense<0.000000e+00> : vector<48x32xf32>
    %303 = tpu.matmul %301, %302, %cst_146 {dimension_numbers = #tpu.dot_dimension_numbers<[1], [0], [0], [1], [0, 0, 1, 1], [], []>} : vector<48x8xf32>, vector<8x32xf32>, vector<48x32xf32> -> vector<48x32xf32>
    %304 = arith.addf %283, %303 : vector<48x32xf32>
    %305 = vector.extract_strided_slice %255 {offsets = [0, 16], sizes = [48, 8], strides = [1, 1]} : vector<48x96xf32> to vector<48x8xf32>
    %306 = vector.extract_strided_slice %255 {offsets = [0, 48], sizes = [48, 8], strides = [1, 1]} : vector<48x96xf32> to vector<48x8xf32>
    %307 = vector.extract_strided_slice %255 {offsets = [0, 80], sizes = [48, 8], strides = [1, 1]} : vector<48x96xf32> to vector<48x8xf32>
    %cst_147 = arith.constant dense<0.000000e+00> : vector<48x48xf32>
    %308 = tpu.matmul %305, %306, %cst_147 {dimension_numbers = #tpu.dot_dimension_numbers<[1], [1], [0], [0], [0, 0, 1, 0], [], []>} : vector<48x8xf32>, vector<48x8xf32>, vector<48x48xf32> -> vector<48x48xf32>
    %cst_148 = arith.constant 0.353553385 : f32
    %309 = vector.broadcast %cst_148 : f32 to vector<48x48xf32>
    %310 = arith.mulf %308, %309 : vector<48x48xf32>
    %311 = arith.addf %310, %43 : vector<48x48xf32>
    %cst_149 = arith.constant dense<0xFF800000> : vector<48xf32>
    %312 = vector.multi_reduction <maximumf>, %311, %cst_149 [1] : vector<48x48xf32> to vector<48xf32>
    %313 = vector.shape_cast %312 : vector<48xf32> to vector<48x1xf32>
    %314 = vector.broadcast %313 : vector<48x1xf32> to vector<48x48xf32>
    %315 = arith.subf %311, %314 : vector<48x48xf32>
    %316 = math.exp %315 : vector<48x48xf32>
    %cst_150 = arith.constant dense<0.000000e+00> : vector<48xf32>
    %317 = vector.multi_reduction <add>, %316, %cst_150 [1] : vector<48x48xf32> to vector<48xf32>
    %318 = vector.shape_cast %317 : vector<48xf32> to vector<48x1xf32>
    %319 = tpu.reciprocal %318 {approx = true} : vector<48x1xf32> -> vector<48x1xf32>
    %320 = vector.broadcast %319 : vector<48x1xf32> to vector<48x48xf32>
    %321 = arith.mulf %316, %320 : vector<48x48xf32>
    %cst_151 = arith.constant dense<0.000000e+00> : vector<48x8xf32>
    %322 = tpu.matmul %321, %307, %cst_151 {dimension_numbers = #tpu.dot_dimension_numbers<[1], [0], [0], [1], [0, 0, 1, 1], [], []>} : vector<48x48xf32>, vector<48x8xf32>, vector<48x8xf32> -> vector<48x8xf32>
    %323 = vector.extract_strided_slice %257 {offsets = [16, 0], sizes = [8, 32], strides = [1, 1]} : vector<32x32xf32> to vector<8x32xf32>
    %cst_152 = arith.constant dense<0.000000e+00> : vector<48x32xf32>
    %324 = tpu.matmul %322, %323, %cst_152 {dimension_numbers = #tpu.dot_dimension_numbers<[1], [0], [0], [1], [0, 0, 1, 1], [], []>} : vector<48x8xf32>, vector<8x32xf32>, vector<48x32xf32> -> vector<48x32xf32>
    %325 = arith.addf %304, %324 : vector<48x32xf32>
    %326 = vector.extract_strided_slice %255 {offsets = [0, 24], sizes = [48, 8], strides = [1, 1]} : vector<48x96xf32> to vector<48x8xf32>
    %327 = vector.extract_strided_slice %255 {offsets = [0, 56], sizes = [48, 8], strides = [1, 1]} : vector<48x96xf32> to vector<48x8xf32>
    %328 = vector.extract_strided_slice %255 {offsets = [0, 88], sizes = [48, 8], strides = [1, 1]} : vector<48x96xf32> to vector<48x8xf32>
    %cst_153 = arith.constant dense<0.000000e+00> : vector<48x48xf32>
    %329 = tpu.matmul %326, %327, %cst_153 {dimension_numbers = #tpu.dot_dimension_numbers<[1], [1], [0], [0], [0, 0, 1, 0], [], []>} : vector<48x8xf32>, vector<48x8xf32>, vector<48x48xf32> -> vector<48x48xf32>
    %cst_154 = arith.constant 0.353553385 : f32
    %330 = vector.broadcast %cst_154 : f32 to vector<48x48xf32>
    %331 = arith.mulf %329, %330 : vector<48x48xf32>
    %332 = arith.addf %331, %43 : vector<48x48xf32>
    %cst_155 = arith.constant dense<0xFF800000> : vector<48xf32>
    %333 = vector.multi_reduction <maximumf>, %332, %cst_155 [1] : vector<48x48xf32> to vector<48xf32>
    %334 = vector.shape_cast %333 : vector<48xf32> to vector<48x1xf32>
    %335 = vector.broadcast %334 : vector<48x1xf32> to vector<48x48xf32>
    %336 = arith.subf %332, %335 : vector<48x48xf32>
    %337 = math.exp %336 : vector<48x48xf32>
    %cst_156 = arith.constant dense<0.000000e+00> : vector<48xf32>
    %338 = vector.multi_reduction <add>, %337, %cst_156 [1] : vector<48x48xf32> to vector<48xf32>
    %339 = vector.shape_cast %338 : vector<48xf32> to vector<48x1xf32>
    %340 = tpu.reciprocal %339 {approx = true} : vector<48x1xf32> -> vector<48x1xf32>
    %341 = vector.broadcast %340 : vector<48x1xf32> to vector<48x48xf32>
    %342 = arith.mulf %337, %341 : vector<48x48xf32>
    %cst_157 = arith.constant dense<0.000000e+00> : vector<48x8xf32>
    %343 = tpu.matmul %342, %328, %cst_157 {dimension_numbers = #tpu.dot_dimension_numbers<[1], [0], [0], [1], [0, 0, 1, 1], [], []>} : vector<48x48xf32>, vector<48x8xf32>, vector<48x8xf32> -> vector<48x8xf32>
    %344 = vector.extract_strided_slice %257 {offsets = [24, 0], sizes = [8, 32], strides = [1, 1]} : vector<32x32xf32> to vector<8x32xf32>
    %cst_158 = arith.constant dense<0.000000e+00> : vector<48x32xf32>
    %345 = tpu.matmul %343, %344, %cst_158 {dimension_numbers = #tpu.dot_dimension_numbers<[1], [0], [0], [1], [0, 0, 1, 1], [], []>} : vector<48x8xf32>, vector<8x32xf32>, vector<48x32xf32> -> vector<48x32xf32>
    %346 = arith.addf %325, %345 : vector<48x32xf32>
    %347 = arith.addf %222, %346 : vector<48x32xf32>
    %c1_159 = arith.constant 1 : index
    %c0_160 = arith.constant 0 : index
    %c0_161 = arith.constant 0 : index
    %348 = vector.load %arg21[%c1_159, %c0_160, %c0_161] : memref<2x1x32xf32, #tpu.memory_space<vmem>>, vector<1x1x32xf32>
    %349 = vector.shape_cast %348 : vector<1x1x32xf32> to vector<1x32xf32>
    %c1_162 = arith.constant 1 : index
    %c0_163 = arith.constant 0 : index
    %c0_164 = arith.constant 0 : index
    %350 = vector.load %arg22[%c1_162, %c0_163, %c0_164] : memref<2x1x32xf32, #tpu.memory_space<vmem>>, vector<1x1x32xf32>
    %351 = vector.shape_cast %350 : vector<1x1x32xf32> to vector<1x32xf32>
    %cst_165 = arith.constant dense<0.000000e+00> : vector<48xf32>
    %352 = vector.multi_reduction <add>, %347, %cst_165 [1] : vector<48x32xf32> to vector<48xf32>
    %353 = vector.shape_cast %352 : vector<48xf32> to vector<48x1xf32>
    %cst_166 = arith.constant 3.200000e+01 : f32
    %354 = vector.broadcast %cst_166 : f32 to vector<48x1xf32>
    %355 = arith.divf %353, %354 : vector<48x1xf32>
    %356 = vector.broadcast %355 : vector<48x1xf32> to vector<48x32xf32>
    %357 = arith.subf %347, %356 : vector<48x32xf32>
    %358 = arith.mulf %357, %357 : vector<48x32xf32>
    %cst_167 = arith.constant dense<0.000000e+00> : vector<48xf32>
    %359 = vector.multi_reduction <add>, %358, %cst_167 [1] : vector<48x32xf32> to vector<48xf32>
    %360 = vector.shape_cast %359 : vector<48xf32> to vector<48x1xf32>
    %cst_168 = arith.constant 3.200000e+01 : f32
    %361 = vector.broadcast %cst_168 : f32 to vector<48x1xf32>
    %362 = arith.divf %360, %361 : vector<48x1xf32>
    %363 = vector.broadcast %355 : vector<48x1xf32> to vector<48x32xf32>
    %364 = arith.subf %347, %363 : vector<48x32xf32>
    %cst_169 = arith.constant 3.000000e-03 : f32
    %365 = vector.broadcast %cst_169 : f32 to vector<48x1xf32>
    %366 = arith.addf %362, %365 : vector<48x1xf32>
    %367 = math.rsqrt %366 : vector<48x1xf32>
    %368 = vector.broadcast %367 : vector<48x1xf32> to vector<48x32xf32>
    %369 = arith.mulf %364, %368 : vector<48x32xf32>
    %370 = vector.broadcast %349 : vector<1x32xf32> to vector<48x32xf32>
    %371 = arith.mulf %369, %370 : vector<48x32xf32>
    %372 = vector.broadcast %351 : vector<1x32xf32> to vector<48x32xf32>
    %373 = arith.addf %371, %372 : vector<48x32xf32>
    %c1_170 = arith.constant 1 : index
    %c0_171 = arith.constant 0 : index
    %c0_172 = arith.constant 0 : index
    %374 = vector.load %arg23[%c1_170, %c0_171, %c0_172] : memref<2x32x128xf32, #tpu.memory_space<vmem>>, vector<1x32x128xf32>
    %375 = vector.shape_cast %374 : vector<1x32x128xf32> to vector<32x128xf32>
    %cst_173 = arith.constant dense<0.000000e+00> : vector<48x128xf32>
    %376 = tpu.matmul %373, %375, %cst_173 {dimension_numbers = #tpu.dot_dimension_numbers<[1], [0], [0], [1], [0, 0, 1, 1], [], []>} : vector<48x32xf32>, vector<32x128xf32>, vector<48x128xf32> -> vector<48x128xf32>
    %c1_174 = arith.constant 1 : index
    %c0_175 = arith.constant 0 : index
    %c0_176 = arith.constant 0 : index
    %377 = vector.load %arg24[%c1_174, %c0_175, %c0_176] : memref<2x1x128xf32, #tpu.memory_space<vmem>>, vector<1x1x128xf32>
    %378 = vector.shape_cast %377 : vector<1x1x128xf32> to vector<1x128xf32>
    %379 = vector.broadcast %378 : vector<1x128xf32> to vector<48x128xf32>
    %380 = arith.addf %376, %379 : vector<48x128xf32>
    %381 = arith.mulf %380, %380 : vector<48x128xf32>
    %382 = arith.mulf %380, %381 : vector<48x128xf32>
    %cst_177 = arith.constant 4.471500e-02 : f32
    %383 = vector.broadcast %cst_177 : f32 to vector<48x128xf32>
    %384 = arith.mulf %383, %382 : vector<48x128xf32>
    %385 = arith.addf %380, %384 : vector<48x128xf32>
    %cst_178 = arith.constant 0.797884583 : f32
    %386 = vector.broadcast %cst_178 : f32 to vector<48x128xf32>
    %387 = arith.mulf %386, %385 : vector<48x128xf32>
    %388 = math.tanh %387 : vector<48x128xf32>
    %cst_179 = arith.constant 1.000000e+00 : f32
    %389 = vector.broadcast %cst_179 : f32 to vector<48x128xf32>
    %390 = arith.addf %389, %388 : vector<48x128xf32>
    %cst_180 = arith.constant 5.000000e-01 : f32
    %391 = vector.broadcast %cst_180 : f32 to vector<48x128xf32>
    %392 = arith.mulf %391, %390 : vector<48x128xf32>
    %393 = arith.mulf %380, %392 : vector<48x128xf32>
    %c1_181 = arith.constant 1 : index
    %c0_182 = arith.constant 0 : index
    %c0_183 = arith.constant 0 : index
    %394 = vector.load %arg25[%c1_181, %c0_182, %c0_183] : memref<2x128x32xf32, #tpu.memory_space<vmem>>, vector<1x128x32xf32>
    %395 = vector.shape_cast %394 : vector<1x128x32xf32> to vector<128x32xf32>
    %cst_184 = arith.constant dense<0.000000e+00> : vector<48x32xf32>
    %396 = tpu.matmul %393, %395, %cst_184 {dimension_numbers = #tpu.dot_dimension_numbers<[1], [0], [0], [1], [0, 0, 1, 1], [], []>} : vector<48x128xf32>, vector<128x32xf32>, vector<48x32xf32> -> vector<48x32xf32>
    %397 = arith.addf %347, %396 : vector<48x32xf32>
    %c1_185 = arith.constant 1 : index
    %c0_186 = arith.constant 0 : index
    %c0_187 = arith.constant 0 : index
    %398 = vector.load %arg26[%c1_185, %c0_186, %c0_187] : memref<2x1x32xf32, #tpu.memory_space<vmem>>, vector<1x1x32xf32>
    %399 = vector.shape_cast %398 : vector<1x1x32xf32> to vector<1x32xf32>
    %400 = vector.broadcast %399 : vector<1x32xf32> to vector<48x32xf32>
    %401 = arith.addf %397, %400 : vector<48x32xf32>
    %c0_188 = arith.constant 0 : index
    %c0_189 = arith.constant 0 : index
    %402 = vector.load %arg27[%c0_188, %c0_189] : memref<1x32xf32, #tpu.memory_space<vmem>>, vector<1x32xf32>
    %c0_190 = arith.constant 0 : index
    %c0_191 = arith.constant 0 : index
    %403 = vector.load %arg28[%c0_190, %c0_191] : memref<1x32xf32, #tpu.memory_space<vmem>>, vector<1x32xf32>
    %cst_192 = arith.constant dense<0.000000e+00> : vector<48xf32>
    %404 = vector.multi_reduction <add>, %401, %cst_192 [1] : vector<48x32xf32> to vector<48xf32>
    %405 = vector.shape_cast %404 : vector<48xf32> to vector<48x1xf32>
    %cst_193 = arith.constant 3.200000e+01 : f32
    %406 = vector.broadcast %cst_193 : f32 to vector<48x1xf32>
    %407 = arith.divf %405, %406 : vector<48x1xf32>
    %408 = vector.broadcast %407 : vector<48x1xf32> to vector<48x32xf32>
    %409 = arith.subf %401, %408 : vector<48x32xf32>
    %410 = arith.mulf %409, %409 : vector<48x32xf32>
    %cst_194 = arith.constant dense<0.000000e+00> : vector<48xf32>
    %411 = vector.multi_reduction <add>, %410, %cst_194 [1] : vector<48x32xf32> to vector<48xf32>
    %412 = vector.shape_cast %411 : vector<48xf32> to vector<48x1xf32>
    %cst_195 = arith.constant 3.200000e+01 : f32
    %413 = vector.broadcast %cst_195 : f32 to vector<48x1xf32>
    %414 = arith.divf %412, %413 : vector<48x1xf32>
    %415 = vector.broadcast %407 : vector<48x1xf32> to vector<48x32xf32>
    %416 = arith.subf %401, %415 : vector<48x32xf32>
    %cst_196 = arith.constant 3.000000e-03 : f32
    %417 = vector.broadcast %cst_196 : f32 to vector<48x1xf32>
    %418 = arith.addf %414, %417 : vector<48x1xf32>
    %419 = math.rsqrt %418 : vector<48x1xf32>
    %420 = vector.broadcast %419 : vector<48x1xf32> to vector<48x32xf32>
    %421 = arith.mulf %416, %420 : vector<48x32xf32>
    %422 = vector.broadcast %402 : vector<1x32xf32> to vector<48x32xf32>
    %423 = arith.mulf %421, %422 : vector<48x32xf32>
    %424 = vector.broadcast %403 : vector<1x32xf32> to vector<48x32xf32>
    %425 = arith.addf %423, %424 : vector<48x32xf32>
    %c0_197 = arith.constant 0 : index
    %c0_198 = arith.constant 0 : index
    %426 = vector.load %arg13[%c0_197, %c0_198] : memref<16x48xf32, #tpu.memory_space<vmem>>, vector<16x48xf32>
    %cst_199 = arith.constant dense<0.000000e+00> : vector<16x32xf32>
    %427 = tpu.matmul %426, %425, %cst_199 {dimension_numbers = #tpu.dot_dimension_numbers<[1], [0], [0], [1], [0, 0, 1, 1], [], []>} : vector<16x48xf32>, vector<48x32xf32>, vector<16x32xf32> -> vector<16x32xf32>
    %c0_200 = arith.constant 0 : index
    %c0_201 = arith.constant 0 : index
    %428 = vector.load %arg29[%c0_200, %c0_201] : memref<32x128xf32, #tpu.memory_space<vmem>>, vector<32x128xf32>
    %cst_202 = arith.constant dense<0.000000e+00> : vector<16x128xf32>
    %429 = tpu.matmul %427, %428, %cst_202 {dimension_numbers = #tpu.dot_dimension_numbers<[1], [0], [0], [1], [0, 0, 1, 1], [], []>} : vector<16x32xf32>, vector<32x128xf32>, vector<16x128xf32> -> vector<16x128xf32>
    %430 = tpu.iota {dimensions = array<i32: 1>} : vector<16x128xi32>
    %c6_i32 = arith.constant 6 : i32
    %431 = vector.broadcast %c6_i32 : i32 to vector<16x128xi32>
    %432 = arith.cmpi slt, %430, %431 : vector<16x128xi32>
    %cst_203 = arith.constant -1.000000e+30 : f32
    %433 = vector.broadcast %cst_203 : f32 to vector<16x128xf32>
    %434 = arith.select %432, %429, %433 : vector<16x128xi1>, vector<16x128xf32>
    %cst_204 = arith.constant dense<0xFF800000> : vector<16xf32>
    %435 = vector.multi_reduction <maximumf>, %434, %cst_204 [1] : vector<16x128xf32> to vector<16xf32>
    %436 = vector.shape_cast %435 : vector<16xf32> to vector<16x1xf32>
    %437 = vector.broadcast %436 : vector<16x1xf32> to vector<16x128xf32>
    %438 = arith.subf %434, %437 : vector<16x128xf32>
    %439 = math.exp %438 : vector<16x128xf32>
    %cst_205 = arith.constant dense<0.000000e+00> : vector<16xf32>
    %440 = vector.multi_reduction <add>, %439, %cst_205 [1] : vector<16x128xf32> to vector<16xf32>
    %441 = vector.shape_cast %440 : vector<16xf32> to vector<16x1xf32>
    %442 = vector.broadcast %441 : vector<16x1xf32> to vector<16x128xf32>
    %443 = arith.divf %439, %442 : vector<16x128xf32>
    %c0_206 = arith.constant 0 : index
    %c0_207 = arith.constant 0 : index
    %444 = vector.load %arg30[%c0_206, %c0_207] : memref<16x128xf32, #tpu.memory_space<vmem>>, vector<16x128xf32>
    tpu.vector_store %arg30[%c0_206, %c0_207], %443 {strides = array<i32>} : memref<16x128xf32, #tpu.memory_space<vmem>>, vector<16x128xf32>,
    %c0_208 = arith.constant 0 : index
    %c0_209 = arith.constant 0 : index
    %445 = vector.load %arg31[%c0_208, %c0_209] : memref<16x128xf32, #tpu.memory_space<vmem>>, vector<16x128xf32>
    tpu.vector_store %arg31[%c0_208, %c0_209], %429 {strides = array<i32>} : memref<16x128xf32, #tpu.memory_space<vmem>>, vector<16x128xf32>,
    return
  }
}

</mosaic_0001>

<llo_original>
// kernel: tpu_custom_call.1
$region0: #{tpu_custom_call.1}
  #allocation0 [shape = 'u32[]', space=smem, size = 0x4, offset = 0x4, fixed_abs, tag = 'smem constant byte address 0x4 - core index']
  #allocation1 [shape = 'u32[144,128]{1,0:T(1,128)}', space=vmem, size = 0x12000, scoped, tag = 'internal scratch']
  %s0 = inlined_call_operand.smem [shape: u32[32], index: -1, kind: input, shape index: {}]
  %s1 = sld [smem:[%s0]]
  %s2 = scalar_lea.smem %s0, 1
  %s3 = sld [smem:[%s2]]
  %s4 = scalar_lea.smem %s0, 2
  %s5 = sld [smem:[%s4]]
  %s6 = scalar_lea.smem %s0, 3
  %s7 = sld [smem:[%s6]]
  %s8 = scalar_lea.smem %s0, 4
  %s9 = sld [smem:[%s8]]
  %s10 = scalar_lea.smem %s0, 5
  %s11 = sld [smem:[%s10]]
  %s12 = scalar_lea.smem %s0, 6
  %s13 = sld [smem:[%s12]]
  %s14 = scalar_lea.smem %s0, 7
  %s15 = sld [smem:[%s14]]
  %s16 = scalar_lea.smem %s0, 8
  %s17 = sld [smem:[%s16]]
  %s18 = scalar_lea.smem %s0, 9
  %s19 = sld [smem:[%s18]]
  %s20 = scalar_lea.smem %s0, 10
  %s21 = sld [smem:[%s20]]
  %s22 = scalar_lea.smem %s0, 11
  %s23 = sld [smem:[%s22]]
  %s24 = scalar_lea.smem %s0, 12
  %s25 = sld [smem:[%s24]]
  %s26 = scalar_lea.smem %s0, 13
  %s27 = sld [smem:[%s26]]
  %s28 = scalar_lea.smem %s0, 14
  %s29 = sld [smem:[%s28]]
  %s30 = scalar_lea.smem %s0, 15
  %s31 = sld [smem:[%s30]]
  %s32 = scalar_lea.smem %s0, 16
  %s33 = sld [smem:[%s32]]
  %s34 = scalar_lea.smem %s0, 17
  %s35 = sld [smem:[%s34]]
  %s36 = scalar_lea.smem %s0, 18
  %s37 = sld [smem:[%s36]]
  %s38 = scalar_lea.smem %s0, 19
  %s39 = sld [smem:[%s38]]
  %s40 = scalar_lea.smem %s0, 20
  %s41 = sld [smem:[%s40]]
  %s42 = scalar_lea.smem %s0, 21
  %s43 = sld [smem:[%s42]]
  %s44 = scalar_lea.smem %s0, 22
  %s45 = sld [smem:[%s44]]
  %s46 = scalar_lea.smem %s0, 23
  %s47 = sld [smem:[%s46]]
  %s48 = scalar_lea.smem %s0, 24
  %s49 = sld [smem:[%s48]]
  %s50 = scalar_lea.smem %s0, 25
  %s51 = sld [smem:[%s50]]
  %s52 = scalar_lea.smem %s0, 26
  %s53 = sld [smem:[%s52]]
  %s54 = scalar_lea.smem %s0, 27
  %s55 = sld [smem:[%s54]]
  %s56 = scalar_lea.smem %s0, 28
  %s57 = sld [smem:[%s56]]
  %s58 = scalar_lea.smem %s0, 29
  %s59 = sld [smem:[%s58]]
  %s60 = scalar_lea.smem %s0, 30
  %s61 = sld [smem:[%s60]]
  %s62 = scalar_lea.smem %s0, 31
  %s63 = sld [smem:[%s62]]
  %64 = xla_tuple %s61, %s63
  %s65 = sld [smem:[#allocation0]]
  $region138: #{tpu_custom_call.1} parent=0
    _
  %s67 = ssub.s32 1, %s65
  %s68 = scalar_select 0, %s67, %s65
  $region1: #{tpu_custom_call.1} parent=0
    #allocation2 [shape = 'u8[8192]{0}', space=vmem, size = 0x2000, scoped, tag = 'output window, operand 0, single buffered']
    #allocation3 [shape = 's32[1]{0}', space=sflag, size = 0x4, scoped, tag = 'scoped memory for tpu_custom_call.1']
    #allocation4 [shape = 'u8[8192]{0}', space=vmem, size = 0x2000, scoped, tag = 'output window, operand 1, single buffered']
    #allocation5 [shape = 's32[1]{0}', space=sflag, size = 0x4, scoped, tag = 'scoped memory for tpu_custom_call.1']
    %69 = vsyncpa [#allocation3], 0
    %70 = vsyncpa [#allocation5], 0
    // Predicated region
    $region2: #{tpu_custom_call.1} parent=1 // pred_check
      _
    $region3: #{tpu_custom_call.1} parent=1 // pred_check_branch
      %72 = sbr.rel (0) target = $region5
    $region4: #{tpu_custom_call.1} parent=1 // pred_region
      _
    $region5: #{tpu_custom_call.1} parent=1 // pred_fallthru
      _
    // Predicated region
    $region6: #{tpu_custom_call.1} parent=1 // pred_check
      _
    $region7: #{tpu_custom_call.1} parent=1 // pred_check_branch
      %74 = sbr.rel (0) target = $region9
    $region8: #{tpu_custom_call.1} parent=1 // pred_region
      _
    $region9: #{tpu_custom_call.1} parent=1 // pred_fallthru
      _
    // Predicated region
    $region10: #{tpu_custom_call.1} parent=1 // pred_check
      _
    $region11: #{tpu_custom_call.1} parent=1 // pred_check_branch
      %76 = sbr.rel (0) target = $region13
    $region12: #{tpu_custom_call.1} parent=1 // pred_region
      _
    $region13: #{tpu_custom_call.1} parent=1 // pred_fallthru
      _
    // Predicated region
    $region14: #{tpu_custom_call.1} parent=1 // pred_check
      _
    $region15: #{tpu_custom_call.1} parent=1 // pred_check_branch
      %78 = sbr.rel (0) target = $region17
    $region16: #{tpu_custom_call.1} parent=1 // pred_region
      _
    $region17: #{tpu_custom_call.1} parent=1 // pred_fallthru
      _
    // Predicated region
    $region18: #{tpu_custom_call.1} parent=1 // pred_check
      _
    $region19: #{tpu_custom_call.1} parent=1 // pred_check_branch
      %80 = sbr.rel (0) target = $region21
    $region20: #{tpu_custom_call.1} parent=1 // pred_region
      _
    $region21: #{tpu_custom_call.1} parent=1 // pred_fallthru
      _
    // Predicated region
    $region22: #{tpu_custom_call.1} parent=1 // pred_check
      _
    $region23: #{tpu_custom_call.1} parent=1 // pred_check_branch
      %82 = sbr.rel (0) target = $region25
    $region24: #{tpu_custom_call.1} parent=1 // pred_region
      _
    $region25: #{tpu_custom_call.1} parent=1 // pred_fallthru
      _
    // Predicated region
    $region26: #{tpu_custom_call.1} parent=1 // pred_check
      _
    $region27: #{tpu_custom_call.1} parent=1 // pred_check_branch
      %84 = sbr.rel (0) target = $region29
    $region28: #{tpu_custom_call.1} parent=1 // pred_region
      _
    $region29: #{tpu_custom_call.1} parent=1 // pred_fallthru
      _
    // Predicated region
    $region30: #{tpu_custom_call.1} parent=1 // pred_check
      _
    $region31: #{tpu_custom_call.1} parent=1 // pred_check_branch
      %86 = sbr.rel (0) target = $region33
    $region32: #{tpu_custom_call.1} parent=1 // pred_region
      _
    $region33: #{tpu_custom_call.1} parent=1 // pred_fallthru
      _
    // Predicated region
    $region34: #{tpu_custom_call.1} parent=1 // pred_check
      _
    $region35: #{tpu_custom_call.1} parent=1 // pred_check_branch
      %88 = sbr.rel (0) target = $region37
    $region36: #{tpu_custom_call.1} parent=1 // pred_region
      _
    $region37: #{tpu_custom_call.1} parent=1 // pred_fallthru
      _
    // Predicated region
    $region38: #{tpu_custom_call.1} parent=1 // pred_check
      _
    $region39: #{tpu_custom_call.1} parent=1 // pred_check_branch
      %90 = sbr.rel (0) target = $region41
    $region40: #{tpu_custom_call.1} parent=1 // pred_region
      _
    $region41: #{tpu_custom_call.1} parent=1 // pred_fallthru
      _
    // Predicated region
    $region42: #{tpu_custom_call.1} parent=1 // pred_check
      _
    $region43: #{tpu_custom_call.1} parent=1 // pred_check_branch
      %92 = sbr.rel (0) target = $region45
    $region44: #{tpu_custom_call.1} parent=1 // pred_region
      _
    $region45: #{tpu_custom_call.1} parent=1 // pred_fallthru
      _
    // Predicated region
    $region46: #{tpu_custom_call.1} parent=1 // pred_check
      _
    $region47: #{tpu_custom_call.1} parent=1 // pred_check_branch
      %94 = sbr.rel (0) target = $region49
    $region48: #{tpu_custom_call.1} parent=1 // pred_region
      _
    $region49: #{tpu_custom_call.1} parent=1 // pred_fallthru
      _
    // Predicated region
    $region50: #{tpu_custom_call.1} parent=1 // pred_check
      _
    $region51: #{tpu_custom_call.1} parent=1 // pred_check_branch
      %96 = sbr.rel (0) target = $region53
    $region52: #{tpu_custom_call.1} parent=1 // pred_region
      _
    $region53: #{tpu_custom_call.1} parent=1 // pred_fallthru
      _
    // Predicated region
    $region54: #{tpu_custom_call.1} parent=1 // pred_check
      _
    $region55: #{tpu_custom_call.1} parent=1 // pred_check_branch
      %98 = sbr.rel (0) target = $region57
    $region56: #{tpu_custom_call.1} parent=1 // pred_region
      _
    $region57: #{tpu_custom_call.1} parent=1 // pred_fallthru
      _
    // Predicated region
    $region58: #{tpu_custom_call.1} parent=1 // pred_check
      _
    $region59: #{tpu_custom_call.1} parent=1 // pred_check_branch
      %100 = sbr.rel (0) target = $region61
    $region60: #{tpu_custom_call.1} parent=1 // pred_region
      _
    $region61: #{tpu_custom_call.1} parent=1 // pred_fallthru
      _
    // Predicated region
    $region62: #{tpu_custom_call.1} parent=1 // pred_check
      _
    $region63: #{tpu_custom_call.1} parent=1 // pred_check_branch
      %102 = sbr.rel (0) target = $region65
    $region64: #{tpu_custom_call.1} parent=1 // pred_region
      _
    $region65: #{tpu_custom_call.1} parent=1 // pred_fallthru
      _
    // Predicated region
    $region66: #{tpu_custom_call.1} parent=1 // pred_check
      _
    $region67: #{tpu_custom_call.1} parent=1 // pred_check_branch
      %104 = sbr.rel (0) target = $region69
    $region68: #{tpu_custom_call.1} parent=1 // pred_region
      _
    $region69: #{tpu_custom_call.1} parent=1 // pred_fallthru
      _
    // Predicated region
    $region70: #{tpu_custom_call.1} parent=1 // pred_check
      _
    $region71: #{tpu_custom_call.1} parent=1 // pred_check_branch
      %106 = sbr.rel (0) target = $region73
    $region72: #{tpu_custom_call.1} parent=1 // pred_region
      _
    $region73: #{tpu_custom_call.1} parent=1 // pred_fallthru
      _
    // Predicated region
    $region74: #{tpu_custom_call.1} parent=1 // pred_check
      _
    $region75: #{tpu_custom_call.1} parent=1 // pred_check_branch
      %108 = sbr.rel (0) target = $region77
    $region76: #{tpu_custom_call.1} parent=1 // pred_region
      _
    $region77: #{tpu_custom_call.1} parent=1 // pred_fallthru
      _
    // Predicated region
    $region78: #{tpu_custom_call.1} parent=1 // pred_check
      _
    $region79: #{tpu_custom_call.1} parent=1 // pred_check_branch
      %110 = sbr.rel (0) target = $region81
    $region80: #{tpu_custom_call.1} parent=1 // pred_region
      _
    $region81: #{tpu_custom_call.1} parent=1 // pred_fallthru
      _
    // Predicated region
    $region82: #{tpu_custom_call.1} parent=1 // pred_check
      _
    $region83: #{tpu_custom_call.1} parent=1 // pred_check_branch
      %112 = sbr.rel (0) target = $region85
    $region84: #{tpu_custom_call.1} parent=1 // pred_region
      _
    $region85: #{tpu_custom_call.1} parent=1 // pred_fallthru
      _
    // Predicated region
    $region86: #{tpu_custom_call.1} parent=1 // pred_check
      _
    $region87: #{tpu_custom_call.1} parent=1 // pred_check_branch
      %114 = sbr.rel (0) target = $region89
    $region88: #{tpu_custom_call.1} parent=1 // pred_region
      _
    $region89: #{tpu_custom_call.1} parent=1 // pred_fallthru
      _
    // Predicated region
    $region90: #{tpu_custom_call.1} parent=1 // pred_check
      _
    $region91: #{tpu_custom_call.1} parent=1 // pred_check_branch
      %116 = sbr.rel (0) target = $region93
    $region92: #{tpu_custom_call.1} parent=1 // pred_region
      _
    $region93: #{tpu_custom_call.1} parent=1 // pred_fallthru
      _
    // Predicated region
    $region94: #{tpu_custom_call.1} parent=1 // pred_check
      _
    $region95: #{tpu_custom_call.1} parent=1 // pred_check_branch
      %118 = sbr.rel (0) target = $region97
    $region96: #{tpu_custom_call.1} parent=1 // pred_region
      _
    $region97: #{tpu_custom_call.1} parent=1 // pred_fallthru
      _
    // Predicated region
    $region98: #{tpu_custom_call.1} parent=1 // pred_check
      _
    $region99: #{tpu_custom_call.1} parent=1 // pred_check_branch
      %120 = sbr.rel (0) target = $region101
    $region100: #{tpu_custom_call.1} parent=1 // pred_region
      _
    $region101: #{tpu_custom_call.1} parent=1 // pred_fallthru
      _
    // Predicated region
    $region102: #{tpu_custom_call.1} parent=1 // pred_check
      _
    $region103: #{tpu_custom_call.1} parent=1 // pred_check_branch
      %122 = sbr.rel (0) target = $region105
    $region104: #{tpu_custom_call.1} parent=1 // pred_region
      _
    $region105: #{tpu_custom_call.1} parent=1 // pred_fallthru
      _
    // Predicated region
    $region106: #{tpu_custom_call.1} parent=1 // pred_check
      _
    $region107: #{tpu_custom_call.1} parent=1 // pred_check_branch
      %124 = sbr.rel (0) target = $region109
    $region108: #{tpu_custom_call.1} parent=1 // pred_region
      _
    $region109: #{tpu_custom_call.1} parent=1 // pred_fallthru
      _
    // Predicated region
    $region110: #{tpu_custom_call.1} parent=1 // pred_check
      _
    $region111: #{tpu_custom_call.1} parent=1 // pred_check_branch
      %126 = sbr.rel (0) target = $region113
    $region112: #{tpu_custom_call.1} parent=1 // pred_region
      _
    $region113: #{tpu_custom_call.1} parent=1 // pred_fallthru
      _
    // Predicated region
    $region114: #{tpu_custom_call.1} parent=1 // pred_check
      _
    $region115: #{tpu_custom_call.1} parent=1 // pred_check_branch
      %128 = sbr.rel (0) target = $region117
    $region116: #{tpu_custom_call.1} parent=1 // pred_region
      _
    $region117: #{tpu_custom_call.1} parent=1 // pred_fallthru
      _
    // Predicated region
    $region118: #{tpu_custom_call.1} parent=1 // pred_check
      _
    $region119: #{tpu_custom_call.1} parent=1 // pred_check_branch
      %130 = sbr.rel (0) target = $region121
    $region120: #{tpu_custom_call.1} parent=1 // pred_region
      _
    $region121: #{tpu_custom_call.1} parent=1 // pred_fallthru
      _
    %v131 = vld [vmem:[%s1] sm:$0xff]
    %v132 = vld [vmem:[%s1 + $0x8] sm:$0xff]
    %v133 = vld [vmem:[%s9] sm:$0xff]
    %v134 = vld [vmem:[%s9 + $0x8] sm:$0xff]
    %v135 = vld [vmem:[%s11] sm:$0x1]
    %v137 = vlaneseq
    %v138 = vshrl.u32 %v137, 7
    %v139 = vsub.s32 0, %v138
    %v140 = vrot.slane %v135, %v139
    %vm142 = vcmask 130048
    %v144 = vsel %vm142, %v131, 0
    %v147 = vsel %vm142, %v132, 0
    %149 = vmatprep.subr.mxu0 0.0
    %150 = vmatpush1.msra.mxu0 %v133
    %151 = vmatprep.subr.mxu0 0.0
    %152 = vmatpush1.msra.mxu0 %v134
    %153 = vmatprep.subr.mxu0 0.0
    %154 = vmatpush1.msra.mxu0 0.0
    %155 = vmatprep.subr.mxu0 0.0
    %156 = vmatpush1.msra.mxu0 0.0
    %157 = vmatprep.subr.mxu0 0.0
    %158 = vmatpush1.msra.mxu0 0.0
    %159 = vmatprep.subr.mxu0 0.0
    %160 = vmatpush1.msra.mxu0 0.0
    %161 = vmatprep.subr.mxu0 0.0
    %162 = vmatpush1.msra.mxu0 0.0
    %163 = vmatprep.subr.mxu0 0.0
    %164 = vmatpush1.msra.mxu0 0.0
    %165 = vmatprep.subr.mxu0 0.0
    %166 = vmatpush1.msra.mxu0 0.0
    %167 = vmatprep.subr.mxu0 0.0
    %168 = vmatpush1.msra.mxu0 0.0
    %169 = vmatprep.subr.mxu0 0.0
    %170 = vmatpush1.msra.mxu0 0.0
    %171 = vmatprep.subr.mxu0 0.0
    %172 = vmatpush1.msra.mxu0 0.0
    %173 = vmatprep.subr.mxu0 0.0
    %174 = vmatpush1.msra.mxu0 0.0
    %175 = vmatprep.subr.mxu0 0.0
    %176 = vmatpush1.msra.mxu0 0.0
    %177 = vmatprep.subr.mxu0 0.0
    %178 = vmatpush1.msra.mxu0 0.0
    %179 = vmatprep.subr.mxu0 0.0
    %180 = vmatpush1.msra.mxu0 0.0
    %181 = vmatprep.subr.mxu0 0.0
    %182 = vmatpush1.msra.mxu0 0.0
    %183 = vmatprep.subr.mxu0 0.0
    %184 = vmatpush1.msra.mxu0 0.0
    %185 = vmatprep.subr.mxu0 0.0
    %186 = vmatpush1.msra.mxu0 0.0
    %187 = vmatprep.subr.mxu0 0.0
    %188 = vmatpush1.msra.mxu0 0.0
    %189 = vmatprep.subr.mxu0 0.0
    %190 = vmatpush1.msra.mxu0 0.0
    %191 = vmatprep.subr.mxu0 0.0
    %192 = vmatpush1.msra.mxu0 0.0
    %193 = vmatprep.subr.mxu0 0.0
    %194 = vmatpush1.msra.mxu0 0.0
    %195 = vmatprep.subr.mxu0 0.0
    %196 = vmatpush1.msra.mxu0 0.0
    %197 = vmatprep.subr.mxu0 0.0
    %198 = vmatpush1.msra.mxu0 0.0
    %199 = vmatprep.subr.mxu0 0.0
    %200 = vmatpush1.msra.mxu0 0.0
    %201 = vmatprep.subr.mxu0 0.0
    %202 = vmatpush1.msra.mxu0 0.0
    %203 = vmatprep.subr.mxu0 0.0
    %204 = vmatpush1.msra.mxu0 0.0
    %205 = vmatprep.subr.mxu0 0.0
    %206 = vmatpush1.msra.mxu0 0.0
    %207 = vmatprep.subr.mxu0 0.0
    %208 = vmatpush1.msra.mxu0 0.0
    %209 = vmatprep.subr.mxu0 0.0
    %210 = vmatpush1.msra.mxu0 0.0
    %211 = vmatprep.subr.mxu0 0.0
    %212 = vmatpush1.msra.mxu0 0.0
    %213 = vmatprep.mubr.f32.mxu0 0.0
    %214 = vmatmul.mubr.f32.gmra.mrb[0].mxu0 %v144
    %v215 = vpop.f32.mrb[0].mxu0
    %v216 = vadd.f32 %v140, %v215
    %v217 = vpop.f32.mrb[0].mxu0
    %218 = vmatprep.mubr.f32.mxu0 0.0
    %219 = vmatmul.mubr.f32.gmra.mrb[0].mxu0 %v147
    %v220 = vpop.f32.mrb[0].mxu0
    %v221 = vadd.f32 %v140, %v220
    %v222 = vpop.f32.mrb[0].mxu0
    %223 = vdwg.mxu0
    %v224 = vmax.f32 %v216, 0.0
    %v225 = vmax.f32 %v221, 0.0
    %v226 = vld [vmem:[%s3] sm:$0xff]
    %v227 = vld [vmem:[%s3 + $0x8] sm:$0xff]
    %v228 = vlaneseq
    %v229 = vand.u32 %v228, 127
    %230 = vset.pattern.permute.xlu0 0
    %231 = vperm.xlu0 %230, %v226
    %v232 = vpop.permute.xlu0 %231
    %233 = vset.pattern.permute.xlu0 0
    %234 = vperm.xlu0 %233, %v227
    %v235 = vpop.permute.xlu0 %234
    %vm236 = vcmp.eq.s32.totalorder %v232, %v229
    %vm237 = vcmp.eq.s32.totalorder %v235, %v229
    %v238 = vsel %vm236, 1, 0
    %v239 = vsel %vm237, 1, 0
    %v240 = vcvt.s32.f32 %v238
    %v241 = vcvt.s32.f32 %v239
    %v242 = vld [vmem:[%s13] sm:$0xff]
    %v243 = vld [vmem:[%s13 + $0x8] sm:$0xff]
    %v244 = vld [vmem:[%s13 + $0x10] sm:$0xff]
    %v245 = vld [vmem:[%s13 + $0x18] sm:$0xff]
    %vm246 = vcmask 261120
    %v248 = vsel %vm246, %v240, 0
    %v251 = vsel %vm246, %v241, 0
    %253 = vmatprep.subr.mxu0 0.0
    %254 = vmatpush1.msra.mxu0 %v242
    %255 = vmatprep.subr.mxu0 0.0
    %256 = vmatpush1.msra.mxu0 %v243
    %257 = vmatprep.subr.mxu0 0.0
    %258 = vmatpush1.msra.mxu0 %v244
    %259 = vmatprep.subr.mxu0 0.0
    %260 = vmatpush1.msra.mxu0 %v245
    %261 = vmatprep.subr.mxu0 0.0
    %262 = vmatpush1.msra.mxu0 0.0
    %263 = vmatprep.subr.mxu0 0.0
    %264 = vmatpush1.msra.mxu0 0.0
    %265 = vmatprep.subr.mxu0 0.0
    %266 = vmatpush1.msra.mxu0 0.0
    %267 = vmatprep.subr.mxu0 0.0
    %268 = vmatpush1.msra.mxu0 0.0
    %269 = vmatprep.subr.mxu0 0.0
    %270 = vmatpush1.msra.mxu0 0.0
    %271 = vmatprep.subr.mxu0 0.0
    %272 = vmatpush1.msra.mxu0 0.0
    %273 = vmatprep.subr.mxu0 0.0
    %274 = vmatpush1.msra.mxu0 0.0
    %275 = vmatprep.subr.mxu0 0.0
    %276 = vmatpush1.msra.mxu0 0.0
    %277 = vmatprep.subr.mxu0 0.0
    %278 = vmatpush1.msra.mxu0 0.0
    %279 = vmatprep.subr.mxu0 0.0
    %280 = vmatpush1.msra.mxu0 0.0
    %281 = vmatprep.subr.mxu0 0.0
    %282 = vmatpush1.msra.mxu0 0.0
    %283 = vmatprep.subr.mxu0 0.0
    %284 = vmatpush1.msra.mxu0 0.0
    %285 = vmatprep.subr.mxu0 0.0
    %286 = vmatpush1.msra.mxu0 0.0
    %287 = vmatprep.subr.mxu0 0.0
    %288 = vmatpush1.msra.mxu0 0.0
    %289 = vmatprep.subr.mxu0 0.0
    %290 = vmatpush1.msra.mxu0 0.0
    %291 = vmatprep.subr.mxu0 0.0
    %292 = vmatpush1.msra.mxu0 0.0
    %293 = vmatprep.subr.mxu0 0.0
    %294 = vmatpush1.msra.mxu0 0.0
    %295 = vmatprep.subr.mxu0 0.0
    %296 = vmatpush1.msra.mxu0 0.0
    %297 = vmatprep.subr.mxu0 0.0
    %298 = vmatpush1.msra.mxu0 0.0
    %299 = vmatprep.subr.mxu0 0.0
    %300 = vmatpush1.msra.mxu0 0.0
    %301 = vmatprep.subr.mxu0 0.0
    %302 = vmatpush1.msra.mxu0 0.0
    %303 = vmatprep.subr.mxu0 0.0
    %304 = vmatpush1.msra.mxu0 0.0
    %305 = vmatprep.subr.mxu0 0.0
    %306 = vmatpush1.msra.mxu0 0.0
    %307 = vmatprep.subr.mxu0 0.0
    %308 = vmatpush1.msra.mxu0 0.0
    %309 = vmatprep.subr.mxu0 0.0
    %310 = vmatpush1.msra.mxu0 0.0
    %311 = vmatprep.subr.mxu0 0.0
    %312 = vmatpush1.msra.mxu0 0.0
    %313 = vmatprep.subr.mxu0 0.0
    %314 = vmatpush1.msra.mxu0 0.0
    %315 = vmatprep.subr.mxu0 0.0
    %316 = vmatpush1.msra.mxu0 0.0
    %317 = vmatprep.mubr.f32.mxu0 0.0
    %318 = vmatmul.mubr.f32.gmra.mrb[0].mxu0 %v248
    %v319 = vpop.f32.mrb[0].mxu0
    %v320 = vadd.f32 0.0, %v319
    %v321 = vpop.f32.mrb[0].mxu0
    %322 = vmatprep.mubr.f32.mxu0 0.0
    %323 = vmatmul.mubr.f32.gmra.mrb[0].mxu0 %v251
    %v324 = vpop.f32.mrb[0].mxu0
    %v325 = vadd.f32 0.0, %v324
    %v326 = vpop.f32.mrb[0].mxu0
    %327 = vdwg.mxu0
    %v328 = vld [vmem:[%s5] sm:$0xff]
    %v329 = vld [vmem:[%s5 + $0x8] sm:$0xff]
    %330 = vset.pattern.permute.xlu0 0
    %331 = vperm.xlu0 %330, %v328
    %v332 = vpop.permute.xlu0 %331
    %333 = vset.pattern.permute.xlu0 0
    %334 = vperm.xlu0 %333, %v329
    %v335 = vpop.permute.xlu0 %334
    %vm336 = vcmp.eq.s32.totalorder %v332, %v229
    %vm337 = vcmp.eq.s32.totalorder %v335, %v229
    %v338 = vsel %vm336, 1, 0
    %v339 = vsel %vm337, 1, 0
    %v340 = vcvt.s32.f32 %v338
    %v341 = vcvt.s32.f32 %v339
    %v342 = vld [vmem:[%s15] sm:$0xff]
    %vm343 = vcmask 64512
    %v345 = vsel %vm343, %v340, 0
    %v348 = vsel %vm343, %v341, 0
    %350 = vmatprep.subr.mxu0 0.0
    %351 = vmatpush1.msra.mxu0 %v342
    %352 = vmatprep.subr.mxu0 0.0
    %353 = vmatpush1.msra.mxu0 0.0
    %354 = vmatprep.subr.mxu0 0.0
    %355 = vmatpush1.msra.mxu0 0.0
    %356 = vmatprep.subr.mxu0 0.0
    %357 = vmatpush1.msra.mxu0 0.0
    %358 = vmatprep.subr.mxu0 0.0
    %359 = vmatpush1.msra.mxu0 0.0
    %360 = vmatprep.subr.mxu0 0.0
    %361 = vmatpush1.msra.mxu0 0.0
    %362 = vmatprep.subr.mxu0 0.0
    %363 = vmatpush1.msra.mxu0 0.0
    %364 = vmatprep.subr.mxu0 0.0
    %365 = vmatpush1.msra.mxu0 0.0
    %366 = vmatprep.subr.mxu0 0.0
    %367 = vmatpush1.msra.mxu0 0.0
    %368 = vmatprep.subr.mxu0 0.0
    %369 = vmatpush1.msra.mxu0 0.0
    %370 = vmatprep.subr.mxu0 0.0
    %371 = vmatpush1.msra.mxu0 0.0
    %372 = vmatprep.subr.mxu0 0.0
    %373 = vmatpush1.msra.mxu0 0.0
    %374 = vmatprep.subr.mxu0 0.0
    %375 = vmatpush1.msra.mxu0 0.0
    %376 = vmatprep.subr.mxu0 0.0
    %377 = vmatpush1.msra.mxu0 0.0
    %378 = vmatprep.subr.mxu0 0.0
    %379 = vmatpush1.msra.mxu0 0.0
    %380 = vmatprep.subr.mxu0 0.0
    %381 = vmatpush1.msra.mxu0 0.0
    %382 = vmatprep.subr.mxu0 0.0
    %383 = vmatpush1.msra.mxu0 0.0
    %384 = vmatprep.subr.mxu0 0.0
    %385 = vmatpush1.msra.mxu0 0.0
    %386 = vmatprep.subr.mxu0 0.0
    %387 = vmatpush1.msra.mxu0 0.0
    %388 = vmatprep.subr.mxu0 0.0
    %389 = vmatpush1.msra.mxu0 0.0
    %390 = vmatprep.subr.mxu0 0.0
    %391 = vmatpush1.msra.mxu0 0.0
    %392 = vmatprep.subr.mxu0 0.0
    %393 = vmatpush1.msra.mxu0 0.0
    %394 = vmatprep.subr.mxu0 0.0
    %395 = vmatpush1.msra.mxu0 0.0
    %396 = vmatprep.subr.mxu0 0.0
    %397 = vmatpush1.msra.mxu0 0.0
    %398 = vmatprep.subr.mxu0 0.0
    %399 = vmatpush1.msra.mxu0 0.0
    %400 = vmatprep.subr.mxu0 0.0
    %401 = vmatpush1.msra.mxu0 0.0
    %402 = vmatprep.subr.mxu0 0.0
    %403 = vmatpush1.msra.mxu0 0.0
    %404 = vmatprep.subr.mxu0 0.0
    %405 = vmatpush1.msra.mxu0 0.0
    %406 = vmatprep.subr.mxu0 0.0
    %407 = vmatpush1.msra.mxu0 0.0
    %408 = vmatprep.subr.mxu0 0.0
    %409 = vmatpush1.msra.mxu0 0.0
    %410 = vmatprep.subr.mxu0 0.0
    %411 = vmatpush1.msra.mxu0 0.0
    %412 = vmatprep.subr.mxu0 0.0
    %413 = vmatpush1.msra.mxu0 0.0
    %414 = vmatprep.mubr.f32.mxu0 0.0
    %415 = vmatmul.mubr.f32.gmra.mrb[0].mxu0 %v345
    %v416 = vpop.f32.mrb[0].mxu0
    %v417 = vadd.f32 %v320, %v416
    %v418 = vpop.f32.mrb[0].mxu0
    %419 = vmatprep.mubr.f32.mxu0 0.0
    %420 = vmatmul.mubr.f32.gmra.mrb[0].mxu0 %v348
    %v421 = vpop.f32.mrb[0].mxu0
    %v422 = vadd.f32 %v325, %v421
    %v423 = vpop.f32.mrb[0].mxu0
    %424 = vdwg.mxu0
    %v425 = vld [vmem:[%s7] sm:$0xff]
    %v426 = vld [vmem:[%s7 + $0x8] sm:$0xff]
    %v427 = vld [vmem:[%s17] sm:$0x1]
    %429 = vset.pattern.permute.xlu0 0
    %430 = vperm.xlu0 %429, %v425
    %v431 = vpop.permute.xlu0 %430
    %434 = vset.pattern.permute.xlu0 0
    %435 = vperm.xlu0 %434, %v426
    %v436 = vpop.permute.xlu0 %435
    %v439 = vlaneseq
    %v440 = vshrl.u32 %v439, 7
    %v441 = vsub.s32 0, %v440
    %v442 = vrot.slane %v427, %v441
    %v444 = vmul.f32 %v431, %v442
    %v445 = vmul.f32 %v436, %v442
    %v446 = vld [vmem:[%s19] sm:$0x1]
    %v448 = vlaneseq
    %v449 = vshrl.u32 %v448, 7
    %v450 = vsub.s32 0, %v449
    %v451 = vrot.slane %v446, %v450
    %v453 = vadd.f32 %v444, %v451
    %v454 = vadd.f32 %v445, %v451
    %v455 = vadd.f32 %v453, %v320
    %v456 = vadd.f32 %v454, %v325
    %v457 = vadd.f32 %v224, %v320
    %v458 = vadd.f32 %v225, %v325
    %v459 = vld [vmem:[%s21] sm:$0xff]
    %v460 = vld [vmem:[%s21 + $0x8] sm:$0xff]
    %v461 = vld [vmem:[%s21 + $0x10] sm:$0xff]
    %v462 = vld [vmem:[%s21 + $0x18] sm:$0xff]
    %v463 = vld [vmem:[%s21 + $0x20] sm:$0xff]
    %v464 = vld [vmem:[%s21 + $0x28] sm:$0xff]
    %v465 = vld [vmem:[%s23] sm:$0xff]
    %v466 = vld [vmem:[%s23 + $0x8] sm:$0xff]
    %v467 = vld [vmem:[%s23 + $0x10] sm:$0xff]
    %v468 = vld [vmem:[%s23 + $0x18] sm:$0xff]
    %v469 = vld [vmem:[%s23 + $0x20] sm:$0xff]
    %v470 = vld [vmem:[%s23 + $0x28] sm:$0xff]
    %v472 = vsel %vm142, %v465, 0
    %v475 = vsel %vm142, %v466, 0
    %v478 = vsel %vm142, %v467, 0
    %v481 = vsel %vm142, %v468, 0
    %v484 = vsel %vm142, %v469, 0
    %v487 = vsel %vm142, %v470, 0
    %489 = vmatprep.subr.mxu0 0.0
    %490 = vmatpush1.msra.mxu0 %v457
    %491 = vmatprep.subr.mxu0 0.0
    %492 = vmatpush1.msra.mxu0 %v458
    %493 = vmatprep.subr.mxu0 0.0
    %494 = vmatpush1.msra.mxu0 0.0
    %495 = vmatprep.subr.mxu0 0.0
    %496 = vmatpush1.msra.mxu0 0.0
    %497 = vmatprep.subr.mxu0 0.0
    %498 = vmatpush1.msra.mxu0 0.0
    %499 = vmatprep.subr.mxu0 0.0
    %500 = vmatpush1.msra.mxu0 0.0
    %501 = vmatprep.subr.mxu0 0.0
    %502 = vmatpush1.msra.mxu0 0.0
    %503 = vmatprep.subr.mxu0 0.0
    %504 = vmatpush1.msra.mxu0 0.0
    %505 = vmatprep.subr.mxu0 0.0
    %506 = vmatpush1.msra.mxu0 0.0
    %507 = vmatprep.subr.mxu0 0.0
    %508 = vmatpush1.msra.mxu0 0.0
    %509 = vmatprep.subr.mxu0 0.0
    %510 = vmatpush1.msra.mxu0 0.0
    %511 = vmatprep.subr.mxu0 0.0
    %512 = vmatpush1.msra.mxu0 0.0
    %513 = vmatprep.subr.mxu0 0.0
    %514 = vmatpush1.msra.mxu0 0.0
    %515 = vmatprep.subr.mxu0 0.0
    %516 = vmatpush1.msra.mxu0 0.0
    %517 = vmatprep.subr.mxu0 0.0
    %518 = vmatpush1.msra.mxu0 0.0
    %519 = vmatprep.subr.mxu0 0.0
    %520 = vmatpush1.msra.mxu0 0.0
    %521 = vmatprep.subr.mxu0 0.0
    %522 = vmatpush1.msra.mxu0 0.0
    %523 = vmatprep.subr.mxu0 0.0
    %524 = vmatpush1.msra.mxu0 0.0
    %525 = vmatprep.subr.mxu0 0.0
    %526 = vmatpush1.msra.mxu0 0.0
    %527 = vmatprep.subr.mxu0 0.0
    %528 = vmatpush1.msra.mxu0 0.0
    %529 = vmatprep.subr.mxu0 0.0
    %530 = vmatpush1.msra.mxu0 0.0
    %531 = vmatprep.subr.mxu0 0.0
    %532 = vmatpush1.msra.mxu0 0.0
    %533 = vmatprep.subr.mxu0 0.0
    %534 = vmatpush1.msra.mxu0 0.0
    %535 = vmatprep.subr.mxu0 0.0
    %536 = vmatpush1.msra.mxu0 0.0
    %537 = vmatprep.subr.mxu0 0.0
    %538 = vmatpush1.msra.mxu0 0.0
    %539 = vmatprep.subr.mxu0 0.0
    %540 = vmatpush1.msra.mxu0 0.0
    %541 = vmatprep.subr.mxu0 0.0
    %542 = vmatpush1.msra.mxu0 0.0
    %543 = vmatprep.subr.mxu0 0.0
    %544 = vmatpush1.msra.mxu0 0.0
    %545 = vmatprep.subr.mxu0 0.0
    %546 = vmatpush1.msra.mxu0 0.0
    %547 = vmatprep.subr.mxu0 0.0
    %548 = vmatpush1.msra.mxu0 0.0
    %549 = vmatprep.subr.mxu0 0.0
    %550 = vmatpush1.msra.mxu0 0.0
    %551 = vmatprep.subr.mxu0 0.0
    %552 = vmatpush1.msra.mxu0 0.0
    %553 = vmatprep.mubr.f32.mxu0 0.0
    %554 = vmatmul.mubr.f32.gmra.mrb[0].mxu0 %v472
    %v555 = vpop.f32.mrb[0].mxu0
    %v556 = vadd.f32 0.0, %v555
    %v557 = vpop.f32.mrb[0].mxu0
    %558 = vmatprep.mubr.f32.mxu0 0.0
    %559 = vmatmul.mubr.f32.gmra.mrb[0].mxu0 %v475
    %v560 = vpop.f32.mrb[0].mxu0
    %v561 = vadd.f32 0.0, %v560
    %v562 = vpop.f32.mrb[0].mxu0
    %563 = vmatprep.mubr.f32.mxu0 0.0
    %564 = vmatmul.mubr.f32.gmra.mrb[0].mxu0 %v478
    %v565 = vpop.f32.mrb[0].mxu0
    %v566 = vadd.f32 0.0, %v565
    %v567 = vpop.f32.mrb[0].mxu0
    %568 = vmatprep.mubr.f32.mxu0 0.0
    %569 = vmatmul.mubr.f32.gmra.mrb[0].mxu0 %v481
    %v570 = vpop.f32.mrb[0].mxu0
    %v571 = vadd.f32 0.0, %v570
    %v572 = vpop.f32.mrb[0].mxu0
    %573 = vmatprep.mubr.f32.mxu0 0.0
    %574 = vmatmul.mubr.f32.gmra.mrb[0].mxu0 %v484
    %v575 = vpop.f32.mrb[0].mxu0
    %v576 = vadd.f32 0.0, %v575
    %v577 = vpop.f32.mrb[0].mxu0
    %578 = vmatprep.mubr.f32.mxu0 0.0
    %579 = vmatmul.mubr.f32.gmra.mrb[0].mxu0 %v487
    %v580 = vpop.f32.mrb[0].mxu0
    %v581 = vadd.f32 0.0, %v580
    %v582 = vpop.f32.mrb[0].mxu0
    %583 = vdwg.mxu0
    %v585 = vsel %vm142, %v459, 0
    %v588 = vsel %vm142, %v460, 0
    %v591 = vsel %vm142, %v461, 0
    %v594 = vsel %vm142, %v462, 0
    %v597 = vsel %vm142, %v463, 0
    %v600 = vsel %vm142, %v464, 0
    %602 = vmatprep.subr.mxu0 0.0
    %603 = vmatpush1.msra.mxu0 %v455
    %604 = vmatprep.subr.mxu0 0.0
    %605 = vmatpush1.msra.mxu0 %v456
    %606 = vmatprep.subr.mxu0 0.0
    %607 = vmatpush1.msra.mxu0 0.0
    %608 = vmatprep.subr.mxu0 0.0
    %609 = vmatpush1.msra.mxu0 0.0
    %610 = vmatprep.subr.mxu0 0.0
    %611 = vmatpush1.msra.mxu0 0.0
    %612 = vmatprep.subr.mxu0 0.0
    %613 = vmatpush1.msra.mxu0 0.0
    %614 = vmatprep.subr.mxu0 0.0
    %615 = vmatpush1.msra.mxu0 0.0
    %616 = vmatprep.subr.mxu0 0.0
    %617 = vmatpush1.msra.mxu0 0.0
    %618 = vmatprep.subr.mxu0 0.0
    %619 = vmatpush1.msra.mxu0 0.0
    %620 = vmatprep.subr.mxu0 0.0
    %621 = vmatpush1.msra.mxu0 0.0
    %622 = vmatprep.subr.mxu0 0.0
    %623 = vmatpush1.msra.mxu0 0.0
    %624 = vmatprep.subr.mxu0 0.0
    %625 = vmatpush1.msra.mxu0 0.0
    %626 = vmatprep.subr.mxu0 0.0
    %627 = vmatpush1.msra.mxu0 0.0
    %628 = vmatprep.subr.mxu0 0.0
    %629 = vmatpush1.msra.mxu0 0.0
    %630 = vmatprep.subr.mxu0 0.0
    %631 = vmatpush1.msra.mxu0 0.0
    %632 = vmatprep.subr.mxu0 0.0
    %633 = vmatpush1.msra.mxu0 0.0
    %634 = vmatprep.subr.mxu0 0.0
    %635 = vmatpush1.msra.mxu0 0.0
    %636 = vmatprep.subr.mxu0 0.0
    %637 = vmatpush1.msra.mxu0 0.0
    %638 = vmatprep.subr.mxu0 0.0
    %639 = vmatpush1.msra.mxu0 0.0
    %640 = vmatprep.subr.mxu0 0.0
    %641 = vmatpush1.msra.mxu0 0.0
    %642 = vmatprep.subr.mxu0 0.0
    %643 = vmatpush1.msra.mxu0 0.0
    %644 = vmatprep.subr.mxu0 0.0
    %645 = vmatpush1.msra.mxu0 0.0
    %646 = vmatprep.subr.mxu0 0.0
    %647 = vmatpush1.msra.mxu0 0.0
    %648 = vmatprep.subr.mxu0 0.0
    %649 = vmatpush1.msra.mxu0 0.0
    %650 = vmatprep.subr.mxu0 0.0
    %651 = vmatpush1.msra.mxu0 0.0
    %652 = vmatprep.subr.mxu0 0.0
    %653 = vmatpush1.msra.mxu0 0.0
    %654 = vmatprep.subr.mxu0 0.0
    %655 = vmatpush1.msra.mxu0 0.0
    %656 = vmatprep.subr.mxu0 0.0
    %657 = vmatpush1.msra.mxu0 0.0
    %658 = vmatprep.subr.mxu0 0.0
    %659 = vmatpush1.msra.mxu0 0.0
    %660 = vmatprep.subr.mxu0 0.0
    %661 = vmatpush1.msra.mxu0 0.0
    %662 = vmatprep.subr.mxu0 0.0
    %663 = vmatpush1.msra.mxu0 0.0
    %664 = vmatprep.subr.mxu0 0.0
    %665 = vmatpush1.msra.mxu0 0.0
    %666 = vmatprep.mubr.f32.mxu0 0.0
    %667 = vmatmul.mubr.f32.gmra.mrb[0].mxu0 %v585
    %v668 = vpop.f32.mrb[0].mxu0
    %v669 = vadd.f32 %v556, %v668
    %v670 = vpop.f32.mrb[0].mxu0
    %671 = vmatprep.mubr.f32.mxu0 0.0
    %672 = vmatmul.mubr.f32.gmra.mrb[0].mxu0 %v588
    %v673 = vpop.f32.mrb[0].mxu0
    %v674 = vadd.f32 %v561, %v673
    %v675 = vpop.f32.mrb[0].mxu0
    %676 = vmatprep.mubr.f32.mxu0 0.0
    %677 = vmatmul.mubr.f32.gmra.mrb[0].mxu0 %v591
    %v678 = vpop.f32.mrb[0].mxu0
    %v679 = vadd.f32 %v566, %v678
    %v680 = vpop.f32.mrb[0].mxu0
    %681 = vmatprep.mubr.f32.mxu0 0.0
    %682 = vmatmul.mubr.f32.gmra.mrb[0].mxu0 %v594
    %v683 = vpop.f32.mrb[0].mxu0
    %v684 = vadd.f32 %v571, %v683
    %v685 = vpop.f32.mrb[0].mxu0
    %686 = vmatprep.mubr.f32.mxu0 0.0
    %687 = vmatmul.mubr.f32.gmra.mrb[0].mxu0 %v597
    %v688 = vpop.f32.mrb[0].mxu0
    %v689 = vadd.f32 %v576, %v688
    %v690 = vpop.f32.mrb[0].mxu0
    %691 = vmatprep.mubr.f32.mxu0 0.0
    %692 = vmatmul.mubr.f32.gmra.mrb[0].mxu0 %v600
    %v693 = vpop.f32.mrb[0].mxu0
    %v694 = vadd.f32 %v581, %v693
    %v695 = vpop.f32.mrb[0].mxu0
    %696 = vdwg.mxu0
    %v697 = vld [vmem:[%s25] sm:$0xff]
    %v698 = vld [vmem:[%s25 + $0x8] sm:$0xff]
    %v699 = vld [vmem:[%s25 + $0x10] sm:$0xff]
    %v700 = vld [vmem:[%s25 + $0x18] sm:$0xff]
    %v701 = vld [vmem:[%s25 + $0x20] sm:$0xff]
    %v702 = vld [vmem:[%s25 + $0x28] sm:$0xff]
    %v704 = vsel %vm142, %v697, 0
    %v707 = vsel %vm142, %v698, 0
    %v710 = vsel %vm142, %v699, 0
    %v713 = vsel %vm142, %v700, 0
    %v716 = vsel %vm142, %v701, 0
    %v719 = vsel %vm142, %v702, 0
    %721 = vmatprep.subr.mxu0 0.0
    %722 = vmatpush1.msra.mxu0 %v417
    %723 = vmatprep.subr.mxu0 0.0
    %724 = vmatpush1.msra.mxu0 %v422
    %725 = vmatprep.subr.mxu0 0.0
    %726 = vmatpush1.msra.mxu0 0.0
    %727 = vmatprep.subr.mxu0 0.0
    %728 = vmatpush1.msra.mxu0 0.0
    %729 = vmatprep.subr.mxu0 0.0
    %730 = vmatpush1.msra.mxu0 0.0
    %731 = vmatprep.subr.mxu0 0.0
    %732 = vmatpush1.msra.mxu0 0.0
    %733 = vmatprep.subr.mxu0 0.0
    %734 = vmatpush1.msra.mxu0 0.0
    %735 = vmatprep.subr.mxu0 0.0
    %736 = vmatpush1.msra.mxu0 0.0
    %737 = vmatprep.subr.mxu0 0.0
    %738 = vmatpush1.msra.mxu0 0.0
    %739 = vmatprep.subr.mxu0 0.0
    %740 = vmatpush1.msra.mxu0 0.0
    %741 = vmatprep.subr.mxu0 0.0
    %742 = vmatpush1.msra.mxu0 0.0
    %743 = vmatprep.subr.mxu0 0.0
    %744 = vmatpush1.msra.mxu0 0.0
    %745 = vmatprep.subr.mxu0 0.0
    %746 = vmatpush1.msra.mxu0 0.0
    %747 = vmatprep.subr.mxu0 0.0
    %748 = vmatpush1.msra.mxu0 0.0
    %749 = vmatprep.subr.mxu0 0.0
    %750 = vmatpush1.msra.mxu0 0.0
    %751 = vmatprep.subr.mxu0 0.0
    %752 = vmatpush1.msra.mxu0 0.0
    %753 = vmatprep.subr.mxu0 0.0
    %754 = vmatpush1.msra.mxu0 0.0
    %755 = vmatprep.subr.mxu0 0.0
    %756 = vmatpush1.msra.mxu0 0.0
    %757 = vmatprep.subr.mxu0 0.0
    %758 = vmatpush1.msra.mxu0 0.0
    %759 = vmatprep.subr.mxu0 0.0
    %760 = vmatpush1.msra.mxu0 0.0
    %761 = vmatprep.subr.mxu0 0.0
    %762 = vmatpush1.msra.mxu0 0.0
    %763 = vmatprep.subr.mxu0 0.0
    %764 = vmatpush1.msra.mxu0 0.0
    %765 = vmatprep.subr.mxu0 0.0
    %766 = vmatpush1.msra.mxu0 0.0
    %767 = vmatprep.subr.mxu0 0.0
    %768 = vmatpush1.msra.mxu0 0.0
    %769 = vmatprep.subr.mxu0 0.0
    %770 = vmatpush1.msra.mxu0 0.0
    %771 = vmatprep.subr.mxu0 0.0
    %772 = vmatpush1.msra.mxu0 0.0
    %773 = vmatprep.subr.mxu0 0.0
    %774 = vmatpush1.msra.mxu0 0.0
    %775 = vmatprep.subr.mxu0 0.0
    %776 = vmatpush1.msra.mxu0 0.0
    %777 = vmatprep.subr.mxu0 0.0
    %778 = vmatpush1.msra.mxu0 0.0
    %779 = vmatprep.subr.mxu0 0.0
    %780 = vmatpush1.msra.mxu0 0.0
    %781 = vmatprep.subr.mxu0 0.0
    %782 = vmatpush1.msra.mxu0 0.0
    %783 = vmatprep.subr.mxu0 0.0
    %784 = vmatpush1.msra.mxu0 0.0
    %785 = vmatprep.mubr.f32.mxu0 0.0
    %786 = vmatmul.mubr.f32.gmra.mrb[0].mxu0 %v704
    %v787 = vpop.f32.mrb[0].mxu0
    %v788 = vadd.f32 0.0, %v787
    %v789 = vpop.f32.mrb[0].mxu0
    %790 = vmatprep.mubr.f32.mxu0 0.0
    %791 = vmatmul.mubr.f32.gmra.mrb[0].mxu0 %v707
    %v792 = vpop.f32.mrb[0].mxu0
    %v793 = vadd.f32 0.0, %v792
    %v794 = vpop.f32.mrb[0].mxu0
    %795 = vmatprep.mubr.f32.mxu0 0.0
    %796 = vmatmul.mubr.f32.gmra.mrb[0].mxu0 %v710
    %v797 = vpop.f32.mrb[0].mxu0
    %v798 = vadd.f32 0.0, %v797
    %v799 = vpop.f32.mrb[0].mxu0
    %800 = vmatprep.mubr.f32.mxu0 0.0
    %801 = vmatmul.mubr.f32.gmra.mrb[0].mxu0 %v713
    %v802 = vpop.f32.mrb[0].mxu0
    %v803 = vadd.f32 0.0, %v802
    %v804 = vpop.f32.mrb[0].mxu0
    %805 = vmatprep.mubr.f32.mxu0 0.0
    %806 = vmatmul.mubr.f32.gmra.mrb[0].mxu0 %v716
    %v807 = vpop.f32.mrb[0].mxu0
    %v808 = vadd.f32 0.0, %v807
    %v809 = vpop.f32.mrb[0].mxu0
    %810 = vmatprep.mubr.f32.mxu0 0.0
    %811 = vmatmul.mubr.f32.gmra.mrb[0].mxu0 %v719
    %v812 = vpop.f32.mrb[0].mxu0
    %v813 = vadd.f32 0.0, %v812
    %v814 = vpop.f32.mrb[0].mxu0
    %815 = vdwg.mxu0
    %v816 = vadd.f32 %v669, %v788
    %v817 = vadd.f32 %v674, %v793
    %v818 = vadd.f32 %v679, %v798
    %v819 = vadd.f32 %v684, %v803
    %v820 = vadd.f32 %v689, %v808
    %v821 = vadd.f32 %v694, %v813
    %v822 = vld [vmem:[%s29] sm:$0xff]
    %v823 = vld [vmem:[%s29 + $0x8] sm:$0xff]
    %v824 = vld [vmem:[%s29 + $0x10] sm:$0xff]
    %v825 = vld [vmem:[%s29 + $0x18] sm:$0xff]
    %v826 = vld [vmem:[%s29 + $0x20] sm:$0xff]
    %v827 = vld [vmem:[%s29 + $0x28] sm:$0xff]
    %v828 = vld [vmem:[%s39] sm:$0x1]
    %v829 = vld [vmem:[%s41] sm:$0x1]
    %v830 = vsel %vm246, %v816, 0.0
    %831 = vadd.xlane.f32.xlu0 %v830
    %v832 = vpop.xlane.xlu0 %831
    %v833 = vsel %vm246, %v817, 0.0
    %834 = vadd.xlane.f32.xlu0 %v833
    %v835 = vpop.xlane.xlu0 %834
    %v836 = vsel %vm246, %v818, 0.0
    %837 = vadd.xlane.f32.xlu0 %v836
    %v838 = vpop.xlane.xlu0 %837
    %v839 = vsel %vm246, %v819, 0.0
    %840 = vadd.xlane.f32.xlu0 %v839
    %v841 = vpop.xlane.xlu0 %840
    %v842 = vsel %vm246, %v820, 0.0
    %843 = vadd.xlane.f32.xlu0 %v842
    %v844 = vpop.xlane.xlu0 %843
    %v845 = vsel %vm246, %v821, 0.0
    %846 = vadd.xlane.f32.xlu0 %v845
    %v847 = vpop.xlane.xlu0 %846
    %v848 = vrcp.pop 32.0
    %v849 = vmul.f32 %v832, %v848
    %v850 = vmul.f32 %v835, %v848
    %v851 = vmul.f32 %v838, %v848
    %v852 = vmul.f32 %v841, %v848
    %v853 = vmul.f32 %v844, %v848
    %v854 = vmul.f32 %v847, %v848
    %v855 = vsub.f32 %v816, %v849
    %v856 = vsub.f32 %v817, %v850
    %v857 = vsub.f32 %v818, %v851
    %v858 = vsub.f32 %v819, %v852
    %v859 = vsub.f32 %v820, %v853
    %v860 = vsub.f32 %v821, %v854
    %v861 = vmul.f32 %v855, %v855
    %v862 = vmul.f32 %v856, %v856
    %v863 = vmul.f32 %v857, %v857
    %v864 = vmul.f32 %v858, %v858
    %v865 = vmul.f32 %v859, %v859
    %v866 = vmul.f32 %v860, %v860
    %v867 = vsel %vm246, %v861, 0.0
    %868 = vadd.xlane.f32.xlu0 %v867
    %v869 = vpop.xlane.xlu0 %868
    %v870 = vsel %vm246, %v862, 0.0
    %871 = vadd.xlane.f32.xlu0 %v870
    %v872 = vpop.xlane.xlu0 %871
    %v873 = vsel %vm246, %v863, 0.0
    %874 = vadd.xlane.f32.xlu0 %v873
    %v875 = vpop.xlane.xlu0 %874
    %v876 = vsel %vm246, %v864, 0.0
    %877 = vadd.xlane.f32.xlu0 %v876
    %v878 = vpop.xlane.xlu0 %877
    %v879 = vsel %vm246, %v865, 0.0
    %880 = vadd.xlane.f32.xlu0 %v879
    %v881 = vpop.xlane.xlu0 %880
    %v882 = vsel %vm246, %v866, 0.0
    %883 = vadd.xlane.f32.xlu0 %v882
    %v884 = vpop.xlane.xlu0 %883
    %v885 = vmul.f32 %v869, %v848
    %v886 = vmul.f32 %v872, %v848
    %v887 = vmul.f32 %v875, %v848
    %v888 = vmul.f32 %v878, %v848
    %v889 = vmul.f32 %v881, %v848
    %v890 = vmul.f32 %v884, %v848
    %v891 = vadd.f32 %v885, 0.003
    %v892 = vadd.f32 %v886, 0.003
    %v893 = vadd.f32 %v887, 0.003
    %v894 = vadd.f32 %v888, 0.003
    %v895 = vadd.f32 %v889, 0.003
    %v896 = vadd.f32 %v890, 0.003
    %v897 = vrsqrt.pop %v891
    %v898 = vrsqrt.pop %v892
    %v899 = vrsqrt.pop %v893
    %v900 = vrsqrt.pop %v894
    %v901 = vrsqrt.pop %v895
    %v902 = vrsqrt.pop %v896
    %v903 = vmul.f32 %v855, %v897
    %v904 = vmul.f32 %v856, %v898
    %v905 = vmul.f32 %v857, %v899
    %v906 = vmul.f32 %v858, %v900
    %v907 = vmul.f32 %v859, %v901
    %v908 = vmul.f32 %v860, %v902
    %v910 = vlaneseq
    %v911 = vshrl.u32 %v910, 7
    %v912 = vsub.s32 0, %v911
    %v913 = vrot.slane %v828, %v912
    %v915 = vmul.f32 %v903, %v913
    %v916 = vmul.f32 %v904, %v913
    %v917 = vmul.f32 %v905, %v913
    %v918 = vmul.f32 %v906, %v913
    %v919 = vmul.f32 %v907, %v913
    %v920 = vmul.f32 %v908, %v913
    %v922 = vlaneseq
    %v923 = vshrl.u32 %v922, 7
    %v924 = vsub.s32 0, %v923
    %v925 = vrot.slane %v829, %v924
    %v927 = vadd.f32 %v915, %v925
    %v928 = vadd.f32 %v916, %v925
    %v929 = vadd.f32 %v917, %v925
    %v930 = vadd.f32 %v918, %v925
    %v931 = vadd.f32 %v919, %v925
    %v932 = vadd.f32 %v920, %v925
    %v933 = vld [vmem:[%s31] sm:$0xff]
    %v934 = vld [vmem:[%s31 + $0x8] sm:$0xff]
    %v935 = vld [vmem:[%s31 + $0x10] sm:$0xff]
    %v936 = vld [vmem:[%s31 + $0x18] sm:$0xff]
    %v937 = vld [vmem:[%s33] sm:$0x1]
    %v939 = vlaneseq
    %v940 = vshrl.u32 %v939, 7
    %v941 = vsub.s32 0, %v940
    %v942 = vrot.slane %v937, %v941
    %v945 = vsel %vm246, %v927, 0
    %v948 = vsel %vm246, %v928, 0
    %v951 = vsel %vm246, %v929, 0
    %v954 = vsel %vm246, %v930, 0
    %v957 = vsel %vm246, %v931, 0
    %v960 = vsel %vm246, %v932, 0
    %962 = vmatprep.subr.mxu0 0.0
    %963 = vmatpush1.msra.mxu0 %v933
    %964 = vmatprep.subr.mxu0 0.0
    %965 = vmatpush1.msra.mxu0 %v934
    %966 = vmatprep.subr.mxu0 0.0
    %967 = vmatpush1.msra.mxu0 %v935
    %968 = vmatprep.subr.mxu0 0.0
    %969 = vmatpush1.msra.mxu0 %v936
    %970 = vmatprep.subr.mxu0 0.0
    %971 = vmatpush1.msra.mxu0 0.0
    %972 = vmatprep.subr.mxu0 0.0
    %973 = vmatpush1.msra.mxu0 0.0
    %974 = vmatprep.subr.mxu0 0.0
    %975 = vmatpush1.msra.mxu0 0.0
    %976 = vmatprep.subr.mxu0 0.0
    %977 = vmatpush1.msra.mxu0 0.0
    %978 = vmatprep.subr.mxu0 0.0
    %979 = vmatpush1.msra.mxu0 0.0
    %980 = vmatprep.subr.mxu0 0.0
    %981 = vmatpush1.msra.mxu0 0.0
    %982 = vmatprep.subr.mxu0 0.0
    %983 = vmatpush1.msra.mxu0 0.0
    %984 = vmatprep.subr.mxu0 0.0
    %985 = vmatpush1.msra.mxu0 0.0
    %986 = vmatprep.subr.mxu0 0.0
    %987 = vmatpush1.msra.mxu0 0.0
    %988 = vmatprep.subr.mxu0 0.0
    %989 = vmatpush1.msra.mxu0 0.0
    %990 = vmatprep.subr.mxu0 0.0
    %991 = vmatpush1.msra.mxu0 0.0
    %992 = vmatprep.subr.mxu0 0.0
    %993 = vmatpush1.msra.mxu0 0.0
    %994 = vmatprep.subr.mxu0 0.0
    %995 = vmatpush1.msra.mxu0 0.0
    %996 = vmatprep.subr.mxu0 0.0
    %997 = vmatpush1.msra.mxu0 0.0
    %998 = vmatprep.subr.mxu0 0.0
    %999 = vmatpush1.msra.mxu0 0.0
    %1000 = vmatprep.subr.mxu0 0.0
    %1001 = vmatpush1.msra.mxu0 0.0
    %1002 = vmatprep.subr.mxu0 0.0
    %1003 = vmatpush1.msra.mxu0 0.0
    %1004 = vmatprep.subr.mxu0 0.0
    %1005 = vmatpush1.msra.mxu0 0.0
    %1006 = vmatprep.subr.mxu0 0.0
    %1007 = vmatpush1.msra.mxu0 0.0
    %1008 = vmatprep.subr.mxu0 0.0
    %1009 = vmatpush1.msra.mxu0 0.0
    %1010 = vmatprep.subr.mxu0 0.0
    %1011 = vmatpush1.msra.mxu0 0.0
    %1012 = vmatprep.subr.mxu0 0.0
    %1013 = vmatpush1.msra.mxu0 0.0
    %1014 = vmatprep.subr.mxu0 0.0
    %1015 = vmatpush1.msra.mxu0 0.0
    %1016 = vmatprep.subr.mxu0 0.0
    %1017 = vmatpush1.msra.mxu0 0.0
    %1018 = vmatprep.subr.mxu0 0.0
    %1019 = vmatpush1.msra.mxu0 0.0
    %1020 = vmatprep.subr.mxu0 0.0
    %1021 = vmatpush1.msra.mxu0 0.0
    %1022 = vmatprep.subr.mxu0 0.0
    %1023 = vmatpush1.msra.mxu0 0.0
    %1024 = vmatprep.subr.mxu0 0.0
    %1025 = vmatpush1.msra.mxu0 0.0
    %1026 = vmatprep.mubr.f32.mxu0 0.0
    %1027 = vmatmul.mubr.f32.gmra.mrb[0].mxu0 %v945
    %v1028 = vpop.f32.mrb[0].mxu0
    %v1029 = vadd.f32 %v942, %v1028
    %v1030 = vpop.f32.mrb[0].mxu0
    %1031 = vmatprep.mubr.f32.mxu0 0.0
    %1032 = vmatmul.mubr.f32.gmra.mrb[0].mxu0 %v948
    %v1033 = vpop.f32.mrb[0].mxu0
    %v1034 = vadd.f32 %v942, %v1033
    %v1035 = vpop.f32.mrb[0].mxu0
    %1036 = vmatprep.mubr.f32.mxu0 0.0
    %1037 = vmatmul.mubr.f32.gmra.mrb[0].mxu0 %v951
    %v1038 = vpop.f32.mrb[0].mxu0
    %v1039 = vadd.f32 %v942, %v1038
    %v1040 = vpop.f32.mrb[0].mxu0
    %1041 = vmatprep.mubr.f32.mxu0 0.0
    %1042 = vmatmul.mubr.f32.gmra.mrb[0].mxu0 %v954
    %v1043 = vpop.f32.mrb[0].mxu0
    %v1044 = vadd.f32 %v942, %v1043
    %v1045 = vpop.f32.mrb[0].mxu0
    %1046 = vmatprep.mubr.f32.mxu0 0.0
    %1047 = vmatmul.mubr.f32.gmra.mrb[0].mxu0 %v957
    %v1048 = vpop.f32.mrb[0].mxu0
    %v1049 = vadd.f32 %v942, %v1048
    %v1050 = vpop.f32.mrb[0].mxu0
    %1051 = vmatprep.mubr.f32.mxu0 0.0
    %1052 = vmatmul.mubr.f32.gmra.mrb[0].mxu0 %v960
    %v1053 = vpop.f32.mrb[0].mxu0
    %v1054 = vadd.f32 %v942, %v1053
    %v1055 = vpop.f32.mrb[0].mxu0
    %1056 = vdwg.mxu0
    %v1057 = vld [vmem:[%s35] sm:$0xff]
    %v1058 = vld [vmem:[%s35 + $0x8] sm:$0xff]
    %v1059 = vld [vmem:[%s35 + $0x10] sm:$0xff]
    %v1060 = vld [vmem:[%s35 + $0x18] sm:$0xff]
    %v1061 = vld [vmem:[%s37] sm:$0x1]
    %v1063 = vlaneseq
    %v1064 = vshrl.u32 %v1063, 7
    %v1065 = vsub.s32 0, %v1064
    %v1066 = vrot.slane %v1061, %v1065
    %v1068 = vadd.f32 %v1066, 0.0
    %1075 = vrot.lane.b32.xlu0 %v1029, 96
    %v1076 = vpop.permute.xlu0 %1075
    %1077 = vrot.lane.b32.xlu0 %v1034, 96
    %v1078 = vpop.permute.xlu0 %1077
    %1079 = vrot.lane.b32.xlu0 %v1039, 96
    %v1080 = vpop.permute.xlu0 %1079
    %1081 = vrot.lane.b32.xlu0 %v1044, 96
    %v1082 = vpop.permute.xlu0 %1081
    %1083 = vrot.lane.b32.xlu0 %v1049, 96
    %v1084 = vpop.permute.xlu0 %1083
    %1085 = vrot.lane.b32.xlu0 %v1054, 96
    %v1086 = vpop.permute.xlu0 %1085
    %v1087 = vsel %vm343, %v1029, 0
    %v1089 = vsel %vm343, %v1034, 0
    %v1091 = vsel %vm343, %v1039, 0
    %v1093 = vsel %vm343, %v1044, 0
    %v1095 = vsel %vm343, %v1049, 0
    %v1097 = vsel %vm343, %v1054, 0
    %v1099 = vsel %vm343, %v1076, 0
    %v1101 = vsel %vm343, %v1078, 0
    %v1103 = vsel %vm343, %v1080, 0
    %v1105 = vsel %vm343, %v1082, 0
    %v1107 = vsel %vm343, %v1084, 0
    %v1109 = vsel %vm343, %v1086, 0
    %1111 = vmatprep.subr.mxu0 0.0
    %1112 = vmatpush1.xpose.msra.mxu0 %v1099
    %1113 = vmatprep.subr.mxu0 0.0
    %1114 = vmatpush1.xpose.msra.mxu0 %v1101
    %1115 = vmatprep.subr.mxu0 0.0
    %1116 = vmatpush1.xpose.msra.mxu0 %v1103
    %1117 = vmatprep.subr.mxu0 0.0
    %1118 = vmatpush1.xpose.msra.mxu0 %v1105
    %1119 = vmatprep.subr.mxu0 0.0
    %1120 = vmatpush1.xpose.msra.mxu0 %v1107
    %1121 = vmatprep.subr.mxu0 0.0
    %1122 = vmatpush1.xpose.msra.mxu0 %v1109
    %1123 = vmatprep.subr.mxu0 0.0
    %1124 = vmatpush1.xpose.msra.mxu0 0.0
    %1125 = vmatprep.subr.mxu0 0.0
    %1126 = vmatpush1.xpose.msra.mxu0 0.0
    %1127 = vmatprep.subr.mxu0 0.0
    %1128 = vmatpush1.xpose.msra.mxu0 0.0
    %1129 = vmatprep.subr.mxu0 0.0
    %1130 = vmatpush1.xpose.msra.mxu0 0.0
    %1131 = vmatprep.subr.mxu0 0.0
    %1132 = vmatpush1.xpose.msra.mxu0 0.0
    %1133 = vmatprep.subr.mxu0 0.0
    %1134 = vmatpush1.xpose.msra.mxu0 0.0
    %1135 = vmatprep.subr.mxu0 0.0
    %1136 = vmatpush1.xpose.msra.mxu0 0.0
    %1137 = vmatprep.subr.mxu0 0.0
    %1138 = vmatpush1.xpose.msra.mxu0 0.0
    %1139 = vmatprep.subr.mxu0 0.0
    %1140 = vmatpush1.xpose.msra.mxu0 0.0
    %1141 = vmatprep.subr.mxu0 0.0
    %1142 = vmatpush1.xpose.msra.mxu0 0.0
    %1143 = vmatprep.subr.mxu0 0.0
    %1144 = vmatpush1.xpose.msra.mxu0 0.0
    %1145 = vmatprep.subr.mxu0 0.0
    %1146 = vmatpush1.xpose.msra.mxu0 0.0
    %1147 = vmatprep.subr.mxu0 0.0
    %1148 = vmatpush1.xpose.msra.mxu0 0.0
    %1149 = vmatprep.subr.mxu0 0.0
    %1150 = vmatpush1.xpose.msra.mxu0 0.0
    %1151 = vmatprep.subr.mxu0 0.0
    %1152 = vmatpush1.xpose.msra.mxu0 0.0
    %1153 = vmatprep.subr.mxu0 0.0
    %1154 = vmatpush1.xpose.msra.mxu0 0.0
    %1155 = vmatprep.subr.mxu0 0.0
    %1156 = vmatpush1.xpose.msra.mxu0 0.0
    %1157 = vmatprep.subr.mxu0 0.0
    %1158 = vmatpush1.xpose.msra.mxu0 0.0
    %1159 = vmatprep.subr.mxu0 0.0
    %1160 = vmatpush1.xpose.msra.mxu0 0.0
    %1161 = vmatprep.subr.mxu0 0.0
    %1162 = vmatpush1.xpose.msra.mxu0 0.0
    %1163 = vmatprep.subr.mxu0 0.0
    %1164 = vmatpush1.xpose.msra.mxu0 0.0
    %1165 = vmatprep.subr.mxu0 0.0
    %1166 = vmatpush1.xpose.msra.mxu0 0.0
    %1167 = vmatprep.subr.mxu0 0.0
    %1168 = vmatpush1.xpose.msra.mxu0 0.0
    %1169 = vmatprep.subr.mxu0 0.0
    %1170 = vmatpush1.xpose.msra.mxu0 0.0
    %1171 = vmatprep.subr.mxu0 0.0
    %1172 = vmatpush1.xpose.msra.mxu0 0.0
    %1173 = vmatprep.subr.mxu0 0.0
    %1174 = vmatpush1.xpose.msra.mxu0 0.0
    %1175 = vmatprep.mubr.f32.mxu0 0.0
    %1176 = vmatmul.mubr.f32.gmra.mrb[0].mxu0 %v1087
    %v1177 = vpop.f32.mrb[0].mxu0
    %v1178 = vadd.f32 0.0, %v1177
    %v1179 = vpop.f32.mrb[0].mxu0
    %1180 = vmatprep.mubr.f32.mxu0 0.0
    %1181 = vmatmul.mubr.f32.gmra.mrb[0].mxu0 %v1089
    %v1182 = vpop.f32.mrb[0].mxu0
    %v1183 = vadd.f32 0.0, %v1182
    %v1184 = vpop.f32.mrb[0].mxu0
    %1185 = vmatprep.mubr.f32.mxu0 0.0
    %1186 = vmatmul.mubr.f32.gmra.mrb[0].mxu0 %v1091
    %v1187 = vpop.f32.mrb[0].mxu0
    %v1188 = vadd.f32 0.0, %v1187
    %v1189 = vpop.f32.mrb[0].mxu0
    %1190 = vmatprep.mubr.f32.mxu0 0.0
    %1191 = vmatmul.mubr.f32.gmra.mrb[0].mxu0 %v1093
    %v1192 = vpop.f32.mrb[0].mxu0
    %v1193 = vadd.f32 0.0, %v1192
    %v1194 = vpop.f32.mrb[0].mxu0
    %1195 = vmatprep.mubr.f32.mxu0 0.0
    %1196 = vmatmul.mubr.f32.gmra.mrb[0].mxu0 %v1095
    %v1197 = vpop.f32.mrb[0].mxu0
    %v1198 = vadd.f32 0.0, %v1197
    %v1199 = vpop.f32.mrb[0].mxu0
    %1200 = vmatprep.mubr.f32.mxu0 0.0
    %1201 = vmatmul.mubr.f32.gmra.mrb[0].mxu0 %v1097
    %v1202 = vpop.f32.mrb[0].mxu0
    %v1203 = vadd.f32 0.0, %v1202
    %v1204 = vpop.f32.mrb[0].mxu0
    %1205 = vdwg.mxu0
    %v1206 = vmul.f32 %v1178, 0.35355338
    %v1207 = vmul.f32 %v1183, 0.35355338
    %v1208 = vmul.f32 %v1188, 0.35355338
    %v1209 = vmul.f32 %v1193, 0.35355338
    %v1210 = vmul.f32 %v1198, 0.35355338
    %v1211 = vmul.f32 %v1203, 0.35355338
    %v1212 = vadd.f32 %v1206, %v822
    %v1213 = vadd.f32 %v1207, %v823
    %v1214 = vadd.f32 %v1208, %v824
    %v1215 = vadd.f32 %v1209, %v825
    %v1216 = vadd.f32 %v1210, %v826
    %v1217 = vadd.f32 %v1211, %v827
    %vm1218 = vcmask 392192
    %v1219 = vsel %vm1218, %v1212, -inf
    %1220 = vmax.xlane.f32.xlu0 %v1219
    %v1221 = vpop.xlane.xlu0 %1220
    %v1222 = vsel %vm1218, %v1213, -inf
    %1223 = vmax.xlane.f32.xlu0 %v1222
    %v1224 = vpop.xlane.xlu0 %1223
    %v1225 = vsel %vm1218, %v1214, -inf
    %1226 = vmax.xlane.f32.xlu0 %v1225
    %v1227 = vpop.xlane.xlu0 %1226
    %v1228 = vsel %vm1218, %v1215, -inf
    %1229 = vmax.xlane.f32.xlu0 %v1228
    %v1230 = vpop.xlane.xlu0 %1229
    %v1231 = vsel %vm1218, %v1216, -inf
    %1232 = vmax.xlane.f32.xlu0 %v1231
    %v1233 = vpop.xlane.xlu0 %1232
    %v1234 = vsel %vm1218, %v1217, -inf
    %1235 = vmax.xlane.f32.xlu0 %v1234
    %v1236 = vpop.xlane.xlu0 %1235
    %v1237 = vsub.f32 %v1212, %v1221
    %v1238 = vsub.f32 %v1213, %v1224
    %v1239 = vsub.f32 %v1214, %v1227
    %v1240 = vsub.f32 %v1215, %v1230
    %v1241 = vsub.f32 %v1216, %v1233
    %v1242 = vsub.f32 %v1217, %v1236
    %v1243 = vmul.f32 %v1237, 1.442695
    %v1244 = vpow.pop %v1243
    %v1245 = vmul.f32 %v1238, 1.442695
    %v1246 = vpow.pop %v1245
    %v1247 = vmul.f32 %v1239, 1.442695
    %v1248 = vpow.pop %v1247
    %v1249 = vmul.f32 %v1240, 1.442695
    %v1250 = vpow.pop %v1249
    %v1251 = vmul.f32 %v1241, 1.442695
    %v1252 = vpow.pop %v1251
    %v1253 = vmul.f32 %v1242, 1.442695
    %v1254 = vpow.pop %v1253
    %v1255 = vsel %vm1218, %v1244, 0.0
    %1256 = vadd.xlane.f32.xlu0 %v1255
    %v1257 = vpop.xlane.xlu0 %1256
    %v1258 = vsel %vm1218, %v1246, 0.0
    %1259 = vadd.xlane.f32.xlu0 %v1258
    %v1260 = vpop.xlane.xlu0 %1259
    %v1261 = vsel %vm1218, %v1248, 0.0
    %1262 = vadd.xlane.f32.xlu0 %v1261
    %v1263 = vpop.xlane.xlu0 %1262
    %v1264 = vsel %vm1218, %v1250, 0.0
    %1265 = vadd.xlane.f32.xlu0 %v1264
    %v1266 = vpop.xlane.xlu0 %1265
    %v1267 = vsel %vm1218, %v1252, 0.0
    %1268 = vadd.xlane.f32.xlu0 %v1267
    %v1269 = vpop.xlane.xlu0 %1268
    %v1270 = vsel %vm1218, %v1254, 0.0
    %1271 = vadd.xlane.f32.xlu0 %v1270
    %v1272 = vpop.xlane.xlu0 %1271
    %v1273 = vrcp.pop %v1257
    %v1274 = vrcp.pop %v1260
    %v1275 = vrcp.pop %v1263
    %v1276 = vrcp.pop %v1266
    %v1277 = vrcp.pop %v1269
    %v1278 = vrcp.pop %v1272
    %v1279 = vmul.f32 %v1244, %v1273
    %v1280 = vmul.f32 %v1246, %v1274
    %v1281 = vmul.f32 %v1248, %v1275
    %v1282 = vmul.f32 %v1250, %v1276
    %v1283 = vmul.f32 %v1252, %v1277
    %v1284 = vmul.f32 %v1254, %v1278
    %1285 = vrot.lane.b32.xlu0 %v1029, 64
    %v1286 = vpop.permute.xlu0 %1285
    %1287 = vrot.lane.b32.xlu0 %v1034, 64
    %v1288 = vpop.permute.xlu0 %1287
    %1289 = vrot.lane.b32.xlu0 %v1039, 64
    %v1290 = vpop.permute.xlu0 %1289
    %1291 = vrot.lane.b32.xlu0 %v1044, 64
    %v1292 = vpop.permute.xlu0 %1291
    %1293 = vrot.lane.b32.xlu0 %v1049, 64
    %v1294 = vpop.permute.xlu0 %1293
    %1295 = vrot.lane.b32.xlu0 %v1054, 64
    %v1296 = vpop.permute.xlu0 %1295
    %v1304 = vsel %vm1218, %v1279, 0
    %v1307 = vsel %vm1218, %v1280, 0
    %v1310 = vsel %vm1218, %v1281, 0
    %v1313 = vsel %vm1218, %v1282, 0
    %v1316 = vsel %vm1218, %v1283, 0
    %v1319 = vsel %vm1218, %v1284, 0
    %1321 = vmatprep.subr.mxu0 0.0
    %1322 = vmatpush1.msra.mxu0 %v1286
    %1323 = vmatprep.subr.mxu0 0.0
    %1324 = vmatpush1.msra.mxu0 %v1288
    %1325 = vmatprep.subr.mxu0 0.0
    %1326 = vmatpush1.msra.mxu0 %v1290
    %1327 = vmatprep.subr.mxu0 0.0
    %1328 = vmatpush1.msra.mxu0 %v1292
    %1329 = vmatprep.subr.mxu0 0.0
    %1330 = vmatpush1.msra.mxu0 %v1294
    %1331 = vmatprep.subr.mxu0 0.0
    %1332 = vmatpush1.msra.mxu0 %v1296
    %1333 = vmatprep.subr.mxu0 0.0
    %1334 = vmatpush1.msra.mxu0 0.0
    %1335 = vmatprep.subr.mxu0 0.0
    %1336 = vmatpush1.msra.mxu0 0.0
    %1337 = vmatprep.subr.mxu0 0.0
    %1338 = vmatpush1.msra.mxu0 0.0
    %1339 = vmatprep.subr.mxu0 0.0
    %1340 = vmatpush1.msra.mxu0 0.0
    %1341 = vmatprep.subr.mxu0 0.0
    %1342 = vmatpush1.msra.mxu0 0.0
    %1343 = vmatprep.subr.mxu0 0.0
    %1344 = vmatpush1.msra.mxu0 0.0
    %1345 = vmatprep.subr.mxu0 0.0
    %1346 = vmatpush1.msra.mxu0 0.0
    %1347 = vmatprep.subr.mxu0 0.0
    %1348 = vmatpush1.msra.mxu0 0.0
    %1349 = vmatprep.subr.mxu0 0.0
    %1350 = vmatpush1.msra.mxu0 0.0
    %1351 = vmatprep.subr.mxu0 0.0
    %1352 = vmatpush1.msra.mxu0 0.0
    %1353 = vmatprep.subr.mxu0 0.0
    %1354 = vmatpush1.msra.mxu0 0.0
    %1355 = vmatprep.subr.mxu0 0.0
    %1356 = vmatpush1.msra.mxu0 0.0
    %1357 = vmatprep.subr.mxu0 0.0
    %1358 = vmatpush1.msra.mxu0 0.0
    %1359 = vmatprep.subr.mxu0 0.0
    %1360 = vmatpush1.msra.mxu0 0.0
    %1361 = vmatprep.subr.mxu0 0.0
    %1362 = vmatpush1.msra.mxu0 0.0
    %1363 = vmatprep.subr.mxu0 0.0
    %1364 = vmatpush1.msra.mxu0 0.0
    %1365 = vmatprep.subr.mxu0 0.0
    %1366 = vmatpush1.msra.mxu0 0.0
    %1367 = vmatprep.subr.mxu0 0.0
    %1368 = vmatpush1.msra.mxu0 0.0
    %1369 = vmatprep.subr.mxu0 0.0
    %1370 = vmatpush1.msra.mxu0 0.0
    %1371 = vmatprep.subr.mxu0 0.0
    %1372 = vmatpush1.msra.mxu0 0.0
    %1373 = vmatprep.subr.mxu0 0.0
    %1374 = vmatpush1.msra.mxu0 0.0
    %1375 = vmatprep.subr.mxu0 0.0
    %1376 = vmatpush1.msra.mxu0 0.0
    %1377 = vmatprep.subr.mxu0 0.0
    %1378 = vmatpush1.msra.mxu0 0.0
    %1379 = vmatprep.subr.mxu0 0.0
    %1380 = vmatpush1.msra.mxu0 0.0
    %1381 = vmatprep.subr.mxu0 0.0
    %1382 = vmatpush1.msra.mxu0 0.0
    %1383 = vmatprep.subr.mxu0 0.0
    %1384 = vmatpush1.msra.mxu0 0.0
    %1385 = vmatprep.mubr.f32.mxu0 0.0
    %1386 = vmatmul.mubr.f32.gmra.mrb[0].mxu0 %v1304
    %v1387 = vpop.f32.mrb[0].mxu0
    %v1388 = vadd.f32 0.0, %v1387
    %v1389 = vpop.f32.mrb[0].mxu0
    %1390 = vmatprep.mubr.f32.mxu0 0.0
    %1391 = vmatmul.mubr.f32.gmra.mrb[0].mxu0 %v1307
    %v1392 = vpop.f32.mrb[0].mxu0
    %v1393 = vadd.f32 0.0, %v1392
    %v1394 = vpop.f32.mrb[0].mxu0
    %1395 = vmatprep.mubr.f32.mxu0 0.0
    %1396 = vmatmul.mubr.f32.gmra.mrb[0].mxu0 %v1310
    %v1397 = vpop.f32.mrb[0].mxu0
    %v1398 = vadd.f32 0.0, %v1397
    %v1399 = vpop.f32.mrb[0].mxu0
    %1400 = vmatprep.mubr.f32.mxu0 0.0
    %1401 = vmatmul.mubr.f32.gmra.mrb[0].mxu0 %v1313
    %v1402 = vpop.f32.mrb[0].mxu0
    %v1403 = vadd.f32 0.0, %v1402
    %v1404 = vpop.f32.mrb[0].mxu0
    %1405 = vmatprep.mubr.f32.mxu0 0.0
    %1406 = vmatmul.mubr.f32.gmra.mrb[0].mxu0 %v1316
    %v1407 = vpop.f32.mrb[0].mxu0
    %v1408 = vadd.f32 0.0, %v1407
    %v1409 = vpop.f32.mrb[0].mxu0
    %1410 = vmatprep.mubr.f32.mxu0 0.0
    %1411 = vmatmul.mubr.f32.gmra.mrb[0].mxu0 %v1319
    %v1412 = vpop.f32.mrb[0].mxu0
    %v1413 = vadd.f32 0.0, %v1412
    %v1414 = vpop.f32.mrb[0].mxu0
    %1415 = vdwg.mxu0
    %v1417 = vsel %vm343, %v1388, 0
    %v1420 = vsel %vm343, %v1393, 0
    %v1423 = vsel %vm343, %v1398, 0
    %v1426 = vsel %vm343, %v1403, 0
    %v1429 = vsel %vm343, %v1408, 0
    %v1432 = vsel %vm343, %v1413, 0
    %1434 = vmatprep.subr.mxu0 0.0
    %1435 = vmatpush1.msra.mxu0 %v1057
    %1436 = vmatprep.subr.mxu0 0.0
    %1437 = vmatpush1.msra.mxu0 0.0
    %1438 = vmatprep.subr.mxu0 0.0
    %1439 = vmatpush1.msra.mxu0 0.0
    %1440 = vmatprep.subr.mxu0 0.0
    %1441 = vmatpush1.msra.mxu0 0.0
    %1442 = vmatprep.subr.mxu0 0.0
    %1443 = vmatpush1.msra.mxu0 0.0
    %1444 = vmatprep.subr.mxu0 0.0
    %1445 = vmatpush1.msra.mxu0 0.0
    %1446 = vmatprep.subr.mxu0 0.0
    %1447 = vmatpush1.msra.mxu0 0.0
    %1448 = vmatprep.subr.mxu0 0.0
    %1449 = vmatpush1.msra.mxu0 0.0
    %1450 = vmatprep.subr.mxu0 0.0
    %1451 = vmatpush1.msra.mxu0 0.0
    %1452 = vmatprep.subr.mxu0 0.0
    %1453 = vmatpush1.msra.mxu0 0.0
    %1454 = vmatprep.subr.mxu0 0.0
    %1455 = vmatpush1.msra.mxu0 0.0
    %1456 = vmatprep.subr.mxu0 0.0
    %1457 = vmatpush1.msra.mxu0 0.0
    %1458 = vmatprep.subr.mxu0 0.0
    %1459 = vmatpush1.msra.mxu0 0.0
    %1460 = vmatprep.subr.mxu0 0.0
    %1461 = vmatpush1.msra.mxu0 0.0
    %1462 = vmatprep.subr.mxu0 0.0
    %1463 = vmatpush1.msra.mxu0 0.0
    %1464 = vmatprep.subr.mxu0 0.0
    %1465 = vmatpush1.msra.mxu0 0.0
    %1466 = vmatprep.subr.mxu0 0.0
    %1467 = vmatpush1.msra.mxu0 0.0
    %1468 = vmatprep.subr.mxu0 0.0
    %1469 = vmatpush1.msra.mxu0 0.0
    %1470 = vmatprep.subr.mxu0 0.0
    %1471 = vmatpush1.msra.mxu0 0.0
    %1472 = vmatprep.subr.mxu0 0.0
    %1473 = vmatpush1.msra.mxu0 0.0
    %1474 = vmatprep.subr.mxu0 0.0
    %1475 = vmatpush1.msra.mxu0 0.0
    %1476 = vmatprep.subr.mxu0 0.0
    %1477 = vmatpush1.msra.mxu0 0.0
    %1478 = vmatprep.subr.mxu0 0.0
    %1479 = vmatpush1.msra.mxu0 0.0
    %1480 = vmatprep.subr.mxu0 0.0
    %1481 = vmatpush1.msra.mxu0 0.0
    %1482 = vmatprep.subr.mxu0 0.0
    %1483 = vmatpush1.msra.mxu0 0.0
    %1484 = vmatprep.subr.mxu0 0.0
    %1485 = vmatpush1.msra.mxu0 0.0
    %1486 = vmatprep.subr.mxu0 0.0
    %1487 = vmatpush1.msra.mxu0 0.0
    %1488 = vmatprep.subr.mxu0 0.0
    %1489 = vmatpush1.msra.mxu0 0.0
    %1490 = vmatprep.subr.mxu0 0.0
    %1491 = vmatpush1.msra.mxu0 0.0
    %1492 = vmatprep.subr.mxu0 0.0
    %1493 = vmatpush1.msra.mxu0 0.0
    %1494 = vmatprep.subr.mxu0 0.0
    %1495 = vmatpush1.msra.mxu0 0.0
    %1496 = vmatprep.subr.mxu0 0.0
    %1497 = vmatpush1.msra.mxu0 0.0
    %1498 = vmatprep.mubr.f32.mxu0 0.0
    %1499 = vmatmul.mubr.f32.gmra.mrb[0].mxu0 %v1417
    %v1500 = vpop.f32.mrb[0].mxu0
    %v1501 = vadd.f32 0.0, %v1500
    %v1502 = vpop.f32.mrb[0].mxu0
    %1503 = vmatprep.mubr.f32.mxu0 0.0
    %1504 = vmatmul.mubr.f32.gmra.mrb[0].mxu0 %v1420
    %v1505 = vpop.f32.mrb[0].mxu0
    %v1506 = vadd.f32 0.0, %v1505
    %v1507 = vpop.f32.mrb[0].mxu0
    %1508 = vmatprep.mubr.f32.mxu0 0.0
    %1509 = vmatmul.mubr.f32.gmra.mrb[0].mxu0 %v1423
    %v1510 = vpop.f32.mrb[0].mxu0
    %v1511 = vadd.f32 0.0, %v1510
    %v1512 = vpop.f32.mrb[0].mxu0
    %1513 = vmatprep.mubr.f32.mxu0 0.0
    %1514 = vmatmul.mubr.f32.gmra.mrb[0].mxu0 %v1426
    %v1515 = vpop.f32.mrb[0].mxu0
    %v1516 = vadd.f32 0.0, %v1515
    %v1517 = vpop.f32.mrb[0].mxu0
    %1518 = vmatprep.mubr.f32.mxu0 0.0
    %1519 = vmatmul.mubr.f32.gmra.mrb[0].mxu0 %v1429
    %v1520 = vpop.f32.mrb[0].mxu0
    %v1521 = vadd.f32 0.0, %v1520
    %v1522 = vpop.f32.mrb[0].mxu0
    %1523 = vmatprep.mubr.f32.mxu0 0.0
    %1524 = vmatmul.mubr.f32.gmra.mrb[0].mxu0 %v1432
    %v1525 = vpop.f32.mrb[0].mxu0
    %v1526 = vadd.f32 0.0, %v1525
    %v1527 = vpop.f32.mrb[0].mxu0
    %1528 = vdwg.mxu0
    %v1529 = vadd.f32 %v1068, %v1501
    %v1530 = vadd.f32 %v1068, %v1506
    %v1531 = vadd.f32 %v1068, %v1511
    %v1532 = vadd.f32 %v1068, %v1516
    %v1533 = vadd.f32 %v1068, %v1521
    %v1534 = vadd.f32 %v1068, %v1526
    %1535 = vrot.lane.b32.xlu0 %v1029, 120
    %v1536 = vpop.permute.xlu0 %1535
    %1537 = vrot.lane.b32.xlu0 %v1034, 120
    %v1538 = vpop.permute.xlu0 %1537
    %1539 = vrot.lane.b32.xlu0 %v1039, 120
    %v1540 = vpop.permute.xlu0 %1539
    %1541 = vrot.lane.b32.xlu0 %v1044, 120
    %v1542 = vpop.permute.xlu0 %1541
    %1543 = vrot.lane.b32.xlu0 %v1049, 120
    %v1544 = vpop.permute.xlu0 %1543
    %1545 = vrot.lane.b32.xlu0 %v1054, 120
    %v1546 = vpop.permute.xlu0 %1545
    %1547 = vrot.lane.b32.xlu0 %v1029, 88
    %v1548 = vpop.permute.xlu0 %1547
    %1549 = vrot.lane.b32.xlu0 %v1034, 88
    %v1550 = vpop.permute.xlu0 %1549
    %1551 = vrot.lane.b32.xlu0 %v1039, 88
    %v1552 = vpop.permute.xlu0 %1551
    %1553 = vrot.lane.b32.xlu0 %v1044, 88
    %v1554 = vpop.permute.xlu0 %1553
    %1555 = vrot.lane.b32.xlu0 %v1049, 88
    %v1556 = vpop.permute.xlu0 %1555
    %1557 = vrot.lane.b32.xlu0 %v1054, 88
    %v1558 = vpop.permute.xlu0 %1557
    %v1559 = vsel %vm343, %v1536, 0
    %v1561 = vsel %vm343, %v1538, 0
    %v1563 = vsel %vm343, %v1540, 0
    %v1565 = vsel %vm343, %v1542, 0
    %v1567 = vsel %vm343, %v1544, 0
    %v1569 = vsel %vm343, %v1546, 0
    %v1571 = vsel %vm343, %v1548, 0
    %v1573 = vsel %vm343, %v1550, 0
    %v1575 = vsel %vm343, %v1552, 0
    %v1577 = vsel %vm343, %v1554, 0
    %v1579 = vsel %vm343, %v1556, 0
    %v1581 = vsel %vm343, %v1558, 0
    %1583 = vmatprep.subr.mxu0 0.0
    %1584 = vmatpush1.xpose.msra.mxu0 %v1571
    %1585 = vmatprep.subr.mxu0 0.0
    %1586 = vmatpush1.xpose.msra.mxu0 %v1573
    %1587 = vmatprep.subr.mxu0 0.0
    %1588 = vmatpush1.xpose.msra.mxu0 %v1575
    %1589 = vmatprep.subr.mxu0 0.0
    %1590 = vmatpush1.xpose.msra.mxu0 %v1577
    %1591 = vmatprep.subr.mxu0 0.0
    %1592 = vmatpush1.xpose.msra.mxu0 %v1579
    %1593 = vmatprep.subr.mxu0 0.0
    %1594 = vmatpush1.xpose.msra.mxu0 %v1581
    %1595 = vmatprep.subr.mxu0 0.0
    %1596 = vmatpush1.xpose.msra.mxu0 0.0
    %1597 = vmatprep.subr.mxu0 0.0
    %1598 = vmatpush1.xpose.msra.mxu0 0.0
    %1599 = vmatprep.subr.mxu0 0.0
    %1600 = vmatpush1.xpose.msra.mxu0 0.0
    %1601 = vmatprep.subr.mxu0 0.0
    %1602 = vmatpush1.xpose.msra.mxu0 0.0
    %1603 = vmatprep.subr.mxu0 0.0
    %1604 = vmatpush1.xpose.msra.mxu0 0.0
    %1605 = vmatprep.subr.mxu0 0.0
    %1606 = vmatpush1.xpose.msra.mxu0 0.0
    %1607 = vmatprep.subr.mxu0 0.0
    %1608 = vmatpush1.xpose.msra.mxu0 0.0
    %1609 = vmatprep.subr.mxu0 0.0
    %1610 = vmatpush1.xpose.msra.mxu0 0.0
    %1611 = vmatprep.subr.mxu0 0.0
    %1612 = vmatpush1.xpose.msra.mxu0 0.0
    %1613 = vmatprep.subr.mxu0 0.0
    %1614 = vmatpush1.xpose.msra.mxu0 0.0
    %1615 = vmatprep.subr.mxu0 0.0
    %1616 = vmatpush1.xpose.msra.mxu0 0.0
    %1617 = vmatprep.subr.mxu0 0.0
    %1618 = vmatpush1.xpose.msra.mxu0 0.0
    %1619 = vmatprep.subr.mxu0 0.0
    %1620 = vmatpush1.xpose.msra.mxu0 0.0
    %1621 = vmatprep.subr.mxu0 0.0
    %1622 = vmatpush1.xpose.msra.mxu0 0.0
    %1623 = vmatprep.subr.mxu0 0.0
    %1624 = vmatpush1.xpose.msra.mxu0 0.0
    %1625 = vmatprep.subr.mxu0 0.0
    %1626 = vmatpush1.xpose.msra.mxu0 0.0
    %1627 = vmatprep.subr.mxu0 0.0
    %1628 = vmatpush1.xpose.msra.mxu0 0.0
    %1629 = vmatprep.subr.mxu0 0.0
    %1630 = vmatpush1.xpose.msra.mxu0 0.0
    %1631 = vmatprep.subr.mxu0 0.0
    %1632 = vmatpush1.xpose.msra.mxu0 0.0
    %1633 = vmatprep.subr.mxu0 0.0
    %1634 = vmatpush1.xpose.msra.mxu0 0.0
    %1635 = vmatprep.subr.mxu0 0.0
    %1636 = vmatpush1.xpose.msra.mxu0 0.0
    %1637 = vmatprep.subr.mxu0 0.0
    %1638 = vmatpush1.xpose.msra.mxu0 0.0
    %1639 = vmatprep.subr.mxu0 0.0
    %1640 = vmatpush1.xpose.msra.mxu0 0.0
    %1641 = vmatprep.subr.mxu0 0.0
    %1642 = vmatpush1.xpose.msra.mxu0 0.0
    %1643 = vmatprep.subr.mxu0 0.0
    %1644 = vmatpush1.xpose.msra.mxu0 0.0
    %1645 = vmatprep.subr.mxu0 0.0
    %1646 = vmatpush1.xpose.msra.mxu0 0.0
    %1647 = vmatprep.mubr.f32.mxu0 0.0
    %1648 = vmatmul.mubr.f32.gmra.mrb[0].mxu0 %v1559
    %v1649 = vpop.f32.mrb[0].mxu0
    %v1650 = vadd.f32 0.0, %v1649
    %v1651 = vpop.f32.mrb[0].mxu0
    %1652 = vmatprep.mubr.f32.mxu0 0.0
    %1653 = vmatmul.mubr.f32.gmra.mrb[0].mxu0 %v1561
    %v1654 = vpop.f32.mrb[0].mxu0
    %v1655 = vadd.f32 0.0, %v1654
    %v1656 = vpop.f32.mrb[0].mxu0
    %1657 = vmatprep.mubr.f32.mxu0 0.0
    %1658 = vmatmul.mubr.f32.gmra.mrb[0].mxu0 %v1563
    %v1659 = vpop.f32.mrb[0].mxu0
    %v1660 = vadd.f32 0.0, %v1659
    %v1661 = vpop.f32.mrb[0].mxu0
    %1662 = vmatprep.mubr.f32.mxu0 0.0
    %1663 = vmatmul.mubr.f32.gmra.mrb[0].mxu0 %v1565
    %v1664 = vpop.f32.mrb[0].mxu0
    %v1665 = vadd.f32 0.0, %v1664
    %v1666 = vpop.f32.mrb[0].mxu0
    %1667 = vmatprep.mubr.f32.mxu0 0.0
    %1668 = vmatmul.mubr.f32.gmra.mrb[0].mxu0 %v1567
    %v1669 = vpop.f32.mrb[0].mxu0
    %v1670 = vadd.f32 0.0, %v1669
    %v1671 = vpop.f32.mrb[0].mxu0
    %1672 = vmatprep.mubr.f32.mxu0 0.0
    %1673 = vmatmul.mubr.f32.gmra.mrb[0].mxu0 %v1569
    %v1674 = vpop.f32.mrb[0].mxu0
    %v1675 = vadd.f32 0.0, %v1674
    %v1676 = vpop.f32.mrb[0].mxu0
    %1677 = vdwg.mxu0
    %v1678 = vmul.f32 %v1650, 0.35355338
    %v1679 = vmul.f32 %v1655, 0.35355338
    %v1680 = vmul.f32 %v1660, 0.35355338
    %v1681 = vmul.f32 %v1665, 0.35355338
    %v1682 = vmul.f32 %v1670, 0.35355338
    %v1683 = vmul.f32 %v1675, 0.35355338
    %v1684 = vadd.f32 %v1678, %v822
    %v1685 = vadd.f32 %v1679, %v823
    %v1686 = vadd.f32 %v1680, %v824
    %v1687 = vadd.f32 %v1681, %v825
    %v1688 = vadd.f32 %v1682, %v826
    %v1689 = vadd.f32 %v1683, %v827
    %v1690 = vsel %vm1218, %v1684, -inf
    %1691 = vmax.xlane.f32.xlu0 %v1690
    %v1692 = vpop.xlane.xlu0 %1691
    %v1693 = vsel %vm1218, %v1685, -inf
    %1694 = vmax.xlane.f32.xlu0 %v1693
    %v1695 = vpop.xlane.xlu0 %1694
    %v1696 = vsel %vm1218, %v1686, -inf
    %1697 = vmax.xlane.f32.xlu0 %v1696
    %v1698 = vpop.xlane.xlu0 %1697
    %v1699 = vsel %vm1218, %v1687, -inf
    %1700 = vmax.xlane.f32.xlu0 %v1699
    %v1701 = vpop.xlane.xlu0 %1700
    %v1702 = vsel %vm1218, %v1688, -inf
    %1703 = vmax.xlane.f32.xlu0 %v1702
    %v1704 = vpop.xlane.xlu0 %1703
    %v1705 = vsel %vm1218, %v1689, -inf
    %1706 = vmax.xlane.f32.xlu0 %v1705
    %v1707 = vpop.xlane.xlu0 %1706
    %v1708 = vsub.f32 %v1684, %v1692
    %v1709 = vsub.f32 %v1685, %v1695
    %v1710 = vsub.f32 %v1686, %v1698
    %v1711 = vsub.f32 %v1687, %v1701
    %v1712 = vsub.f32 %v1688, %v1704
    %v1713 = vsub.f32 %v1689, %v1707
    %v1714 = vmul.f32 %v1708, 1.442695
    %v1715 = vpow.pop %v1714
    %v1716 = vmul.f32 %v1709, 1.442695
    %v1717 = vpow.pop %v1716
    %v1718 = vmul.f32 %v1710, 1.442695
    %v1719 = vpow.pop %v1718
    %v1720 = vmul.f32 %v1711, 1.442695
    %v1721 = vpow.pop %v1720
    %v1722 = vmul.f32 %v1712, 1.442695
    %v1723 = vpow.pop %v1722
    %v1724 = vmul.f32 %v1713, 1.442695
    %v1725 = vpow.pop %v1724
    %v1726 = vsel %vm1218, %v1715, 0.0
    %1727 = vadd.xlane.f32.xlu0 %v1726
    %v1728 = vpop.xlane.xlu0 %1727
    %v1729 = vsel %vm1218, %v1717, 0.0
    %1730 = vadd.xlane.f32.xlu0 %v1729
    %v1731 = vpop.xlane.xlu0 %1730
    %v1732 = vsel %vm1218, %v1719, 0.0
    %1733 = vadd.xlane.f32.xlu0 %v1732
    %v1734 = vpop.xlane.xlu0 %1733
    %v1735 = vsel %vm1218, %v1721, 0.0
    %1736 = vadd.xlane.f32.xlu0 %v1735
    %v1737 = vpop.xlane.xlu0 %1736
    %v1738 = vsel %vm1218, %v1723, 0.0
    %1739 = vadd.xlane.f32.xlu0 %v1738
    %v1740 = vpop.xlane.xlu0 %1739
    %v1741 = vsel %vm1218, %v1725, 0.0
    %1742 = vadd.xlane.f32.xlu0 %v1741
    %v1743 = vpop.xlane.xlu0 %1742
    %v1744 = vrcp.pop %v1728
    %v1745 = vrcp.pop %v1731
    %v1746 = vrcp.pop %v1734
    %v1747 = vrcp.pop %v1737
    %v1748 = vrcp.pop %v1740
    %v1749 = vrcp.pop %v1743
    %v1750 = vmul.f32 %v1715, %v1744
    %v1751 = vmul.f32 %v1717, %v1745
    %v1752 = vmul.f32 %v1719, %v1746
    %v1753 = vmul.f32 %v1721, %v1747
    %v1754 = vmul.f32 %v1723, %v1748
    %v1755 = vmul.f32 %v1725, %v1749
    %1756 = vrot.lane.b32.xlu0 %v1029, 56
    %v1757 = vpop.permute.xlu0 %1756
    %1758 = vrot.lane.b32.xlu0 %v1034, 56
    %v1759 = vpop.permute.xlu0 %1758
    %1760 = vrot.lane.b32.xlu0 %v1039, 56
    %v1761 = vpop.permute.xlu0 %1760
    %1762 = vrot.lane.b32.xlu0 %v1044, 56
    %v1763 = vpop.permute.xlu0 %1762
    %1764 = vrot.lane.b32.xlu0 %v1049, 56
    %v1765 = vpop.permute.xlu0 %1764
    %1766 = vrot.lane.b32.xlu0 %v1054, 56
    %v1767 = vpop.permute.xlu0 %1766
    %v1775 = vsel %vm1218, %v1750, 0
    %v1778 = vsel %vm1218, %v1751, 0
    %v1781 = vsel %vm1218, %v1752, 0
    %v1784 = vsel %vm1218, %v1753, 0
    %v1787 = vsel %vm1218, %v1754, 0
    %v1790 = vsel %vm1218, %v1755, 0
    %1792 = vmatprep.subr.mxu0 0.0
    %1793 = vmatpush1.msra.mxu0 %v1757
    %1794 = vmatprep.subr.mxu0 0.0
    %1795 = vmatpush1.msra.mxu0 %v1759
    %1796 = vmatprep.subr.mxu0 0.0
    %1797 = vmatpush1.msra.mxu0 %v1761
    %1798 = vmatprep.subr.mxu0 0.0
    %1799 = vmatpush1.msra.mxu0 %v1763
    %1800 = vmatprep.subr.mxu0 0.0
    %1801 = vmatpush1.msra.mxu0 %v1765
    %1802 = vmatprep.subr.mxu0 0.0
    %1803 = vmatpush1.msra.mxu0 %v1767
    %1804 = vmatprep.subr.mxu0 0.0
    %1805 = vmatpush1.msra.mxu0 0.0
    %1806 = vmatprep.subr.mxu0 0.0
    %1807 = vmatpush1.msra.mxu0 0.0
    %1808 = vmatprep.subr.mxu0 0.0
    %1809 = vmatpush1.msra.mxu0 0.0
    %1810 = vmatprep.subr.mxu0 0.0
    %1811 = vmatpush1.msra.mxu0 0.0
    %1812 = vmatprep.subr.mxu0 0.0
    %1813 = vmatpush1.msra.mxu0 0.0
    %1814 = vmatprep.subr.mxu0 0.0
    %1815 = vmatpush1.msra.mxu0 0.0
    %1816 = vmatprep.subr.mxu0 0.0
    %1817 = vmatpush1.msra.mxu0 0.0
    %1818 = vmatprep.subr.mxu0 0.0
    %1819 = vmatpush1.msra.mxu0 0.0
    %1820 = vmatprep.subr.mxu0 0.0
    %1821 = vmatpush1.msra.mxu0 0.0
    %1822 = vmatprep.subr.mxu0 0.0
    %1823 = vmatpush1.msra.mxu0 0.0
    %1824 = vmatprep.subr.mxu0 0.0
    %1825 = vmatpush1.msra.mxu0 0.0
    %1826 = vmatprep.subr.mxu0 0.0
    %1827 = vmatpush1.msra.mxu0 0.0
    %1828 = vmatprep.subr.mxu0 0.0
    %1829 = vmatpush1.msra.mxu0 0.0
    %1830 = vmatprep.subr.mxu0 0.0
    %1831 = vmatpush1.msra.mxu0 0.0
    %1832 = vmatprep.subr.mxu0 0.0
    %1833 = vmatpush1.msra.mxu0 0.0
    %1834 = vmatprep.subr.mxu0 0.0
    %1835 = vmatpush1.msra.mxu0 0.0
    %1836 = vmatprep.subr.mxu0 0.0
    %1837 = vmatpush1.msra.mxu0 0.0
    %1838 = vmatprep.subr.mxu0 0.0
    %1839 = vmatpush1.msra.mxu0 0.0
    %1840 = vmatprep.subr.mxu0 0.0
    %1841 = vmatpush1.msra.mxu0 0.0
    %1842 = vmatprep.subr.mxu0 0.0
    %1843 = vmatpush1.msra.mxu0 0.0
    %1844 = vmatprep.subr.mxu0 0.0
    %1845 = vmatpush1.msra.mxu0 0.0
    %1846 = vmatprep.subr.mxu0 0.0
    %1847 = vmatpush1.msra.mxu0 0.0
    %1848 = vmatprep.subr.mxu0 0.0
    %1849 = vmatpush1.msra.mxu0 0.0
    %1850 = vmatprep.subr.mxu0 0.0
    %1851 = vmatpush1.msra.mxu0 0.0
    %1852 = vmatprep.subr.mxu0 0.0
    %1853 = vmatpush1.msra.mxu0 0.0
    %1854 = vmatprep.subr.mxu0 0.0
    %1855 = vmatpush1.msra.mxu0 0.0
    %1856 = vmatprep.mubr.f32.mxu0 0.0
    %1857 = vmatmul.mubr.f32.gmra.mrb[0].mxu0 %v1775
    %v1858 = vpop.f32.mrb[0].mxu0
    %v1859 = vadd.f32 0.0, %v1858
    %v1860 = vpop.f32.mrb[0].mxu0
    %1861 = vmatprep.mubr.f32.mxu0 0.0
    %1862 = vmatmul.mubr.f32.gmra.mrb[0].mxu0 %v1778
    %v1863 = vpop.f32.mrb[0].mxu0
    %v1864 = vadd.f32 0.0, %v1863
    %v1865 = vpop.f32.mrb[0].mxu0
    %1866 = vmatprep.mubr.f32.mxu0 0.0
    %1867 = vmatmul.mubr.f32.gmra.mrb[0].mxu0 %v1781
    %v1868 = vpop.f32.mrb[0].mxu0
    %v1869 = vadd.f32 0.0, %v1868
    %v1870 = vpop.f32.mrb[0].mxu0
    %1871 = vmatprep.mubr.f32.mxu0 0.0
    %1872 = vmatmul.mubr.f32.gmra.mrb[0].mxu0 %v1784
    %v1873 = vpop.f32.mrb[0].mxu0
    %v1874 = vadd.f32 0.0, %v1873
    %v1875 = vpop.f32.mrb[0].mxu0
    %1876 = vmatprep.mubr.f32.mxu0 0.0
    %1877 = vmatmul.mubr.f32.gmra.mrb[0].mxu0 %v1787
    %v1878 = vpop.f32.mrb[0].mxu0
    %v1879 = vadd.f32 0.0, %v1878
    %v1880 = vpop.f32.mrb[0].mxu0
    %1881 = vmatprep.mubr.f32.mxu0 0.0
    %1882 = vmatmul.mubr.f32.gmra.mrb[0].mxu0 %v1790
    %v1883 = vpop.f32.mrb[0].mxu0
    %v1884 = vadd.f32 0.0, %v1883
    %v1885 = vpop.f32.mrb[0].mxu0
    %1886 = vdwg.mxu0
    %v1888 = vsel %vm343, %v1859, 0
    %v1891 = vsel %vm343, %v1864, 0
    %v1894 = vsel %vm343, %v1869, 0
    %v1897 = vsel %vm343, %v1874, 0
    %v1900 = vsel %vm343, %v1879, 0
    %v1903 = vsel %vm343, %v1884, 0
    %1905 = vmatprep.subr.mxu0 0.0
    %1906 = vmatpush1.msra.mxu0 %v1058
    %1907 = vmatprep.subr.mxu0 0.0
    %1908 = vmatpush1.msra.mxu0 0.0
    %1909 = vmatprep.subr.mxu0 0.0
    %1910 = vmatpush1.msra.mxu0 0.0
    %1911 = vmatprep.subr.mxu0 0.0
    %1912 = vmatpush1.msra.mxu0 0.0
    %1913 = vmatprep.subr.mxu0 0.0
    %1914 = vmatpush1.msra.mxu0 0.0
    %1915 = vmatprep.subr.mxu0 0.0
    %1916 = vmatpush1.msra.mxu0 0.0
    %1917 = vmatprep.subr.mxu0 0.0
    %1918 = vmatpush1.msra.mxu0 0.0
    %1919 = vmatprep.subr.mxu0 0.0
    %1920 = vmatpush1.msra.mxu0 0.0
    %1921 = vmatprep.subr.mxu0 0.0
    %1922 = vmatpush1.msra.mxu0 0.0
    %1923 = vmatprep.subr.mxu0 0.0
    %1924 = vmatpush1.msra.mxu0 0.0
    %1925 = vmatprep.subr.mxu0 0.0
    %1926 = vmatpush1.msra.mxu0 0.0
    %1927 = vmatprep.subr.mxu0 0.0
    %1928 = vmatpush1.msra.mxu0 0.0
    %1929 = vmatprep.subr.mxu0 0.0
    %1930 = vmatpush1.msra.mxu0 0.0
    %1931 = vmatprep.subr.mxu0 0.0
    %1932 = vmatpush1.msra.mxu0 0.0
    %1933 = vmatprep.subr.mxu0 0.0
    %1934 = vmatpush1.msra.mxu0 0.0
    %1935 = vmatprep.subr.mxu0 0.0
    %1936 = vmatpush1.msra.mxu0 0.0
    %1937 = vmatprep.subr.mxu0 0.0
    %1938 = vmatpush1.msra.mxu0 0.0
    %1939 = vmatprep.subr.mxu0 0.0
    %1940 = vmatpush1.msra.mxu0 0.0
    %1941 = vmatprep.subr.mxu0 0.0
    %1942 = vmatpush1.msra.mxu0 0.0
    %1943 = vmatprep.subr.mxu0 0.0
    %1944 = vmatpush1.msra.mxu0 0.0
    %1945 = vmatprep.subr.mxu0 0.0
    %1946 = vmatpush1.msra.mxu0 0.0
    %1947 = vmatprep.subr.mxu0 0.0
    %1948 = vmatpush1.msra.mxu0 0.0
    %1949 = vmatprep.subr.mxu0 0.0
    %1950 = vmatpush1.msra.mxu0 0.0
    %1951 = vmatprep.subr.mxu0 0.0
    %1952 = vmatpush1.msra.mxu0 0.0
    %1953 = vmatprep.subr.mxu0 0.0
    %1954 = vmatpush1.msra.mxu0 0.0
    %1955 = vmatprep.subr.mxu0 0.0
    %1956 = vmatpush1.msra.mxu0 0.0
    %1957 = vmatprep.subr.mxu0 0.0
    %1958 = vmatpush1.msra.mxu0 0.0
    %1959 = vmatprep.subr.mxu0 0.0
    %1960 = vmatpush1.msra.mxu0 0.0
    %1961 = vmatprep.subr.mxu0 0.0
    %1962 = vmatpush1.msra.mxu0 0.0
    %1963 = vmatprep.subr.mxu0 0.0
    %1964 = vmatpush1.msra.mxu0 0.0
    %1965 = vmatprep.subr.mxu0 0.0
    %1966 = vmatpush1.msra.mxu0 0.0
    %1967 = vmatprep.subr.mxu0 0.0
    %1968 = vmatpush1.msra.mxu0 0.0
    %1969 = vmatprep.mubr.f32.mxu0 0.0
    %1970 = vmatmul.mubr.f32.gmra.mrb[0].mxu0 %v1888
    %v1971 = vpop.f32.mrb[0].mxu0
    %v1972 = vadd.f32 0.0, %v1971
    %v1973 = vpop.f32.mrb[0].mxu0
    %1974 = vmatprep.mubr.f32.mxu0 0.0
    %1975 = vmatmul.mubr.f32.gmra.mrb[0].mxu0 %v1891
    %v1976 = vpop.f32.mrb[0].mxu0
    %v1977 = vadd.f32 0.0, %v1976
    %v1978 = vpop.f32.mrb[0].mxu0
    %1979 = vmatprep.mubr.f32.mxu0 0.0
    %1980 = vmatmul.mubr.f32.gmra.mrb[0].mxu0 %v1894
    %v1981 = vpop.f32.mrb[0].mxu0
    %v1982 = vadd.f32 0.0, %v1981
    %v1983 = vpop.f32.mrb[0].mxu0
    %1984 = vmatprep.mubr.f32.mxu0 0.0
    %1985 = vmatmul.mubr.f32.gmra.mrb[0].mxu0 %v1897
    %v1986 = vpop.f32.mrb[0].mxu0
    %v1987 = vadd.f32 0.0, %v1986
    %v1988 = vpop.f32.mrb[0].mxu0
    %1989 = vmatprep.mubr.f32.mxu0 0.0
    %1990 = vmatmul.mubr.f32.gmra.mrb[0].mxu0 %v1900
    %v1991 = vpop.f32.mrb[0].mxu0
    %v1992 = vadd.f32 0.0, %v1991
    %v1993 = vpop.f32.mrb[0].mxu0
    %1994 = vmatprep.mubr.f32.mxu0 0.0
    %1995 = vmatmul.mubr.f32.gmra.mrb[0].mxu0 %v1903
    %v1996 = vpop.f32.mrb[0].mxu0
    %v1997 = vadd.f32 0.0, %v1996
    %v1998 = vpop.f32.mrb[0].mxu0
    %1999 = vdwg.mxu0
    %v2000 = vadd.f32 %v1529, %v1972
    %v2001 = vadd.f32 %v1530, %v1977
    %v2002 = vadd.f32 %v1531, %v1982
    %v2003 = vadd.f32 %v1532, %v1987
    %v2004 = vadd.f32 %v1533, %v1992
    %v2005 = vadd.f32 %v1534, %v1997
    %2006 = vrot.lane.b32.xlu0 %v1029, 112
    %v2007 = vpop.permute.xlu0 %2006
    %2008 = vrot.lane.b32.xlu0 %v1034, 112
    %v2009 = vpop.permute.xlu0 %2008
    %2010 = vrot.lane.b32.xlu0 %v1039, 112
    %v2011 = vpop.permute.xlu0 %2010
    %2012 = vrot.lane.b32.xlu0 %v1044, 112
    %v2013 = vpop.permute.xlu0 %2012
    %2014 = vrot.lane.b32.xlu0 %v1049, 112
    %v2015 = vpop.permute.xlu0 %2014
    %2016 = vrot.lane.b32.xlu0 %v1054, 112
    %v2017 = vpop.permute.xlu0 %2016
    %2018 = vrot.lane.b32.xlu0 %v1029, 80
    %v2019 = vpop.permute.xlu0 %2018
    %2020 = vrot.lane.b32.xlu0 %v1034, 80
    %v2021 = vpop.permute.xlu0 %2020
    %2022 = vrot.lane.b32.xlu0 %v1039, 80
    %v2023 = vpop.permute.xlu0 %2022
    %2024 = vrot.lane.b32.xlu0 %v1044, 80
    %v2025 = vpop.permute.xlu0 %2024
    %2026 = vrot.lane.b32.xlu0 %v1049, 80
    %v2027 = vpop.permute.xlu0 %2026
    %2028 = vrot.lane.b32.xlu0 %v1054, 80
    %v2029 = vpop.permute.xlu0 %2028
    %v2030 = vsel %vm343, %v2007, 0
    %v2032 = vsel %vm343, %v2009, 0
    %v2034 = vsel %vm343, %v2011, 0
    %v2036 = vsel %vm343, %v2013, 0
    %v2038 = vsel %vm343, %v2015, 0
    %v2040 = vsel %vm343, %v2017, 0
    %v2042 = vsel %vm343, %v2019, 0
    %v2044 = vsel %vm343, %v2021, 0
    %v2046 = vsel %vm343, %v2023, 0
    %v2048 = vsel %vm343, %v2025, 0
    %v2050 = vsel %vm343, %v2027, 0
    %v2052 = vsel %vm343, %v2029, 0
    %2054 = vmatprep.subr.mxu0 0.0
    %2055 = vmatpush1.xpose.msra.mxu0 %v2042
    %2056 = vmatprep.subr.mxu0 0.0
    %2057 = vmatpush1.xpose.msra.mxu0 %v2044
    %2058 = vmatprep.subr.mxu0 0.0
    %2059 = vmatpush1.xpose.msra.mxu0 %v2046
    %2060 = vmatprep.subr.mxu0 0.0
    %2061 = vmatpush1.xpose.msra.mxu0 %v2048
    %2062 = vmatprep.subr.mxu0 0.0
    %2063 = vmatpush1.xpose.msra.mxu0 %v2050
    %2064 = vmatprep.subr.mxu0 0.0
    %2065 = vmatpush1.xpose.msra.mxu0 %v2052
    %2066 = vmatprep.subr.mxu0 0.0
    %2067 = vmatpush1.xpose.msra.mxu0 0.0
    %2068 = vmatprep.subr.mxu0 0.0
    %2069 = vmatpush1.xpose.msra.mxu0 0.0
    %2070 = vmatprep.subr.mxu0 0.0
    %2071 = vmatpush1.xpose.msra.mxu0 0.0
    %2072 = vmatprep.subr.mxu0 0.0
    %2073 = vmatpush1.xpose.msra.mxu0 0.0
    %2074 = vmatprep.subr.mxu0 0.0
    %2075 = vmatpush1.xpose.msra.mxu0 0.0
    %2076 = vmatprep.subr.mxu0 0.0
    %2077 = vmatpush1.xpose.msra.mxu0 0.0
    %2078 = vmatprep.subr.mxu0 0.0
    %2079 = vmatpush1.xpose.msra.mxu0 0.0
    %2080 = vmatprep.subr.mxu0 0.0
    %2081 = vmatpush1.xpose.msra.mxu0 0.0
    %2082 = vmatprep.subr.mxu0 0.0
    %2083 = vmatpush1.xpose.msra.mxu0 0.0
    %2084 = vmatprep.subr.mxu0 0.0
    %2085 = vmatpush1.xpose.msra.mxu0 0.0
    %2086 = vmatprep.subr.mxu0 0.0
    %2087 = vmatpush1.xpose.msra.mxu0 0.0
    %2088 = vmatprep.subr.mxu0 0.0
    %2089 = vmatpush1.xpose.msra.mxu0 0.0
    %2090 = vmatprep.subr.mxu0 0.0
    %2091 = vmatpush1.xpose.msra.mxu0 0.0
    %2092 = vmatprep.subr.mxu0 0.0
    %2093 = vmatpush1.xpose.msra.mxu0 0.0
    %2094 = vmatprep.subr.mxu0 0.0
    %2095 = vmatpush1.xpose.msra.mxu0 0.0
    %2096 = vmatprep.subr.mxu0 0.0
    %2097 = vmatpush1.xpose.msra.mxu0 0.0
    %2098 = vmatprep.subr.mxu0 0.0
    %2099 = vmatpush1.xpose.msra.mxu0 0.0
    %2100 = vmatprep.subr.mxu0 0.0
    %2101 = vmatpush1.xpose.msra.mxu0 0.0
    %2102 = vmatprep.subr.mxu0 0.0
    %2103 = vmatpush1.xpose.msra.mxu0 0.0
    %2104 = vmatprep.subr.mxu0 0.0
    %2105 = vmatpush1.xpose.msra.mxu0 0.0
    %2106 = vmatprep.subr.mxu0 0.0
    %2107 = vmatpush1.xpose.msra.mxu0 0.0
    %2108 = vmatprep.subr.mxu0 0.0
    %2109 = vmatpush1.xpose.msra.mxu0 0.0
    %2110 = vmatprep.subr.mxu0 0.0
    %2111 = vmatpush1.xpose.msra.mxu0 0.0
    %2112 = vmatprep.subr.mxu0 0.0
    %2113 = vmatpush1.xpose.msra.mxu0 0.0
    %2114 = vmatprep.subr.mxu0 0.0
    %2115 = vmatpush1.xpose.msra.mxu0 0.0
    %2116 = vmatprep.subr.mxu0 0.0
    %2117 = vmatpush1.xpose.msra.mxu0 0.0
    %2118 = vmatprep.mubr.f32.mxu0 0.0
    %2119 = vmatmul.mubr.f32.gmra.mrb[0].mxu0 %v2030
    %v2120 = vpop.f32.mrb[0].mxu0
    %v2121 = vadd.f32 0.0, %v2120
    %v2122 = vpop.f32.mrb[0].mxu0
    %2123 = vmatprep.mubr.f32.mxu0 0.0
    %2124 = vmatmul.mubr.f32.gmra.mrb[0].mxu0 %v2032
    %v2125 = vpop.f32.mrb[0].mxu0
    %v2126 = vadd.f32 0.0, %v2125
    %v2127 = vpop.f32.mrb[0].mxu0
    %2128 = vmatprep.mubr.f32.mxu0 0.0
    %2129 = vmatmul.mubr.f32.gmra.mrb[0].mxu0 %v2034
    %v2130 = vpop.f32.mrb[0].mxu0
    %v2131 = vadd.f32 0.0, %v2130
    %v2132 = vpop.f32.mrb[0].mxu0
    %2133 = vmatprep.mubr.f32.mxu0 0.0
    %2134 = vmatmul.mubr.f32.gmra.mrb[0].mxu0 %v2036
    %v2135 = vpop.f32.mrb[0].mxu0
    %v2136 = vadd.f32 0.0, %v2135
    %v2137 = vpop.f32.mrb[0].mxu0
    %2138 = vmatprep.mubr.f32.mxu0 0.0
    %2139 = vmatmul.mubr.f32.gmra.mrb[0].mxu0 %v2038
    %v2140 = vpop.f32.mrb[0].mxu0
    %v2141 = vadd.f32 0.0, %v2140
    %v2142 = vpop.f32.mrb[0].mxu0
    %2143 = vmatprep.mubr.f32.mxu0 0.0
    %2144 = vmatmul.mubr.f32.gmra.mrb[0].mxu0 %v2040
    %v2145 = vpop.f32.mrb[0].mxu0
    %v2146 = vadd.f32 0.0, %v2145
    %v2147 = vpop.f32.mrb[0].mxu0
    %2148 = vdwg.mxu0
    %v2149 = vmul.f32 %v2121, 0.35355338
    %v2150 = vmul.f32 %v2126, 0.35355338
    %v2151 = vmul.f32 %v2131, 0.35355338
    %v2152 = vmul.f32 %v2136, 0.35355338
    %v2153 = vmul.f32 %v2141, 0.35355338
    %v2154 = vmul.f32 %v2146, 0.35355338
    %v2155 = vadd.f32 %v2149, %v822
    %v2156 = vadd.f32 %v2150, %v823
    %v2157 = vadd.f32 %v2151, %v824
    %v2158 = vadd.f32 %v2152, %v825
    %v2159 = vadd.f32 %v2153, %v826
    %v2160 = vadd.f32 %v2154, %v827
    %v2161 = vsel %vm1218, %v2155, -inf
    %2162 = vmax.xlane.f32.xlu0 %v2161
    %v2163 = vpop.xlane.xlu0 %2162
    %v2164 = vsel %vm1218, %v2156, -inf
    %2165 = vmax.xlane.f32.xlu0 %v2164
    %v2166 = vpop.xlane.xlu0 %2165
    %v2167 = vsel %vm1218, %v2157, -inf
    %2168 = vmax.xlane.f32.xlu0 %v2167
    %v2169 = vpop.xlane.xlu0 %2168
    %v2170 = vsel %vm1218, %v2158, -inf
    %2171 = vmax.xlane.f32.xlu0 %v2170
    %v2172 = vpop.xlane.xlu0 %2171
    %v2173 = vsel %vm1218, %v2159, -inf
    %2174 = vmax.xlane.f32.xlu0 %v2173
    %v2175 = vpop.xlane.xlu0 %2174
    %v2176 = vsel %vm1218, %v2160, -inf
    %2177 = vmax.xlane.f32.xlu0 %v2176
    %v2178 = vpop.xlane.xlu0 %2177
    %v2179 = vsub.f32 %v2155, %v2163
    %v2180 = vsub.f32 %v2156, %v2166
    %v2181 = vsub.f32 %v2157, %v2169
    %v2182 = vsub.f32 %v2158, %v2172
    %v2183 = vsub.f32 %v2159, %v2175
    %v2184 = vsub.f32 %v2160, %v2178
    %v2185 = vmul.f32 %v2179, 1.442695
    %v2186 = vpow.pop %v2185
    %v2187 = vmul.f32 %v2180, 1.442695
    %v2188 = vpow.pop %v2187
    %v2189 = vmul.f32 %v2181, 1.442695
    %v2190 = vpow.pop %v2189
    %v2191 = vmul.f32 %v2182, 1.442695
    %v2192 = vpow.pop %v2191
    %v2193 = vmul.f32 %v2183, 1.442695
    %v2194 = vpow.pop %v2193
    %v2195 = vmul.f32 %v2184, 1.442695
    %v2196 = vpow.pop %v2195
    %v2197 = vsel %vm1218, %v2186, 0.0
    %2198 = vadd.xlane.f32.xlu0 %v2197
    %v2199 = vpop.xlane.xlu0 %2198
    %v2200 = vsel %vm1218, %v2188, 0.0
    %2201 = vadd.xlane.f32.xlu0 %v2200
    %v2202 = vpop.xlane.xlu0 %2201
    %v2203 = vsel %vm1218, %v2190, 0.0
    %2204 = vadd.xlane.f32.xlu0 %v2203
    %v2205 = vpop.xlane.xlu0 %2204
    %v2206 = vsel %vm1218, %v2192, 0.0
    %2207 = vadd.xlane.f32.xlu0 %v2206
    %v2208 = vpop.xlane.xlu0 %2207
    %v2209 = vsel %vm1218, %v2194, 0.0
    %2210 = vadd.xlane.f32.xlu0 %v2209
    %v2211 = vpop.xlane.xlu0 %2210
    %v2212 = vsel %vm1218, %v2196, 0.0
    %2213 = vadd.xlane.f32.xlu0 %v2212
    %v2214 = vpop.xlane.xlu0 %2213
    %v2215 = vrcp.pop %v2199
    %v2216 = vrcp.pop %v2202
    %v2217 = vrcp.pop %v2205
    %v2218 = vrcp.pop %v2208
    %v2219 = vrcp.pop %v2211
    %v2220 = vrcp.pop %v2214
    %v2221 = vmul.f32 %v2186, %v2215
    %v2222 = vmul.f32 %v2188, %v2216
    %v2223 = vmul.f32 %v2190, %v2217
    %v2224 = vmul.f32 %v2192, %v2218
    %v2225 = vmul.f32 %v2194, %v2219
    %v2226 = vmul.f32 %v2196, %v2220
    %2227 = vrot.lane.b32.xlu0 %v1029, 48
    %v2228 = vpop.permute.xlu0 %2227
    %2229 = vrot.lane.b32.xlu0 %v1034, 48
    %v2230 = vpop.permute.xlu0 %2229
    %2231 = vrot.lane.b32.xlu0 %v1039, 48
    %v2232 = vpop.permute.xlu0 %2231
    %2233 = vrot.lane.b32.xlu0 %v1044, 48
    %v2234 = vpop.permute.xlu0 %2233
    %2235 = vrot.lane.b32.xlu0 %v1049, 48
    %v2236 = vpop.permute.xlu0 %2235
    %2237 = vrot.lane.b32.xlu0 %v1054, 48
    %v2238 = vpop.permute.xlu0 %2237
    %v2246 = vsel %vm1218, %v2221, 0
    %v2249 = vsel %vm1218, %v2222, 0
    %v2252 = vsel %vm1218, %v2223, 0
    %v2255 = vsel %vm1218, %v2224, 0
    %v2258 = vsel %vm1218, %v2225, 0
    %v2261 = vsel %vm1218, %v2226, 0
    %2263 = vmatprep.subr.mxu0 0.0
    %2264 = vmatpush1.msra.mxu0 %v2228
    %2265 = vmatprep.subr.mxu0 0.0
    %2266 = vmatpush1.msra.mxu0 %v2230
    %2267 = vmatprep.subr.mxu0 0.0
    %2268 = vmatpush1.msra.mxu0 %v2232
    %2269 = vmatprep.subr.mxu0 0.0
    %2270 = vmatpush1.msra.mxu0 %v2234
    %2271 = vmatprep.subr.mxu0 0.0
    %2272 = vmatpush1.msra.mxu0 %v2236
    %2273 = vmatprep.subr.mxu0 0.0
    %2274 = vmatpush1.msra.mxu0 %v2238
    %2275 = vmatprep.subr.mxu0 0.0
    %2276 = vmatpush1.msra.mxu0 0.0
    %2277 = vmatprep.subr.mxu0 0.0
    %2278 = vmatpush1.msra.mxu0 0.0
    %2279 = vmatprep.subr.mxu0 0.0
    %2280 = vmatpush1.msra.mxu0 0.0
    %2281 = vmatprep.subr.mxu0 0.0
    %2282 = vmatpush1.msra.mxu0 0.0
    %2283 = vmatprep.subr.mxu0 0.0
    %2284 = vmatpush1.msra.mxu0 0.0
    %2285 = vmatprep.subr.mxu0 0.0
    %2286 = vmatpush1.msra.mxu0 0.0
    %2287 = vmatprep.subr.mxu0 0.0
    %2288 = vmatpush1.msra.mxu0 0.0
    %2289 = vmatprep.subr.mxu0 0.0
    %2290 = vmatpush1.msra.mxu0 0.0
    %2291 = vmatprep.subr.mxu0 0.0
    %2292 = vmatpush1.msra.mxu0 0.0
    %2293 = vmatprep.subr.mxu0 0.0
    %2294 = vmatpush1.msra.mxu0 0.0
    %2295 = vmatprep.subr.mxu0 0.0
    %2296 = vmatpush1.msra.mxu0 0.0
    %2297 = vmatprep.subr.mxu0 0.0
    %2298 = vmatpush1.msra.mxu0 0.0
    %2299 = vmatprep.subr.mxu0 0.0
    %2300 = vmatpush1.msra.mxu0 0.0
    %2301 = vmatprep.subr.mxu0 0.0
    %2302 = vmatpush1.msra.mxu0 0.0
    %2303 = vmatprep.subr.mxu0 0.0
    %2304 = vmatpush1.msra.mxu0 0.0
    %2305 = vmatprep.subr.mxu0 0.0
    %2306 = vmatpush1.msra.mxu0 0.0
    %2307 = vmatprep.subr.mxu0 0.0
    %2308 = vmatpush1.msra.mxu0 0.0
    %2309 = vmatprep.subr.mxu0 0.0
    %2310 = vmatpush1.msra.mxu0 0.0
    %2311 = vmatprep.subr.mxu0 0.0
    %2312 = vmatpush1.msra.mxu0 0.0
    %2313 = vmatprep.subr.mxu0 0.0
    %2314 = vmatpush1.msra.mxu0 0.0
    %2315 = vmatprep.subr.mxu0 0.0
    %2316 = vmatpush1.msra.mxu0 0.0
    %2317 = vmatprep.subr.mxu0 0.0
    %2318 = vmatpush1.msra.mxu0 0.0
    %2319 = vmatprep.subr.mxu0 0.0
    %2320 = vmatpush1.msra.mxu0 0.0
    %2321 = vmatprep.subr.mxu0 0.0
    %2322 = vmatpush1.msra.mxu0 0.0
    %2323 = vmatprep.subr.mxu0 0.0
    %2324 = vmatpush1.msra.mxu0 0.0
    %2325 = vmatprep.subr.mxu0 0.0
    %2326 = vmatpush1.msra.mxu0 0.0
    %2327 = vmatprep.mubr.f32.mxu0 0.0
    %2328 = vmatmul.mubr.f32.gmra.mrb[0].mxu0 %v2246
    %v2329 = vpop.f32.mrb[0].mxu0
    %v2330 = vadd.f32 0.0, %v2329
    %v2331 = vpop.f32.mrb[0].mxu0
    %2332 = vmatprep.mubr.f32.mxu0 0.0
    %2333 = vmatmul.mubr.f32.gmra.mrb[0].mxu0 %v2249
    %v2334 = vpop.f32.mrb[0].mxu0
    %v2335 = vadd.f32 0.0, %v2334
    %v2336 = vpop.f32.mrb[0].mxu0
    %2337 = vmatprep.mubr.f32.mxu0 0.0
    %2338 = vmatmul.mubr.f32.gmra.mrb[0].mxu0 %v2252
    %v2339 = vpop.f32.mrb[0].mxu0
    %v2340 = vadd.f32 0.0, %v2339
    %v2341 = vpop.f32.mrb[0].mxu0
    %2342 = vmatprep.mubr.f32.mxu0 0.0
    %2343 = vmatmul.mubr.f32.gmra.mrb[0].mxu0 %v2255
    %v2344 = vpop.f32.mrb[0].mxu0
    %v2345 = vadd.f32 0.0, %v2344
    %v2346 = vpop.f32.mrb[0].mxu0
    %2347 = vmatprep.mubr.f32.mxu0 0.0
    %2348 = vmatmul.mubr.f32.gmra.mrb[0].mxu0 %v2258
    %v2349 = vpop.f32.mrb[0].mxu0
    %v2350 = vadd.f32 0.0, %v2349
    %v2351 = vpop.f32.mrb[0].mxu0
    %2352 = vmatprep.mubr.f32.mxu0 0.0
    %2353 = vmatmul.mubr.f32.gmra.mrb[0].mxu0 %v2261
    %v2354 = vpop.f32.mrb[0].mxu0
    %v2355 = vadd.f32 0.0, %v2354
    %v2356 = vpop.f32.mrb[0].mxu0
    %2357 = vdwg.mxu0
    %v2359 = vsel %vm343, %v2330, 0
    %v2362 = vsel %vm343, %v2335, 0
    %v2365 = vsel %vm343, %v2340, 0
    %v2368 = vsel %vm343, %v2345, 0
    %v2371 = vsel %vm343, %v2350, 0
    %v2374 = vsel %vm343, %v2355, 0
    %2376 = vmatprep.subr.mxu0 0.0
    %2377 = vmatpush1.msra.mxu0 %v1059
    %2378 = vmatprep.subr.mxu0 0.0
    %2379 = vmatpush1.msra.mxu0 0.0
    %2380 = vmatprep.subr.mxu0 0.0
    %2381 = vmatpush1.msra.mxu0 0.0
    %2382 = vmatprep.subr.mxu0 0.0
    %2383 = vmatpush1.msra.mxu0 0.0
    %2384 = vmatprep.subr.mxu0 0.0
    %2385 = vmatpush1.msra.mxu0 0.0
    %2386 = vmatprep.subr.mxu0 0.0
    %2387 = vmatpush1.msra.mxu0 0.0
    %2388 = vmatprep.subr.mxu0 0.0
    %2389 = vmatpush1.msra.mxu0 0.0
    %2390 = vmatprep.subr.mxu0 0.0
    %2391 = vmatpush1.msra.mxu0 0.0
    %2392 = vmatprep.subr.mxu0 0.0
    %2393 = vmatpush1.msra.mxu0 0.0
    %2394 = vmatprep.subr.mxu0 0.0
    %2395 = vmatpush1.msra.mxu0 0.0
    %2396 = vmatprep.subr.mxu0 0.0
    %2397 = vmatpush1.msra.mxu0 0.0
    %2398 = vmatprep.subr.mxu0 0.0
    %2399 = vmatpush1.msra.mxu0 0.0
    %2400 = vmatprep.subr.mxu0 0.0
    %2401 = vmatpush1.msra.mxu0 0.0
    %2402 = vmatprep.subr.mxu0 0.0
    %2403 = vmatpush1.msra.mxu0 0.0
    %2404 = vmatprep.subr.mxu0 0.0
    %2405 = vmatpush1.msra.mxu0 0.0
    %2406 = vmatprep.subr.mxu0 0.0
    %2407 = vmatpush1.msra.mxu0 0.0
    %2408 = vmatprep.subr.mxu0 0.0
    %2409 = vmatpush1.msra.mxu0 0.0
    %2410 = vmatprep.subr.mxu0 0.0
    %2411 = vmatpush1.msra.mxu0 0.0
    %2412 = vmatprep.subr.mxu0 0.0
    %2413 = vmatpush1.msra.mxu0 0.0
    %2414 = vmatprep.subr.mxu0 0.0
    %2415 = vmatpush1.msra.mxu0 0.0
    %2416 = vmatprep.subr.mxu0 0.0
    %2417 = vmatpush1.msra.mxu0 0.0
    %2418 = vmatprep.subr.mxu0 0.0
    %2419 = vmatpush1.msra.mxu0 0.0
    %2420 = vmatprep.subr.mxu0 0.0
    %2421 = vmatpush1.msra.mxu0 0.0
    %2422 = vmatprep.subr.mxu0 0.0
    %2423 = vmatpush1.msra.mxu0 0.0
    %2424 = vmatprep.subr.mxu0 0.0
    %2425 = vmatpush1.msra.mxu0 0.0
    %2426 = vmatprep.subr.mxu0 0.0
    %2427 = vmatpush1.msra.mxu0 0.0
    %2428 = vmatprep.subr.mxu0 0.0
    %2429 = vmatpush1.msra.mxu0 0.0
    %2430 = vmatprep.subr.mxu0 0.0
    %2431 = vmatpush1.msra.mxu0 0.0
    %2432 = vmatprep.subr.mxu0 0.0
    %2433 = vmatpush1.msra.mxu0 0.0
    %2434 = vmatprep.subr.mxu0 0.0
    %2435 = vmatpush1.msra.mxu0 0.0
    %2436 = vmatprep.subr.mxu0 0.0
    %2437 = vmatpush1.msra.mxu0 0.0
    %2438 = vmatprep.subr.mxu0 0.0
    %2439 = vmatpush1.msra.mxu0 0.0
    %2440 = vmatprep.mubr.f32.mxu0 0.0
    %2441 = vmatmul.mubr.f32.gmra.mrb[0].mxu0 %v2359
    %v2442 = vpop.f32.mrb[0].mxu0
    %v2443 = vadd.f32 0.0, %v2442
    %v2444 = vpop.f32.mrb[0].mxu0
    %2445 = vmatprep.mubr.f32.mxu0 0.0
    %2446 = vmatmul.mubr.f32.gmra.mrb[0].mxu0 %v2362
    %v2447 = vpop.f32.mrb[0].mxu0
    %v2448 = vadd.f32 0.0, %v2447
    %v2449 = vpop.f32.mrb[0].mxu0
    %2450 = vmatprep.mubr.f32.mxu0 0.0
    %2451 = vmatmul.mubr.f32.gmra.mrb[0].mxu0 %v2365
    %v2452 = vpop.f32.mrb[0].mxu0
    %v2453 = vadd.f32 0.0, %v2452
    %v2454 = vpop.f32.mrb[0].mxu0
    %2455 = vmatprep.mubr.f32.mxu0 0.0
    %2456 = vmatmul.mubr.f32.gmra.mrb[0].mxu0 %v2368
    %v2457 = vpop.f32.mrb[0].mxu0
    %v2458 = vadd.f32 0.0, %v2457
    %v2459 = vpop.f32.mrb[0].mxu0
    %2460 = vmatprep.mubr.f32.mxu0 0.0
    %2461 = vmatmul.mubr.f32.gmra.mrb[0].mxu0 %v2371
    %v2462 = vpop.f32.mrb[0].mxu0
    %v2463 = vadd.f32 0.0, %v2462
    %v2464 = vpop.f32.mrb[0].mxu0
    %2465 = vmatprep.mubr.f32.mxu0 0.0
    %2466 = vmatmul.mubr.f32.gmra.mrb[0].mxu0 %v2374
    %v2467 = vpop.f32.mrb[0].mxu0
    %v2468 = vadd.f32 0.0, %v2467
    %v2469 = vpop.f32.mrb[0].mxu0
    %2470 = vdwg.mxu0
    %v2471 = vadd.f32 %v2000, %v2443
    %v2472 = vadd.f32 %v2001, %v2448
    %v2473 = vadd.f32 %v2002, %v2453
    %v2474 = vadd.f32 %v2003, %v2458
    %v2475 = vadd.f32 %v2004, %v2463
    %v2476 = vadd.f32 %v2005, %v2468
    %2477 = vrot.lane.b32.xlu0 %v1029, 104
    %v2478 = vpop.permute.xlu0 %2477
    %2479 = vrot.lane.b32.xlu0 %v1034, 104
    %v2480 = vpop.permute.xlu0 %2479
    %2481 = vrot.lane.b32.xlu0 %v1039, 104
    %v2482 = vpop.permute.xlu0 %2481
    %2483 = vrot.lane.b32.xlu0 %v1044, 104
    %v2484 = vpop.permute.xlu0 %2483
    %2485 = vrot.lane.b32.xlu0 %v1049, 104
    %v2486 = vpop.permute.xlu0 %2485
    %2487 = vrot.lane.b32.xlu0 %v1054, 104
    %v2488 = vpop.permute.xlu0 %2487
    %2489 = vrot.lane.b32.xlu0 %v1029, 72
    %v2490 = vpop.permute.xlu0 %2489
    %2491 = vrot.lane.b32.xlu0 %v1034, 72
    %v2492 = vpop.permute.xlu0 %2491
    %2493 = vrot.lane.b32.xlu0 %v1039, 72
    %v2494 = vpop.permute.xlu0 %2493
    %2495 = vrot.lane.b32.xlu0 %v1044, 72
    %v2496 = vpop.permute.xlu0 %2495
    %2497 = vrot.lane.b32.xlu0 %v1049, 72
    %v2498 = vpop.permute.xlu0 %2497
    %2499 = vrot.lane.b32.xlu0 %v1054, 72
    %v2500 = vpop.permute.xlu0 %2499
    %v2501 = vsel %vm343, %v2478, 0
    %v2503 = vsel %vm343, %v2480, 0
    %v2505 = vsel %vm343, %v2482, 0
    %v2507 = vsel %vm343, %v2484, 0
    %v2509 = vsel %vm343, %v2486, 0
    %v2511 = vsel %vm343, %v2488, 0
    %v2513 = vsel %vm343, %v2490, 0
    %v2515 = vsel %vm343, %v2492, 0
    %v2517 = vsel %vm343, %v2494, 0
    %v2519 = vsel %vm343, %v2496, 0
    %v2521 = vsel %vm343, %v2498, 0
    %v2523 = vsel %vm343, %v2500, 0
    %2525 = vmatprep.subr.mxu0 0.0
    %2526 = vmatpush1.xpose.msra.mxu0 %v2513
    %2527 = vmatprep.subr.mxu0 0.0
    %2528 = vmatpush1.xpose.msra.mxu0 %v2515
    %2529 = vmatprep.subr.mxu0 0.0
    %2530 = vmatpush1.xpose.msra.mxu0 %v2517
    %2531 = vmatprep.subr.mxu0 0.0
    %2532 = vmatpush1.xpose.msra.mxu0 %v2519
    %2533 = vmatprep.subr.mxu0 0.0
    %2534 = vmatpush1.xpose.msra.mxu0 %v2521
    %2535 = vmatprep.subr.mxu0 0.0
    %2536 = vmatpush1.xpose.msra.mxu0 %v2523
    %2537 = vmatprep.subr.mxu0 0.0
    %2538 = vmatpush1.xpose.msra.mxu0 0.0
    %2539 = vmatprep.subr.mxu0 0.0
    %2540 = vmatpush1.xpose.msra.mxu0 0.0
    %2541 = vmatprep.subr.mxu0 0.0
    %2542 = vmatpush1.xpose.msra.mxu0 0.0
    %2543 = vmatprep.subr.mxu0 0.0
    %2544 = vmatpush1.xpose.msra.mxu0 0.0
    %2545 = vmatprep.subr.mxu0 0.0
    %2546 = vmatpush1.xpose.msra.mxu0 0.0
    %2547 = vmatprep.subr.mxu0 0.0
    %2548 = vmatpush1.xpose.msra.mxu0 0.0
    %2549 = vmatprep.subr.mxu0 0.0
    %2550 = vmatpush1.xpose.msra.mxu0 0.0
    %2551 = vmatprep.subr.mxu0 0.0
    %2552 = vmatpush1.xpose.msra.mxu0 0.0
    %2553 = vmatprep.subr.mxu0 0.0
    %2554 = vmatpush1.xpose.msra.mxu0 0.0
    %2555 = vmatprep.subr.mxu0 0.0
    %2556 = vmatpush1.xpose.msra.mxu0 0.0
    %2557 = vmatprep.subr.mxu0 0.0
    %2558 = vmatpush1.xpose.msra.mxu0 0.0
    %2559 = vmatprep.subr.mxu0 0.0
    %2560 = vmatpush1.xpose.msra.mxu0 0.0
    %2561 = vmatprep.subr.mxu0 0.0
    %2562 = vmatpush1.xpose.msra.mxu0 0.0
    %2563 = vmatprep.subr.mxu0 0.0
    %2564 = vmatpush1.xpose.msra.mxu0 0.0
    %2565 = vmatprep.subr.mxu0 0.0
    %2566 = vmatpush1.xpose.msra.mxu0 0.0
    %2567 = vmatprep.subr.mxu0 0.0
    %2568 = vmatpush1.xpose.msra.mxu0 0.0
    %2569 = vmatprep.subr.mxu0 0.0
    %2570 = vmatpush1.xpose.msra.mxu0 0.0
    %2571 = vmatprep.subr.mxu0 0.0
    %2572 = vmatpush1.xpose.msra.mxu0 0.0
    %2573 = vmatprep.subr.mxu0 0.0
    %2574 = vmatpush1.xpose.msra.mxu0 0.0
    %2575 = vmatprep.subr.mxu0 0.0
    %2576 = vmatpush1.xpose.msra.mxu0 0.0
    %2577 = vmatprep.subr.mxu0 0.0
    %2578 = vmatpush1.xpose.msra.mxu0 0.0
    %2579 = vmatprep.subr.mxu0 0.0
    %2580 = vmatpush1.xpose.msra.mxu0 0.0
    %2581 = vmatprep.subr.mxu0 0.0
    %2582 = vmatpush1.xpose.msra.mxu0 0.0
    %2583 = vmatprep.subr.mxu0 0.0
    %2584 = vmatpush1.xpose.msra.mxu0 0.0
    %2585 = vmatprep.subr.mxu0 0.0
    %2586 = vmatpush1.xpose.msra.mxu0 0.0
    %2587 = vmatprep.subr.mxu0 0.0
    %2588 = vmatpush1.xpose.msra.mxu0 0.0
    %2589 = vmatprep.mubr.f32.mxu0 0.0
    %2590 = vmatmul.mubr.f32.gmra.mrb[0].mxu0 %v2501
    %v2591 = vpop.f32.mrb[0].mxu0
    %v2592 = vadd.f32 0.0, %v2591
    %v2593 = vpop.f32.mrb[0].mxu0
    %2594 = vmatprep.mubr.f32.mxu0 0.0
    %2595 = vmatmul.mubr.f32.gmra.mrb[0].mxu0 %v2503
    %v2596 = vpop.f32.mrb[0].mxu0
    %v2597 = vadd.f32 0.0, %v2596
    %v2598 = vpop.f32.mrb[0].mxu0
    %2599 = vmatprep.mubr.f32.mxu0 0.0
    %2600 = vmatmul.mubr.f32.gmra.mrb[0].mxu0 %v2505
    %v2601 = vpop.f32.mrb[0].mxu0
    %v2602 = vadd.f32 0.0, %v2601
    %v2603 = vpop.f32.mrb[0].mxu0
    %2604 = vmatprep.mubr.f32.mxu0 0.0
    %2605 = vmatmul.mubr.f32.gmra.mrb[0].mxu0 %v2507
    %v2606 = vpop.f32.mrb[0].mxu0
    %v2607 = vadd.f32 0.0, %v2606
    %v2608 = vpop.f32.mrb[0].mxu0
    %2609 = vmatprep.mubr.f32.mxu0 0.0
    %2610 = vmatmul.mubr.f32.gmra.mrb[0].mxu0 %v2509
    %v2611 = vpop.f32.mrb[0].mxu0
    %v2612 = vadd.f32 0.0, %v2611
    %v2613 = vpop.f32.mrb[0].mxu0
    %2614 = vmatprep.mubr.f32.mxu0 0.0
    %2615 = vmatmul.mubr.f32.gmra.mrb[0].mxu0 %v2511
    %v2616 = vpop.f32.mrb[0].mxu0
    %v2617 = vadd.f32 0.0, %v2616
    %v2618 = vpop.f32.mrb[0].mxu0
    %2619 = vdwg.mxu0
    %v2620 = vmul.f32 %v2592, 0.35355338
    %v2621 = vmul.f32 %v2597, 0.35355338
    %v2622 = vmul.f32 %v2602, 0.35355338
    %v2623 = vmul.f32 %v2607, 0.35355338
    %v2624 = vmul.f32 %v2612, 0.35355338
    %v2625 = vmul.f32 %v2617, 0.35355338
    %v2626 = vadd.f32 %v2620, %v822
    %v2627 = vadd.f32 %v2621, %v823
    %v2628 = vadd.f32 %v2622, %v824
    %v2629 = vadd.f32 %v2623, %v825
    %v2630 = vadd.f32 %v2624, %v826
    %v2631 = vadd.f32 %v2625, %v827
    %v2632 = vsel %vm1218, %v2626, -inf
    %2633 = vmax.xlane.f32.xlu0 %v2632
    %v2634 = vpop.xlane.xlu0 %2633
    %v2635 = vsel %vm1218, %v2627, -inf
    %2636 = vmax.xlane.f32.xlu0 %v2635
    %v2637 = vpop.xlane.xlu0 %2636
    %v2638 = vsel %vm1218, %v2628, -inf
    %2639 = vmax.xlane.f32.xlu0 %v2638
    %v2640 = vpop.xlane.xlu0 %2639
    %v2641 = vsel %vm1218, %v2629, -inf
    %2642 = vmax.xlane.f32.xlu0 %v2641
    %v2643 = vpop.xlane.xlu0 %2642
    %v2644 = vsel %vm1218, %v2630, -inf
    %2645 = vmax.xlane.f32.xlu0 %v2644
    %v2646 = vpop.xlane.xlu0 %2645
    %v2647 = vsel %vm1218, %v2631, -inf
    %2648 = vmax.xlane.f32.xlu0 %v2647
    %v2649 = vpop.xlane.xlu0 %2648
    %v2650 = vsub.f32 %v2626, %v2634
    %v2651 = vsub.f32 %v2627, %v2637
    %v2652 = vsub.f32 %v2628, %v2640
    %v2653 = vsub.f32 %v2629, %v2643
    %v2654 = vsub.f32 %v2630, %v2646
    %v2655 = vsub.f32 %v2631, %v2649
    %v2656 = vmul.f32 %v2650, 1.442695
    %v2657 = vpow.pop %v2656
    %v2658 = vmul.f32 %v2651, 1.442695
    %v2659 = vpow.pop %v2658
    %v2660 = vmul.f32 %v2652, 1.442695
    %v2661 = vpow.pop %v2660
    %v2662 = vmul.f32 %v2653, 1.442695
    %v2663 = vpow.pop %v2662
    %v2664 = vmul.f32 %v2654, 1.442695
    %v2665 = vpow.pop %v2664
    %v2666 = vmul.f32 %v2655, 1.442695
    %v2667 = vpow.pop %v2666
    %v2668 = vsel %vm1218, %v2657, 0.0
    %2669 = vadd.xlane.f32.xlu0 %v2668
    %v2670 = vpop.xlane.xlu0 %2669
    %v2671 = vsel %vm1218, %v2659, 0.0
    %2672 = vadd.xlane.f32.xlu0 %v2671
    %v2673 = vpop.xlane.xlu0 %2672
    %v2674 = vsel %vm1218, %v2661, 0.0
    %2675 = vadd.xlane.f32.xlu0 %v2674
    %v2676 = vpop.xlane.xlu0 %2675
    %v2677 = vsel %vm1218, %v2663, 0.0
    %2678 = vadd.xlane.f32.xlu0 %v2677
    %v2679 = vpop.xlane.xlu0 %2678
    %v2680 = vsel %vm1218, %v2665, 0.0
    %2681 = vadd.xlane.f32.xlu0 %v2680
    %v2682 = vpop.xlane.xlu0 %2681
    %v2683 = vsel %vm1218, %v2667, 0.0
    %2684 = vadd.xlane.f32.xlu0 %v2683
    %v2685 = vpop.xlane.xlu0 %2684
    %v2686 = vrcp.pop %v2670
    %v2687 = vrcp.pop %v2673
    %v2688 = vrcp.pop %v2676
    %v2689 = vrcp.pop %v2679
    %v2690 = vrcp.pop %v2682
    %v2691 = vrcp.pop %v2685
    %v2692 = vmul.f32 %v2657, %v2686
    %v2693 = vmul.f32 %v2659, %v2687
    %v2694 = vmul.f32 %v2661, %v2688
    %v2695 = vmul.f32 %v2663, %v2689
    %v2696 = vmul.f32 %v2665, %v2690
    %v2697 = vmul.f32 %v2667, %v2691
    %2698 = vrot.lane.b32.xlu0 %v1029, 40
    %v2699 = vpop.permute.xlu0 %2698
    %2700 = vrot.lane.b32.xlu0 %v1034, 40
    %v2701 = vpop.permute.xlu0 %2700
    %2702 = vrot.lane.b32.xlu0 %v1039, 40
    %v2703 = vpop.permute.xlu0 %2702
    %2704 = vrot.lane.b32.xlu0 %v1044, 40
    %v2705 = vpop.permute.xlu0 %2704
    %2706 = vrot.lane.b32.xlu0 %v1049, 40
    %v2707 = vpop.permute.xlu0 %2706
    %2708 = vrot.lane.b32.xlu0 %v1054, 40
    %v2709 = vpop.permute.xlu0 %2708
    %v2717 = vsel %vm1218, %v2692, 0
    %v2720 = vsel %vm1218, %v2693, 0
    %v2723 = vsel %vm1218, %v2694, 0
    %v2726 = vsel %vm1218, %v2695, 0
    %v2729 = vsel %vm1218, %v2696, 0
    %v2732 = vsel %vm1218, %v2697, 0
    %2734 = vmatprep.subr.mxu0 0.0
    %2735 = vmatpush1.msra.mxu0 %v2699
    %2736 = vmatprep.subr.mxu0 0.0
    %2737 = vmatpush1.msra.mxu0 %v2701
    %2738 = vmatprep.subr.mxu0 0.0
    %2739 = vmatpush1.msra.mxu0 %v2703
    %2740 = vmatprep.subr.mxu0 0.0
    %2741 = vmatpush1.msra.mxu0 %v2705
    %2742 = vmatprep.subr.mxu0 0.0
    %2743 = vmatpush1.msra.mxu0 %v2707
    %2744 = vmatprep.subr.mxu0 0.0
    %2745 = vmatpush1.msra.mxu0 %v2709
    %2746 = vmatprep.subr.mxu0 0.0
    %2747 = vmatpush1.msra.mxu0 0.0
    %2748 = vmatprep.subr.mxu0 0.0
    %2749 = vmatpush1.msra.mxu0 0.0
    %2750 = vmatprep.subr.mxu0 0.0
    %2751 = vmatpush1.msra.mxu0 0.0
    %2752 = vmatprep.subr.mxu0 0.0
    %2753 = vmatpush1.msra.mxu0 0.0
    %2754 = vmatprep.subr.mxu0 0.0
    %2755 = vmatpush1.msra.mxu0 0.0
    %2756 = vmatprep.subr.mxu0 0.0
    %2757 = vmatpush1.msra.mxu0 0.0
    %2758 = vmatprep.subr.mxu0 0.0
    %2759 = vmatpush1.msra.mxu0 0.0
    %2760 = vmatprep.subr.mxu0 0.0
    %2761 = vmatpush1.msra.mxu0 0.0
    %2762 = vmatprep.subr.mxu0 0.0
    %2763 = vmatpush1.msra.mxu0 0.0
    %2764 = vmatprep.subr.mxu0 0.0
    %2765 = vmatpush1.msra.mxu0 0.0
    %2766 = vmatprep.subr.mxu0 0.0
    %2767 = vmatpush1.msra.mxu0 0.0
    %2768 = vmatprep.subr.mxu0 0.0
    %2769 = vmatpush1.msra.mxu0 0.0
    %2770 = vmatprep.subr.mxu0 0.0
    %2771 = vmatpush1.msra.mxu0 0.0
    %2772 = vmatprep.subr.mxu0 0.0
    %2773 = vmatpush1.msra.mxu0 0.0
    %2774 = vmatprep.subr.mxu0 0.0
    %2775 = vmatpush1.msra.mxu0 0.0
    %2776 = vmatprep.subr.mxu0 0.0
    %2777 = vmatpush1.msra.mxu0 0.0
    %2778 = vmatprep.subr.mxu0 0.0
    %2779 = vmatpush1.msra.mxu0 0.0
    %2780 = vmatprep.subr.mxu0 0.0
    %2781 = vmatpush1.msra.mxu0 0.0
    %2782 = vmatprep.subr.mxu0 0.0
    %2783 = vmatpush1.msra.mxu0 0.0
    %2784 = vmatprep.subr.mxu0 0.0
    %2785 = vmatpush1.msra.mxu0 0.0
    %2786 = vmatprep.subr.mxu0 0.0
    %2787 = vmatpush1.msra.mxu0 0.0
    %2788 = vmatprep.subr.mxu0 0.0
    %2789 = vmatpush1.msra.mxu0 0.0
    %2790 = vmatprep.subr.mxu0 0.0
    %2791 = vmatpush1.msra.mxu0 0.0
    %2792 = vmatprep.subr.mxu0 0.0
    %2793 = vmatpush1.msra.mxu0 0.0
    %2794 = vmatprep.subr.mxu0 0.0
    %2795 = vmatpush1.msra.mxu0 0.0
    %2796 = vmatprep.subr.mxu0 0.0
    %2797 = vmatpush1.msra.mxu0 0.0
    %2798 = vmatprep.mubr.f32.mxu0 0.0
    %2799 = vmatmul.mubr.f32.gmra.mrb[0].mxu0 %v2717
    %v2800 = vpop.f32.mrb[0].mxu0
    %v2801 = vadd.f32 0.0, %v2800
    %v2802 = vpop.f32.mrb[0].mxu0
    %2803 = vmatprep.mubr.f32.mxu0 0.0
    %2804 = vmatmul.mubr.f32.gmra.mrb[0].mxu0 %v2720
    %v2805 = vpop.f32.mrb[0].mxu0
    %v2806 = vadd.f32 0.0, %v2805
    %v2807 = vpop.f32.mrb[0].mxu0
    %2808 = vmatprep.mubr.f32.mxu0 0.0
    %2809 = vmatmul.mubr.f32.gmra.mrb[0].mxu0 %v2723
    %v2810 = vpop.f32.mrb[0].mxu0
    %v2811 = vadd.f32 0.0, %v2810
    %v2812 = vpop.f32.mrb[0].mxu0
    %2813 = vmatprep.mubr.f32.mxu0 0.0
    %2814 = vmatmul.mubr.f32.gmra.mrb[0].mxu0 %v2726
    %v2815 = vpop.f32.mrb[0].mxu0
    %v2816 = vadd.f32 0.0, %v2815
    %v2817 = vpop.f32.mrb[0].mxu0
    %2818 = vmatprep.mubr.f32.mxu0 0.0
    %2819 = vmatmul.mubr.f32.gmra.mrb[0].mxu0 %v2729
    %v2820 = vpop.f32.mrb[0].mxu0
    %v2821 = vadd.f32 0.0, %v2820
    %v2822 = vpop.f32.mrb[0].mxu0
    %2823 = vmatprep.mubr.f32.mxu0 0.0
    %2824 = vmatmul.mubr.f32.gmra.mrb[0].mxu0 %v2732
    %v2825 = vpop.f32.mrb[0].mxu0
    %v2826 = vadd.f32 0.0, %v2825
    %v2827 = vpop.f32.mrb[0].mxu0
    %2828 = vdwg.mxu0
    %v2830 = vsel %vm343, %v2801, 0
    %v2833 = vsel %vm343, %v2806, 0
    %v2836 = vsel %vm343, %v2811, 0
    %v2839 = vsel %vm343, %v2816, 0
    %v2842 = vsel %vm343, %v2821, 0
    %v2845 = vsel %vm343, %v2826, 0
    %2847 = vmatprep.subr.mxu0 0.0
    %2848 = vmatpush1.msra.mxu0 %v1060
    %2849 = vmatprep.subr.mxu0 0.0
    %2850 = vmatpush1.msra.mxu0 0.0
    %2851 = vmatprep.subr.mxu0 0.0
    %2852 = vmatpush1.msra.mxu0 0.0
    %2853 = vmatprep.subr.mxu0 0.0
    %2854 = vmatpush1.msra.mxu0 0.0
    %2855 = vmatprep.subr.mxu0 0.0
    %2856 = vmatpush1.msra.mxu0 0.0
    %2857 = vmatprep.subr.mxu0 0.0
    %2858 = vmatpush1.msra.mxu0 0.0
    %2859 = vmatprep.subr.mxu0 0.0
    %2860 = vmatpush1.msra.mxu0 0.0
    %2861 = vmatprep.subr.mxu0 0.0
    %2862 = vmatpush1.msra.mxu0 0.0
    %2863 = vmatprep.subr.mxu0 0.0
    %2864 = vmatpush1.msra.mxu0 0.0
    %2865 = vmatprep.subr.mxu0 0.0
    %2866 = vmatpush1.msra.mxu0 0.0
    %2867 = vmatprep.subr.mxu0 0.0
    %2868 = vmatpush1.msra.mxu0 0.0
    %2869 = vmatprep.subr.mxu0 0.0
    %2870 = vmatpush1.msra.mxu0 0.0
    %2871 = vmatprep.subr.mxu0 0.0
    %2872 = vmatpush1.msra.mxu0 0.0
    %2873 = vmatprep.subr.mxu0 0.0
    %2874 = vmatpush1.msra.mxu0 0.0
    %2875 = vmatprep.subr.mxu0 0.0
    %2876 = vmatpush1.msra.mxu0 0.0
    %2877 = vmatprep.subr.mxu0 0.0
    %2878 = vmatpush1.msra.mxu0 0.0
    %2879 = vmatprep.subr.mxu0 0.0
    %2880 = vmatpush1.msra.mxu0 0.0
    %2881 = vmatprep.subr.mxu0 0.0
    %2882 = vmatpush1.msra.mxu0 0.0
    %2883 = vmatprep.subr.mxu0 0.0
    %2884 = vmatpush1.msra.mxu0 0.0
    %2885 = vmatprep.subr.mxu0 0.0
    %2886 = vmatpush1.msra.mxu0 0.0
    %2887 = vmatprep.subr.mxu0 0.0
    %2888 = vmatpush1.msra.mxu0 0.0
    %2889 = vmatprep.subr.mxu0 0.0
    %2890 = vmatpush1.msra.mxu0 0.0
    %2891 = vmatprep.subr.mxu0 0.0
    %2892 = vmatpush1.msra.mxu0 0.0
    %2893 = vmatprep.subr.mxu0 0.0
    %2894 = vmatpush1.msra.mxu0 0.0
    %2895 = vmatprep.subr.mxu0 0.0
    %2896 = vmatpush1.msra.mxu0 0.0
    %2897 = vmatprep.subr.mxu0 0.0
    %2898 = vmatpush1.msra.mxu0 0.0
    %2899 = vmatprep.subr.mxu0 0.0
    %2900 = vmatpush1.msra.mxu0 0.0
    %2901 = vmatprep.subr.mxu0 0.0
    %2902 = vmatpush1.msra.mxu0 0.0
    %2903 = vmatprep.subr.mxu0 0.0
    %2904 = vmatpush1.msra.mxu0 0.0
    %2905 = vmatprep.subr.mxu0 0.0
    %2906 = vmatpush1.msra.mxu0 0.0
    %2907 = vmatprep.subr.mxu0 0.0
    %2908 = vmatpush1.msra.mxu0 0.0
    %2909 = vmatprep.subr.mxu0 0.0
    %2910 = vmatpush1.msra.mxu0 0.0
    %2911 = vmatprep.mubr.f32.mxu0 0.0
    %2912 = vmatmul.mubr.f32.gmra.mrb[0].mxu0 %v2830
    %v2913 = vpop.f32.mrb[0].mxu0
    %v2914 = vadd.f32 0.0, %v2913
    %v2915 = vpop.f32.mrb[0].mxu0
    %2916 = vmatprep.mubr.f32.mxu0 0.0
    %2917 = vmatmul.mubr.f32.gmra.mrb[0].mxu0 %v2833
    %v2918 = vpop.f32.mrb[0].mxu0
    %v2919 = vadd.f32 0.0, %v2918
    %v2920 = vpop.f32.mrb[0].mxu0
    %2921 = vmatprep.mubr.f32.mxu0 0.0
    %2922 = vmatmul.mubr.f32.gmra.mrb[0].mxu0 %v2836
    %v2923 = vpop.f32.mrb[0].mxu0
    %v2924 = vadd.f32 0.0, %v2923
    %v2925 = vpop.f32.mrb[0].mxu0
    %2926 = vmatprep.mubr.f32.mxu0 0.0
    %2927 = vmatmul.mubr.f32.gmra.mrb[0].mxu0 %v2839
    %v2928 = vpop.f32.mrb[0].mxu0
    %v2929 = vadd.f32 0.0, %v2928
    %v2930 = vpop.f32.mrb[0].mxu0
    %2931 = vmatprep.mubr.f32.mxu0 0.0
    %2932 = vmatmul.mubr.f32.gmra.mrb[0].mxu0 %v2842
    %v2933 = vpop.f32.mrb[0].mxu0
    %v2934 = vadd.f32 0.0, %v2933
    %v2935 = vpop.f32.mrb[0].mxu0
    %2936 = vmatprep.mubr.f32.mxu0 0.0
    %2937 = vmatmul.mubr.f32.gmra.mrb[0].mxu0 %v2845
    %v2938 = vpop.f32.mrb[0].mxu0
    %v2939 = vadd.f32 0.0, %v2938
    %v2940 = vpop.f32.mrb[0].mxu0
    %2941 = vdwg.mxu0
    %v2942 = vadd.f32 %v2471, %v2914
    %v2943 = vadd.f32 %v2472, %v2919
    %v2944 = vadd.f32 %v2473, %v2924
    %v2945 = vadd.f32 %v2474, %v2929
    %v2946 = vadd.f32 %v2475, %v2934
    %v2947 = vadd.f32 %v2476, %v2939
    %v2948 = vadd.f32 %v816, %v2942
    %v2949 = vadd.f32 %v817, %v2943
    %v2950 = vadd.f32 %v818, %v2944
    %v2951 = vadd.f32 %v819, %v2945
    %v2952 = vadd.f32 %v820, %v2946
    %v2953 = vadd.f32 %v821, %v2947
    %v2954 = vld [vmem:[%s43] sm:$0x1]
    %v2955 = vld [vmem:[%s45] sm:$0x1]
    %v2956 = vsel %vm246, %v2948, 0.0
    %2957 = vadd.xlane.f32.xlu0 %v2956
    %v2958 = vpop.xlane.xlu0 %2957
    %v2959 = vsel %vm246, %v2949, 0.0
    %2960 = vadd.xlane.f32.xlu0 %v2959
    %v2961 = vpop.xlane.xlu0 %2960
    %v2962 = vsel %vm246, %v2950, 0.0
    %2963 = vadd.xlane.f32.xlu0 %v2962
    %v2964 = vpop.xlane.xlu0 %2963
    %v2965 = vsel %vm246, %v2951, 0.0
    %2966 = vadd.xlane.f32.xlu0 %v2965
    %v2967 = vpop.xlane.xlu0 %2966
    %v2968 = vsel %vm246, %v2952, 0.0
    %2969 = vadd.xlane.f32.xlu0 %v2968
    %v2970 = vpop.xlane.xlu0 %2969
    %v2971 = vsel %vm246, %v2953, 0.0
    %2972 = vadd.xlane.f32.xlu0 %v2971
    %v2973 = vpop.xlane.xlu0 %2972
    %v2974 = vmul.f32 %v2958, %v848
    %v2975 = vmul.f32 %v2961, %v848
    %v2976 = vmul.f32 %v2964, %v848
    %v2977 = vmul.f32 %v2967, %v848
    %v2978 = vmul.f32 %v2970, %v848
    %v2979 = vmul.f32 %v2973, %v848
    %v2980 = vsub.f32 %v2948, %v2974
    %v2981 = vsub.f32 %v2949, %v2975
    %v2982 = vsub.f32 %v2950, %v2976
    %v2983 = vsub.f32 %v2951, %v2977
    %v2984 = vsub.f32 %v2952, %v2978
    %v2985 = vsub.f32 %v2953, %v2979
    %v2986 = vmul.f32 %v2980, %v2980
    %v2987 = vmul.f32 %v2981, %v2981
    %v2988 = vmul.f32 %v2982, %v2982
    %v2989 = vmul.f32 %v2983, %v2983
    %v2990 = vmul.f32 %v2984, %v2984
    %v2991 = vmul.f32 %v2985, %v2985
    %v2992 = vsel %vm246, %v2986, 0.0
    %2993 = vadd.xlane.f32.xlu0 %v2992
    %v2994 = vpop.xlane.xlu0 %2993
    %v2995 = vsel %vm246, %v2987, 0.0
    %2996 = vadd.xlane.f32.xlu0 %v2995
    %v2997 = vpop.xlane.xlu0 %2996
    %v2998 = vsel %vm246, %v2988, 0.0
    %2999 = vadd.xlane.f32.xlu0 %v2998
    %v3000 = vpop.xlane.xlu0 %2999
    %v3001 = vsel %vm246, %v2989, 0.0
    %3002 = vadd.xlane.f32.xlu0 %v3001
    %v3003 = vpop.xlane.xlu0 %3002
    %v3004 = vsel %vm246, %v2990, 0.0
    %3005 = vadd.xlane.f32.xlu0 %v3004
    %v3006 = vpop.xlane.xlu0 %3005
    %v3007 = vsel %vm246, %v2991, 0.0
    %3008 = vadd.xlane.f32.xlu0 %v3007
    %v3009 = vpop.xlane.xlu0 %3008
    %v3010 = vmul.f32 %v2994, %v848
    %v3011 = vmul.f32 %v2997, %v848
    %v3012 = vmul.f32 %v3000, %v848
    %v3013 = vmul.f32 %v3003, %v848
    %v3014 = vmul.f32 %v3006, %v848
    %v3015 = vmul.f32 %v3009, %v848
    %v3016 = vadd.f32 %v3010, 0.003
    %v3017 = vadd.f32 %v3011, 0.003
    %v3018 = vadd.f32 %v3012, 0.003
    %v3019 = vadd.f32 %v3013, 0.003
    %v3020 = vadd.f32 %v3014, 0.003
    %v3021 = vadd.f32 %v3015, 0.003
    %v3022 = vrsqrt.pop %v3016
    %v3023 = vrsqrt.pop %v3017
    %v3024 = vrsqrt.pop %v3018
    %v3025 = vrsqrt.pop %v3019
    %v3026 = vrsqrt.pop %v3020
    %v3027 = vrsqrt.pop %v3021
    %v3028 = vmul.f32 %v2980, %v3022
    %v3029 = vmul.f32 %v2981, %v3023
    %v3030 = vmul.f32 %v2982, %v3024
    %v3031 = vmul.f32 %v2983, %v3025
    %v3032 = vmul.f32 %v2984, %v3026
    %v3033 = vmul.f32 %v2985, %v3027
    %v3035 = vlaneseq
    %v3036 = vshrl.u32 %v3035, 7
    %v3037 = vsub.s32 0, %v3036
    %v3038 = vrot.slane %v2954, %v3037
    %v3040 = vmul.f32 %v3028, %v3038
    %v3041 = vmul.f32 %v3029, %v3038
    %v3042 = vmul.f32 %v3030, %v3038
    %v3043 = vmul.f32 %v3031, %v3038
    %v3044 = vmul.f32 %v3032, %v3038
    %v3045 = vmul.f32 %v3033, %v3038
    %v3047 = vlaneseq
    %v3048 = vshrl.u32 %v3047, 7
    %v3049 = vsub.s32 0, %v3048
    %v3050 = vrot.slane %v2955, %v3049
    %v3052 = vadd.f32 %v3040, %v3050
    %v3053 = vadd.f32 %v3041, %v3050
    %v3054 = vadd.f32 %v3042, %v3050
    %v3055 = vadd.f32 %v3043, %v3050
    %v3056 = vadd.f32 %v3044, %v3050
    %v3057 = vadd.f32 %v3045, %v3050
    %v3058 = vld [vmem:[%s47] sm:$0xff]
    %v3059 = vld [vmem:[%s47 + $0x8] sm:$0xff]
    %v3060 = vld [vmem:[%s47 + $0x10] sm:$0xff]
    %v3061 = vld [vmem:[%s47 + $0x18] sm:$0xff]
    %v3062 = vld [vmem:[%s49] sm:$0x1]
    %v3064 = vlaneseq
    %v3065 = vshrl.u32 %v3064, 7
    %v3066 = vsub.s32 0, %v3065
    %v3067 = vrot.slane %v3062, %v3066
    %v3070 = vsel %vm246, %v3052, 0
    %v3073 = vsel %vm246, %v3053, 0
    %v3076 = vsel %vm246, %v3054, 0
    %v3079 = vsel %vm246, %v3055, 0
    %v3082 = vsel %vm246, %v3056, 0
    %v3085 = vsel %vm246, %v3057, 0
    %3087 = vmatprep.subr.mxu0 0.0
    %3088 = vmatpush1.msra.mxu0 %v3058
    %3089 = vmatprep.subr.mxu0 0.0
    %3090 = vmatpush1.msra.mxu0 %v3059
    %3091 = vmatprep.subr.mxu0 0.0
    %3092 = vmatpush1.msra.mxu0 %v3060
    %3093 = vmatprep.subr.mxu0 0.0
    %3094 = vmatpush1.msra.mxu0 %v3061
    %3095 = vmatprep.subr.mxu0 0.0
    %3096 = vmatpush1.msra.mxu0 0.0
    %3097 = vmatprep.subr.mxu0 0.0
    %3098 = vmatpush1.msra.mxu0 0.0
    %3099 = vmatprep.subr.mxu0 0.0
    %3100 = vmatpush1.msra.mxu0 0.0
    %3101 = vmatprep.subr.mxu0 0.0
    %3102 = vmatpush1.msra.mxu0 0.0
    %3103 = vmatprep.subr.mxu0 0.0
    %3104 = vmatpush1.msra.mxu0 0.0
    %3105 = vmatprep.subr.mxu0 0.0
    %3106 = vmatpush1.msra.mxu0 0.0
    %3107 = vmatprep.subr.mxu0 0.0
    %3108 = vmatpush1.msra.mxu0 0.0
    %3109 = vmatprep.subr.mxu0 0.0
    %3110 = vmatpush1.msra.mxu0 0.0
    %3111 = vmatprep.subr.mxu0 0.0
    %3112 = vmatpush1.msra.mxu0 0.0
    %3113 = vmatprep.subr.mxu0 0.0
    %3114 = vmatpush1.msra.mxu0 0.0
    %3115 = vmatprep.subr.mxu0 0.0
    %3116 = vmatpush1.msra.mxu0 0.0
    %3117 = vmatprep.subr.mxu0 0.0
    %3118 = vmatpush1.msra.mxu0 0.0
    %3119 = vmatprep.subr.mxu0 0.0
    %3120 = vmatpush1.msra.mxu0 0.0
    %3121 = vmatprep.subr.mxu0 0.0
    %3122 = vmatpush1.msra.mxu0 0.0
    %3123 = vmatprep.subr.mxu0 0.0
    %3124 = vmatpush1.msra.mxu0 0.0
    %3125 = vmatprep.subr.mxu0 0.0
    %3126 = vmatpush1.msra.mxu0 0.0
    %3127 = vmatprep.subr.mxu0 0.0
    %3128 = vmatpush1.msra.mxu0 0.0
    %3129 = vmatprep.subr.mxu0 0.0
    %3130 = vmatpush1.msra.mxu0 0.0
    %3131 = vmatprep.subr.mxu0 0.0
    %3132 = vmatpush1.msra.mxu0 0.0
    %3133 = vmatprep.subr.mxu0 0.0
    %3134 = vmatpush1.msra.mxu0 0.0
    %3135 = vmatprep.subr.mxu0 0.0
    %3136 = vmatpush1.msra.mxu0 0.0
    %3137 = vmatprep.subr.mxu0 0.0
    %3138 = vmatpush1.msra.mxu0 0.0
    %3139 = vmatprep.subr.mxu0 0.0
    %3140 = vmatpush1.msra.mxu0 0.0
    %3141 = vmatprep.subr.mxu0 0.0
    %3142 = vmatpush1.msra.mxu0 0.0
    %3143 = vmatprep.subr.mxu0 0.0
    %3144 = vmatpush1.msra.mxu0 0.0
    %3145 = vmatprep.subr.mxu0 0.0
    %3146 = vmatpush1.msra.mxu0 0.0
    %3147 = vmatprep.subr.mxu0 0.0
    %3148 = vmatpush1.msra.mxu0 0.0
    %3149 = vmatprep.subr.mxu0 0.0
    %3150 = vmatpush1.msra.mxu0 0.0
    %3151 = vmatprep.mubr.f32.mxu0 0.0
    %3152 = vmatmul.mubr.f32.gmra.mrb[0].mxu0 %v3070
    %v3153 = vpop.f32.mrb[0].mxu0
    %v3154 = vadd.f32 %v3067, %v3153
    %v3155 = vpop.f32.mrb[0].mxu0
    %3156 = vmatprep.mubr.f32.mxu0 0.0
    %3157 = vmatmul.mubr.f32.gmra.mrb[0].mxu0 %v3073
    %v3158 = vpop.f32.mrb[0].mxu0
    %v3159 = vadd.f32 %v3067, %v3158
    %v3160 = vpop.f32.mrb[0].mxu0
    %3161 = vmatprep.mubr.f32.mxu0 0.0
    %3162 = vmatmul.mubr.f32.gmra.mrb[0].mxu0 %v3076
    %v3163 = vpop.f32.mrb[0].mxu0
    %v3164 = vadd.f32 %v3067, %v3163
    %v3165 = vpop.f32.mrb[0].mxu0
    %3166 = vmatprep.mubr.f32.mxu0 0.0
    %3167 = vmatmul.mubr.f32.gmra.mrb[0].mxu0 %v3079
    %v3168 = vpop.f32.mrb[0].mxu0
    %v3169 = vadd.f32 %v3067, %v3168
    %v3170 = vpop.f32.mrb[0].mxu0
    %3171 = vmatprep.mubr.f32.mxu0 0.0
    %3172 = vmatmul.mubr.f32.gmra.mrb[0].mxu0 %v3082
    %v3173 = vpop.f32.mrb[0].mxu0
    %v3174 = vadd.f32 %v3067, %v3173
    %v3175 = vpop.f32.mrb[0].mxu0
    %3176 = vmatprep.mubr.f32.mxu0 0.0
    %3177 = vmatmul.mubr.f32.gmra.mrb[0].mxu0 %v3085
    %v3178 = vpop.f32.mrb[0].mxu0
    %v3179 = vadd.f32 %v3067, %v3178
    %v3180 = vpop.f32.mrb[0].mxu0
    %3181 = vdwg.mxu0
    %v3182 = vmul.f32 %v3154, %v3154
    %v3183 = vmul.f32 %v3159, %v3159
    %v3184 = vmul.f32 %v3164, %v3164
    %v3185 = vmul.f32 %v3169, %v3169
    %v3186 = vmul.f32 %v3174, %v3174
    %v3187 = vmul.f32 %v3179, %v3179
    %v3188 = vmul.f32 %v3154, %v3182
    %v3189 = vmul.f32 %v3159, %v3183
    %v3190 = vmul.f32 %v3164, %v3184
    %v3191 = vmul.f32 %v3169, %v3185
    %v3192 = vmul.f32 %v3174, %v3186
    %v3193 = vmul.f32 %v3179, %v3187
    %v3194 = vmul.f32 %v3188, 0.044715
    %v3195 = vmul.f32 %v3189, 0.044715
    %v3196 = vmul.f32 %v3190, 0.044715
    %v3197 = vmul.f32 %v3191, 0.044715
    %v3198 = vmul.f32 %v3192, 0.044715
    %v3199 = vmul.f32 %v3193, 0.044715
    %v3200 = vadd.f32 %v3154, %v3194
    %v3201 = vadd.f32 %v3159, %v3195
    %v3202 = vadd.f32 %v3164, %v3196
    %v3203 = vadd.f32 %v3169, %v3197
    %v3204 = vadd.f32 %v3174, %v3198
    %v3205 = vadd.f32 %v3179, %v3199
    %v3206 = vmul.f32 %v3200, 0.7978846
    %v3207 = vmul.f32 %v3201, 0.7978846
    %v3208 = vmul.f32 %v3202, 0.7978846
    %v3209 = vmul.f32 %v3203, 0.7978846
    %v3210 = vmul.f32 %v3204, 0.7978846
    %v3211 = vmul.f32 %v3205, 0.7978846
    %v3212 = vtanh.pop %v3206
    %v3213 = vtanh.pop %v3207
    %v3214 = vtanh.pop %v3208
    %v3215 = vtanh.pop %v3209
    %v3216 = vtanh.pop %v3210
    %v3217 = vtanh.pop %v3211
    %v3218 = vadd.f32 %v3212, 1.0
    %v3219 = vadd.f32 %v3213, 1.0
    %v3220 = vadd.f32 %v3214, 1.0
    %v3221 = vadd.f32 %v3215, 1.0
    %v3222 = vadd.f32 %v3216, 1.0
    %v3223 = vadd.f32 %v3217, 1.0
    %v3224 = vmul.f32 %v3218, 0.5
    %v3225 = vmul.f32 %v3219, 0.5
    %v3226 = vmul.f32 %v3220, 0.5
    %v3227 = vmul.f32 %v3221, 0.5
    %v3228 = vmul.f32 %v3222, 0.5
    %v3229 = vmul.f32 %v3223, 0.5
    %v3230 = vmul.f32 %v3154, %v3224
    %v3231 = vmul.f32 %v3159, %v3225
    %v3232 = vmul.f32 %v3164, %v3226
    %v3233 = vmul.f32 %v3169, %v3227
    %v3234 = vmul.f32 %v3174, %v3228
    %v3235 = vmul.f32 %v3179, %v3229
    %v3236 = vld [vmem:[%s51] sm:$0xff]
    %v3237 = vld [vmem:[%s51 + $0x8] sm:$0xff]
    %v3238 = vld [vmem:[%s51 + $0x10] sm:$0xff]
    %v3239 = vld [vmem:[%s51 + $0x18] sm:$0xff]
    %v3240 = vld [vmem:[%s51 + $0x20] sm:$0xff]
    %v3241 = vld [vmem:[%s51 + $0x28] sm:$0xff]
    %v3242 = vld [vmem:[%s51 + $0x30] sm:$0xff]
    %v3243 = vld [vmem:[%s51 + $0x38] sm:$0xff]
    %v3244 = vld [vmem:[%s51 + $0x40] sm:$0xff]
    %v3245 = vld [vmem:[%s51 + $0x48] sm:$0xff]
    %v3246 = vld [vmem:[%s51 + $0x50] sm:$0xff]
    %v3247 = vld [vmem:[%s51 + $0x58] sm:$0xff]
    %v3248 = vld [vmem:[%s51 + $0x60] sm:$0xff]
    %v3249 = vld [vmem:[%s51 + $0x68] sm:$0xff]
    %v3250 = vld [vmem:[%s51 + $0x70] sm:$0xff]
    %v3251 = vld [vmem:[%s51 + $0x78] sm:$0xff]
    %3252 = vmatprep.subr.mxu0 0.0
    %3253 = vmatpush1.msra.mxu0 %v3236
    %3254 = vmatprep.subr.mxu0 0.0
    %3255 = vmatpush1.msra.mxu0 %v3237
    %3256 = vmatprep.subr.mxu0 0.0
    %3257 = vmatpush1.msra.mxu0 %v3238
    %3258 = vmatprep.subr.mxu0 0.0
    %3259 = vmatpush1.msra.mxu0 %v3239
    %3260 = vmatprep.subr.mxu0 0.0
    %3261 = vmatpush1.msra.mxu0 %v3240
    %3262 = vmatprep.subr.mxu0 0.0
    %3263 = vmatpush1.msra.mxu0 %v3241
    %3264 = vmatprep.subr.mxu0 0.0
    %3265 = vmatpush1.msra.mxu0 %v3242
    %3266 = vmatprep.subr.mxu0 0.0
    %3267 = vmatpush1.msra.mxu0 %v3243
    %3268 = vmatprep.subr.mxu0 0.0
    %3269 = vmatpush1.msra.mxu0 %v3244
    %3270 = vmatprep.subr.mxu0 0.0
    %3271 = vmatpush1.msra.mxu0 %v3245
    %3272 = vmatprep.subr.mxu0 0.0
    %3273 = vmatpush1.msra.mxu0 %v3246
    %3274 = vmatprep.subr.mxu0 0.0
    %3275 = vmatpush1.msra.mxu0 %v3247
    %3276 = vmatprep.subr.mxu0 0.0
    %3277 = vmatpush1.msra.mxu0 %v3248
    %3278 = vmatprep.subr.mxu0 0.0
    %3279 = vmatpush1.msra.mxu0 %v3249
    %3280 = vmatprep.subr.mxu0 0.0
    %3281 = vmatpush1.msra.mxu0 %v3250
    %3282 = vmatprep.subr.mxu0 0.0
    %3283 = vmatpush1.msra.mxu0 %v3251
    %3284 = vmatprep.subr.mxu0 0.0
    %3285 = vmatpush1.msra.mxu0 0.0
    %3286 = vmatprep.subr.mxu0 0.0
    %3287 = vmatpush1.msra.mxu0 0.0
    %3288 = vmatprep.subr.mxu0 0.0
    %3289 = vmatpush1.msra.mxu0 0.0
    %3290 = vmatprep.subr.mxu0 0.0
    %3291 = vmatpush1.msra.mxu0 0.0
    %3292 = vmatprep.subr.mxu0 0.0
    %3293 = vmatpush1.msra.mxu0 0.0
    %3294 = vmatprep.subr.mxu0 0.0
    %3295 = vmatpush1.msra.mxu0 0.0
    %3296 = vmatprep.subr.mxu0 0.0
    %3297 = vmatpush1.msra.mxu0 0.0
    %3298 = vmatprep.subr.mxu0 0.0
    %3299 = vmatpush1.msra.mxu0 0.0
    %3300 = vmatprep.subr.mxu0 0.0
    %3301 = vmatpush1.msra.mxu0 0.0
    %3302 = vmatprep.subr.mxu0 0.0
    %3303 = vmatpush1.msra.mxu0 0.0
    %3304 = vmatprep.subr.mxu0 0.0
    %3305 = vmatpush1.msra.mxu0 0.0
    %3306 = vmatprep.subr.mxu0 0.0
    %3307 = vmatpush1.msra.mxu0 0.0
    %3308 = vmatprep.subr.mxu0 0.0
    %3309 = vmatpush1.msra.mxu0 0.0
    %3310 = vmatprep.subr.mxu0 0.0
    %3311 = vmatpush1.msra.mxu0 0.0
    %3312 = vmatprep.subr.mxu0 0.0
    %3313 = vmatpush1.msra.mxu0 0.0
    %3314 = vmatprep.subr.mxu0 0.0
    %3315 = vmatpush1.msra.mxu0 0.0
    %3316 = vmatprep.mubr.f32.mxu0 0.0
    %3317 = vmatmul.mubr.f32.gmra.mrb[0].mxu0 %v3230
    %v3318 = vpop.f32.mrb[0].mxu0
    %v3319 = vadd.f32 0.0, %v3318
    %v3320 = vpop.f32.mrb[0].mxu0
    %3321 = vmatprep.mubr.f32.mxu0 0.0
    %3322 = vmatmul.mubr.f32.gmra.mrb[0].mxu0 %v3231
    %v3323 = vpop.f32.mrb[0].mxu0
    %v3324 = vadd.f32 0.0, %v3323
    %v3325 = vpop.f32.mrb[0].mxu0
    %3326 = vmatprep.mubr.f32.mxu0 0.0
    %3327 = vmatmul.mubr.f32.gmra.mrb[0].mxu0 %v3232
    %v3328 = vpop.f32.mrb[0].mxu0
    %v3329 = vadd.f32 0.0, %v3328
    %v3330 = vpop.f32.mrb[0].mxu0
    %3331 = vmatprep.mubr.f32.mxu0 0.0
    %3332 = vmatmul.mubr.f32.gmra.mrb[0].mxu0 %v3233
    %v3333 = vpop.f32.mrb[0].mxu0
    %v3334 = vadd.f32 0.0, %v3333
    %v3335 = vpop.f32.mrb[0].mxu0
    %3336 = vmatprep.mubr.f32.mxu0 0.0
    %3337 = vmatmul.mubr.f32.gmra.mrb[0].mxu0 %v3234
    %v3338 = vpop.f32.mrb[0].mxu0
    %v3339 = vadd.f32 0.0, %v3338
    %v3340 = vpop.f32.mrb[0].mxu0
    %3341 = vmatprep.mubr.f32.mxu0 0.0
    %3342 = vmatmul.mubr.f32.gmra.mrb[0].mxu0 %v3235
    %v3343 = vpop.f32.mrb[0].mxu0
    %v3344 = vadd.f32 0.0, %v3343
    %v3345 = vpop.f32.mrb[0].mxu0
    %3346 = vdwg.mxu0
    %v3347 = vadd.f32 %v2948, %v3319
    %v3348 = vadd.f32 %v2949, %v3324
    %v3349 = vadd.f32 %v2950, %v3329
    %v3350 = vadd.f32 %v2951, %v3334
    %v3351 = vadd.f32 %v2952, %v3339
    %v3352 = vadd.f32 %v2953, %v3344
    %v3353 = vld [vmem:[%s53] sm:$0x1]
    %v3355 = vlaneseq
    %v3356 = vshrl.u32 %v3355, 7
    %v3357 = vsub.s32 0, %v3356
    %v3358 = vrot.slane %v3353, %v3357
    %v3360 = vadd.f32 %v3347, %v3358
    %v3361 = vadd.f32 %v3348, %v3358
    %v3362 = vadd.f32 %v3349, %v3358
    %v3363 = vadd.f32 %v3350, %v3358
    %v3364 = vadd.f32 %v3351, %v3358
    %v3365 = vadd.f32 %v3352, %v3358
    %s3366 = scalar_lea.vmem %s39, 1
    %v3367 = vld [vmem:[%s3366] sm:$0x1]
    %s3368 = scalar_lea.vmem %s41, 1
    %v3369 = vld [vmem:[%s3368] sm:$0x1]
    %v3370 = vsel %vm246, %v3360, 0.0
    %3371 = vadd.xlane.f32.xlu0 %v3370
    %v3372 = vpop.xlane.xlu0 %3371
    %v3373 = vsel %vm246, %v3361, 0.0
    %3374 = vadd.xlane.f32.xlu0 %v3373
    %v3375 = vpop.xlane.xlu0 %3374
    %v3376 = vsel %vm246, %v3362, 0.0
    %3377 = vadd.xlane.f32.xlu0 %v3376
    %v3378 = vpop.xlane.xlu0 %3377
    %v3379 = vsel %vm246, %v3363, 0.0
    %3380 = vadd.xlane.f32.xlu0 %v3379
    %v3381 = vpop.xlane.xlu0 %3380
    %v3382 = vsel %vm246, %v3364, 0.0
    %3383 = vadd.xlane.f32.xlu0 %v3382
    %v3384 = vpop.xlane.xlu0 %3383
    %v3385 = vsel %vm246, %v3365, 0.0
    %3386 = vadd.xlane.f32.xlu0 %v3385
    %v3387 = vpop.xlane.xlu0 %3386
    %v3388 = vmul.f32 %v3372, %v848
    %v3389 = vmul.f32 %v3375, %v848
    %v3390 = vmul.f32 %v3378, %v848
    %v3391 = vmul.f32 %v3381, %v848
    %v3392 = vmul.f32 %v3384, %v848
    %v3393 = vmul.f32 %v3387, %v848
    %v3394 = vsub.f32 %v3360, %v3388
    %v3395 = vsub.f32 %v3361, %v3389
    %v3396 = vsub.f32 %v3362, %v3390
    %v3397 = vsub.f32 %v3363, %v3391
    %v3398 = vsub.f32 %v3364, %v3392
    %v3399 = vsub.f32 %v3365, %v3393
    %v3400 = vmul.f32 %v3394, %v3394
    %v3401 = vmul.f32 %v3395, %v3395
    %v3402 = vmul.f32 %v3396, %v3396
    %v3403 = vmul.f32 %v3397, %v3397
    %v3404 = vmul.f32 %v3398, %v3398
    %v3405 = vmul.f32 %v3399, %v3399
    %v3406 = vsel %vm246, %v3400, 0.0
    %3407 = vadd.xlane.f32.xlu0 %v3406
    %v3408 = vpop.xlane.xlu0 %3407
    %v3409 = vsel %vm246, %v3401, 0.0
    %3410 = vadd.xlane.f32.xlu0 %v3409
    %v3411 = vpop.xlane.xlu0 %3410
    %v3412 = vsel %vm246, %v3402, 0.0
    %3413 = vadd.xlane.f32.xlu0 %v3412
    %v3414 = vpop.xlane.xlu0 %3413
    %v3415 = vsel %vm246, %v3403, 0.0
    %3416 = vadd.xlane.f32.xlu0 %v3415
    %v3417 = vpop.xlane.xlu0 %3416
    %v3418 = vsel %vm246, %v3404, 0.0
    %3419 = vadd.xlane.f32.xlu0 %v3418
    %v3420 = vpop.xlane.xlu0 %3419
    %v3421 = vsel %vm246, %v3405, 0.0
    %3422 = vadd.xlane.f32.xlu0 %v3421
    %v3423 = vpop.xlane.xlu0 %3422
    %v3424 = vmul.f32 %v3408, %v848
    %v3425 = vmul.f32 %v3411, %v848
    %v3426 = vmul.f32 %v3414, %v848
    %v3427 = vmul.f32 %v3417, %v848
    %v3428 = vmul.f32 %v3420, %v848
    %v3429 = vmul.f32 %v3423, %v848
    %v3430 = vadd.f32 %v3424, 0.003
    %v3431 = vadd.f32 %v3425, 0.003
    %v3432 = vadd.f32 %v3426, 0.003
    %v3433 = vadd.f32 %v3427, 0.003
    %v3434 = vadd.f32 %v3428, 0.003
    %v3435 = vadd.f32 %v3429, 0.003
    %v3436 = vrsqrt.pop %v3430
    %v3437 = vrsqrt.pop %v3431
    %v3438 = vrsqrt.pop %v3432
    %v3439 = vrsqrt.pop %v3433
    %v3440 = vrsqrt.pop %v3434
    %v3441 = vrsqrt.pop %v3435
    %v3442 = vmul.f32 %v3394, %v3436
    %v3443 = vmul.f32 %v3395, %v3437
    %v3444 = vmul.f32 %v3396, %v3438
    %v3445 = vmul.f32 %v3397, %v3439
    %v3446 = vmul.f32 %v3398, %v3440
    %v3447 = vmul.f32 %v3399, %v3441
    %v3449 = vlaneseq
    %v3450 = vshrl.u32 %v3449, 7
    %v3451 = vsub.s32 0, %v3450
    %v3452 = vrot.slane %v3367, %v3451
    %v3454 = vmul.f32 %v3442, %v3452
    %v3455 = vmul.f32 %v3443, %v3452
    %v3456 = vmul.f32 %v3444, %v3452
    %v3457 = vmul.f32 %v3445, %v3452
    %v3458 = vmul.f32 %v3446, %v3452
    %v3459 = vmul.f32 %v3447, %v3452
    %v3461 = vlaneseq
    %v3462 = vshrl.u32 %v3461, 7
    %v3463 = vsub.s32 0, %v3462
    %v3464 = vrot.slane %v3369, %v3463
    %v3466 = vadd.f32 %v3454, %v3464
    %v3467 = vadd.f32 %v3455, %v3464
    %v3468 = vadd.f32 %v3456, %v3464
    %v3469 = vadd.f32 %v3457, %v3464
    %v3470 = vadd.f32 %v3458, %v3464
    %v3471 = vadd.f32 %v3459, %v3464
    %s3472 = scalar_lea.vmem %s31, 32
    %v3473 = vld [vmem:[%s3472] sm:$0xff]
    %v3474 = vld [vmem:[%s3472 + $0x8] sm:$0xff]
    %v3475 = vld [vmem:[%s3472 + $0x10] sm:$0xff]
    %v3476 = vld [vmem:[%s3472 + $0x18] sm:$0xff]
    %s3477 = scalar_lea.vmem %s33, 1
    %v3478 = vld [vmem:[%s3477] sm:$0x1]
    %v3480 = vlaneseq
    %v3481 = vshrl.u32 %v3480, 7
    %v3482 = vsub.s32 0, %v3481
    %v3483 = vrot.slane %v3478, %v3482
    %v3486 = vsel %vm246, %v3466, 0
    %v3489 = vsel %vm246, %v3467, 0
    %v3492 = vsel %vm246, %v3468, 0
    %v3495 = vsel %vm246, %v3469, 0
    %v3498 = vsel %vm246, %v3470, 0
    %v3501 = vsel %vm246, %v3471, 0
    %3503 = vmatprep.subr.mxu0 0.0
    %3504 = vmatpush1.msra.mxu0 %v3473
    %3505 = vmatprep.subr.mxu0 0.0
    %3506 = vmatpush1.msra.mxu0 %v3474
    %3507 = vmatprep.subr.mxu0 0.0
    %3508 = vmatpush1.msra.mxu0 %v3475
    %3509 = vmatprep.subr.mxu0 0.0
    %3510 = vmatpush1.msra.mxu0 %v3476
    %3511 = vmatprep.subr.mxu0 0.0
    %3512 = vmatpush1.msra.mxu0 0.0
    %3513 = vmatprep.subr.mxu0 0.0
    %3514 = vmatpush1.msra.mxu0 0.0
    %3515 = vmatprep.subr.mxu0 0.0
    %3516 = vmatpush1.msra.mxu0 0.0
    %3517 = vmatprep.subr.mxu0 0.0
    %3518 = vmatpush1.msra.mxu0 0.0
    %3519 = vmatprep.subr.mxu0 0.0
    %3520 = vmatpush1.msra.mxu0 0.0
    %3521 = vmatprep.subr.mxu0 0.0
    %3522 = vmatpush1.msra.mxu0 0.0
    %3523 = vmatprep.subr.mxu0 0.0
    %3524 = vmatpush1.msra.mxu0 0.0
    %3525 = vmatprep.subr.mxu0 0.0
    %3526 = vmatpush1.msra.mxu0 0.0
    %3527 = vmatprep.subr.mxu0 0.0
    %3528 = vmatpush1.msra.mxu0 0.0
    %3529 = vmatprep.subr.mxu0 0.0
    %3530 = vmatpush1.msra.mxu0 0.0
    %3531 = vmatprep.subr.mxu0 0.0
    %3532 = vmatpush1.msra.mxu0 0.0
    %3533 = vmatprep.subr.mxu0 0.0
    %3534 = vmatpush1.msra.mxu0 0.0
    %3535 = vmatprep.subr.mxu0 0.0
    %3536 = vmatpush1.msra.mxu0 0.0
    %3537 = vmatprep.subr.mxu0 0.0
    %3538 = vmatpush1.msra.mxu0 0.0
    %3539 = vmatprep.subr.mxu0 0.0
    %3540 = vmatpush1.msra.mxu0 0.0
    %3541 = vmatprep.subr.mxu0 0.0
    %3542 = vmatpush1.msra.mxu0 0.0
    %3543 = vmatprep.subr.mxu0 0.0
    %3544 = vmatpush1.msra.mxu0 0.0
    %3545 = vmatprep.subr.mxu0 0.0
    %3546 = vmatpush1.msra.mxu0 0.0
    %3547 = vmatprep.subr.mxu0 0.0
    %3548 = vmatpush1.msra.mxu0 0.0
    %3549 = vmatprep.subr.mxu0 0.0
    %3550 = vmatpush1.msra.mxu0 0.0
    %3551 = vmatprep.subr.mxu0 0.0
    %3552 = vmatpush1.msra.mxu0 0.0
    %3553 = vmatprep.subr.mxu0 0.0
    %3554 = vmatpush1.msra.mxu0 0.0
    %3555 = vmatprep.subr.mxu0 0.0
    %3556 = vmatpush1.msra.mxu0 0.0
    %3557 = vmatprep.subr.mxu0 0.0
    %3558 = vmatpush1.msra.mxu0 0.0
    %3559 = vmatprep.subr.mxu0 0.0
    %3560 = vmatpush1.msra.mxu0 0.0
    %3561 = vmatprep.subr.mxu0 0.0
    %3562 = vmatpush1.msra.mxu0 0.0
    %3563 = vmatprep.subr.mxu0 0.0
    %3564 = vmatpush1.msra.mxu0 0.0
    %3565 = vmatprep.subr.mxu0 0.0
    %3566 = vmatpush1.msra.mxu0 0.0
    %3567 = vmatprep.mubr.f32.mxu0 0.0
    %3568 = vmatmul.mubr.f32.gmra.mrb[0].mxu0 %v3486
    %v3569 = vpop.f32.mrb[0].mxu0
    %v3570 = vadd.f32 %v3483, %v3569
    %v3571 = vpop.f32.mrb[0].mxu0
    %3572 = vmatprep.mubr.f32.mxu0 0.0
    %3573 = vmatmul.mubr.f32.gmra.mrb[0].mxu0 %v3489
    %v3574 = vpop.f32.mrb[0].mxu0
    %v3575 = vadd.f32 %v3483, %v3574
    %v3576 = vpop.f32.mrb[0].mxu0
    %3577 = vmatprep.mubr.f32.mxu0 0.0
    %3578 = vmatmul.mubr.f32.gmra.mrb[0].mxu0 %v3492
    %v3579 = vpop.f32.mrb[0].mxu0
    %v3580 = vadd.f32 %v3483, %v3579
    %v3581 = vpop.f32.mrb[0].mxu0
    %3582 = vmatprep.mubr.f32.mxu0 0.0
    %3583 = vmatmul.mubr.f32.gmra.mrb[0].mxu0 %v3495
    %v3584 = vpop.f32.mrb[0].mxu0
    %v3585 = vadd.f32 %v3483, %v3584
    %v3586 = vpop.f32.mrb[0].mxu0
    %3587 = vmatprep.mubr.f32.mxu0 0.0
    %3588 = vmatmul.mubr.f32.gmra.mrb[0].mxu0 %v3498
    %v3589 = vpop.f32.mrb[0].mxu0
    %v3590 = vadd.f32 %v3483, %v3589
    %v3591 = vpop.f32.mrb[0].mxu0
    %3592 = vmatprep.mubr.f32.mxu0 0.0
    %3593 = vmatmul.mubr.f32.gmra.mrb[0].mxu0 %v3501
    %v3594 = vpop.f32.mrb[0].mxu0
    %v3595 = vadd.f32 %v3483, %v3594
    %v3596 = vpop.f32.mrb[0].mxu0
    %3597 = vdwg.mxu0
    %s3598 = scalar_lea.vmem %s35, 32
    %v3599 = vld [vmem:[%s3598] sm:$0xff]
    %v3600 = vld [vmem:[%s3598 + $0x8] sm:$0xff]
    %v3601 = vld [vmem:[%s3598 + $0x10] sm:$0xff]
    %v3602 = vld [vmem:[%s3598 + $0x18] sm:$0xff]
    %s3603 = scalar_lea.vmem %s37, 1
    %v3604 = vld [vmem:[%s3603] sm:$0x1]
    %v3606 = vlaneseq
    %v3607 = vshrl.u32 %v3606, 7
    %v3608 = vsub.s32 0, %v3607
    %v3609 = vrot.slane %v3604, %v3608
    %v3611 = vadd.f32 %v3609, 0.0
    %3618 = vrot.lane.b32.xlu0 %v3570, 96
    %v3619 = vpop.permute.xlu0 %3618
    %3620 = vrot.lane.b32.xlu0 %v3575, 96
    %v3621 = vpop.permute.xlu0 %3620
    %3622 = vrot.lane.b32.xlu0 %v3580, 96
    %v3623 = vpop.permute.xlu0 %3622
    %3624 = vrot.lane.b32.xlu0 %v3585, 96
    %v3625 = vpop.permute.xlu0 %3624
    %3626 = vrot.lane.b32.xlu0 %v3590, 96
    %v3627 = vpop.permute.xlu0 %3626
    %3628 = vrot.lane.b32.xlu0 %v3595, 96
    %v3629 = vpop.permute.xlu0 %3628
    %v3630 = vsel %vm343, %v3570, 0
    %v3632 = vsel %vm343, %v3575, 0
    %v3634 = vsel %vm343, %v3580, 0
    %v3636 = vsel %vm343, %v3585, 0
    %v3638 = vsel %vm343, %v3590, 0
    %v3640 = vsel %vm343, %v3595, 0
    %v3642 = vsel %vm343, %v3619, 0
    %v3644 = vsel %vm343, %v3621, 0
    %v3646 = vsel %vm343, %v3623, 0
    %v3648 = vsel %vm343, %v3625, 0
    %v3650 = vsel %vm343, %v3627, 0
    %v3652 = vsel %vm343, %v3629, 0
    %3654 = vmatprep.subr.mxu0 0.0
    %3655 = vmatpush1.xpose.msra.mxu0 %v3642
    %3656 = vmatprep.subr.mxu0 0.0
    %3657 = vmatpush1.xpose.msra.mxu0 %v3644
    %3658 = vmatprep.subr.mxu0 0.0
    %3659 = vmatpush1.xpose.msra.mxu0 %v3646
    %3660 = vmatprep.subr.mxu0 0.0
    %3661 = vmatpush1.xpose.msra.mxu0 %v3648
    %3662 = vmatprep.subr.mxu0 0.0
    %3663 = vmatpush1.xpose.msra.mxu0 %v3650
    %3664 = vmatprep.subr.mxu0 0.0
    %3665 = vmatpush1.xpose.msra.mxu0 %v3652
    %3666 = vmatprep.subr.mxu0 0.0
    %3667 = vmatpush1.xpose.msra.mxu0 0.0
    %3668 = vmatprep.subr.mxu0 0.0
    %3669 = vmatpush1.xpose.msra.mxu0 0.0
    %3670 = vmatprep.subr.mxu0 0.0
    %3671 = vmatpush1.xpose.msra.mxu0 0.0
    %3672 = vmatprep.subr.mxu0 0.0
    %3673 = vmatpush1.xpose.msra.mxu0 0.0
    %3674 = vmatprep.subr.mxu0 0.0
    %3675 = vmatpush1.xpose.msra.mxu0 0.0
    %3676 = vmatprep.subr.mxu0 0.0
    %3677 = vmatpush1.xpose.msra.mxu0 0.0
    %3678 = vmatprep.subr.mxu0 0.0
    %3679 = vmatpush1.xpose.msra.mxu0 0.0
    %3680 = vmatprep.subr.mxu0 0.0
    %3681 = vmatpush1.xpose.msra.mxu0 0.0
    %3682 = vmatprep.subr.mxu0 0.0
    %3683 = vmatpush1.xpose.msra.mxu0 0.0
    %3684 = vmatprep.subr.mxu0 0.0
    %3685 = vmatpush1.xpose.msra.mxu0 0.0
    %3686 = vmatprep.subr.mxu0 0.0
    %3687 = vmatpush1.xpose.msra.mxu0 0.0
    %3688 = vmatprep.subr.mxu0 0.0
    %3689 = vmatpush1.xpose.msra.mxu0 0.0
    %3690 = vmatprep.subr.mxu0 0.0
    %3691 = vmatpush1.xpose.msra.mxu0 0.0
    %3692 = vmatprep.subr.mxu0 0.0
    %3693 = vmatpush1.xpose.msra.mxu0 0.0
    %3694 = vmatprep.subr.mxu0 0.0
    %3695 = vmatpush1.xpose.msra.mxu0 0.0
    %3696 = vmatprep.subr.mxu0 0.0
    %3697 = vmatpush1.xpose.msra.mxu0 0.0
    %3698 = vmatprep.subr.mxu0 0.0
    %3699 = vmatpush1.xpose.msra.mxu0 0.0
    %3700 = vmatprep.subr.mxu0 0.0
    %3701 = vmatpush1.xpose.msra.mxu0 0.0
    %3702 = vmatprep.subr.mxu0 0.0
    %3703 = vmatpush1.xpose.msra.mxu0 0.0
    %3704 = vmatprep.subr.mxu0 0.0
    %3705 = vmatpush1.xpose.msra.mxu0 0.0
    %3706 = vmatprep.subr.mxu0 0.0
    %3707 = vmatpush1.xpose.msra.mxu0 0.0
    %3708 = vmatprep.subr.mxu0 0.0
    %3709 = vmatpush1.xpose.msra.mxu0 0.0
    %3710 = vmatprep.subr.mxu0 0.0
    %3711 = vmatpush1.xpose.msra.mxu0 0.0
    %3712 = vmatprep.subr.mxu0 0.0
    %3713 = vmatpush1.xpose.msra.mxu0 0.0
    %3714 = vmatprep.subr.mxu0 0.0
    %3715 = vmatpush1.xpose.msra.mxu0 0.0
    %3716 = vmatprep.subr.mxu0 0.0
    %3717 = vmatpush1.xpose.msra.mxu0 0.0
    %3718 = vmatprep.mubr.f32.mxu0 0.0
    %3719 = vmatmul.mubr.f32.gmra.mrb[0].mxu0 %v3630
    %v3720 = vpop.f32.mrb[0].mxu0
    %v3721 = vadd.f32 0.0, %v3720
    %v3722 = vpop.f32.mrb[0].mxu0
    %3723 = vmatprep.mubr.f32.mxu0 0.0
    %3724 = vmatmul.mubr.f32.gmra.mrb[0].mxu0 %v3632
    %v3725 = vpop.f32.mrb[0].mxu0
    %v3726 = vadd.f32 0.0, %v3725
    %v3727 = vpop.f32.mrb[0].mxu0
    %3728 = vmatprep.mubr.f32.mxu0 0.0
    %3729 = vmatmul.mubr.f32.gmra.mrb[0].mxu0 %v3634
    %v3730 = vpop.f32.mrb[0].mxu0
    %v3731 = vadd.f32 0.0, %v3730
    %v3732 = vpop.f32.mrb[0].mxu0
    %3733 = vmatprep.mubr.f32.mxu0 0.0
    %3734 = vmatmul.mubr.f32.gmra.mrb[0].mxu0 %v3636
    %v3735 = vpop.f32.mrb[0].mxu0
    %v3736 = vadd.f32 0.0, %v3735
    %v3737 = vpop.f32.mrb[0].mxu0
    %3738 = vmatprep.mubr.f32.mxu0 0.0
    %3739 = vmatmul.mubr.f32.gmra.mrb[0].mxu0 %v3638
    %v3740 = vpop.f32.mrb[0].mxu0
    %v3741 = vadd.f32 0.0, %v3740
    %v3742 = vpop.f32.mrb[0].mxu0
    %3743 = vmatprep.mubr.f32.mxu0 0.0
    %3744 = vmatmul.mubr.f32.gmra.mrb[0].mxu0 %v3640
    %v3745 = vpop.f32.mrb[0].mxu0
    %v3746 = vadd.f32 0.0, %v3745
    %v3747 = vpop.f32.mrb[0].mxu0
    %3748 = vdwg.mxu0
    %v3749 = vmul.f32 %v3721, 0.35355338
    %v3750 = vmul.f32 %v3726, 0.35355338
    %v3751 = vmul.f32 %v3731, 0.35355338
    %v3752 = vmul.f32 %v3736, 0.35355338
    %v3753 = vmul.f32 %v3741, 0.35355338
    %v3754 = vmul.f32 %v3746, 0.35355338
    %v3755 = vadd.f32 %v3749, %v822
    %v3756 = vadd.f32 %v3750, %v823
    %v3757 = vadd.f32 %v3751, %v824
    %v3758 = vadd.f32 %v3752, %v825
    %v3759 = vadd.f32 %v3753, %v826
    %v3760 = vadd.f32 %v3754, %v827
    %v3761 = vsel %vm1218, %v3755, -inf
    %3762 = vmax.xlane.f32.xlu0 %v3761
    %v3763 = vpop.xlane.xlu0 %3762
    %v3764 = vsel %vm1218, %v3756, -inf
    %3765 = vmax.xlane.f32.xlu0 %v3764
    %v3766 = vpop.xlane.xlu0 %3765
    %v3767 = vsel %vm1218, %v3757, -inf
    %3768 = vmax.xlane.f32.xlu0 %v3767
    %v3769 = vpop.xlane.xlu0 %3768
    %v3770 = vsel %vm1218, %v3758, -inf
    %3771 = vmax.xlane.f32.xlu0 %v3770
    %v3772 = vpop.xlane.xlu0 %3771
    %v3773 = vsel %vm1218, %v3759, -inf
    %3774 = vmax.xlane.f32.xlu0 %v3773
    %v3775 = vpop.xlane.xlu0 %3774
    %v3776 = vsel %vm1218, %v3760, -inf
    %3777 = vmax.xlane.f32.xlu0 %v3776
    %v3778 = vpop.xlane.xlu0 %3777
    %v3779 = vsub.f32 %v3755, %v3763
    %v3780 = vsub.f32 %v3756, %v3766
    %v3781 = vsub.f32 %v3757, %v3769
    %v3782 = vsub.f32 %v3758, %v3772
    %v3783 = vsub.f32 %v3759, %v3775
    %v3784 = vsub.f32 %v3760, %v3778
    %v3785 = vmul.f32 %v3779, 1.442695
    %v3786 = vpow.pop %v3785
    %v3787 = vmul.f32 %v3780, 1.442695
    %v3788 = vpow.pop %v3787
    %v3789 = vmul.f32 %v3781, 1.442695
    %v3790 = vpow.pop %v3789
    %v3791 = vmul.f32 %v3782, 1.442695
    %v3792 = vpow.pop %v3791
    %v3793 = vmul.f32 %v3783, 1.442695
    %v3794 = vpow.pop %v3793
    %v3795 = vmul.f32 %v3784, 1.442695
    %v3796 = vpow.pop %v3795
    %v3797 = vsel %vm1218, %v3786, 0.0
    %3798 = vadd.xlane.f32.xlu0 %v3797
    %v3799 = vpop.xlane.xlu0 %3798
    %v3800 = vsel %vm1218, %v3788, 0.0
    %3801 = vadd.xlane.f32.xlu0 %v3800
    %v3802 = vpop.xlane.xlu0 %3801
    %v3803 = vsel %vm1218, %v3790, 0.0
    %3804 = vadd.xlane.f32.xlu0 %v3803
    %v3805 = vpop.xlane.xlu0 %3804
    %v3806 = vsel %vm1218, %v3792, 0.0
    %3807 = vadd.xlane.f32.xlu0 %v3806
    %v3808 = vpop.xlane.xlu0 %3807
    %v3809 = vsel %vm1218, %v3794, 0.0
    %3810 = vadd.xlane.f32.xlu0 %v3809
    %v3811 = vpop.xlane.xlu0 %3810
    %v3812 = vsel %vm1218, %v3796, 0.0
    %3813 = vadd.xlane.f32.xlu0 %v3812
    %v3814 = vpop.xlane.xlu0 %3813
    %v3815 = vrcp.pop %v3799
    %v3816 = vrcp.pop %v3802
    %v3817 = vrcp.pop %v3805
    %v3818 = vrcp.pop %v3808
    %v3819 = vrcp.pop %v3811
    %v3820 = vrcp.pop %v3814
    %v3821 = vmul.f32 %v3786, %v3815
    %v3822 = vmul.f32 %v3788, %v3816
    %v3823 = vmul.f32 %v3790, %v3817
    %v3824 = vmul.f32 %v3792, %v3818
    %v3825 = vmul.f32 %v3794, %v3819
    %v3826 = vmul.f32 %v3796, %v3820
    %3827 = vrot.lane.b32.xlu0 %v3570, 64
    %v3828 = vpop.permute.xlu0 %3827
    %3829 = vrot.lane.b32.xlu0 %v3575, 64
    %v3830 = vpop.permute.xlu0 %3829
    %3831 = vrot.lane.b32.xlu0 %v3580, 64
    %v3832 = vpop.permute.xlu0 %3831
    %3833 = vrot.lane.b32.xlu0 %v3585, 64
    %v3834 = vpop.permute.xlu0 %3833
    %3835 = vrot.lane.b32.xlu0 %v3590, 64
    %v3836 = vpop.permute.xlu0 %3835
    %3837 = vrot.lane.b32.xlu0 %v3595, 64
    %v3838 = vpop.permute.xlu0 %3837
    %v3846 = vsel %vm1218, %v3821, 0
    %v3849 = vsel %vm1218, %v3822, 0
    %v3852 = vsel %vm1218, %v3823, 0
    %v3855 = vsel %vm1218, %v3824, 0
    %v3858 = vsel %vm1218, %v3825, 0
    %v3861 = vsel %vm1218, %v3826, 0
    %3863 = vmatprep.subr.mxu0 0.0
    %3864 = vmatpush1.msra.mxu0 %v3828
    %3865 = vmatprep.subr.mxu0 0.0
    %3866 = vmatpush1.msra.mxu0 %v3830
    %3867 = vmatprep.subr.mxu0 0.0
    %3868 = vmatpush1.msra.mxu0 %v3832
    %3869 = vmatprep.subr.mxu0 0.0
    %3870 = vmatpush1.msra.mxu0 %v3834
    %3871 = vmatprep.subr.mxu0 0.0
    %3872 = vmatpush1.msra.mxu0 %v3836
    %3873 = vmatprep.subr.mxu0 0.0
    %3874 = vmatpush1.msra.mxu0 %v3838
    %3875 = vmatprep.subr.mxu0 0.0
    %3876 = vmatpush1.msra.mxu0 0.0
    %3877 = vmatprep.subr.mxu0 0.0
    %3878 = vmatpush1.msra.mxu0 0.0
    %3879 = vmatprep.subr.mxu0 0.0
    %3880 = vmatpush1.msra.mxu0 0.0
    %3881 = vmatprep.subr.mxu0 0.0
    %3882 = vmatpush1.msra.mxu0 0.0
    %3883 = vmatprep.subr.mxu0 0.0
    %3884 = vmatpush1.msra.mxu0 0.0
    %3885 = vmatprep.subr.mxu0 0.0
    %3886 = vmatpush1.msra.mxu0 0.0
    %3887 = vmatprep.subr.mxu0 0.0
    %3888 = vmatpush1.msra.mxu0 0.0
    %3889 = vmatprep.subr.mxu0 0.0
    %3890 = vmatpush1.msra.mxu0 0.0
    %3891 = vmatprep.subr.mxu0 0.0
    %3892 = vmatpush1.msra.mxu0 0.0
    %3893 = vmatprep.subr.mxu0 0.0
    %3894 = vmatpush1.msra.mxu0 0.0
    %3895 = vmatprep.subr.mxu0 0.0
    %3896 = vmatpush1.msra.mxu0 0.0
    %3897 = vmatprep.subr.mxu0 0.0
    %3898 = vmatpush1.msra.mxu0 0.0
    %3899 = vmatprep.subr.mxu0 0.0
    %3900 = vmatpush1.msra.mxu0 0.0
    %3901 = vmatprep.subr.mxu0 0.0
    %3902 = vmatpush1.msra.mxu0 0.0
    %3903 = vmatprep.subr.mxu0 0.0
    %3904 = vmatpush1.msra.mxu0 0.0
    %3905 = vmatprep.subr.mxu0 0.0
    %3906 = vmatpush1.msra.mxu0 0.0
    %3907 = vmatprep.subr.mxu0 0.0
    %3908 = vmatpush1.msra.mxu0 0.0
    %3909 = vmatprep.subr.mxu0 0.0
    %3910 = vmatpush1.msra.mxu0 0.0
    %3911 = vmatprep.subr.mxu0 0.0
    %3912 = vmatpush1.msra.mxu0 0.0
    %3913 = vmatprep.subr.mxu0 0.0
    %3914 = vmatpush1.msra.mxu0 0.0
    %3915 = vmatprep.subr.mxu0 0.0
    %3916 = vmatpush1.msra.mxu0 0.0
    %3917 = vmatprep.subr.mxu0 0.0
    %3918 = vmatpush1.msra.mxu0 0.0
    %3919 = vmatprep.subr.mxu0 0.0
    %3920 = vmatpush1.msra.mxu0 0.0
    %3921 = vmatprep.subr.mxu0 0.0
    %3922 = vmatpush1.msra.mxu0 0.0
    %3923 = vmatprep.subr.mxu0 0.0
    %3924 = vmatpush1.msra.mxu0 0.0
    %3925 = vmatprep.subr.mxu0 0.0
    %3926 = vmatpush1.msra.mxu0 0.0
    %3927 = vmatprep.mubr.f32.mxu0 0.0
    %3928 = vmatmul.mubr.f32.gmra.mrb[0].mxu0 %v3846
    %v3929 = vpop.f32.mrb[0].mxu0
    %v3930 = vadd.f32 0.0, %v3929
    %v3931 = vpop.f32.mrb[0].mxu0
    %3932 = vmatprep.mubr.f32.mxu0 0.0
    %3933 = vmatmul.mubr.f32.gmra.mrb[0].mxu0 %v3849
    %v3934 = vpop.f32.mrb[0].mxu0
    %v3935 = vadd.f32 0.0, %v3934
    %v3936 = vpop.f32.mrb[0].mxu0
    %3937 = vmatprep.mubr.f32.mxu0 0.0
    %3938 = vmatmul.mubr.f32.gmra.mrb[0].mxu0 %v3852
    %v3939 = vpop.f32.mrb[0].mxu0
    %v3940 = vadd.f32 0.0, %v3939
    %v3941 = vpop.f32.mrb[0].mxu0
    %3942 = vmatprep.mubr.f32.mxu0 0.0
    %3943 = vmatmul.mubr.f32.gmra.mrb[0].mxu0 %v3855
    %v3944 = vpop.f32.mrb[0].mxu0
    %v3945 = vadd.f32 0.0, %v3944
    %v3946 = vpop.f32.mrb[0].mxu0
    %3947 = vmatprep.mubr.f32.mxu0 0.0
    %3948 = vmatmul.mubr.f32.gmra.mrb[0].mxu0 %v3858
    %v3949 = vpop.f32.mrb[0].mxu0
    %v3950 = vadd.f32 0.0, %v3949
    %v3951 = vpop.f32.mrb[0].mxu0
    %3952 = vmatprep.mubr.f32.mxu0 0.0
    %3953 = vmatmul.mubr.f32.gmra.mrb[0].mxu0 %v3861
    %v3954 = vpop.f32.mrb[0].mxu0
    %v3955 = vadd.f32 0.0, %v3954
    %v3956 = vpop.f32.mrb[0].mxu0
    %3957 = vdwg.mxu0
    %v3959 = vsel %vm343, %v3930, 0
    %v3962 = vsel %vm343, %v3935, 0
    %v3965 = vsel %vm343, %v3940, 0
    %v3968 = vsel %vm343, %v3945, 0
    %v3971 = vsel %vm343, %v3950, 0
    %v3974 = vsel %vm343, %v3955, 0
    %3976 = vmatprep.subr.mxu0 0.0
    %3977 = vmatpush1.msra.mxu0 %v3599
    %3978 = vmatprep.subr.mxu0 0.0
    %3979 = vmatpush1.msra.mxu0 0.0
    %3980 = vmatprep.subr.mxu0 0.0
    %3981 = vmatpush1.msra.mxu0 0.0
    %3982 = vmatprep.subr.mxu0 0.0
    %3983 = vmatpush1.msra.mxu0 0.0
    %3984 = vmatprep.subr.mxu0 0.0
    %3985 = vmatpush1.msra.mxu0 0.0
    %3986 = vmatprep.subr.mxu0 0.0
    %3987 = vmatpush1.msra.mxu0 0.0
    %3988 = vmatprep.subr.mxu0 0.0
    %3989 = vmatpush1.msra.mxu0 0.0
    %3990 = vmatprep.subr.mxu0 0.0
    %3991 = vmatpush1.msra.mxu0 0.0
    %3992 = vmatprep.subr.mxu0 0.0
    %3993 = vmatpush1.msra.mxu0 0.0
    %3994 = vmatprep.subr.mxu0 0.0
    %3995 = vmatpush1.msra.mxu0 0.0
    %3996 = vmatprep.subr.mxu0 0.0
    %3997 = vmatpush1.msra.mxu0 0.0
    %3998 = vmatprep.subr.mxu0 0.0
    %3999 = vmatpush1.msra.mxu0 0.0
    %4000 = vmatprep.subr.mxu0 0.0
    %4001 = vmatpush1.msra.mxu0 0.0
    %4002 = vmatprep.subr.mxu0 0.0
    %4003 = vmatpush1.msra.mxu0 0.0
    %4004 = vmatprep.subr.mxu0 0.0
    %4005 = vmatpush1.msra.mxu0 0.0
    %4006 = vmatprep.subr.mxu0 0.0
    %4007 = vmatpush1.msra.mxu0 0.0
    %4008 = vmatprep.subr.mxu0 0.0
    %4009 = vmatpush1.msra.mxu0 0.0
    %4010 = vmatprep.subr.mxu0 0.0
    %4011 = vmatpush1.msra.mxu0 0.0
    %4012 = vmatprep.subr.mxu0 0.0
    %4013 = vmatpush1.msra.mxu0 0.0
    %4014 = vmatprep.subr.mxu0 0.0
    %4015 = vmatpush1.msra.mxu0 0.0
    %4016 = vmatprep.subr.mxu0 0.0
    %4017 = vmatpush1.msra.mxu0 0.0
    %4018 = vmatprep.subr.mxu0 0.0
    %4019 = vmatpush1.msra.mxu0 0.0
    %4020 = vmatprep.subr.mxu0 0.0
    %4021 = vmatpush1.msra.mxu0 0.0
    %4022 = vmatprep.subr.mxu0 0.0
    %4023 = vmatpush1.msra.mxu0 0.0
    %4024 = vmatprep.subr.mxu0 0.0
    %4025 = vmatpush1.msra.mxu0 0.0
    %4026 = vmatprep.subr.mxu0 0.0
    %4027 = vmatpush1.msra.mxu0 0.0
    %4028 = vmatprep.subr.mxu0 0.0
    %4029 = vmatpush1.msra.mxu0 0.0
    %4030 = vmatprep.subr.mxu0 0.0
    %4031 = vmatpush1.msra.mxu0 0.0
    %4032 = vmatprep.subr.mxu0 0.0
    %4033 = vmatpush1.msra.mxu0 0.0
    %4034 = vmatprep.subr.mxu0 0.0
    %4035 = vmatpush1.msra.mxu0 0.0
    %4036 = vmatprep.subr.mxu0 0.0
    %4037 = vmatpush1.msra.mxu0 0.0
    %4038 = vmatprep.subr.mxu0 0.0
    %4039 = vmatpush1.msra.mxu0 0.0
    %4040 = vmatprep.mubr.f32.mxu0 0.0
    %4041 = vmatmul.mubr.f32.gmra.mrb[0].mxu0 %v3959
    %v4042 = vpop.f32.mrb[0].mxu0
    %v4043 = vadd.f32 0.0, %v4042
    %v4044 = vpop.f32.mrb[0].mxu0
    %4045 = vmatprep.mubr.f32.mxu0 0.0
    %4046 = vmatmul.mubr.f32.gmra.mrb[0].mxu0 %v3962
    %v4047 = vpop.f32.mrb[0].mxu0
    %v4048 = vadd.f32 0.0, %v4047
    %v4049 = vpop.f32.mrb[0].mxu0
    %4050 = vmatprep.mubr.f32.mxu0 0.0
    %4051 = vmatmul.mubr.f32.gmra.mrb[0].mxu0 %v3965
    %v4052 = vpop.f32.mrb[0].mxu0
    %v4053 = vadd.f32 0.0, %v4052
    %v4054 = vpop.f32.mrb[0].mxu0
    %4055 = vmatprep.mubr.f32.mxu0 0.0
    %4056 = vmatmul.mubr.f32.gmra.mrb[0].mxu0 %v3968
    %v4057 = vpop.f32.mrb[0].mxu0
    %v4058 = vadd.f32 0.0, %v4057
    %v4059 = vpop.f32.mrb[0].mxu0
    %4060 = vmatprep.mubr.f32.mxu0 0.0
    %4061 = vmatmul.mubr.f32.gmra.mrb[0].mxu0 %v3971
    %v4062 = vpop.f32.mrb[0].mxu0
    %v4063 = vadd.f32 0.0, %v4062
    %v4064 = vpop.f32.mrb[0].mxu0
    %4065 = vmatprep.mubr.f32.mxu0 0.0
    %4066 = vmatmul.mubr.f32.gmra.mrb[0].mxu0 %v3974
    %v4067 = vpop.f32.mrb[0].mxu0
    %v4068 = vadd.f32 0.0, %v4067
    %v4069 = vpop.f32.mrb[0].mxu0
    %4070 = vdwg.mxu0
    %v4071 = vadd.f32 %v3611, %v4043
    %v4072 = vadd.f32 %v3611, %v4048
    %v4073 = vadd.f32 %v3611, %v4053
    %v4074 = vadd.f32 %v3611, %v4058
    %v4075 = vadd.f32 %v3611, %v4063
    %v4076 = vadd.f32 %v3611, %v4068
    %4077 = vrot.lane.b32.xlu0 %v3570, 120
    %v4078 = vpop.permute.xlu0 %4077
    %4079 = vrot.lane.b32.xlu0 %v3575, 120
    %v4080 = vpop.permute.xlu0 %4079
    %4081 = vrot.lane.b32.xlu0 %v3580, 120
    %v4082 = vpop.permute.xlu0 %4081
    %4083 = vrot.lane.b32.xlu0 %v3585, 120
    %v4084 = vpop.permute.xlu0 %4083
    %4085 = vrot.lane.b32.xlu0 %v3590, 120
    %v4086 = vpop.permute.xlu0 %4085
    %4087 = vrot.lane.b32.xlu0 %v3595, 120
    %v4088 = vpop.permute.xlu0 %4087
    %4089 = vrot.lane.b32.xlu0 %v3570, 88
    %v4090 = vpop.permute.xlu0 %4089
    %4091 = vrot.lane.b32.xlu0 %v3575, 88
    %v4092 = vpop.permute.xlu0 %4091
    %4093 = vrot.lane.b32.xlu0 %v3580, 88
    %v4094 = vpop.permute.xlu0 %4093
    %4095 = vrot.lane.b32.xlu0 %v3585, 88
    %v4096 = vpop.permute.xlu0 %4095
    %4097 = vrot.lane.b32.xlu0 %v3590, 88
    %v4098 = vpop.permute.xlu0 %4097
    %4099 = vrot.lane.b32.xlu0 %v3595, 88
    %v4100 = vpop.permute.xlu0 %4099
    %v4101 = vsel %vm343, %v4078, 0
    %v4103 = vsel %vm343, %v4080, 0
    %v4105 = vsel %vm343, %v4082, 0
    %v4107 = vsel %vm343, %v4084, 0
    %v4109 = vsel %vm343, %v4086, 0
    %v4111 = vsel %vm343, %v4088, 0
    %v4113 = vsel %vm343, %v4090, 0
    %v4115 = vsel %vm343, %v4092, 0
    %v4117 = vsel %vm343, %v4094, 0
    %v4119 = vsel %vm343, %v4096, 0
    %v4121 = vsel %vm343, %v4098, 0
    %v4123 = vsel %vm343, %v4100, 0
    %4125 = vmatprep.subr.mxu0 0.0
    %4126 = vmatpush1.xpose.msra.mxu0 %v4113
    %4127 = vmatprep.subr.mxu0 0.0
    %4128 = vmatpush1.xpose.msra.mxu0 %v4115
    %4129 = vmatprep.subr.mxu0 0.0
    %4130 = vmatpush1.xpose.msra.mxu0 %v4117
    %4131 = vmatprep.subr.mxu0 0.0
    %4132 = vmatpush1.xpose.msra.mxu0 %v4119
    %4133 = vmatprep.subr.mxu0 0.0
    %4134 = vmatpush1.xpose.msra.mxu0 %v4121
    %4135 = vmatprep.subr.mxu0 0.0
    %4136 = vmatpush1.xpose.msra.mxu0 %v4123
    %4137 = vmatprep.subr.mxu0 0.0
    %4138 = vmatpush1.xpose.msra.mxu0 0.0
    %4139 = vmatprep.subr.mxu0 0.0
    %4140 = vmatpush1.xpose.msra.mxu0 0.0
    %4141 = vmatprep.subr.mxu0 0.0
    %4142 = vmatpush1.xpose.msra.mxu0 0.0
    %4143 = vmatprep.subr.mxu0 0.0
    %4144 = vmatpush1.xpose.msra.mxu0 0.0
    %4145 = vmatprep.subr.mxu0 0.0
    %4146 = vmatpush1.xpose.msra.mxu0 0.0
    %4147 = vmatprep.subr.mxu0 0.0
    %4148 = vmatpush1.xpose.msra.mxu0 0.0
    %4149 = vmatprep.subr.mxu0 0.0
    %4150 = vmatpush1.xpose.msra.mxu0 0.0
    %4151 = vmatprep.subr.mxu0 0.0
    %4152 = vmatpush1.xpose.msra.mxu0 0.0
    %4153 = vmatprep.subr.mxu0 0.0
    %4154 = vmatpush1.xpose.msra.mxu0 0.0
    %4155 = vmatprep.subr.mxu0 0.0
    %4156 = vmatpush1.xpose.msra.mxu0 0.0
    %4157 = vmatprep.subr.mxu0 0.0
    %4158 = vmatpush1.xpose.msra.mxu0 0.0
    %4159 = vmatprep.subr.mxu0 0.0
    %4160 = vmatpush1.xpose.msra.mxu0 0.0
    %4161 = vmatprep.subr.mxu0 0.0
    %4162 = vmatpush1.xpose.msra.mxu0 0.0
    %4163 = vmatprep.subr.mxu0 0.0
    %4164 = vmatpush1.xpose.msra.mxu0 0.0
    %4165 = vmatprep.subr.mxu0 0.0
    %4166 = vmatpush1.xpose.msra.mxu0 0.0
    %4167 = vmatprep.subr.mxu0 0.0
    %4168 = vmatpush1.xpose.msra.mxu0 0.0
    %4169 = vmatprep.subr.mxu0 0.0
    %4170 = vmatpush1.xpose.msra.mxu0 0.0
    %4171 = vmatprep.subr.mxu0 0.0
    %4172 = vmatpush1.xpose.msra.mxu0 0.0
    %4173 = vmatprep.subr.mxu0 0.0
    %4174 = vmatpush1.xpose.msra.mxu0 0.0
    %4175 = vmatprep.subr.mxu0 0.0
    %4176 = vmatpush1.xpose.msra.mxu0 0.0
    %4177 = vmatprep.subr.mxu0 0.0
    %4178 = vmatpush1.xpose.msra.mxu0 0.0
    %4179 = vmatprep.subr.mxu0 0.0
    %4180 = vmatpush1.xpose.msra.mxu0 0.0
    %4181 = vmatprep.subr.mxu0 0.0
    %4182 = vmatpush1.xpose.msra.mxu0 0.0
    %4183 = vmatprep.subr.mxu0 0.0
    %4184 = vmatpush1.xpose.msra.mxu0 0.0
    %4185 = vmatprep.subr.mxu0 0.0
    %4186 = vmatpush1.xpose.msra.mxu0 0.0
    %4187 = vmatprep.subr.mxu0 0.0
    %4188 = vmatpush1.xpose.msra.mxu0 0.0
    %4189 = vmatprep.mubr.f32.mxu0 0.0
    %4190 = vmatmul.mubr.f32.gmra.mrb[0].mxu0 %v4101
    %v4191 = vpop.f32.mrb[0].mxu0
    %v4192 = vadd.f32 0.0, %v4191
    %v4193 = vpop.f32.mrb[0].mxu0
    %4194 = vmatprep.mubr.f32.mxu0 0.0
    %4195 = vmatmul.mubr.f32.gmra.mrb[0].mxu0 %v4103
    %v4196 = vpop.f32.mrb[0].mxu0
    %v4197 = vadd.f32 0.0, %v4196
    %v4198 = vpop.f32.mrb[0].mxu0
    %4199 = vmatprep.mubr.f32.mxu0 0.0
    %4200 = vmatmul.mubr.f32.gmra.mrb[0].mxu0 %v4105
    %v4201 = vpop.f32.mrb[0].mxu0
    %v4202 = vadd.f32 0.0, %v4201
    %v4203 = vpop.f32.mrb[0].mxu0
    %4204 = vmatprep.mubr.f32.mxu0 0.0
    %4205 = vmatmul.mubr.f32.gmra.mrb[0].mxu0 %v4107
    %v4206 = vpop.f32.mrb[0].mxu0
    %v4207 = vadd.f32 0.0, %v4206
    %v4208 = vpop.f32.mrb[0].mxu0
    %4209 = vmatprep.mubr.f32.mxu0 0.0
    %4210 = vmatmul.mubr.f32.gmra.mrb[0].mxu0 %v4109
    %v4211 = vpop.f32.mrb[0].mxu0
    %v4212 = vadd.f32 0.0, %v4211
    %v4213 = vpop.f32.mrb[0].mxu0
    %4214 = vmatprep.mubr.f32.mxu0 0.0
    %4215 = vmatmul.mubr.f32.gmra.mrb[0].mxu0 %v4111
    %v4216 = vpop.f32.mrb[0].mxu0
    %v4217 = vadd.f32 0.0, %v4216
    %v4218 = vpop.f32.mrb[0].mxu0
    %4219 = vdwg.mxu0
    %v4220 = vmul.f32 %v4192, 0.35355338
    %v4221 = vmul.f32 %v4197, 0.35355338
    %v4222 = vmul.f32 %v4202, 0.35355338
    %v4223 = vmul.f32 %v4207, 0.35355338
    %v4224 = vmul.f32 %v4212, 0.35355338
    %v4225 = vmul.f32 %v4217, 0.35355338
    %v4226 = vadd.f32 %v4220, %v822
    %v4227 = vadd.f32 %v4221, %v823
    %v4228 = vadd.f32 %v4222, %v824
    %v4229 = vadd.f32 %v4223, %v825
    %v4230 = vadd.f32 %v4224, %v826
    %v4231 = vadd.f32 %v4225, %v827
    %v4232 = vsel %vm1218, %v4226, -inf
    %4233 = vmax.xlane.f32.xlu0 %v4232
    %v4234 = vpop.xlane.xlu0 %4233
    %v4235 = vsel %vm1218, %v4227, -inf
    %4236 = vmax.xlane.f32.xlu0 %v4235
    %v4237 = vpop.xlane.xlu0 %4236
    %v4238 = vsel %vm1218, %v4228, -inf
    %4239 = vmax.xlane.f32.xlu0 %v4238
    %v4240 = vpop.xlane.xlu0 %4239
    %v4241 = vsel %vm1218, %v4229, -inf
    %4242 = vmax.xlane.f32.xlu0 %v4241
    %v4243 = vpop.xlane.xlu0 %4242
    %v4244 = vsel %vm1218, %v4230, -inf
    %4245 = vmax.xlane.f32.xlu0 %v4244
    %v4246 = vpop.xlane.xlu0 %4245
    %v4247 = vsel %vm1218, %v4231, -inf
    %4248 = vmax.xlane.f32.xlu0 %v4247
    %v4249 = vpop.xlane.xlu0 %4248
    %v4250 = vsub.f32 %v4226, %v4234
    %v4251 = vsub.f32 %v4227, %v4237
    %v4252 = vsub.f32 %v4228, %v4240
    %v4253 = vsub.f32 %v4229, %v4243
    %v4254 = vsub.f32 %v4230, %v4246
    %v4255 = vsub.f32 %v4231, %v4249
    %v4256 = vmul.f32 %v4250, 1.442695
    %v4257 = vpow.pop %v4256
    %v4258 = vmul.f32 %v4251, 1.442695
    %v4259 = vpow.pop %v4258
    %v4260 = vmul.f32 %v4252, 1.442695
    %v4261 = vpow.pop %v4260
    %v4262 = vmul.f32 %v4253, 1.442695
    %v4263 = vpow.pop %v4262
    %v4264 = vmul.f32 %v4254, 1.442695
    %v4265 = vpow.pop %v4264
    %v4266 = vmul.f32 %v4255, 1.442695
    %v4267 = vpow.pop %v4266
    %v4268 = vsel %vm1218, %v4257, 0.0
    %4269 = vadd.xlane.f32.xlu0 %v4268
    %v4270 = vpop.xlane.xlu0 %4269
    %v4271 = vsel %vm1218, %v4259, 0.0
    %4272 = vadd.xlane.f32.xlu0 %v4271
    %v4273 = vpop.xlane.xlu0 %4272
    %v4274 = vsel %vm1218, %v4261, 0.0
    %4275 = vadd.xlane.f32.xlu0 %v4274
    %v4276 = vpop.xlane.xlu0 %4275
    %v4277 = vsel %vm1218, %v4263, 0.0
    %4278 = vadd.xlane.f32.xlu0 %v4277
    %v4279 = vpop.xlane.xlu0 %4278
    %v4280 = vsel %vm1218, %v4265, 0.0
    %4281 = vadd.xlane.f32.xlu0 %v4280
    %v4282 = vpop.xlane.xlu0 %4281
    %v4283 = vsel %vm1218, %v4267, 0.0
    %4284 = vadd.xlane.f32.xlu0 %v4283
    %v4285 = vpop.xlane.xlu0 %4284
    %v4286 = vrcp.pop %v4270
    %v4287 = vrcp.pop %v4273
    %v4288 = vrcp.pop %v4276
    %v4289 = vrcp.pop %v4279
    %v4290 = vrcp.pop %v4282
    %v4291 = vrcp.pop %v4285
    %v4292 = vmul.f32 %v4257, %v4286
    %v4293 = vmul.f32 %v4259, %v4287
    %v4294 = vmul.f32 %v4261, %v4288
    %v4295 = vmul.f32 %v4263, %v4289
    %v4296 = vmul.f32 %v4265, %v4290
    %v4297 = vmul.f32 %v4267, %v4291
    %4298 = vrot.lane.b32.xlu0 %v3570, 56
    %v4299 = vpop.permute.xlu0 %4298
    %4300 = vrot.lane.b32.xlu0 %v3575, 56
    %v4301 = vpop.permute.xlu0 %4300
    %4302 = vrot.lane.b32.xlu0 %v3580, 56
    %v4303 = vpop.permute.xlu0 %4302
    %4304 = vrot.lane.b32.xlu0 %v3585, 56
    %v4305 = vpop.permute.xlu0 %4304
    %4306 = vrot.lane.b32.xlu0 %v3590, 56
    %v4307 = vpop.permute.xlu0 %4306
    %4308 = vrot.lane.b32.xlu0 %v3595, 56
    %v4309 = vpop.permute.xlu0 %4308
    %v4317 = vsel %vm1218, %v4292, 0
    %v4320 = vsel %vm1218, %v4293, 0
    %v4323 = vsel %vm1218, %v4294, 0
    %v4326 = vsel %vm1218, %v4295, 0
    %v4329 = vsel %vm1218, %v4296, 0
    %v4332 = vsel %vm1218, %v4297, 0
    %4334 = vmatprep.subr.mxu0 0.0
    %4335 = vmatpush1.msra.mxu0 %v4299
    %4336 = vmatprep.subr.mxu0 0.0
    %4337 = vmatpush1.msra.mxu0 %v4301
    %4338 = vmatprep.subr.mxu0 0.0
    %4339 = vmatpush1.msra.mxu0 %v4303
    %4340 = vmatprep.subr.mxu0 0.0
    %4341 = vmatpush1.msra.mxu0 %v4305
    %4342 = vmatprep.subr.mxu0 0.0
    %4343 = vmatpush1.msra.mxu0 %v4307
    %4344 = vmatprep.subr.mxu0 0.0
    %4345 = vmatpush1.msra.mxu0 %v4309
    %4346 = vmatprep.subr.mxu0 0.0
    %4347 = vmatpush1.msra.mxu0 0.0
    %4348 = vmatprep.subr.mxu0 0.0
    %4349 = vmatpush1.msra.mxu0 0.0
    %4350 = vmatprep.subr.mxu0 0.0
    %4351 = vmatpush1.msra.mxu0 0.0
    %4352 = vmatprep.subr.mxu0 0.0
    %4353 = vmatpush1.msra.mxu0 0.0
    %4354 = vmatprep.subr.mxu0 0.0
    %4355 = vmatpush1.msra.mxu0 0.0
    %4356 = vmatprep.subr.mxu0 0.0
    %4357 = vmatpush1.msra.mxu0 0.0
    %4358 = vmatprep.subr.mxu0 0.0
    %4359 = vmatpush1.msra.mxu0 0.0
    %4360 = vmatprep.subr.mxu0 0.0
    %4361 = vmatpush1.msra.mxu0 0.0
    %4362 = vmatprep.subr.mxu0 0.0
    %4363 = vmatpush1.msra.mxu0 0.0
    %4364 = vmatprep.subr.mxu0 0.0
    %4365 = vmatpush1.msra.mxu0 0.0
    %4366 = vmatprep.subr.mxu0 0.0
    %4367 = vmatpush1.msra.mxu0 0.0
    %4368 = vmatprep.subr.mxu0 0.0
    %4369 = vmatpush1.msra.mxu0 0.0
    %4370 = vmatprep.subr.mxu0 0.0
    %4371 = vmatpush1.msra.mxu0 0.0
    %4372 = vmatprep.subr.mxu0 0.0
    %4373 = vmatpush1.msra.mxu0 0.0
    %4374 = vmatprep.subr.mxu0 0.0
    %4375 = vmatpush1.msra.mxu0 0.0
    %4376 = vmatprep.subr.mxu0 0.0
    %4377 = vmatpush1.msra.mxu0 0.0
    %4378 = vmatprep.subr.mxu0 0.0
    %4379 = vmatpush1.msra.mxu0 0.0
    %4380 = vmatprep.subr.mxu0 0.0
    %4381 = vmatpush1.msra.mxu0 0.0
    %4382 = vmatprep.subr.mxu0 0.0
    %4383 = vmatpush1.msra.mxu0 0.0
    %4384 = vmatprep.subr.mxu0 0.0
    %4385 = vmatpush1.msra.mxu0 0.0
    %4386 = vmatprep.subr.mxu0 0.0
    %4387 = vmatpush1.msra.mxu0 0.0
    %4388 = vmatprep.subr.mxu0 0.0
    %4389 = vmatpush1.msra.mxu0 0.0
    %4390 = vmatprep.subr.mxu0 0.0
    %4391 = vmatpush1.msra.mxu0 0.0
    %4392 = vmatprep.subr.mxu0 0.0
    %4393 = vmatpush1.msra.mxu0 0.0
    %4394 = vmatprep.subr.mxu0 0.0
    %4395 = vmatpush1.msra.mxu0 0.0
    %4396 = vmatprep.subr.mxu0 0.0
    %4397 = vmatpush1.msra.mxu0 0.0
    %4398 = vmatprep.mubr.f32.mxu0 0.0
    %4399 = vmatmul.mubr.f32.gmra.mrb[0].mxu0 %v4317
    %v4400 = vpop.f32.mrb[0].mxu0
    %v4401 = vadd.f32 0.0, %v4400
    %v4402 = vpop.f32.mrb[0].mxu0
    %4403 = vmatprep.mubr.f32.mxu0 0.0
    %4404 = vmatmul.mubr.f32.gmra.mrb[0].mxu0 %v4320
    %v4405 = vpop.f32.mrb[0].mxu0
    %v4406 = vadd.f32 0.0, %v4405
    %v4407 = vpop.f32.mrb[0].mxu0
    %4408 = vmatprep.mubr.f32.mxu0 0.0
    %4409 = vmatmul.mubr.f32.gmra.mrb[0].mxu0 %v4323
    %v4410 = vpop.f32.mrb[0].mxu0
    %v4411 = vadd.f32 0.0, %v4410
    %v4412 = vpop.f32.mrb[0].mxu0
    %4413 = vmatprep.mubr.f32.mxu0 0.0
    %4414 = vmatmul.mubr.f32.gmra.mrb[0].mxu0 %v4326
    %v4415 = vpop.f32.mrb[0].mxu0
    %v4416 = vadd.f32 0.0, %v4415
    %v4417 = vpop.f32.mrb[0].mxu0
    %4418 = vmatprep.mubr.f32.mxu0 0.0
    %4419 = vmatmul.mubr.f32.gmra.mrb[0].mxu0 %v4329
    %v4420 = vpop.f32.mrb[0].mxu0
    %v4421 = vadd.f32 0.0, %v4420
    %v4422 = vpop.f32.mrb[0].mxu0
    %4423 = vmatprep.mubr.f32.mxu0 0.0
    %4424 = vmatmul.mubr.f32.gmra.mrb[0].mxu0 %v4332
    %v4425 = vpop.f32.mrb[0].mxu0
    %v4426 = vadd.f32 0.0, %v4425
    %v4427 = vpop.f32.mrb[0].mxu0
    %4428 = vdwg.mxu0
    %v4430 = vsel %vm343, %v4401, 0
    %v4433 = vsel %vm343, %v4406, 0
    %v4436 = vsel %vm343, %v4411, 0
    %v4439 = vsel %vm343, %v4416, 0
    %v4442 = vsel %vm343, %v4421, 0
    %v4445 = vsel %vm343, %v4426, 0
    %4447 = vmatprep.subr.mxu0 0.0
    %4448 = vmatpush1.msra.mxu0 %v3600
    %4449 = vmatprep.subr.mxu0 0.0
    %4450 = vmatpush1.msra.mxu0 0.0
    %4451 = vmatprep.subr.mxu0 0.0
    %4452 = vmatpush1.msra.mxu0 0.0
    %4453 = vmatprep.subr.mxu0 0.0
    %4454 = vmatpush1.msra.mxu0 0.0
    %4455 = vmatprep.subr.mxu0 0.0
    %4456 = vmatpush1.msra.mxu0 0.0
    %4457 = vmatprep.subr.mxu0 0.0
    %4458 = vmatpush1.msra.mxu0 0.0
    %4459 = vmatprep.subr.mxu0 0.0
    %4460 = vmatpush1.msra.mxu0 0.0
    %4461 = vmatprep.subr.mxu0 0.0
    %4462 = vmatpush1.msra.mxu0 0.0
    %4463 = vmatprep.subr.mxu0 0.0
    %4464 = vmatpush1.msra.mxu0 0.0
    %4465 = vmatprep.subr.mxu0 0.0
    %4466 = vmatpush1.msra.mxu0 0.0
    %4467 = vmatprep.subr.mxu0 0.0
    %4468 = vmatpush1.msra.mxu0 0.0
    %4469 = vmatprep.subr.mxu0 0.0
    %4470 = vmatpush1.msra.mxu0 0.0
    %4471 = vmatprep.subr.mxu0 0.0
    %4472 = vmatpush1.msra.mxu0 0.0
    %4473 = vmatprep.subr.mxu0 0.0
    %4474 = vmatpush1.msra.mxu0 0.0
    %4475 = vmatprep.subr.mxu0 0.0
    %4476 = vmatpush1.msra.mxu0 0.0
    %4477 = vmatprep.subr.mxu0 0.0
    %4478 = vmatpush1.msra.mxu0 0.0
    %4479 = vmatprep.subr.mxu0 0.0
    %4480 = vmatpush1.msra.mxu0 0.0
    %4481 = vmatprep.subr.mxu0 0.0
    %4482 = vmatpush1.msra.mxu0 0.0
    %4483 = vmatprep.subr.mxu0 0.0
    %4484 = vmatpush1.msra.mxu0 0.0
    %4485 = vmatprep.subr.mxu0 0.0
    %4486 = vmatpush1.msra.mxu0 0.0
    %4487 = vmatprep.subr.mxu0 0.0
    %4488 = vmatpush1.msra.mxu0 0.0
    %4489 = vmatprep.subr.mxu0 0.0
    %4490 = vmatpush1.msra.mxu0 0.0
    %4491 = vmatprep.subr.mxu0 0.0
    %4492 = vmatpush1.msra.mxu0 0.0
    %4493 = vmatprep.subr.mxu0 0.0
    %4494 = vmatpush1.msra.mxu0 0.0
    %4495 = vmatprep.subr.mxu0 0.0
    %4496 = vmatpush1.msra.mxu0 0.0
    %4497 = vmatprep.subr.mxu0 0.0
    %4498 = vmatpush1.msra.mxu0 0.0
    %4499 = vmatprep.subr.mxu0 0.0
    %4500 = vmatpush1.msra.mxu0 0.0
    %4501 = vmatprep.subr.mxu0 0.0
    %4502 = vmatpush1.msra.mxu0 0.0
    %4503 = vmatprep.subr.mxu0 0.0
    %4504 = vmatpush1.msra.mxu0 0.0
    %4505 = vmatprep.subr.mxu0 0.0
    %4506 = vmatpush1.msra.mxu0 0.0
    %4507 = vmatprep.subr.mxu0 0.0
    %4508 = vmatpush1.msra.mxu0 0.0
    %4509 = vmatprep.subr.mxu0 0.0
    %4510 = vmatpush1.msra.mxu0 0.0
    %4511 = vmatprep.mubr.f32.mxu0 0.0
    %4512 = vmatmul.mubr.f32.gmra.mrb[0].mxu0 %v4430
    %v4513 = vpop.f32.mrb[0].mxu0
    %v4514 = vadd.f32 0.0, %v4513
    %v4515 = vpop.f32.mrb[0].mxu0
    %4516 = vmatprep.mubr.f32.mxu0 0.0
    %4517 = vmatmul.mubr.f32.gmra.mrb[0].mxu0 %v4433
    %v4518 = vpop.f32.mrb[0].mxu0
    %v4519 = vadd.f32 0.0, %v4518
    %v4520 = vpop.f32.mrb[0].mxu0
    %4521 = vmatprep.mubr.f32.mxu0 0.0
    %4522 = vmatmul.mubr.f32.gmra.mrb[0].mxu0 %v4436
    %v4523 = vpop.f32.mrb[0].mxu0
    %v4524 = vadd.f32 0.0, %v4523
    %v4525 = vpop.f32.mrb[0].mxu0
    %4526 = vmatprep.mubr.f32.mxu0 0.0
    %4527 = vmatmul.mubr.f32.gmra.mrb[0].mxu0 %v4439
    %v4528 = vpop.f32.mrb[0].mxu0
    %v4529 = vadd.f32 0.0, %v4528
    %v4530 = vpop.f32.mrb[0].mxu0
    %4531 = vmatprep.mubr.f32.mxu0 0.0
    %4532 = vmatmul.mubr.f32.gmra.mrb[0].mxu0 %v4442
    %v4533 = vpop.f32.mrb[0].mxu0
    %v4534 = vadd.f32 0.0, %v4533
    %v4535 = vpop.f32.mrb[0].mxu0
    %4536 = vmatprep.mubr.f32.mxu0 0.0
    %4537 = vmatmul.mubr.f32.gmra.mrb[0].mxu0 %v4445
    %v4538 = vpop.f32.mrb[0].mxu0
    %v4539 = vadd.f32 0.0, %v4538
    %v4540 = vpop.f32.mrb[0].mxu0
    %4541 = vdwg.mxu0
    %v4542 = vadd.f32 %v4071, %v4514
    %v4543 = vadd.f32 %v4072, %v4519
    %v4544 = vadd.f32 %v4073, %v4524
    %v4545 = vadd.f32 %v4074, %v4529
    %v4546 = vadd.f32 %v4075, %v4534
    %v4547 = vadd.f32 %v4076, %v4539
    %4548 = vrot.lane.b32.xlu0 %v3570, 112
    %v4549 = vpop.permute.xlu0 %4548
    %4550 = vrot.lane.b32.xlu0 %v3575, 112
    %v4551 = vpop.permute.xlu0 %4550
    %4552 = vrot.lane.b32.xlu0 %v3580, 112
    %v4553 = vpop.permute.xlu0 %4552
    %4554 = vrot.lane.b32.xlu0 %v3585, 112
    %v4555 = vpop.permute.xlu0 %4554
    %4556 = vrot.lane.b32.xlu0 %v3590, 112
    %v4557 = vpop.permute.xlu0 %4556
    %4558 = vrot.lane.b32.xlu0 %v3595, 112
    %v4559 = vpop.permute.xlu0 %4558
    %4560 = vrot.lane.b32.xlu0 %v3570, 80
    %v4561 = vpop.permute.xlu0 %4560
    %4562 = vrot.lane.b32.xlu0 %v3575, 80
    %v4563 = vpop.permute.xlu0 %4562
    %4564 = vrot.lane.b32.xlu0 %v3580, 80
    %v4565 = vpop.permute.xlu0 %4564
    %4566 = vrot.lane.b32.xlu0 %v3585, 80
    %v4567 = vpop.permute.xlu0 %4566
    %4568 = vrot.lane.b32.xlu0 %v3590, 80
    %v4569 = vpop.permute.xlu0 %4568
    %4570 = vrot.lane.b32.xlu0 %v3595, 80
    %v4571 = vpop.permute.xlu0 %4570
    %v4572 = vsel %vm343, %v4549, 0
    %v4574 = vsel %vm343, %v4551, 0
    %v4576 = vsel %vm343, %v4553, 0
    %v4578 = vsel %vm343, %v4555, 0
    %v4580 = vsel %vm343, %v4557, 0
    %v4582 = vsel %vm343, %v4559, 0
    %v4584 = vsel %vm343, %v4561, 0
    %v4586 = vsel %vm343, %v4563, 0
    %v4588 = vsel %vm343, %v4565, 0
    %v4590 = vsel %vm343, %v4567, 0
    %v4592 = vsel %vm343, %v4569, 0
    %v4594 = vsel %vm343, %v4571, 0
    %4596 = vmatprep.subr.mxu0 0.0
    %4597 = vmatpush1.xpose.msra.mxu0 %v4584
    %4598 = vmatprep.subr.mxu0 0.0
    %4599 = vmatpush1.xpose.msra.mxu0 %v4586
    %4600 = vmatprep.subr.mxu0 0.0
    %4601 = vmatpush1.xpose.msra.mxu0 %v4588
    %4602 = vmatprep.subr.mxu0 0.0
    %4603 = vmatpush1.xpose.msra.mxu0 %v4590
    %4604 = vmatprep.subr.mxu0 0.0
    %4605 = vmatpush1.xpose.msra.mxu0 %v4592
    %4606 = vmatprep.subr.mxu0 0.0
    %4607 = vmatpush1.xpose.msra.mxu0 %v4594
    %4608 = vmatprep.subr.mxu0 0.0
    %4609 = vmatpush1.xpose.msra.mxu0 0.0
    %4610 = vmatprep.subr.mxu0 0.0
    %4611 = vmatpush1.xpose.msra.mxu0 0.0
    %4612 = vmatprep.subr.mxu0 0.0
    %4613 = vmatpush1.xpose.msra.mxu0 0.0
    %4614 = vmatprep.subr.mxu0 0.0
    %4615 = vmatpush1.xpose.msra.mxu0 0.0
    %4616 = vmatprep.subr.mxu0 0.0
    %4617 = vmatpush1.xpose.msra.mxu0 0.0
    %4618 = vmatprep.subr.mxu0 0.0
    %4619 = vmatpush1.xpose.msra.mxu0 0.0
    %4620 = vmatprep.subr.mxu0 0.0
    %4621 = vmatpush1.xpose.msra.mxu0 0.0
    %4622 = vmatprep.subr.mxu0 0.0
    %4623 = vmatpush1.xpose.msra.mxu0 0.0
    %4624 = vmatprep.subr.mxu0 0.0
    %4625 = vmatpush1.xpose.msra.mxu0 0.0
    %4626 = vmatprep.subr.mxu0 0.0
    %4627 = vmatpush1.xpose.msra.mxu0 0.0
    %4628 = vmatprep.subr.mxu0 0.0
    %4629 = vmatpush1.xpose.msra.mxu0 0.0
    %4630 = vmatprep.subr.mxu0 0.0
    %4631 = vmatpush1.xpose.msra.mxu0 0.0
    %4632 = vmatprep.subr.mxu0 0.0
    %4633 = vmatpush1.xpose.msra.mxu0 0.0
    %4634 = vmatprep.subr.mxu0 0.0
    %4635 = vmatpush1.xpose.msra.mxu0 0.0
    %4636 = vmatprep.subr.mxu0 0.0
    %4637 = vmatpush1.xpose.msra.mxu0 0.0
    %4638 = vmatprep.subr.mxu0 0.0
    %4639 = vmatpush1.xpose.msra.mxu0 0.0
    %4640 = vmatprep.subr.mxu0 0.0
    %4641 = vmatpush1.xpose.msra.mxu0 0.0
    %4642 = vmatprep.subr.mxu0 0.0
    %4643 = vmatpush1.xpose.msra.mxu0 0.0
    %4644 = vmatprep.subr.mxu0 0.0
    %4645 = vmatpush1.xpose.msra.mxu0 0.0
    %4646 = vmatprep.subr.mxu0 0.0
    %4647 = vmatpush1.xpose.msra.mxu0 0.0
    %4648 = vmatprep.subr.mxu0 0.0
    %4649 = vmatpush1.xpose.msra.mxu0 0.0
    %4650 = vmatprep.subr.mxu0 0.0
    %4651 = vmatpush1.xpose.msra.mxu0 0.0
    %4652 = vmatprep.subr.mxu0 0.0
    %4653 = vmatpush1.xpose.msra.mxu0 0.0
    %4654 = vmatprep.subr.mxu0 0.0
    %4655 = vmatpush1.xpose.msra.mxu0 0.0
    %4656 = vmatprep.subr.mxu0 0.0
    %4657 = vmatpush1.xpose.msra.mxu0 0.0
    %4658 = vmatprep.subr.mxu0 0.0
    %4659 = vmatpush1.xpose.msra.mxu0 0.0
    %4660 = vmatprep.mubr.f32.mxu0 0.0
    %4661 = vmatmul.mubr.f32.gmra.mrb[0].mxu0 %v4572
    %v4662 = vpop.f32.mrb[0].mxu0
    %v4663 = vadd.f32 0.0, %v4662
    %v4664 = vpop.f32.mrb[0].mxu0
    %4665 = vmatprep.mubr.f32.mxu0 0.0
    %4666 = vmatmul.mubr.f32.gmra.mrb[0].mxu0 %v4574
    %v4667 = vpop.f32.mrb[0].mxu0
    %v4668 = vadd.f32 0.0, %v4667
    %v4669 = vpop.f32.mrb[0].mxu0
    %4670 = vmatprep.mubr.f32.mxu0 0.0
    %4671 = vmatmul.mubr.f32.gmra.mrb[0].mxu0 %v4576
    %v4672 = vpop.f32.mrb[0].mxu0
    %v4673 = vadd.f32 0.0, %v4672
    %v4674 = vpop.f32.mrb[0].mxu0
    %4675 = vmatprep.mubr.f32.mxu0 0.0
    %4676 = vmatmul.mubr.f32.gmra.mrb[0].mxu0 %v4578
    %v4677 = vpop.f32.mrb[0].mxu0
    %v4678 = vadd.f32 0.0, %v4677
    %v4679 = vpop.f32.mrb[0].mxu0
    %4680 = vmatprep.mubr.f32.mxu0 0.0
    %4681 = vmatmul.mubr.f32.gmra.mrb[0].mxu0 %v4580
    %v4682 = vpop.f32.mrb[0].mxu0
    %v4683 = vadd.f32 0.0, %v4682
    %v4684 = vpop.f32.mrb[0].mxu0
    %4685 = vmatprep.mubr.f32.mxu0 0.0
    %4686 = vmatmul.mubr.f32.gmra.mrb[0].mxu0 %v4582
    %v4687 = vpop.f32.mrb[0].mxu0
    %v4688 = vadd.f32 0.0, %v4687
    %v4689 = vpop.f32.mrb[0].mxu0
    %4690 = vdwg.mxu0
    %v4691 = vmul.f32 %v4663, 0.35355338
    %v4692 = vmul.f32 %v4668, 0.35355338
    %v4693 = vmul.f32 %v4673, 0.35355338
    %v4694 = vmul.f32 %v4678, 0.35355338
    %v4695 = vmul.f32 %v4683, 0.35355338
    %v4696 = vmul.f32 %v4688, 0.35355338
    %v4697 = vadd.f32 %v4691, %v822
    %v4698 = vadd.f32 %v4692, %v823
    %v4699 = vadd.f32 %v4693, %v824
    %v4700 = vadd.f32 %v4694, %v825
    %v4701 = vadd.f32 %v4695, %v826
    %v4702 = vadd.f32 %v4696, %v827
    %v4703 = vsel %vm1218, %v4697, -inf
    %4704 = vmax.xlane.f32.xlu0 %v4703
    %v4705 = vpop.xlane.xlu0 %4704
    %v4706 = vsel %vm1218, %v4698, -inf
    %4707 = vmax.xlane.f32.xlu0 %v4706
    %v4708 = vpop.xlane.xlu0 %4707
    %v4709 = vsel %vm1218, %v4699, -inf
    %4710 = vmax.xlane.f32.xlu0 %v4709
    %v4711 = vpop.xlane.xlu0 %4710
    %v4712 = vsel %vm1218, %v4700, -inf
    %4713 = vmax.xlane.f32.xlu0 %v4712
    %v4714 = vpop.xlane.xlu0 %4713
    %v4715 = vsel %vm1218, %v4701, -inf
    %4716 = vmax.xlane.f32.xlu0 %v4715
    %v4717 = vpop.xlane.xlu0 %4716
    %v4718 = vsel %vm1218, %v4702, -inf
    %4719 = vmax.xlane.f32.xlu0 %v4718
    %v4720 = vpop.xlane.xlu0 %4719
    %v4721 = vsub.f32 %v4697, %v4705
    %v4722 = vsub.f32 %v4698, %v4708
    %v4723 = vsub.f32 %v4699, %v4711
    %v4724 = vsub.f32 %v4700, %v4714
    %v4725 = vsub.f32 %v4701, %v4717
    %v4726 = vsub.f32 %v4702, %v4720
    %v4727 = vmul.f32 %v4721, 1.442695
    %v4728 = vpow.pop %v4727
    %v4729 = vmul.f32 %v4722, 1.442695
    %v4730 = vpow.pop %v4729
    %v4731 = vmul.f32 %v4723, 1.442695
    %v4732 = vpow.pop %v4731
    %v4733 = vmul.f32 %v4724, 1.442695
    %v4734 = vpow.pop %v4733
    %v4735 = vmul.f32 %v4725, 1.442695
    %v4736 = vpow.pop %v4735
    %v4737 = vmul.f32 %v4726, 1.442695
    %v4738 = vpow.pop %v4737
    %v4739 = vsel %vm1218, %v4728, 0.0
    %4740 = vadd.xlane.f32.xlu0 %v4739
    %v4741 = vpop.xlane.xlu0 %4740
    %v4742 = vsel %vm1218, %v4730, 0.0
    %4743 = vadd.xlane.f32.xlu0 %v4742
    %v4744 = vpop.xlane.xlu0 %4743
    %v4745 = vsel %vm1218, %v4732, 0.0
    %4746 = vadd.xlane.f32.xlu0 %v4745
    %v4747 = vpop.xlane.xlu0 %4746
    %v4748 = vsel %vm1218, %v4734, 0.0
    %4749 = vadd.xlane.f32.xlu0 %v4748
    %v4750 = vpop.xlane.xlu0 %4749
    %v4751 = vsel %vm1218, %v4736, 0.0
    %4752 = vadd.xlane.f32.xlu0 %v4751
    %v4753 = vpop.xlane.xlu0 %4752
    %v4754 = vsel %vm1218, %v4738, 0.0
    %4755 = vadd.xlane.f32.xlu0 %v4754
    %v4756 = vpop.xlane.xlu0 %4755
    %v4757 = vrcp.pop %v4741
    %v4758 = vrcp.pop %v4744
    %v4759 = vrcp.pop %v4747
    %v4760 = vrcp.pop %v4750
    %v4761 = vrcp.pop %v4753
    %v4762 = vrcp.pop %v4756
    %v4763 = vmul.f32 %v4728, %v4757
    %v4764 = vmul.f32 %v4730, %v4758
    %v4765 = vmul.f32 %v4732, %v4759
    %v4766 = vmul.f32 %v4734, %v4760
    %v4767 = vmul.f32 %v4736, %v4761
    %v4768 = vmul.f32 %v4738, %v4762
    %4769 = vrot.lane.b32.xlu0 %v3570, 48
    %v4770 = vpop.permute.xlu0 %4769
    %4771 = vrot.lane.b32.xlu0 %v3575, 48
    %v4772 = vpop.permute.xlu0 %4771
    %4773 = vrot.lane.b32.xlu0 %v3580, 48
    %v4774 = vpop.permute.xlu0 %4773
    %4775 = vrot.lane.b32.xlu0 %v3585, 48
    %v4776 = vpop.permute.xlu0 %4775
    %4777 = vrot.lane.b32.xlu0 %v3590, 48
    %v4778 = vpop.permute.xlu0 %4777
    %4779 = vrot.lane.b32.xlu0 %v3595, 48
    %v4780 = vpop.permute.xlu0 %4779
    %v4788 = vsel %vm1218, %v4763, 0
    %v4791 = vsel %vm1218, %v4764, 0
    %v4794 = vsel %vm1218, %v4765, 0
    %v4797 = vsel %vm1218, %v4766, 0
    %v4800 = vsel %vm1218, %v4767, 0
    %v4803 = vsel %vm1218, %v4768, 0
    %4805 = vmatprep.subr.mxu0 0.0
    %4806 = vmatpush1.msra.mxu0 %v4770
    %4807 = vmatprep.subr.mxu0 0.0
    %4808 = vmatpush1.msra.mxu0 %v4772
    %4809 = vmatprep.subr.mxu0 0.0
    %4810 = vmatpush1.msra.mxu0 %v4774
    %4811 = vmatprep.subr.mxu0 0.0
    %4812 = vmatpush1.msra.mxu0 %v4776
    %4813 = vmatprep.subr.mxu0 0.0
    %4814 = vmatpush1.msra.mxu0 %v4778
    %4815 = vmatprep.subr.mxu0 0.0
    %4816 = vmatpush1.msra.mxu0 %v4780
    %4817 = vmatprep.subr.mxu0 0.0
    %4818 = vmatpush1.msra.mxu0 0.0
    %4819 = vmatprep.subr.mxu0 0.0
    %4820 = vmatpush1.msra.mxu0 0.0
    %4821 = vmatprep.subr.mxu0 0.0
    %4822 = vmatpush1.msra.mxu0 0.0
    %4823 = vmatprep.subr.mxu0 0.0
    %4824 = vmatpush1.msra.mxu0 0.0
    %4825 = vmatprep.subr.mxu0 0.0
    %4826 = vmatpush1.msra.mxu0 0.0
    %4827 = vmatprep.subr.mxu0 0.0
    %4828 = vmatpush1.msra.mxu0 0.0
    %4829 = vmatprep.subr.mxu0 0.0
    %4830 = vmatpush1.msra.mxu0 0.0
    %4831 = vmatprep.subr.mxu0 0.0
    %4832 = vmatpush1.msra.mxu0 0.0
    %4833 = vmatprep.subr.mxu0 0.0
    %4834 = vmatpush1.msra.mxu0 0.0
    %4835 = vmatprep.subr.mxu0 0.0
    %4836 = vmatpush1.msra.mxu0 0.0
    %4837 = vmatprep.subr.mxu0 0.0
    %4838 = vmatpush1.msra.mxu0 0.0
    %4839 = vmatprep.subr.mxu0 0.0
    %4840 = vmatpush1.msra.mxu0 0.0
    %4841 = vmatprep.subr.mxu0 0.0
    %4842 = vmatpush1.msra.mxu0 0.0
    %4843 = vmatprep.subr.mxu0 0.0
    %4844 = vmatpush1.msra.mxu0 0.0
    %4845 = vmatprep.subr.mxu0 0.0
    %4846 = vmatpush1.msra.mxu0 0.0
    %4847 = vmatprep.subr.mxu0 0.0
    %4848 = vmatpush1.msra.mxu0 0.0
    %4849 = vmatprep.subr.mxu0 0.0
    %4850 = vmatpush1.msra.mxu0 0.0
    %4851 = vmatprep.subr.mxu0 0.0
    %4852 = vmatpush1.msra.mxu0 0.0
    %4853 = vmatprep.subr.mxu0 0.0
    %4854 = vmatpush1.msra.mxu0 0.0
    %4855 = vmatprep.subr.mxu0 0.0
    %4856 = vmatpush1.msra.mxu0 0.0
    %4857 = vmatprep.subr.mxu0 0.0
    %4858 = vmatpush1.msra.mxu0 0.0
    %4859 = vmatprep.subr.mxu0 0.0
    %4860 = vmatpush1.msra.mxu0 0.0
    %4861 = vmatprep.subr.mxu0 0.0
    %4862 = vmatpush1.msra.mxu0 0.0
    %4863 = vmatprep.subr.mxu0 0.0
    %4864 = vmatpush1.msra.mxu0 0.0
    %4865 = vmatprep.subr.mxu0 0.0
    %4866 = vmatpush1.msra.mxu0 0.0
    %4867 = vmatprep.subr.mxu0 0.0
    %4868 = vmatpush1.msra.mxu0 0.0
    %4869 = vmatprep.mubr.f32.mxu0 0.0
    %4870 = vmatmul.mubr.f32.gmra.mrb[0].mxu0 %v4788
    %v4871 = vpop.f32.mrb[0].mxu0
    %v4872 = vadd.f32 0.0, %v4871
    %v4873 = vpop.f32.mrb[0].mxu0
    %4874 = vmatprep.mubr.f32.mxu0 0.0
    %4875 = vmatmul.mubr.f32.gmra.mrb[0].mxu0 %v4791
    %v4876 = vpop.f32.mrb[0].mxu0
    %v4877 = vadd.f32 0.0, %v4876
    %v4878 = vpop.f32.mrb[0].mxu0
    %4879 = vmatprep.mubr.f32.mxu0 0.0
    %4880 = vmatmul.mubr.f32.gmra.mrb[0].mxu0 %v4794
    %v4881 = vpop.f32.mrb[0].mxu0
    %v4882 = vadd.f32 0.0, %v4881
    %v4883 = vpop.f32.mrb[0].mxu0
    %4884 = vmatprep.mubr.f32.mxu0 0.0
    %4885 = vmatmul.mubr.f32.gmra.mrb[0].mxu0 %v4797
    %v4886 = vpop.f32.mrb[0].mxu0
    %v4887 = vadd.f32 0.0, %v4886
    %v4888 = vpop.f32.mrb[0].mxu0
    %4889 = vmatprep.mubr.f32.mxu0 0.0
    %4890 = vmatmul.mubr.f32.gmra.mrb[0].mxu0 %v4800
    %v4891 = vpop.f32.mrb[0].mxu0
    %v4892 = vadd.f32 0.0, %v4891
    %v4893 = vpop.f32.mrb[0].mxu0
    %4894 = vmatprep.mubr.f32.mxu0 0.0
    %4895 = vmatmul.mubr.f32.gmra.mrb[0].mxu0 %v4803
    %v4896 = vpop.f32.mrb[0].mxu0
    %v4897 = vadd.f32 0.0, %v4896
    %v4898 = vpop.f32.mrb[0].mxu0
    %4899 = vdwg.mxu0
    %v4901 = vsel %vm343, %v4872, 0
    %v4904 = vsel %vm343, %v4877, 0
    %v4907 = vsel %vm343, %v4882, 0
    %v4910 = vsel %vm343, %v4887, 0
    %v4913 = vsel %vm343, %v4892, 0
    %v4916 = vsel %vm343, %v4897, 0
    %4918 = vmatprep.subr.mxu0 0.0
    %4919 = vmatpush1.msra.mxu0 %v3601
    %4920 = vmatprep.subr.mxu0 0.0
    %4921 = vmatpush1.msra.mxu0 0.0
    %4922 = vmatprep.subr.mxu0 0.0
    %4923 = vmatpush1.msra.mxu0 0.0
    %4924 = vmatprep.subr.mxu0 0.0
    %4925 = vmatpush1.msra.mxu0 0.0
    %4926 = vmatprep.subr.mxu0 0.0
    %4927 = vmatpush1.msra.mxu0 0.0
    %4928 = vmatprep.subr.mxu0 0.0
    %4929 = vmatpush1.msra.mxu0 0.0
    %4930 = vmatprep.subr.mxu0 0.0
    %4931 = vmatpush1.msra.mxu0 0.0
    %4932 = vmatprep.subr.mxu0 0.0
    %4933 = vmatpush1.msra.mxu0 0.0
    %4934 = vmatprep.subr.mxu0 0.0
    %4935 = vmatpush1.msra.mxu0 0.0
    %4936 = vmatprep.subr.mxu0 0.0
    %4937 = vmatpush1.msra.mxu0 0.0
    %4938 = vmatprep.subr.mxu0 0.0
    %4939 = vmatpush1.msra.mxu0 0.0
    %4940 = vmatprep.subr.mxu0 0.0
    %4941 = vmatpush1.msra.mxu0 0.0
    %4942 = vmatprep.subr.mxu0 0.0
    %4943 = vmatpush1.msra.mxu0 0.0
    %4944 = vmatprep.subr.mxu0 0.0
    %4945 = vmatpush1.msra.mxu0 0.0
    %4946 = vmatprep.subr.mxu0 0.0
    %4947 = vmatpush1.msra.mxu0 0.0
    %4948 = vmatprep.subr.mxu0 0.0
    %4949 = vmatpush1.msra.mxu0 0.0
    %4950 = vmatprep.subr.mxu0 0.0
    %4951 = vmatpush1.msra.mxu0 0.0
    %4952 = vmatprep.subr.mxu0 0.0
    %4953 = vmatpush1.msra.mxu0 0.0
    %4954 = vmatprep.subr.mxu0 0.0
    %4955 = vmatpush1.msra.mxu0 0.0
    %4956 = vmatprep.subr.mxu0 0.0
    %4957 = vmatpush1.msra.mxu0 0.0
    %4958 = vmatprep.subr.mxu0 0.0
    %4959 = vmatpush1.msra.mxu0 0.0
    %4960 = vmatprep.subr.mxu0 0.0
    %4961 = vmatpush1.msra.mxu0 0.0
    %4962 = vmatprep.subr.mxu0 0.0
    %4963 = vmatpush1.msra.mxu0 0.0
    %4964 = vmatprep.subr.mxu0 0.0
    %4965 = vmatpush1.msra.mxu0 0.0
    %4966 = vmatprep.subr.mxu0 0.0
    %4967 = vmatpush1.msra.mxu0 0.0
    %4968 = vmatprep.subr.mxu0 0.0
    %4969 = vmatpush1.msra.mxu0 0.0
    %4970 = vmatprep.subr.mxu0 0.0
    %4971 = vmatpush1.msra.mxu0 0.0
    %4972 = vmatprep.subr.mxu0 0.0
    %4973 = vmatpush1.msra.mxu0 0.0
    %4974 = vmatprep.subr.mxu0 0.0
    %4975 = vmatpush1.msra.mxu0 0.0
    %4976 = vmatprep.subr.mxu0 0.0
    %4977 = vmatpush1.msra.mxu0 0.0
    %4978 = vmatprep.subr.mxu0 0.0
    %4979 = vmatpush1.msra.mxu0 0.0
    %4980 = vmatprep.subr.mxu0 0.0
    %4981 = vmatpush1.msra.mxu0 0.0
    %4982 = vmatprep.mubr.f32.mxu0 0.0
    %4983 = vmatmul.mubr.f32.gmra.mrb[0].mxu0 %v4901
    %v4984 = vpop.f32.mrb[0].mxu0
    %v4985 = vadd.f32 0.0, %v4984
    %v4986 = vpop.f32.mrb[0].mxu0
    %4987 = vmatprep.mubr.f32.mxu0 0.0
    %4988 = vmatmul.mubr.f32.gmra.mrb[0].mxu0 %v4904
    %v4989 = vpop.f32.mrb[0].mxu0
    %v4990 = vadd.f32 0.0, %v4989
    %v4991 = vpop.f32.mrb[0].mxu0
    %4992 = vmatprep.mubr.f32.mxu0 0.0
    %4993 = vmatmul.mubr.f32.gmra.mrb[0].mxu0 %v4907
    %v4994 = vpop.f32.mrb[0].mxu0
    %v4995 = vadd.f32 0.0, %v4994
    %v4996 = vpop.f32.mrb[0].mxu0
    %4997 = vmatprep.mubr.f32.mxu0 0.0
    %4998 = vmatmul.mubr.f32.gmra.mrb[0].mxu0 %v4910
    %v4999 = vpop.f32.mrb[0].mxu0
    %v5000 = vadd.f32 0.0, %v4999
    %v5001 = vpop.f32.mrb[0].mxu0
    %5002 = vmatprep.mubr.f32.mxu0 0.0
    %5003 = vmatmul.mubr.f32.gmra.mrb[0].mxu0 %v4913
    %v5004 = vpop.f32.mrb[0].mxu0
    %v5005 = vadd.f32 0.0, %v5004
    %v5006 = vpop.f32.mrb[0].mxu0
    %5007 = vmatprep.mubr.f32.mxu0 0.0
    %5008 = vmatmul.mubr.f32.gmra.mrb[0].mxu0 %v4916
    %v5009 = vpop.f32.mrb[0].mxu0
    %v5010 = vadd.f32 0.0, %v5009
    %v5011 = vpop.f32.mrb[0].mxu0
    %5012 = vdwg.mxu0
    %v5013 = vadd.f32 %v4542, %v4985
    %v5014 = vadd.f32 %v4543, %v4990
    %v5015 = vadd.f32 %v4544, %v4995
    %v5016 = vadd.f32 %v4545, %v5000
    %v5017 = vadd.f32 %v4546, %v5005
    %v5018 = vadd.f32 %v4547, %v5010
    %5019 = vrot.lane.b32.xlu0 %v3570, 104
    %v5020 = vpop.permute.xlu0 %5019
    %5021 = vrot.lane.b32.xlu0 %v3575, 104
    %v5022 = vpop.permute.xlu0 %5021
    %5023 = vrot.lane.b32.xlu0 %v3580, 104
    %v5024 = vpop.permute.xlu0 %5023
    %5025 = vrot.lane.b32.xlu0 %v3585, 104
    %v5026 = vpop.permute.xlu0 %5025
    %5027 = vrot.lane.b32.xlu0 %v3590, 104
    %v5028 = vpop.permute.xlu0 %5027
    %5029 = vrot.lane.b32.xlu0 %v3595, 104
    %v5030 = vpop.permute.xlu0 %5029
    %5031 = vrot.lane.b32.xlu0 %v3570, 72
    %v5032 = vpop.permute.xlu0 %5031
    %5033 = vrot.lane.b32.xlu0 %v3575, 72
    %v5034 = vpop.permute.xlu0 %5033
    %5035 = vrot.lane.b32.xlu0 %v3580, 72
    %v5036 = vpop.permute.xlu0 %5035
    %5037 = vrot.lane.b32.xlu0 %v3585, 72
    %v5038 = vpop.permute.xlu0 %5037
    %5039 = vrot.lane.b32.xlu0 %v3590, 72
    %v5040 = vpop.permute.xlu0 %5039
    %5041 = vrot.lane.b32.xlu0 %v3595, 72
    %v5042 = vpop.permute.xlu0 %5041
    %v5043 = vsel %vm343, %v5020, 0
    %v5045 = vsel %vm343, %v5022, 0
    %v5047 = vsel %vm343, %v5024, 0
    %v5049 = vsel %vm343, %v5026, 0
    %v5051 = vsel %vm343, %v5028, 0
    %v5053 = vsel %vm343, %v5030, 0
    %v5055 = vsel %vm343, %v5032, 0
    %v5057 = vsel %vm343, %v5034, 0
    %v5059 = vsel %vm343, %v5036, 0
    %v5061 = vsel %vm343, %v5038, 0
    %v5063 = vsel %vm343, %v5040, 0
    %v5065 = vsel %vm343, %v5042, 0
    %5067 = vmatprep.subr.mxu0 0.0
    %5068 = vmatpush1.xpose.msra.mxu0 %v5055
    %5069 = vmatprep.subr.mxu0 0.0
    %5070 = vmatpush1.xpose.msra.mxu0 %v5057
    %5071 = vmatprep.subr.mxu0 0.0
    %5072 = vmatpush1.xpose.msra.mxu0 %v5059
    %5073 = vmatprep.subr.mxu0 0.0
    %5074 = vmatpush1.xpose.msra.mxu0 %v5061
    %5075 = vmatprep.subr.mxu0 0.0
    %5076 = vmatpush1.xpose.msra.mxu0 %v5063
    %5077 = vmatprep.subr.mxu0 0.0
    %5078 = vmatpush1.xpose.msra.mxu0 %v5065
    %5079 = vmatprep.subr.mxu0 0.0
    %5080 = vmatpush1.xpose.msra.mxu0 0.0
    %5081 = vmatprep.subr.mxu0 0.0
    %5082 = vmatpush1.xpose.msra.mxu0 0.0
    %5083 = vmatprep.subr.mxu0 0.0
    %5084 = vmatpush1.xpose.msra.mxu0 0.0
    %5085 = vmatprep.subr.mxu0 0.0
    %5086 = vmatpush1.xpose.msra.mxu0 0.0
    %5087 = vmatprep.subr.mxu0 0.0
    %5088 = vmatpush1.xpose.msra.mxu0 0.0
    %5089 = vmatprep.subr.mxu0 0.0
    %5090 = vmatpush1.xpose.msra.mxu0 0.0
    %5091 = vmatprep.subr.mxu0 0.0
    %5092 = vmatpush1.xpose.msra.mxu0 0.0
    %5093 = vmatprep.subr.mxu0 0.0
    %5094 = vmatpush1.xpose.msra.mxu0 0.0
    %5095 = vmatprep.subr.mxu0 0.0
    %5096 = vmatpush1.xpose.msra.mxu0 0.0
    %5097 = vmatprep.subr.mxu0 0.0
    %5098 = vmatpush1.xpose.msra.mxu0 0.0
    %5099 = vmatprep.subr.mxu0 0.0
    %5100 = vmatpush1.xpose.msra.mxu0 0.0
    %5101 = vmatprep.subr.mxu0 0.0
    %5102 = vmatpush1.xpose.msra.mxu0 0.0
    %5103 = vmatprep.subr.mxu0 0.0
    %5104 = vmatpush1.xpose.msra.mxu0 0.0
    %5105 = vmatprep.subr.mxu0 0.0
    %5106 = vmatpush1.xpose.msra.mxu0 0.0
    %5107 = vmatprep.subr.mxu0 0.0
    %5108 = vmatpush1.xpose.msra.mxu0 0.0
    %5109 = vmatprep.subr.mxu0 0.0
    %5110 = vmatpush1.xpose.msra.mxu0 0.0
    %5111 = vmatprep.subr.mxu0 0.0
    %5112 = vmatpush1.xpose.msra.mxu0 0.0
    %5113 = vmatprep.subr.mxu0 0.0
    %5114 = vmatpush1.xpose.msra.mxu0 0.0
    %5115 = vmatprep.subr.mxu0 0.0
    %5116 = vmatpush1.xpose.msra.mxu0 0.0
    %5117 = vmatprep.subr.mxu0 0.0
    %5118 = vmatpush1.xpose.msra.mxu0 0.0
    %5119 = vmatprep.subr.mxu0 0.0
    %5120 = vmatpush1.xpose.msra.mxu0 0.0
    %5121 = vmatprep.subr.mxu0 0.0
    %5122 = vmatpush1.xpose.msra.mxu0 0.0
    %5123 = vmatprep.subr.mxu0 0.0
    %5124 = vmatpush1.xpose.msra.mxu0 0.0
    %5125 = vmatprep.subr.mxu0 0.0
    %5126 = vmatpush1.xpose.msra.mxu0 0.0
    %5127 = vmatprep.subr.mxu0 0.0
    %5128 = vmatpush1.xpose.msra.mxu0 0.0
    %5129 = vmatprep.subr.mxu0 0.0
    %5130 = vmatpush1.xpose.msra.mxu0 0.0
    %5131 = vmatprep.mubr.f32.mxu0 0.0
    %5132 = vmatmul.mubr.f32.gmra.mrb[0].mxu0 %v5043
    %v5133 = vpop.f32.mrb[0].mxu0
    %v5134 = vadd.f32 0.0, %v5133
    %v5135 = vpop.f32.mrb[0].mxu0
    %5136 = vmatprep.mubr.f32.mxu0 0.0
    %5137 = vmatmul.mubr.f32.gmra.mrb[0].mxu0 %v5045
    %v5138 = vpop.f32.mrb[0].mxu0
    %v5139 = vadd.f32 0.0, %v5138
    %v5140 = vpop.f32.mrb[0].mxu0
    %5141 = vmatprep.mubr.f32.mxu0 0.0
    %5142 = vmatmul.mubr.f32.gmra.mrb[0].mxu0 %v5047
    %v5143 = vpop.f32.mrb[0].mxu0
    %v5144 = vadd.f32 0.0, %v5143
    %v5145 = vpop.f32.mrb[0].mxu0
    %5146 = vmatprep.mubr.f32.mxu0 0.0
    %5147 = vmatmul.mubr.f32.gmra.mrb[0].mxu0 %v5049
    %v5148 = vpop.f32.mrb[0].mxu0
    %v5149 = vadd.f32 0.0, %v5148
    %v5150 = vpop.f32.mrb[0].mxu0
    %5151 = vmatprep.mubr.f32.mxu0 0.0
    %5152 = vmatmul.mubr.f32.gmra.mrb[0].mxu0 %v5051
    %v5153 = vpop.f32.mrb[0].mxu0
    %v5154 = vadd.f32 0.0, %v5153
    %v5155 = vpop.f32.mrb[0].mxu0
    %5156 = vmatprep.mubr.f32.mxu0 0.0
    %5157 = vmatmul.mubr.f32.gmra.mrb[0].mxu0 %v5053
    %v5158 = vpop.f32.mrb[0].mxu0
    %v5159 = vadd.f32 0.0, %v5158
    %v5160 = vpop.f32.mrb[0].mxu0
    %5161 = vdwg.mxu0
    %v5162 = vmul.f32 %v5134, 0.35355338
    %v5163 = vmul.f32 %v5139, 0.35355338
    %v5164 = vmul.f32 %v5144, 0.35355338
    %v5165 = vmul.f32 %v5149, 0.35355338
    %v5166 = vmul.f32 %v5154, 0.35355338
    %v5167 = vmul.f32 %v5159, 0.35355338
    %v5168 = vadd.f32 %v5162, %v822
    %v5169 = vadd.f32 %v5163, %v823
    %v5170 = vadd.f32 %v5164, %v824
    %v5171 = vadd.f32 %v5165, %v825
    %v5172 = vadd.f32 %v5166, %v826
    %v5173 = vadd.f32 %v5167, %v827
    %v5174 = vsel %vm1218, %v5168, -inf
    %5175 = vmax.xlane.f32.xlu0 %v5174
    %v5176 = vpop.xlane.xlu0 %5175
    %v5177 = vsel %vm1218, %v5169, -inf
    %5178 = vmax.xlane.f32.xlu0 %v5177
    %v5179 = vpop.xlane.xlu0 %5178
    %v5180 = vsel %vm1218, %v5170, -inf
    %5181 = vmax.xlane.f32.xlu0 %v5180
    %v5182 = vpop.xlane.xlu0 %5181
    %v5183 = vsel %vm1218, %v5171, -inf
    %5184 = vmax.xlane.f32.xlu0 %v5183
    %v5185 = vpop.xlane.xlu0 %5184
    %v5186 = vsel %vm1218, %v5172, -inf
    %5187 = vmax.xlane.f32.xlu0 %v5186
    %v5188 = vpop.xlane.xlu0 %5187
    %v5189 = vsel %vm1218, %v5173, -inf
    %5190 = vmax.xlane.f32.xlu0 %v5189
    %v5191 = vpop.xlane.xlu0 %5190
    %v5192 = vsub.f32 %v5168, %v5176
    %v5193 = vsub.f32 %v5169, %v5179
    %v5194 = vsub.f32 %v5170, %v5182
    %v5195 = vsub.f32 %v5171, %v5185
    %v5196 = vsub.f32 %v5172, %v5188
    %v5197 = vsub.f32 %v5173, %v5191
    %v5198 = vmul.f32 %v5192, 1.442695
    %v5199 = vpow.pop %v5198
    %v5200 = vmul.f32 %v5193, 1.442695
    %v5201 = vpow.pop %v5200
    %v5202 = vmul.f32 %v5194, 1.442695
    %v5203 = vpow.pop %v5202
    %v5204 = vmul.f32 %v5195, 1.442695
    %v5205 = vpow.pop %v5204
    %v5206 = vmul.f32 %v5196, 1.442695
    %v5207 = vpow.pop %v5206
    %v5208 = vmul.f32 %v5197, 1.442695
    %v5209 = vpow.pop %v5208
    %v5210 = vsel %vm1218, %v5199, 0.0
    %5211 = vadd.xlane.f32.xlu0 %v5210
    %v5212 = vpop.xlane.xlu0 %5211
    %v5213 = vsel %vm1218, %v5201, 0.0
    %5214 = vadd.xlane.f32.xlu0 %v5213
    %v5215 = vpop.xlane.xlu0 %5214
    %v5216 = vsel %vm1218, %v5203, 0.0
    %5217 = vadd.xlane.f32.xlu0 %v5216
    %v5218 = vpop.xlane.xlu0 %5217
    %v5219 = vsel %vm1218, %v5205, 0.0
    %5220 = vadd.xlane.f32.xlu0 %v5219
    %v5221 = vpop.xlane.xlu0 %5220
    %v5222 = vsel %vm1218, %v5207, 0.0
    %5223 = vadd.xlane.f32.xlu0 %v5222
    %v5224 = vpop.xlane.xlu0 %5223
    %v5225 = vsel %vm1218, %v5209, 0.0
    %5226 = vadd.xlane.f32.xlu0 %v5225
    %v5227 = vpop.xlane.xlu0 %5226
    %v5228 = vrcp.pop %v5212
    %v5229 = vrcp.pop %v5215
    %v5230 = vrcp.pop %v5218
    %v5231 = vrcp.pop %v5221
    %v5232 = vrcp.pop %v5224
    %v5233 = vrcp.pop %v5227
    %v5234 = vmul.f32 %v5199, %v5228
    %v5235 = vmul.f32 %v5201, %v5229
    %v5236 = vmul.f32 %v5203, %v5230
    %v5237 = vmul.f32 %v5205, %v5231
    %v5238 = vmul.f32 %v5207, %v5232
    %v5239 = vmul.f32 %v5209, %v5233
    %5240 = vrot.lane.b32.xlu0 %v3570, 40
    %v5241 = vpop.permute.xlu0 %5240
    %5242 = vrot.lane.b32.xlu0 %v3575, 40
    %v5243 = vpop.permute.xlu0 %5242
    %5244 = vrot.lane.b32.xlu0 %v3580, 40
    %v5245 = vpop.permute.xlu0 %5244
    %5246 = vrot.lane.b32.xlu0 %v3585, 40
    %v5247 = vpop.permute.xlu0 %5246
    %5248 = vrot.lane.b32.xlu0 %v3590, 40
    %v5249 = vpop.permute.xlu0 %5248
    %5250 = vrot.lane.b32.xlu0 %v3595, 40
    %v5251 = vpop.permute.xlu0 %5250
    %v5259 = vsel %vm1218, %v5234, 0
    %v5262 = vsel %vm1218, %v5235, 0
    %v5265 = vsel %vm1218, %v5236, 0
    %v5268 = vsel %vm1218, %v5237, 0
    %v5271 = vsel %vm1218, %v5238, 0
    %v5274 = vsel %vm1218, %v5239, 0
    %5276 = vmatprep.subr.mxu0 0.0
    %5277 = vmatpush1.msra.mxu0 %v5241
    %5278 = vmatprep.subr.mxu0 0.0
    %5279 = vmatpush1.msra.mxu0 %v5243
    %5280 = vmatprep.subr.mxu0 0.0
    %5281 = vmatpush1.msra.mxu0 %v5245
    %5282 = vmatprep.subr.mxu0 0.0
    %5283 = vmatpush1.msra.mxu0 %v5247
    %5284 = vmatprep.subr.mxu0 0.0
    %5285 = vmatpush1.msra.mxu0 %v5249
    %5286 = vmatprep.subr.mxu0 0.0
    %5287 = vmatpush1.msra.mxu0 %v5251
    %5288 = vmatprep.subr.mxu0 0.0
    %5289 = vmatpush1.msra.mxu0 0.0
    %5290 = vmatprep.subr.mxu0 0.0
    %5291 = vmatpush1.msra.mxu0 0.0
    %5292 = vmatprep.subr.mxu0 0.0
    %5293 = vmatpush1.msra.mxu0 0.0
    %5294 = vmatprep.subr.mxu0 0.0
    %5295 = vmatpush1.msra.mxu0 0.0
    %5296 = vmatprep.subr.mxu0 0.0
    %5297 = vmatpush1.msra.mxu0 0.0
    %5298 = vmatprep.subr.mxu0 0.0
    %5299 = vmatpush1.msra.mxu0 0.0
    %5300 = vmatprep.subr.mxu0 0.0
    %5301 = vmatpush1.msra.mxu0 0.0
    %5302 = vmatprep.subr.mxu0 0.0
    %5303 = vmatpush1.msra.mxu0 0.0
    %5304 = vmatprep.subr.mxu0 0.0
    %5305 = vmatpush1.msra.mxu0 0.0
    %5306 = vmatprep.subr.mxu0 0.0
    %5307 = vmatpush1.msra.mxu0 0.0
    %5308 = vmatprep.subr.mxu0 0.0
    %5309 = vmatpush1.msra.mxu0 0.0
    %5310 = vmatprep.subr.mxu0 0.0
    %5311 = vmatpush1.msra.mxu0 0.0
    %5312 = vmatprep.subr.mxu0 0.0
    %5313 = vmatpush1.msra.mxu0 0.0
    %5314 = vmatprep.subr.mxu0 0.0
    %5315 = vmatpush1.msra.mxu0 0.0
    %5316 = vmatprep.subr.mxu0 0.0
    %5317 = vmatpush1.msra.mxu0 0.0
    %5318 = vmatprep.subr.mxu0 0.0
    %5319 = vmatpush1.msra.mxu0 0.0
    %5320 = vmatprep.subr.mxu0 0.0
    %5321 = vmatpush1.msra.mxu0 0.0
    %5322 = vmatprep.subr.mxu0 0.0
    %5323 = vmatpush1.msra.mxu0 0.0
    %5324 = vmatprep.subr.mxu0 0.0
    %5325 = vmatpush1.msra.mxu0 0.0
    %5326 = vmatprep.subr.mxu0 0.0
    %5327 = vmatpush1.msra.mxu0 0.0
    %5328 = vmatprep.subr.mxu0 0.0
    %5329 = vmatpush1.msra.mxu0 0.0
    %5330 = vmatprep.subr.mxu0 0.0
    %5331 = vmatpush1.msra.mxu0 0.0
    %5332 = vmatprep.subr.mxu0 0.0
    %5333 = vmatpush1.msra.mxu0 0.0
    %5334 = vmatprep.subr.mxu0 0.0
    %5335 = vmatpush1.msra.mxu0 0.0
    %5336 = vmatprep.subr.mxu0 0.0
    %5337 = vmatpush1.msra.mxu0 0.0
    %5338 = vmatprep.subr.mxu0 0.0
    %5339 = vmatpush1.msra.mxu0 0.0
    %5340 = vmatprep.mubr.f32.mxu0 0.0
    %5341 = vmatmul.mubr.f32.gmra.mrb[0].mxu0 %v5259
    %v5342 = vpop.f32.mrb[0].mxu0
    %v5343 = vadd.f32 0.0, %v5342
    %v5344 = vpop.f32.mrb[0].mxu0
    %5345 = vmatprep.mubr.f32.mxu0 0.0
    %5346 = vmatmul.mubr.f32.gmra.mrb[0].mxu0 %v5262
    %v5347 = vpop.f32.mrb[0].mxu0
    %v5348 = vadd.f32 0.0, %v5347
    %v5349 = vpop.f32.mrb[0].mxu0
    %5350 = vmatprep.mubr.f32.mxu0 0.0
    %5351 = vmatmul.mubr.f32.gmra.mrb[0].mxu0 %v5265
    %v5352 = vpop.f32.mrb[0].mxu0
    %v5353 = vadd.f32 0.0, %v5352
    %v5354 = vpop.f32.mrb[0].mxu0
    %5355 = vmatprep.mubr.f32.mxu0 0.0
    %5356 = vmatmul.mubr.f32.gmra.mrb[0].mxu0 %v5268
    %v5357 = vpop.f32.mrb[0].mxu0
    %v5358 = vadd.f32 0.0, %v5357
    %v5359 = vpop.f32.mrb[0].mxu0
    %5360 = vmatprep.mubr.f32.mxu0 0.0
    %5361 = vmatmul.mubr.f32.gmra.mrb[0].mxu0 %v5271
    %v5362 = vpop.f32.mrb[0].mxu0
    %v5363 = vadd.f32 0.0, %v5362
    %v5364 = vpop.f32.mrb[0].mxu0
    %5365 = vmatprep.mubr.f32.mxu0 0.0
    %5366 = vmatmul.mubr.f32.gmra.mrb[0].mxu0 %v5274
    %v5367 = vpop.f32.mrb[0].mxu0
    %v5368 = vadd.f32 0.0, %v5367
    %v5369 = vpop.f32.mrb[0].mxu0
    %5370 = vdwg.mxu0
    %v5372 = vsel %vm343, %v5343, 0
    %v5375 = vsel %vm343, %v5348, 0
    %v5378 = vsel %vm343, %v5353, 0
    %v5381 = vsel %vm343, %v5358, 0
    %v5384 = vsel %vm343, %v5363, 0
    %v5387 = vsel %vm343, %v5368, 0
    %5389 = vmatprep.subr.mxu0 0.0
    %5390 = vmatpush1.msra.mxu0 %v3602
    %5391 = vmatprep.subr.mxu0 0.0
    %5392 = vmatpush1.msra.mxu0 0.0
    %5393 = vmatprep.subr.mxu0 0.0
    %5394 = vmatpush1.msra.mxu0 0.0
    %5395 = vmatprep.subr.mxu0 0.0
    %5396 = vmatpush1.msra.mxu0 0.0
    %5397 = vmatprep.subr.mxu0 0.0
    %5398 = vmatpush1.msra.mxu0 0.0
    %5399 = vmatprep.subr.mxu0 0.0
    %5400 = vmatpush1.msra.mxu0 0.0
    %5401 = vmatprep.subr.mxu0 0.0
    %5402 = vmatpush1.msra.mxu0 0.0
    %5403 = vmatprep.subr.mxu0 0.0
    %5404 = vmatpush1.msra.mxu0 0.0
    %5405 = vmatprep.subr.mxu0 0.0
    %5406 = vmatpush1.msra.mxu0 0.0
    %5407 = vmatprep.subr.mxu0 0.0
    %5408 = vmatpush1.msra.mxu0 0.0
    %5409 = vmatprep.subr.mxu0 0.0
    %5410 = vmatpush1.msra.mxu0 0.0
    %5411 = vmatprep.subr.mxu0 0.0
    %5412 = vmatpush1.msra.mxu0 0.0
    %5413 = vmatprep.subr.mxu0 0.0
    %5414 = vmatpush1.msra.mxu0 0.0
    %5415 = vmatprep.subr.mxu0 0.0
    %5416 = vmatpush1.msra.mxu0 0.0
    %5417 = vmatprep.subr.mxu0 0.0
    %5418 = vmatpush1.msra.mxu0 0.0
    %5419 = vmatprep.subr.mxu0 0.0
    %5420 = vmatpush1.msra.mxu0 0.0
    %5421 = vmatprep.subr.mxu0 0.0
    %5422 = vmatpush1.msra.mxu0 0.0
    %5423 = vmatprep.subr.mxu0 0.0
    %5424 = vmatpush1.msra.mxu0 0.0
    %5425 = vmatprep.subr.mxu0 0.0
    %5426 = vmatpush1.msra.mxu0 0.0
    %5427 = vmatprep.subr.mxu0 0.0
    %5428 = vmatpush1.msra.mxu0 0.0
    %5429 = vmatprep.subr.mxu0 0.0
    %5430 = vmatpush1.msra.mxu0 0.0
    %5431 = vmatprep.subr.mxu0 0.0
    %5432 = vmatpush1.msra.mxu0 0.0
    %5433 = vmatprep.subr.mxu0 0.0
    %5434 = vmatpush1.msra.mxu0 0.0
    %5435 = vmatprep.subr.mxu0 0.0
    %5436 = vmatpush1.msra.mxu0 0.0
    %5437 = vmatprep.subr.mxu0 0.0
    %5438 = vmatpush1.msra.mxu0 0.0
    %5439 = vmatprep.subr.mxu0 0.0
    %5440 = vmatpush1.msra.mxu0 0.0
    %5441 = vmatprep.subr.mxu0 0.0
    %5442 = vmatpush1.msra.mxu0 0.0
    %5443 = vmatprep.subr.mxu0 0.0
    %5444 = vmatpush1.msra.mxu0 0.0
    %5445 = vmatprep.subr.mxu0 0.0
    %5446 = vmatpush1.msra.mxu0 0.0
    %5447 = vmatprep.subr.mxu0 0.0
    %5448 = vmatpush1.msra.mxu0 0.0
    %5449 = vmatprep.subr.mxu0 0.0
    %5450 = vmatpush1.msra.mxu0 0.0
    %5451 = vmatprep.subr.mxu0 0.0
    %5452 = vmatpush1.msra.mxu0 0.0
    %5453 = vmatprep.mubr.f32.mxu0 0.0
    %5454 = vmatmul.mubr.f32.gmra.mrb[0].mxu0 %v5372
    %v5455 = vpop.f32.mrb[0].mxu0
    %v5456 = vadd.f32 0.0, %v5455
    %v5457 = vpop.f32.mrb[0].mxu0
    %5458 = vmatprep.mubr.f32.mxu0 0.0
    %5459 = vmatmul.mubr.f32.gmra.mrb[0].mxu0 %v5375
    %v5460 = vpop.f32.mrb[0].mxu0
    %v5461 = vadd.f32 0.0, %v5460
    %v5462 = vpop.f32.mrb[0].mxu0
    %5463 = vmatprep.mubr.f32.mxu0 0.0
    %5464 = vmatmul.mubr.f32.gmra.mrb[0].mxu0 %v5378
    %v5465 = vpop.f32.mrb[0].mxu0
    %v5466 = vadd.f32 0.0, %v5465
    %v5467 = vpop.f32.mrb[0].mxu0
    %5468 = vmatprep.mubr.f32.mxu0 0.0
    %5469 = vmatmul.mubr.f32.gmra.mrb[0].mxu0 %v5381
    %v5470 = vpop.f32.mrb[0].mxu0
    %v5471 = vadd.f32 0.0, %v5470
    %v5472 = vpop.f32.mrb[0].mxu0
    %5473 = vmatprep.mubr.f32.mxu0 0.0
    %5474 = vmatmul.mubr.f32.gmra.mrb[0].mxu0 %v5384
    %v5475 = vpop.f32.mrb[0].mxu0
    %v5476 = vadd.f32 0.0, %v5475
    %v5477 = vpop.f32.mrb[0].mxu0
    %5478 = vmatprep.mubr.f32.mxu0 0.0
    %5479 = vmatmul.mubr.f32.gmra.mrb[0].mxu0 %v5387
    %v5480 = vpop.f32.mrb[0].mxu0
    %v5481 = vadd.f32 0.0, %v5480
    %v5482 = vpop.f32.mrb[0].mxu0
    %5483 = vdwg.mxu0
    %v5484 = vadd.f32 %v5013, %v5456
    %v5485 = vadd.f32 %v5014, %v5461
    %v5486 = vadd.f32 %v5015, %v5466
    %v5487 = vadd.f32 %v5016, %v5471
    %v5488 = vadd.f32 %v5017, %v5476
    %v5489 = vadd.f32 %v5018, %v5481
    %v5490 = vadd.f32 %v3360, %v5484
    %v5491 = vadd.f32 %v3361, %v5485
    %v5492 = vadd.f32 %v3362, %v5486
    %v5493 = vadd.f32 %v3363, %v5487
    %v5494 = vadd.f32 %v3364, %v5488
    %v5495 = vadd.f32 %v3365, %v5489
    %s5496 = scalar_lea.vmem %s43, 1
    %v5497 = vld [vmem:[%s5496] sm:$0x1]
    %s5498 = scalar_lea.vmem %s45, 1
    %v5499 = vld [vmem:[%s5498] sm:$0x1]
    %v5500 = vsel %vm246, %v5490, 0.0
    %5501 = vadd.xlane.f32.xlu0 %v5500
    %v5502 = vpop.xlane.xlu0 %5501
    %v5503 = vsel %vm246, %v5491, 0.0
    %5504 = vadd.xlane.f32.xlu0 %v5503
    %v5505 = vpop.xlane.xlu0 %5504
    %v5506 = vsel %vm246, %v5492, 0.0
    %5507 = vadd.xlane.f32.xlu0 %v5506
    %v5508 = vpop.xlane.xlu0 %5507
    %v5509 = vsel %vm246, %v5493, 0.0
    %5510 = vadd.xlane.f32.xlu0 %v5509
    %v5511 = vpop.xlane.xlu0 %5510
    %v5512 = vsel %vm246, %v5494, 0.0
    %5513 = vadd.xlane.f32.xlu0 %v5512
    %v5514 = vpop.xlane.xlu0 %5513
    %v5515 = vsel %vm246, %v5495, 0.0
    %5516 = vadd.xlane.f32.xlu0 %v5515
    %v5517 = vpop.xlane.xlu0 %5516
    %v5518 = vmul.f32 %v5502, %v848
    %v5519 = vmul.f32 %v5505, %v848
    %v5520 = vmul.f32 %v5508, %v848
    %v5521 = vmul.f32 %v5511, %v848
    %v5522 = vmul.f32 %v5514, %v848
    %v5523 = vmul.f32 %v5517, %v848
    %v5524 = vsub.f32 %v5490, %v5518
    %v5525 = vsub.f32 %v5491, %v5519
    %v5526 = vsub.f32 %v5492, %v5520
    %v5527 = vsub.f32 %v5493, %v5521
    %v5528 = vsub.f32 %v5494, %v5522
    %v5529 = vsub.f32 %v5495, %v5523
    %v5530 = vmul.f32 %v5524, %v5524
    %v5531 = vmul.f32 %v5525, %v5525
    %v5532 = vmul.f32 %v5526, %v5526
    %v5533 = vmul.f32 %v5527, %v5527
    %v5534 = vmul.f32 %v5528, %v5528
    %v5535 = vmul.f32 %v5529, %v5529
    %v5536 = vsel %vm246, %v5530, 0.0
    %5537 = vadd.xlane.f32.xlu0 %v5536
    %v5538 = vpop.xlane.xlu0 %5537
    %v5539 = vsel %vm246, %v5531, 0.0
    %5540 = vadd.xlane.f32.xlu0 %v5539
    %v5541 = vpop.xlane.xlu0 %5540
    %v5542 = vsel %vm246, %v5532, 0.0
    %5543 = vadd.xlane.f32.xlu0 %v5542
    %v5544 = vpop.xlane.xlu0 %5543
    %v5545 = vsel %vm246, %v5533, 0.0
    %5546 = vadd.xlane.f32.xlu0 %v5545
    %v5547 = vpop.xlane.xlu0 %5546
    %v5548 = vsel %vm246, %v5534, 0.0
    %5549 = vadd.xlane.f32.xlu0 %v5548
    %v5550 = vpop.xlane.xlu0 %5549
    %v5551 = vsel %vm246, %v5535, 0.0
    %5552 = vadd.xlane.f32.xlu0 %v5551
    %v5553 = vpop.xlane.xlu0 %5552
    %v5554 = vmul.f32 %v5538, %v848
    %v5555 = vmul.f32 %v5541, %v848
    %v5556 = vmul.f32 %v5544, %v848
    %v5557 = vmul.f32 %v5547, %v848
    %v5558 = vmul.f32 %v5550, %v848
    %v5559 = vmul.f32 %v5553, %v848
    %v5560 = vadd.f32 %v5554, 0.003
    %v5561 = vadd.f32 %v5555, 0.003
    %v5562 = vadd.f32 %v5556, 0.003
    %v5563 = vadd.f32 %v5557, 0.003
    %v5564 = vadd.f32 %v5558, 0.003
    %v5565 = vadd.f32 %v5559, 0.003
    %v5566 = vrsqrt.pop %v5560
    %v5567 = vrsqrt.pop %v5561
    %v5568 = vrsqrt.pop %v5562
    %v5569 = vrsqrt.pop %v5563
    %v5570 = vrsqrt.pop %v5564
    %v5571 = vrsqrt.pop %v5565
    %v5572 = vmul.f32 %v5524, %v5566
    %v5573 = vmul.f32 %v5525, %v5567
    %v5574 = vmul.f32 %v5526, %v5568
    %v5575 = vmul.f32 %v5527, %v5569
    %v5576 = vmul.f32 %v5528, %v5570
    %v5577 = vmul.f32 %v5529, %v5571
    %v5579 = vlaneseq
    %v5580 = vshrl.u32 %v5579, 7
    %v5581 = vsub.s32 0, %v5580
    %v5582 = vrot.slane %v5497, %v5581
    %v5584 = vmul.f32 %v5572, %v5582
    %v5585 = vmul.f32 %v5573, %v5582
    %v5586 = vmul.f32 %v5574, %v5582
    %v5587 = vmul.f32 %v5575, %v5582
    %v5588 = vmul.f32 %v5576, %v5582
    %v5589 = vmul.f32 %v5577, %v5582
    %v5591 = vlaneseq
    %v5592 = vshrl.u32 %v5591, 7
    %v5593 = vsub.s32 0, %v5592
    %v5594 = vrot.slane %v5499, %v5593
    %v5596 = vadd.f32 %v5584, %v5594
    %v5597 = vadd.f32 %v5585, %v5594
    %v5598 = vadd.f32 %v5586, %v5594
    %v5599 = vadd.f32 %v5587, %v5594
    %v5600 = vadd.f32 %v5588, %v5594
    %v5601 = vadd.f32 %v5589, %v5594
    %s5602 = scalar_lea.vmem %s47, 32
    %v5603 = vld [vmem:[%s5602] sm:$0xff]
    %v5604 = vld [vmem:[%s5602 + $0x8] sm:$0xff]
    %v5605 = vld [vmem:[%s5602 + $0x10] sm:$0xff]
    %v5606 = vld [vmem:[%s5602 + $0x18] sm:$0xff]
    %s5607 = scalar_lea.vmem %s49, 1
    %v5608 = vld [vmem:[%s5607] sm:$0x1]
    %v5610 = vlaneseq
    %v5611 = vshrl.u32 %v5610, 7
    %v5612 = vsub.s32 0, %v5611
    %v5613 = vrot.slane %v5608, %v5612
    %v5616 = vsel %vm246, %v5596, 0
    %v5619 = vsel %vm246, %v5597, 0
    %v5622 = vsel %vm246, %v5598, 0
    %v5625 = vsel %vm246, %v5599, 0
    %v5628 = vsel %vm246, %v5600, 0
    %v5631 = vsel %vm246, %v5601, 0
    %5633 = vmatprep.subr.mxu0 0.0
    %5634 = vmatpush1.msra.mxu0 %v5603
    %5635 = vmatprep.subr.mxu0 0.0
    %5636 = vmatpush1.msra.mxu0 %v5604
    %5637 = vmatprep.subr.mxu0 0.0
    %5638 = vmatpush1.msra.mxu0 %v5605
    %5639 = vmatprep.subr.mxu0 0.0
    %5640 = vmatpush1.msra.mxu0 %v5606
    %5641 = vmatprep.subr.mxu0 0.0
    %5642 = vmatpush1.msra.mxu0 0.0
    %5643 = vmatprep.subr.mxu0 0.0
    %5644 = vmatpush1.msra.mxu0 0.0
    %5645 = vmatprep.subr.mxu0 0.0
    %5646 = vmatpush1.msra.mxu0 0.0
    %5647 = vmatprep.subr.mxu0 0.0
    %5648 = vmatpush1.msra.mxu0 0.0
    %5649 = vmatprep.subr.mxu0 0.0
    %5650 = vmatpush1.msra.mxu0 0.0
    %5651 = vmatprep.subr.mxu0 0.0
    %5652 = vmatpush1.msra.mxu0 0.0
    %5653 = vmatprep.subr.mxu0 0.0
    %5654 = vmatpush1.msra.mxu0 0.0
    %5655 = vmatprep.subr.mxu0 0.0
    %5656 = vmatpush1.msra.mxu0 0.0
    %5657 = vmatprep.subr.mxu0 0.0
    %5658 = vmatpush1.msra.mxu0 0.0
    %5659 = vmatprep.subr.mxu0 0.0
    %5660 = vmatpush1.msra.mxu0 0.0
    %5661 = vmatprep.subr.mxu0 0.0
    %5662 = vmatpush1.msra.mxu0 0.0
    %5663 = vmatprep.subr.mxu0 0.0
    %5664 = vmatpush1.msra.mxu0 0.0
    %5665 = vmatprep.subr.mxu0 0.0
    %5666 = vmatpush1.msra.mxu0 0.0
    %5667 = vmatprep.subr.mxu0 0.0
    %5668 = vmatpush1.msra.mxu0 0.0
    %5669 = vmatprep.subr.mxu0 0.0
    %5670 = vmatpush1.msra.mxu0 0.0
    %5671 = vmatprep.subr.mxu0 0.0
    %5672 = vmatpush1.msra.mxu0 0.0
    %5673 = vmatprep.subr.mxu0 0.0
    %5674 = vmatpush1.msra.mxu0 0.0
    %5675 = vmatprep.subr.mxu0 0.0
    %5676 = vmatpush1.msra.mxu0 0.0
    %5677 = vmatprep.subr.mxu0 0.0
    %5678 = vmatpush1.msra.mxu0 0.0
    %5679 = vmatprep.subr.mxu0 0.0
    %5680 = vmatpush1.msra.mxu0 0.0
    %5681 = vmatprep.subr.mxu0 0.0
    %5682 = vmatpush1.msra.mxu0 0.0
    %5683 = vmatprep.subr.mxu0 0.0
    %5684 = vmatpush1.msra.mxu0 0.0
    %5685 = vmatprep.subr.mxu0 0.0
    %5686 = vmatpush1.msra.mxu0 0.0
    %5687 = vmatprep.subr.mxu0 0.0
    %5688 = vmatpush1.msra.mxu0 0.0
    %5689 = vmatprep.subr.mxu0 0.0
    %5690 = vmatpush1.msra.mxu0 0.0
    %5691 = vmatprep.subr.mxu0 0.0
    %5692 = vmatpush1.msra.mxu0 0.0
    %5693 = vmatprep.subr.mxu0 0.0
    %5694 = vmatpush1.msra.mxu0 0.0
    %5695 = vmatprep.subr.mxu0 0.0
    %5696 = vmatpush1.msra.mxu0 0.0
    %5697 = vmatprep.mubr.f32.mxu0 0.0
    %5698 = vmatmul.mubr.f32.gmra.mrb[0].mxu0 %v5616
    %v5699 = vpop.f32.mrb[0].mxu0
    %v5700 = vadd.f32 %v5613, %v5699
    %v5701 = vpop.f32.mrb[0].mxu0
    %5702 = vmatprep.mubr.f32.mxu0 0.0
    %5703 = vmatmul.mubr.f32.gmra.mrb[0].mxu0 %v5619
    %v5704 = vpop.f32.mrb[0].mxu0
    %v5705 = vadd.f32 %v5613, %v5704
    %v5706 = vpop.f32.mrb[0].mxu0
    %5707 = vmatprep.mubr.f32.mxu0 0.0
    %5708 = vmatmul.mubr.f32.gmra.mrb[0].mxu0 %v5622
    %v5709 = vpop.f32.mrb[0].mxu0
    %v5710 = vadd.f32 %v5613, %v5709
    %v5711 = vpop.f32.mrb[0].mxu0
    %5712 = vmatprep.mubr.f32.mxu0 0.0
    %5713 = vmatmul.mubr.f32.gmra.mrb[0].mxu0 %v5625
    %v5714 = vpop.f32.mrb[0].mxu0
    %v5715 = vadd.f32 %v5613, %v5714
    %v5716 = vpop.f32.mrb[0].mxu0
    %5717 = vmatprep.mubr.f32.mxu0 0.0
    %5718 = vmatmul.mubr.f32.gmra.mrb[0].mxu0 %v5628
    %v5719 = vpop.f32.mrb[0].mxu0
    %v5720 = vadd.f32 %v5613, %v5719
    %v5721 = vpop.f32.mrb[0].mxu0
    %5722 = vmatprep.mubr.f32.mxu0 0.0
    %5723 = vmatmul.mubr.f32.gmra.mrb[0].mxu0 %v5631
    %v5724 = vpop.f32.mrb[0].mxu0
    %v5725 = vadd.f32 %v5613, %v5724
    %v5726 = vpop.f32.mrb[0].mxu0
    %5727 = vdwg.mxu0
    %v5728 = vmul.f32 %v5700, %v5700
    %v5729 = vmul.f32 %v5705, %v5705
    %v5730 = vmul.f32 %v5710, %v5710
    %v5731 = vmul.f32 %v5715, %v5715
    %v5732 = vmul.f32 %v5720, %v5720
    %v5733 = vmul.f32 %v5725, %v5725
    %v5734 = vmul.f32 %v5700, %v5728
    %v5735 = vmul.f32 %v5705, %v5729
    %v5736 = vmul.f32 %v5710, %v5730
    %v5737 = vmul.f32 %v5715, %v5731
    %v5738 = vmul.f32 %v5720, %v5732
    %v5739 = vmul.f32 %v5725, %v5733
    %v5740 = vmul.f32 %v5734, 0.044715
    %v5741 = vmul.f32 %v5735, 0.044715
    %v5742 = vmul.f32 %v5736, 0.044715
    %v5743 = vmul.f32 %v5737, 0.044715
    %v5744 = vmul.f32 %v5738, 0.044715
    %v5745 = vmul.f32 %v5739, 0.044715
    %v5746 = vadd.f32 %v5700, %v5740
    %v5747 = vadd.f32 %v5705, %v5741
    %v5748 = vadd.f32 %v5710, %v5742
    %v5749 = vadd.f32 %v5715, %v5743
    %v5750 = vadd.f32 %v5720, %v5744
    %v5751 = vadd.f32 %v5725, %v5745
    %v5752 = vmul.f32 %v5746, 0.7978846
    %v5753 = vmul.f32 %v5747, 0.7978846
    %v5754 = vmul.f32 %v5748, 0.7978846
    %v5755 = vmul.f32 %v5749, 0.7978846
    %v5756 = vmul.f32 %v5750, 0.7978846
    %v5757 = vmul.f32 %v5751, 0.7978846
    %v5758 = vtanh.pop %v5752
    %v5759 = vtanh.pop %v5753
    %v5760 = vtanh.pop %v5754
    %v5761 = vtanh.pop %v5755
    %v5762 = vtanh.pop %v5756
    %v5763 = vtanh.pop %v5757
    %v5764 = vadd.f32 %v5758, 1.0
    %v5765 = vadd.f32 %v5759, 1.0
    %v5766 = vadd.f32 %v5760, 1.0
    %v5767 = vadd.f32 %v5761, 1.0
    %v5768 = vadd.f32 %v5762, 1.0
    %v5769 = vadd.f32 %v5763, 1.0
    %v5770 = vmul.f32 %v5764, 0.5
    %v5771 = vmul.f32 %v5765, 0.5
    %v5772 = vmul.f32 %v5766, 0.5
    %v5773 = vmul.f32 %v5767, 0.5
    %v5774 = vmul.f32 %v5768, 0.5
    %v5775 = vmul.f32 %v5769, 0.5
    %v5776 = vmul.f32 %v5700, %v5770
    %v5777 = vmul.f32 %v5705, %v5771
    %v5778 = vmul.f32 %v5710, %v5772
    %v5779 = vmul.f32 %v5715, %v5773
    %v5780 = vmul.f32 %v5720, %v5774
    %v5781 = vmul.f32 %v5725, %v5775
    %s5782 = scalar_lea.vmem %s51, 128
    %v5783 = vld [vmem:[%s5782] sm:$0xff]
    %v5784 = vld [vmem:[%s5782 + $0x8] sm:$0xff]
    %v5785 = vld [vmem:[%s5782 + $0x10] sm:$0xff]
    %v5786 = vld [vmem:[%s5782 + $0x18] sm:$0xff]
    %v5787 = vld [vmem:[%s5782 + $0x20] sm:$0xff]
    %v5788 = vld [vmem:[%s5782 + $0x28] sm:$0xff]
    %v5789 = vld [vmem:[%s5782 + $0x30] sm:$0xff]
    %v5790 = vld [vmem:[%s5782 + $0x38] sm:$0xff]
    %v5791 = vld [vmem:[%s5782 + $0x40] sm:$0xff]
    %v5792 = vld [vmem:[%s5782 + $0x48] sm:$0xff]
    %v5793 = vld [vmem:[%s5782 + $0x50] sm:$0xff]
    %v5794 = vld [vmem:[%s5782 + $0x58] sm:$0xff]
    %v5795 = vld [vmem:[%s5782 + $0x60] sm:$0xff]
    %v5796 = vld [vmem:[%s5782 + $0x68] sm:$0xff]
    %v5797 = vld [vmem:[%s5782 + $0x70] sm:$0xff]
    %v5798 = vld [vmem:[%s5782 + $0x78] sm:$0xff]
    %5799 = vmatprep.subr.mxu0 0.0
    %5800 = vmatpush1.msra.mxu0 %v5783
    %5801 = vmatprep.subr.mxu0 0.0
    %5802 = vmatpush1.msra.mxu0 %v5784
    %5803 = vmatprep.subr.mxu0 0.0
    %5804 = vmatpush1.msra.mxu0 %v5785
    %5805 = vmatprep.subr.mxu0 0.0
    %5806 = vmatpush1.msra.mxu0 %v5786
    %5807 = vmatprep.subr.mxu0 0.0
    %5808 = vmatpush1.msra.mxu0 %v5787
    %5809 = vmatprep.subr.mxu0 0.0
    %5810 = vmatpush1.msra.mxu0 %v5788
    %5811 = vmatprep.subr.mxu0 0.0
    %5812 = vmatpush1.msra.mxu0 %v5789
    %5813 = vmatprep.subr.mxu0 0.0
    %5814 = vmatpush1.msra.mxu0 %v5790
    %5815 = vmatprep.subr.mxu0 0.0
    %5816 = vmatpush1.msra.mxu0 %v5791
    %5817 = vmatprep.subr.mxu0 0.0
    %5818 = vmatpush1.msra.mxu0 %v5792
    %5819 = vmatprep.subr.mxu0 0.0
    %5820 = vmatpush1.msra.mxu0 %v5793
    %5821 = vmatprep.subr.mxu0 0.0
    %5822 = vmatpush1.msra.mxu0 %v5794
    %5823 = vmatprep.subr.mxu0 0.0
    %5824 = vmatpush1.msra.mxu0 %v5795
    %5825 = vmatprep.subr.mxu0 0.0
    %5826 = vmatpush1.msra.mxu0 %v5796
    %5827 = vmatprep.subr.mxu0 0.0
    %5828 = vmatpush1.msra.mxu0 %v5797
    %5829 = vmatprep.subr.mxu0 0.0
    %5830 = vmatpush1.msra.mxu0 %v5798
    %5831 = vmatprep.subr.mxu0 0.0
    %5832 = vmatpush1.msra.mxu0 0.0
    %5833 = vmatprep.subr.mxu0 0.0
    %5834 = vmatpush1.msra.mxu0 0.0
    %5835 = vmatprep.subr.mxu0 0.0
    %5836 = vmatpush1.msra.mxu0 0.0
    %5837 = vmatprep.subr.mxu0 0.0
    %5838 = vmatpush1.msra.mxu0 0.0
    %5839 = vmatprep.subr.mxu0 0.0
    %5840 = vmatpush1.msra.mxu0 0.0
    %5841 = vmatprep.subr.mxu0 0.0
    %5842 = vmatpush1.msra.mxu0 0.0
    %5843 = vmatprep.subr.mxu0 0.0
    %5844 = vmatpush1.msra.mxu0 0.0
    %5845 = vmatprep.subr.mxu0 0.0
    %5846 = vmatpush1.msra.mxu0 0.0
    %5847 = vmatprep.subr.mxu0 0.0
    %5848 = vmatpush1.msra.mxu0 0.0
    %5849 = vmatprep.subr.mxu0 0.0
    %5850 = vmatpush1.msra.mxu0 0.0
    %5851 = vmatprep.subr.mxu0 0.0
    %5852 = vmatpush1.msra.mxu0 0.0
    %5853 = vmatprep.subr.mxu0 0.0
    %5854 = vmatpush1.msra.mxu0 0.0
    %5855 = vmatprep.subr.mxu0 0.0
    %5856 = vmatpush1.msra.mxu0 0.0
    %5857 = vmatprep.subr.mxu0 0.0
    %5858 = vmatpush1.msra.mxu0 0.0
    %5859 = vmatprep.subr.mxu0 0.0
    %5860 = vmatpush1.msra.mxu0 0.0
    %5861 = vmatprep.subr.mxu0 0.0
    %5862 = vmatpush1.msra.mxu0 0.0
    %5863 = vmatprep.mubr.f32.mxu0 0.0
    %5864 = vmatmul.mubr.f32.gmra.mrb[0].mxu0 %v5776
    %v5865 = vpop.f32.mrb[0].mxu0
    %v5866 = vadd.f32 0.0, %v5865
    %v5867 = vpop.f32.mrb[0].mxu0
    %5868 = vmatprep.mubr.f32.mxu0 0.0
    %5869 = vmatmul.mubr.f32.gmra.mrb[0].mxu0 %v5777
    %v5870 = vpop.f32.mrb[0].mxu0
    %v5871 = vadd.f32 0.0, %v5870
    %v5872 = vpop.f32.mrb[0].mxu0
    %5873 = vmatprep.mubr.f32.mxu0 0.0
    %5874 = vmatmul.mubr.f32.gmra.mrb[0].mxu0 %v5778
    %v5875 = vpop.f32.mrb[0].mxu0
    %v5876 = vadd.f32 0.0, %v5875
    %v5877 = vpop.f32.mrb[0].mxu0
    %5878 = vmatprep.mubr.f32.mxu0 0.0
    %5879 = vmatmul.mubr.f32.gmra.mrb[0].mxu0 %v5779
    %v5880 = vpop.f32.mrb[0].mxu0
    %v5881 = vadd.f32 0.0, %v5880
    %v5882 = vpop.f32.mrb[0].mxu0
    %5883 = vmatprep.mubr.f32.mxu0 0.0
    %5884 = vmatmul.mubr.f32.gmra.mrb[0].mxu0 %v5780
    %v5885 = vpop.f32.mrb[0].mxu0
    %v5886 = vadd.f32 0.0, %v5885
    %v5887 = vpop.f32.mrb[0].mxu0
    %5888 = vmatprep.mubr.f32.mxu0 0.0
    %5889 = vmatmul.mubr.f32.gmra.mrb[0].mxu0 %v5781
    %v5890 = vpop.f32.mrb[0].mxu0
    %v5891 = vadd.f32 0.0, %v5890
    %v5892 = vpop.f32.mrb[0].mxu0
    %5893 = vdwg.mxu0
    %v5894 = vadd.f32 %v5490, %v5866
    %v5895 = vadd.f32 %v5491, %v5871
    %v5896 = vadd.f32 %v5492, %v5876
    %v5897 = vadd.f32 %v5493, %v5881
    %v5898 = vadd.f32 %v5494, %v5886
    %v5899 = vadd.f32 %v5495, %v5891
    %s5900 = scalar_lea.vmem %s53, 1
    %v5901 = vld [vmem:[%s5900] sm:$0x1]
    %v5903 = vlaneseq
    %v5904 = vshrl.u32 %v5903, 7
    %v5905 = vsub.s32 0, %v5904
    %v5906 = vrot.slane %v5901, %v5905
    %v5908 = vadd.f32 %v5894, %v5906
    %v5909 = vadd.f32 %v5895, %v5906
    %v5910 = vadd.f32 %v5896, %v5906
    %v5911 = vadd.f32 %v5897, %v5906
    %v5912 = vadd.f32 %v5898, %v5906
    %v5913 = vadd.f32 %v5899, %v5906
    %v5914 = vld [vmem:[%s55] sm:$0x1]
    %v5915 = vld [vmem:[%s57] sm:$0x1]
    %v5916 = vsel %vm246, %v5908, 0.0
    %5917 = vadd.xlane.f32.xlu0 %v5916
    %v5918 = vpop.xlane.xlu0 %5917
    %v5919 = vsel %vm246, %v5909, 0.0
    %5920 = vadd.xlane.f32.xlu0 %v5919
    %v5921 = vpop.xlane.xlu0 %5920
    %v5922 = vsel %vm246, %v5910, 0.0
    %5923 = vadd.xlane.f32.xlu0 %v5922
    %v5924 = vpop.xlane.xlu0 %5923
    %v5925 = vsel %vm246, %v5911, 0.0
    %5926 = vadd.xlane.f32.xlu0 %v5925
    %v5927 = vpop.xlane.xlu0 %5926
    %v5928 = vsel %vm246, %v5912, 0.0
    %5929 = vadd.xlane.f32.xlu0 %v5928
    %v5930 = vpop.xlane.xlu0 %5929
    %v5931 = vsel %vm246, %v5913, 0.0
    %5932 = vadd.xlane.f32.xlu0 %v5931
    %v5933 = vpop.xlane.xlu0 %5932
    %v5934 = vmul.f32 %v5918, %v848
    %v5935 = vmul.f32 %v5921, %v848
    %v5936 = vmul.f32 %v5924, %v848
    %v5937 = vmul.f32 %v5927, %v848
    %v5938 = vmul.f32 %v5930, %v848
    %v5939 = vmul.f32 %v5933, %v848
    %v5940 = vsub.f32 %v5908, %v5934
    %v5941 = vsub.f32 %v5909, %v5935
    %v5942 = vsub.f32 %v5910, %v5936
    %v5943 = vsub.f32 %v5911, %v5937
    %v5944 = vsub.f32 %v5912, %v5938
    %v5945 = vsub.f32 %v5913, %v5939
    %v5946 = vmul.f32 %v5940, %v5940
    %v5947 = vmul.f32 %v5941, %v5941
    %v5948 = vmul.f32 %v5942, %v5942
    %v5949 = vmul.f32 %v5943, %v5943
    %v5950 = vmul.f32 %v5944, %v5944
    %v5951 = vmul.f32 %v5945, %v5945
    %v5952 = vsel %vm246, %v5946, 0.0
    %5953 = vadd.xlane.f32.xlu0 %v5952
    %v5954 = vpop.xlane.xlu0 %5953
    %v5955 = vsel %vm246, %v5947, 0.0
    %5956 = vadd.xlane.f32.xlu0 %v5955
    %v5957 = vpop.xlane.xlu0 %5956
    %v5958 = vsel %vm246, %v5948, 0.0
    %5959 = vadd.xlane.f32.xlu0 %v5958
    %v5960 = vpop.xlane.xlu0 %5959
    %v5961 = vsel %vm246, %v5949, 0.0
    %5962 = vadd.xlane.f32.xlu0 %v5961
    %v5963 = vpop.xlane.xlu0 %5962
    %v5964 = vsel %vm246, %v5950, 0.0
    %5965 = vadd.xlane.f32.xlu0 %v5964
    %v5966 = vpop.xlane.xlu0 %5965
    %v5967 = vsel %vm246, %v5951, 0.0
    %5968 = vadd.xlane.f32.xlu0 %v5967
    %v5969 = vpop.xlane.xlu0 %5968
    %v5970 = vmul.f32 %v5954, %v848
    %v5971 = vmul.f32 %v5957, %v848
    %v5972 = vmul.f32 %v5960, %v848
    %v5973 = vmul.f32 %v5963, %v848
    %v5974 = vmul.f32 %v5966, %v848
    %v5975 = vmul.f32 %v5969, %v848
    %v5976 = vadd.f32 %v5970, 0.003
    %v5977 = vadd.f32 %v5971, 0.003
    %v5978 = vadd.f32 %v5972, 0.003
    %v5979 = vadd.f32 %v5973, 0.003
    %v5980 = vadd.f32 %v5974, 0.003
    %v5981 = vadd.f32 %v5975, 0.003
    %v5982 = vrsqrt.pop %v5976
    %v5983 = vrsqrt.pop %v5977
    %v5984 = vrsqrt.pop %v5978
    %v5985 = vrsqrt.pop %v5979
    %v5986 = vrsqrt.pop %v5980
    %v5987 = vrsqrt.pop %v5981
    %v5988 = vmul.f32 %v5940, %v5982
    %v5989 = vmul.f32 %v5941, %v5983
    %v5990 = vmul.f32 %v5942, %v5984
    %v5991 = vmul.f32 %v5943, %v5985
    %v5992 = vmul.f32 %v5944, %v5986
    %v5993 = vmul.f32 %v5945, %v5987
    %v5995 = vlaneseq
    %v5996 = vshrl.u32 %v5995, 7
    %v5997 = vsub.s32 0, %v5996
    %v5998 = vrot.slane %v5914, %v5997
    %v6000 = vmul.f32 %v5988, %v5998
    %v6001 = vmul.f32 %v5989, %v5998
    %v6002 = vmul.f32 %v5990, %v5998
    %v6003 = vmul.f32 %v5991, %v5998
    %v6004 = vmul.f32 %v5992, %v5998
    %v6005 = vmul.f32 %v5993, %v5998
    %v6007 = vlaneseq
    %v6008 = vshrl.u32 %v6007, 7
    %v6009 = vsub.s32 0, %v6008
    %v6010 = vrot.slane %v5915, %v6009
    %v6012 = vadd.f32 %v6000, %v6010
    %v6013 = vadd.f32 %v6001, %v6010
    %v6014 = vadd.f32 %v6002, %v6010
    %v6015 = vadd.f32 %v6003, %v6010
    %v6016 = vadd.f32 %v6004, %v6010
    %v6017 = vadd.f32 %v6005, %v6010
    %v6018 = vld [vmem:[%s27] sm:$0xff]
    %v6019 = vld [vmem:[%s27 + $0x8] sm:$0xff]
    %v6021 = vsel %vm1218, %v6018, 0
    %v6024 = vsel %vm1218, %v6019, 0
    %6026 = vmatprep.subr.mxu0 0.0
    %6027 = vmatpush1.msra.mxu0 %v6012
    %6028 = vmatprep.subr.mxu0 0.0
    %6029 = vmatpush1.msra.mxu0 %v6013
    %6030 = vmatprep.subr.mxu0 0.0
    %6031 = vmatpush1.msra.mxu0 %v6014
    %6032 = vmatprep.subr.mxu0 0.0
    %6033 = vmatpush1.msra.mxu0 %v6015
    %6034 = vmatprep.subr.mxu0 0.0
    %6035 = vmatpush1.msra.mxu0 %v6016
    %6036 = vmatprep.subr.mxu0 0.0
    %6037 = vmatpush1.msra.mxu0 %v6017
    %6038 = vmatprep.subr.mxu0 0.0
    %6039 = vmatpush1.msra.mxu0 0.0
    %6040 = vmatprep.subr.mxu0 0.0
    %6041 = vmatpush1.msra.mxu0 0.0
    %6042 = vmatprep.subr.mxu0 0.0
    %6043 = vmatpush1.msra.mxu0 0.0
    %6044 = vmatprep.subr.mxu0 0.0
    %6045 = vmatpush1.msra.mxu0 0.0
    %6046 = vmatprep.subr.mxu0 0.0
    %6047 = vmatpush1.msra.mxu0 0.0
    %6048 = vmatprep.subr.mxu0 0.0
    %6049 = vmatpush1.msra.mxu0 0.0
    %6050 = vmatprep.subr.mxu0 0.0
    %6051 = vmatpush1.msra.mxu0 0.0
    %6052 = vmatprep.subr.mxu0 0.0
    %6053 = vmatpush1.msra.mxu0 0.0
    %6054 = vmatprep.subr.mxu0 0.0
    %6055 = vmatpush1.msra.mxu0 0.0
    %6056 = vmatprep.subr.mxu0 0.0
    %6057 = vmatpush1.msra.mxu0 0.0
    %6058 = vmatprep.subr.mxu0 0.0
    %6059 = vmatpush1.msra.mxu0 0.0
    %6060 = vmatprep.subr.mxu0 0.0
    %6061 = vmatpush1.msra.mxu0 0.0
    %6062 = vmatprep.subr.mxu0 0.0
    %6063 = vmatpush1.msra.mxu0 0.0
    %6064 = vmatprep.subr.mxu0 0.0
    %6065 = vmatpush1.msra.mxu0 0.0
    %6066 = vmatprep.subr.mxu0 0.0
    %6067 = vmatpush1.msra.mxu0 0.0
    %6068 = vmatprep.subr.mxu0 0.0
    %6069 = vmatpush1.msra.mxu0 0.0
    %6070 = vmatprep.subr.mxu0 0.0
    %6071 = vmatpush1.msra.mxu0 0.0
    %6072 = vmatprep.subr.mxu0 0.0
    %6073 = vmatpush1.msra.mxu0 0.0
    %6074 = vmatprep.subr.mxu0 0.0
    %6075 = vmatpush1.msra.mxu0 0.0
    %6076 = vmatprep.subr.mxu0 0.0
    %6077 = vmatpush1.msra.mxu0 0.0
    %6078 = vmatprep.subr.mxu0 0.0
    %6079 = vmatpush1.msra.mxu0 0.0
    %6080 = vmatprep.subr.mxu0 0.0
    %6081 = vmatpush1.msra.mxu0 0.0
    %6082 = vmatprep.subr.mxu0 0.0
    %6083 = vmatpush1.msra.mxu0 0.0
    %6084 = vmatprep.subr.mxu0 0.0
    %6085 = vmatpush1.msra.mxu0 0.0
    %6086 = vmatprep.subr.mxu0 0.0
    %6087 = vmatpush1.msra.mxu0 0.0
    %6088 = vmatprep.subr.mxu0 0.0
    %6089 = vmatpush1.msra.mxu0 0.0
    %6090 = vmatprep.mubr.f32.mxu0 0.0
    %6091 = vmatmul.mubr.f32.gmra.mrb[0].mxu0 %v6021
    %v6092 = vpop.f32.mrb[0].mxu0
    %v6093 = vadd.f32 0.0, %v6092
    %v6094 = vpop.f32.mrb[0].mxu0
    %6095 = vmatprep.mubr.f32.mxu0 0.0
    %6096 = vmatmul.mubr.f32.gmra.mrb[0].mxu0 %v6024
    %v6097 = vpop.f32.mrb[0].mxu0
    %v6098 = vadd.f32 0.0, %v6097
    %v6099 = vpop.f32.mrb[0].mxu0
    %6100 = vdwg.mxu0
    %v6101 = vld [vmem:[%s59] sm:$0xff]
    %v6102 = vld [vmem:[%s59 + $0x8] sm:$0xff]
    %v6103 = vld [vmem:[%s59 + $0x10] sm:$0xff]
    %v6104 = vld [vmem:[%s59 + $0x18] sm:$0xff]
    %v6106 = vsel %vm246, %v6093, 0
    %v6109 = vsel %vm246, %v6098, 0
    %6111 = vmatprep.subr.mxu0 0.0
    %6112 = vmatpush1.msra.mxu0 %v6101
    %6113 = vmatprep.subr.mxu0 0.0
    %6114 = vmatpush1.msra.mxu0 %v6102
    %6115 = vmatprep.subr.mxu0 0.0
    %6116 = vmatpush1.msra.mxu0 %v6103
    %6117 = vmatprep.subr.mxu0 0.0
    %6118 = vmatpush1.msra.mxu0 %v6104
    %6119 = vmatprep.subr.mxu0 0.0
    %6120 = vmatpush1.msra.mxu0 0.0
    %6121 = vmatprep.subr.mxu0 0.0
    %6122 = vmatpush1.msra.mxu0 0.0
    %6123 = vmatprep.subr.mxu0 0.0
    %6124 = vmatpush1.msra.mxu0 0.0
    %6125 = vmatprep.subr.mxu0 0.0
    %6126 = vmatpush1.msra.mxu0 0.0
    %6127 = vmatprep.subr.mxu0 0.0
    %6128 = vmatpush1.msra.mxu0 0.0
    %6129 = vmatprep.subr.mxu0 0.0
    %6130 = vmatpush1.msra.mxu0 0.0
    %6131 = vmatprep.subr.mxu0 0.0
    %6132 = vmatpush1.msra.mxu0 0.0
    %6133 = vmatprep.subr.mxu0 0.0
    %6134 = vmatpush1.msra.mxu0 0.0
    %6135 = vmatprep.subr.mxu0 0.0
    %6136 = vmatpush1.msra.mxu0 0.0
    %6137 = vmatprep.subr.mxu0 0.0
    %6138 = vmatpush1.msra.mxu0 0.0
    %6139 = vmatprep.subr.mxu0 0.0
    %6140 = vmatpush1.msra.mxu0 0.0
    %6141 = vmatprep.subr.mxu0 0.0
    %6142 = vmatpush1.msra.mxu0 0.0
    %6143 = vmatprep.subr.mxu0 0.0
    %6144 = vmatpush1.msra.mxu0 0.0
    %6145 = vmatprep.subr.mxu0 0.0
    %6146 = vmatpush1.msra.mxu0 0.0
    %6147 = vmatprep.subr.mxu0 0.0
    %6148 = vmatpush1.msra.mxu0 0.0
    %6149 = vmatprep.subr.mxu0 0.0
    %6150 = vmatpush1.msra.mxu0 0.0
    %6151 = vmatprep.subr.mxu0 0.0
    %6152 = vmatpush1.msra.mxu0 0.0
    %6153 = vmatprep.subr.mxu0 0.0
    %6154 = vmatpush1.msra.mxu0 0.0
    %6155 = vmatprep.subr.mxu0 0.0
    %6156 = vmatpush1.msra.mxu0 0.0
    %6157 = vmatprep.subr.mxu0 0.0
    %6158 = vmatpush1.msra.mxu0 0.0
    %6159 = vmatprep.subr.mxu0 0.0
    %6160 = vmatpush1.msra.mxu0 0.0
    %6161 = vmatprep.subr.mxu0 0.0
    %6162 = vmatpush1.msra.mxu0 0.0
    %6163 = vmatprep.subr.mxu0 0.0
    %6164 = vmatpush1.msra.mxu0 0.0
    %6165 = vmatprep.subr.mxu0 0.0
    %6166 = vmatpush1.msra.mxu0 0.0
    %6167 = vmatprep.subr.mxu0 0.0
    %6168 = vmatpush1.msra.mxu0 0.0
    %6169 = vmatprep.subr.mxu0 0.0
    %6170 = vmatpush1.msra.mxu0 0.0
    %6171 = vmatprep.subr.mxu0 0.0
    %6172 = vmatpush1.msra.mxu0 0.0
    %6173 = vmatprep.subr.mxu0 0.0
    %6174 = vmatpush1.msra.mxu0 0.0
    %6175 = vmatprep.mubr.f32.mxu0 0.0
    %6176 = vmatmul.mubr.f32.gmra.mrb[0].mxu0 %v6106
    %v6177 = vpop.f32.mrb[0].mxu0
    %v6178 = vadd.f32 0.0, %v6177
    %v6179 = vpop.f32.mrb[0].mxu0
    %6180 = vmatprep.mubr.f32.mxu0 0.0
    %6181 = vmatmul.mubr.f32.gmra.mrb[0].mxu0 %v6109
    %v6182 = vpop.f32.mrb[0].mxu0
    %v6183 = vadd.f32 0.0, %v6182
    %v6184 = vpop.f32.mrb[0].mxu0
    %6185 = vdwg.mxu0
    %vm6186 = vcmp.lt.s32.totalorder %v229, 6
    %v6187 = vsel %vm6186, %v6178, -1e+30
    %v6188 = vsel %vm6186, %v6183, -1e+30
    %6189 = vmax.xlane.f32.xlu0 %v6187
    %v6190 = vpop.xlane.xlu0 %6189
    %6191 = vmax.xlane.f32.xlu0 %v6188
    %v6192 = vpop.xlane.xlu0 %6191
    %v6193 = vsub.f32 %v6187, %v6190
    %v6194 = vsub.f32 %v6188, %v6192
    %v6195 = vmul.f32 %v6193, 1.442695
    %v6196 = vpow.pop %v6195
    %v6197 = vmul.f32 %v6194, 1.442695
    %v6198 = vpow.pop %v6197
    %6199 = vadd.xlane.f32.xlu0 %v6196
    %v6200 = vpop.xlane.xlu0 %6199
    %6201 = vadd.xlane.f32.xlu0 %v6198
    %v6202 = vpop.xlane.xlu0 %6201
    %v6203 = vrcp.pop %v6200
    %v6204 = vmul.f32 %v6196, %v6203
    %v6205 = vrcp.pop %v6202
    %v6206 = vmul.f32 %v6198, %v6205
    %6207 = vst [vmem:[#allocation2] sm:$0xff] %v6204
    %6208 = vst [vmem:[#allocation2 + $0x8] sm:$0xff] %v6206
    %6209 = vst [vmem:[#allocation4] sm:$0xff] %v6178
    %6210 = vst [vmem:[#allocation4 + $0x8] sm:$0xff] %v6183
    // Predicated region
    $region122: #{tpu_custom_call.1} parent=1 // pred_check
      _
    $region123: #{tpu_custom_call.1} parent=1 // pred_check_branch
      %6212 = sbr.rel (0) target = $region125
    $region124: #{tpu_custom_call.1} parent=1 // pred_region
      %s6214 = ssub.s32 256, 256
      %6215 = vsyncadd [#allocation3], %s6214
      %s6216 = sshll.u32 [#allocation2], 4
      %s6217 = int_to_ptr.vmem [resolvable:$true] %s6216
      %6222 = dma.vmem_to_hbm [thread:$0]  %s6217, 256, %s61, [#allocation3], 128, 128, 8
    $region125: #{tpu_custom_call.1} parent=1 // pred_fallthru
      _
    // Predicated region
    $region126: #{tpu_custom_call.1} parent=1 // pred_check
      _
    $region127: #{tpu_custom_call.1} parent=1 // pred_check_branch
      %6224 = sbr.rel (0) target = $region129
    $region128: #{tpu_custom_call.1} parent=1 // pred_region
      %s6226 = ssub.s32 256, 256
      %6227 = vsyncadd [#allocation5], %s6226
      %s6228 = sshll.u32 [#allocation4], 4
      %s6229 = int_to_ptr.vmem [resolvable:$true] %s6228
      %6234 = dma.vmem_to_hbm [thread:$0]  %s6229, 256, %s63, [#allocation5], 128, 128, 8
    $region129: #{tpu_custom_call.1} parent=1 // pred_fallthru
      _
    // Predicated region
    $region130: #{tpu_custom_call.1} parent=1 // pred_check
      _
    $region131: #{tpu_custom_call.1} parent=1 // pred_check_branch
      %6236 = sbr.rel (0) target = $region133
    $region132: #{tpu_custom_call.1} parent=1 // pred_region
      %6237 = dma.done [#allocation3], 256
    $region133: #{tpu_custom_call.1} parent=1 // pred_fallthru
      _
    // Predicated region
    $region134: #{tpu_custom_call.1} parent=1 // pred_check
      _
    $region135: #{tpu_custom_call.1} parent=1 // pred_check_branch
      %6239 = sbr.rel (0) target = $region137
    $region136: #{tpu_custom_call.1} parent=1 // pred_region
      %6240 = dma.done [#allocation5], 256
    $region137: #{tpu_custom_call.1} parent=1 // pred_fallthru
      _
    %6241 = vsyncpa [#allocation3], 1
    %6242 = vsyncpa [#allocation5], 1

</llo_original>
